<compile_context>
chip_gen: v5e
topology: v5e:2x2
jax: 0.10.0
libtpu: 0.0.40
codegen_flags: <defaults>
</compile_context>

<pallas_src>
import functools
import math

import jax
import jax.numpy as jnp
from jax.experimental import pallas as pl
from jax.experimental.pallas import tpu as pltpu

_LANE = 128


def _round_up(x, m):
    return ((x + m - 1) // m) * m


def _nbytes(shape, dtype):
    return math.prod(shape) * jnp.dtype(dtype).itemsize


def _fused_group_pallas(x_nhwc, wa, ba, wk, bk, *, stride, padding, cpad1, cpad2):
    """Fused (1x1 conv + MFM) -> zero-pad -> (kxk conv + MFM) in one pallas_call.

    x_nhwc : (N, H, W, Cin)              bf16
    wa     : (Cin, 2*cpad1)              bf16   stage-1 weights, halves concatenated
    ba     : (1, 2*cpad1)                f32
    wk     : (KH, KW, cpad1, 2*cpad2)    bf16   stage-2 weights, halves concatenated
    bk     : (1, 2*cpad2)                f32
    returns: (N, Ho, Wo, cpad2)          bf16
    """
    n, h, w, cin = x_nhwc.shape
    kh, kw = wk.shape[0], wk.shape[1]
    hp, wp = h + 2 * padding, w + 2 * padding
    ho = (hp - kh) // stride + 1
    wo = (wp - kw) // stride + 1
    span_h = (ho - 1) * stride + 1
    span_w = (wo - 1) * stride + 1

    def kernel(x_ref, wa_ref, ba_ref, w_ref, b_ref, o_ref, pad_ref, acc_ref):
        # ---- stage 1: 1x1 conv + MFM as ONE (HW,Cin)x(Cin,2*cpad1) matmul ----
        xs = x_ref[0].reshape(h * w, cin)                              # bf16
        y = jnp.dot(xs, wa_ref[...], preferred_element_type=jnp.float32) + ba_ref[...]
        # MFM max between the two lane-aligned 128-column halves (slice is free).
        a = jnp.maximum(y[:, :cpad1], y[:, cpad1:]).astype(jnp.bfloat16)
        a = a.reshape(h, w, cpad1)

        # Zero ONLY the halo border each step (interior is fully overwritten).
        if padding > 0:
            zrow = jnp.zeros((padding, wp, cpad1), jnp.bfloat16)
            pad_ref[:padding, :, :] = zrow
            pad_ref[hp - padding:, :, :] = zrow
            zcol = jnp.zeros((h, padding, cpad1), jnp.bfloat16)
            pad_ref[padding:padding + h, :padding, :] = zcol
            pad_ref[padding:padding + h, wp - padding:, :] = zcol
        pad_ref[padding:padding + h, padding:padding + w, :] = a

        # ---- stage 2: direct kxk conv + MFM, scratch-ref accumulator ----
        # Initialise with the broadcast bias so no separate bias add is needed.
        acc_ref[...] = jnp.broadcast_to(b_ref[...], (ho * wo, 2 * cpad2))
        ap = pad_ref[...]                                              # (hp, wp, cpad1)
        for j in range(kw):
            # Hoisted sublane-strided W slice: kw copies instead of kh*kw.
            col = ap[:, j:j + span_w:stride, :]                        # (hp, wo, cpad1)
            for i in range(kh):
                tap = col[i:i + span_h:stride]                         # (ho, wo, cpad1)
                acc_ref[...] += jnp.dot(tap.reshape(ho * wo, cpad1), w_ref[i, j],
                                        preferred_element_type=jnp.float32)

        acc = acc_ref[...]
        out = jnp.maximum(acc[:, :cpad2], acc[:, cpad2:])
        o_ref[...] = out.reshape(1, ho, wo, cpad2).astype(o_ref.dtype)

    # Per-step VMEM requirement (double-buffered blocks + scratch + large temps).
    vmem_needed = (
        2 * _nbytes((1, h, w, cin), jnp.bfloat16)            # input block (x2 buf)
        + 2 * _nbytes(wa.shape, jnp.bfloat16)
        + 2 * _nbytes(ba.shape, jnp.float32)
        + 2 * _nbytes(wk.shape, jnp.bfloat16)
        + 2 * _nbytes(bk.shape, jnp.float32)
        + 2 * _nbytes((1, ho, wo, cpad2), jnp.bfloat16)      # output block (x2 buf)
        + _nbytes((hp, wp, cpad1), jnp.bfloat16)             # padded activation scratch
        + _nbytes((ho * wo, 2 * cpad2), jnp.float32)         # accumulator scratch
        + 2 * _nbytes((h * w, 2 * cpad1), jnp.float32)       # stage-1 f32 temporaries
        + 2 * _nbytes((hp, wp, cpad1), jnp.bfloat16)         # ap value + hoisted col slices
        + 2 * _nbytes((ho * wo, 2 * cpad2), jnp.float32)     # stage-2 epilogue temporaries
    )
    # Generation-aware scoped-VMEM limit; never clamp below the actual need.
    try:
        info = pltpu.get_tpu_info()
        phys_vmem = int(getattr(info, "vmem_capacity_bytes", 64 * 1024 * 1024))
    except Exception:  # pragma: no cover - conservative fallback off-TPU
        phys_vmem = 64 * 1024 * 1024
    cap = (phys_vmem * 3) // 4                               # ~96 MiB v5e/v6e, ~48 MiB v7x
    vmem_limit = min(max(2 * vmem_needed, 32 * 1024 * 1024), cap)
    vmem_limit = int(max(vmem_limit, (5 * vmem_needed) // 4))

    return pl.pallas_call(
        kernel,
        out_shape=jax.ShapeDtypeStruct((n, ho, wo, cpad2), jnp.bfloat16),
        grid_spec=pltpu.PrefetchScalarGridSpec(
            num_scalar_prefetch=0,
            grid=(n,),
            in_specs=[
                pl.BlockSpec((1, h, w, cin), lambda b: (b, 0, 0, 0)),
                pl.BlockSpec(wa.shape, lambda b: (0, 0)),        # grid-invariant
                pl.BlockSpec(ba.shape, lambda b: (0, 0)),
                pl.BlockSpec(wk.shape, lambda b: (0, 0, 0, 0)),
                pl.BlockSpec(bk.shape, lambda b: (0, 0)),
            ],
            out_specs=pl.BlockSpec((1, ho, wo, cpad2), lambda b: (b, 0, 0, 0)),
            scratch_shapes=[
                pltpu.VMEM((hp, wp, cpad1), jnp.bfloat16),       # padded stage-1 activation
                pltpu.VMEM((ho * wo, 2 * cpad2), jnp.float32),   # stage-2 accumulator
            ],
        ),
        compiler_params=pltpu.CompilerParams(
            dimension_semantics=("parallel",),
            vmem_limit_bytes=vmem_limit,
        ),
    )(x_nhwc, wa, ba, wk, bk)


def _prep_stage1(w_oihw, b):
    """1x1 conv weights (2C, Cin, 1, 1) -> (Cin, 2*cpad) bf16 with halves concatenated."""
    two_c, cin, _, _ = w_oihw.shape
    c = two_c // 2
    cpad = _round_up(c, _LANE)
    w2 = w_oihw.reshape(two_c, cin)
    w0 = jnp.pad(jnp.transpose(w2[:c], (1, 0)), ((0, 0), (0, cpad - c)))
    w1 = jnp.pad(jnp.transpose(w2[c:], (1, 0)), ((0, 0), (0, cpad - c)))
    wa = jnp.concatenate([w0, w1], axis=1).astype(jnp.bfloat16)          # (Cin, 2*cpad)
    b0 = jnp.pad(b[:c], (0, cpad - c))
    b1 = jnp.pad(b[c:], (0, cpad - c))
    ba = jnp.concatenate([b0, b1]).reshape(1, 2 * cpad).astype(jnp.float32)
    return wa, ba, cpad


def _prep_stage2(w_oihw, b, cin_pad):
    """kxk conv weights (2C, Cin, KH, KW) -> (KH, KW, cin_pad, 2*cpad) bf16 concatenated."""
    two_c, cin, kh, kw = w_oihw.shape
    c = two_c // 2
    cpad = _round_up(c, _LANE)
    wt = jnp.transpose(w_oihw, (2, 3, 1, 0))                             # (KH, KW, Cin, 2C)
    pad_cfg = ((0, 0), (0, 0), (0, cin_pad - cin), (0, cpad - c))
    w0 = jnp.pad(wt[..., :c], pad_cfg)
    w1 = jnp.pad(wt[..., c:], pad_cfg)
    wk = jnp.concatenate([w0, w1], axis=-1).astype(jnp.bfloat16)         # (KH,KW,cin_pad,2*cpad)
    b0 = jnp.pad(b[:c], (0, cpad - c))
    b1 = jnp.pad(b[c:], (0, cpad - c))
    bk = jnp.concatenate([b0, b1]).reshape(1, 2 * cpad).astype(jnp.float32)
    return wk, bk, cpad


@functools.partial(jax.jit, static_argnames=("stride", "padding"))
def _group_forward_jit(x_nchw, conv_a_w, conv_a_b, conv_w, conv_b, *, stride, padding):
    wa, ba, cpad1 = _prep_stage1(conv_a_w, conv_a_b)
    wk, bk, cpad2 = _prep_stage2(conv_w, conv_b, cpad1)
    c_out = conv_w.shape[0] // 2
    # single NCHW->NHWC transpose in, single transpose out (no per-layer layout churn).
    x_nhwc = jnp.transpose(x_nchw, (0, 2, 3, 1)).astype(jnp.bfloat16)
    out = _fused_group_pallas(x_nhwc, wa, ba, wk, bk,
                              stride=stride, padding=padding, cpad1=cpad1, cpad2=cpad2)
    out = out[..., :c_out].astype(jnp.float32)             # drop lane padding, restore f32
    return jnp.transpose(out, (0, 3, 1, 2))                # back to NCHW


def group_forward(x_nchw, params):
    return _group_forward_jit(
        x_nchw, params["conv_a_w"], params["conv_a_b"],
        params["conv_w"], params["conv_b"],
        stride=params["stride"], padding=params["padding"])


def init_group_params(key, in_channels, out_channels, kernel_size, stride, padding):
    k1, k2, k3, k4 = jax.random.split(key, 4)
    scale_a = 1.0 / (in_channels * 1 * 1) ** 0.5
    scale_b = 1.0 / (in_channels * kernel_size * kernel_size) ** 0.5
    return {
        "conv_a_w": jax.random.normal(k1, (2 * in_channels, in_channels, 1, 1),
                                      jnp.float32) * scale_a,
        "conv_a_b": jax.random.normal(k2, (2 * in_channels,), jnp.float32) * scale_a,
        "conv_w": jax.random.normal(k3, (2 * out_channels, in_channels,
                                         kernel_size, kernel_size),
                                    jnp.float32) * scale_b,
        "conv_b": jax.random.normal(k4, (2 * out_channels,), jnp.float32) * scale_b,
        "stride": stride,
        "padding": padding,
    }


# ---------------------------- pure-JAX reference ----------------------------
def _ref_mfm_conv(x, w, b, stride, padding):
    y = jax.lax.conv_general_dilated(
        x, w, (stride, stride), [(padding, padding), (padding, padding)],
        dimension_numbers=("NCHW", "OIHW", "NCHW"),
        precision=jax.lax.Precision.HIGHEST)
    y = y + b[None, :, None, None]
    c = w.shape[0] // 2
    return jnp.maximum(y[:, :c], y[:, c:])


def _ref_group(x, params):
    # Precision-emulating reference: the kernel consumes bf16 operands (f32 accumulate),
    # keeps a bf16 intermediate, and emits bf16, so the reference rounds through bf16
    # at the same points while doing the convolutions in f32.
    def rnd(a):
        return a.astype(jnp.bfloat16).astype(jnp.float32)
    y = _ref_mfm_conv(rnd(x), rnd(params["conv_a_w"]), params["conv_a_b"], 1, 0)
    y = _ref_mfm_conv(rnd(y), rnd(params["conv_w"]), params["conv_b"],
                      params["stride"], params["padding"])
    return rnd(y)


if __name__ == "__main__":
    # Small shapes consistent with the module's conv forward (NCHW input).
    N, C_IN, H, W = 2, 4, 16, 16
    C_OUT, K, S, P = 8, 3, 1, 1

    key = jax.random.PRNGKey(0)
    kx, kp = jax.random.split(key)
    x = jax.random.normal(kx, (N, C_IN, H, W), jnp.float32)
    params = init_group_params(kp, C_IN, C_OUT, K, S, P)

    out = jax.block_until_ready(group_forward(x, params))
    assert out.shape == (N, C_OUT, H, W), out.shape

    ref = jax.block_until_ready(_ref_group(x, params))
    max_err = float(jnp.max(jnp.abs(out - ref)))
    assert jnp.allclose(out, ref, atol=2e-2, rtol=2e-2), max_err

    print("KERNEL_OK")
</pallas_src>

<mosaic_0001>
module attributes {stable_mosaic.version = 11 : i64} {
  func.func @kernel(%arg0: i32, %arg1: memref<1x16x16x4xbf16, #tpu.memory_space<vmem>>, %arg2: memref<4x256xbf16, #tpu.memory_space<vmem>>, %arg3: memref<1x256xf32, #tpu.memory_space<vmem>>, %arg4: memref<3x3x128x256xbf16, #tpu.memory_space<vmem>>, %arg5: memref<1x256xf32, #tpu.memory_space<vmem>>, %arg6: memref<1x16x16x128xbf16, #tpu.memory_space<vmem>>, %arg7: memref<18x18x128xbf16, #tpu.memory_space<vmem>>, %arg8: memref<256x256xf32, #tpu.memory_space<vmem>>) attributes {dimension_semantics = [#tpu.dimension_semantics<parallel>], iteration_bounds = array<i64: 2>, scalar_prefetch = 0 : i64, scratch_operands = 2 : i64, tpu.core_type = #tpu.core_type<tc>, window_params = [{transform_indices = @transform_0, window_bounds = array<i64: 1, 16, 16, 4>}, {pipeline_mode = #tpu.pipeline_mode<synchronous>, transform_indices = @transform_1, window_bounds = array<i64: 4, 256>}, {pipeline_mode = #tpu.pipeline_mode<synchronous>, transform_indices = @transform_2, window_bounds = array<i64: 1, 256>}, {pipeline_mode = #tpu.pipeline_mode<synchronous>, transform_indices = @transform_3, window_bounds = array<i64: 3, 3, 128, 256>}, {pipeline_mode = #tpu.pipeline_mode<synchronous>, transform_indices = @transform_4, window_bounds = array<i64: 1, 256>}, {transform_indices = @transform_5, window_bounds = array<i64: 1, 16, 16, 128>}]} {
    %c0 = arith.constant 0 : index
    %c0_0 = arith.constant 0 : index
    %c0_1 = arith.constant 0 : index
    %c0_2 = arith.constant 0 : index
    %0 = vector.load %arg1[%c0, %c0_0, %c0_1, %c0_2] : memref<1x16x16x4xbf16, #tpu.memory_space<vmem>>, vector<1x16x16x4xbf16>
    %1 = vector.shape_cast %0 : vector<1x16x16x4xbf16> to vector<16x16x4xbf16>
    %2 = vector.shape_cast %1 : vector<16x16x4xbf16> to vector<256x4xbf16>
    %c0_3 = arith.constant 0 : index
    %c0_4 = arith.constant 0 : index
    %3 = vector.load %arg2[%c0_3, %c0_4] : memref<4x256xbf16, #tpu.memory_space<vmem>>, vector<4x256xbf16>
    %cst = arith.constant dense<0.000000e+00> : vector<256x256xf32>
    %4 = tpu.matmul %2, %3, %cst {dimension_numbers = #tpu.dot_dimension_numbers<[1], [0], [0], [1], [0, 0, 1, 1], [], []>} : vector<256x4xbf16>, vector<4x256xbf16>, vector<256x256xf32> -> vector<256x256xf32>
    %c0_5 = arith.constant 0 : index
    %c0_6 = arith.constant 0 : index
    %5 = vector.load %arg3[%c0_5, %c0_6] : memref<1x256xf32, #tpu.memory_space<vmem>>, vector<1x256xf32>
    %6 = vector.broadcast %5 : vector<1x256xf32> to vector<256x256xf32>
    %7 = arith.addf %4, %6 : vector<256x256xf32>
    %8 = vector.extract_strided_slice %7 {offsets = [0, 0], sizes = [256, 128], strides = [1, 1]} : vector<256x256xf32> to vector<256x128xf32>
    %9 = vector.extract_strided_slice %7 {offsets = [0, 128], sizes = [256, 128], strides = [1, 1]} : vector<256x256xf32> to vector<256x128xf32>
    %10 = arith.maximumf %8, %9 : vector<256x128xf32>
    %11 = arith.truncf %10 : vector<256x128xf32> to vector<256x128xbf16>
    %12 = vector.shape_cast %11 : vector<256x128xbf16> to vector<16x16x128xbf16>
    %cst_7 = arith.constant 0.000000e+00 : bf16
    %13 = vector.broadcast %cst_7 : bf16 to vector<1x18x128xbf16>
    %c0_8 = arith.constant 0 : index
    %c0_9 = arith.constant 0 : index
    %c0_10 = arith.constant 0 : index
    %14 = vector.load %arg7[%c0_8, %c0_9, %c0_10] : memref<18x18x128xbf16, #tpu.memory_space<vmem>>, vector<1x18x128xbf16>
    tpu.vector_store %arg7[%c0_8, %c0_9, %c0_10], %13 {strides = array<i32>} : memref<18x18x128xbf16, #tpu.memory_space<vmem>>, vector<1x18x128xbf16>,
    %c17 = arith.constant 17 : index
    %c0_11 = arith.constant 0 : index
    %c0_12 = arith.constant 0 : index
    %15 = vector.load %arg7[%c17, %c0_11, %c0_12] : memref<18x18x128xbf16, #tpu.memory_space<vmem>>, vector<1x18x128xbf16>
    tpu.vector_store %arg7[%c17, %c0_11, %c0_12], %13 {strides = array<i32>} : memref<18x18x128xbf16, #tpu.memory_space<vmem>>, vector<1x18x128xbf16>,
    %cst_13 = arith.constant 0.000000e+00 : bf16
    %16 = vector.broadcast %cst_13 : bf16 to vector<16x1x128xbf16>
    %c1 = arith.constant 1 : index
    %c0_14 = arith.constant 0 : index
    %c0_15 = arith.constant 0 : index
    %17 = vector.load %arg7[%c1, %c0_14, %c0_15] : memref<18x18x128xbf16, #tpu.memory_space<vmem>>, vector<16x1x128xbf16>
    tpu.vector_store %arg7[%c1, %c0_14, %c0_15], %16 {strides = array<i32>} : memref<18x18x128xbf16, #tpu.memory_space<vmem>>, vector<16x1x128xbf16>,
    %c1_16 = arith.constant 1 : index
    %c17_17 = arith.constant 17 : index
    %c0_18 = arith.constant 0 : index
    %18 = vector.load %arg7[%c1_16, %c17_17, %c0_18] : memref<18x18x128xbf16, #tpu.memory_space<vmem>>, vector<16x1x128xbf16>
    tpu.vector_store %arg7[%c1_16, %c17_17, %c0_18], %16 {strides = array<i32>} : memref<18x18x128xbf16, #tpu.memory_space<vmem>>, vector<16x1x128xbf16>,
    %c1_19 = arith.constant 1 : index
    %c1_20 = arith.constant 1 : index
    %c0_21 = arith.constant 0 : index
    %19 = vector.load %arg7[%c1_19, %c1_20, %c0_21] : memref<18x18x128xbf16, #tpu.memory_space<vmem>>, vector<16x16x128xbf16>
    tpu.vector_store %arg7[%c1_19, %c1_20, %c0_21], %12 {strides = array<i32>} : memref<18x18x128xbf16, #tpu.memory_space<vmem>>, vector<16x16x128xbf16>,
    %c0_22 = arith.constant 0 : index
    %c0_23 = arith.constant 0 : index
    %20 = vector.load %arg5[%c0_22, %c0_23] : memref<1x256xf32, #tpu.memory_space<vmem>>, vector<1x256xf32>
    %21 = vector.shape_cast %20 : vector<1x256xf32> to vector<1x256xf32>
    %22 = vector.broadcast %21 : vector<1x256xf32> to vector<256x256xf32>
    %c0_24 = arith.constant 0 : index
    %c0_25 = arith.constant 0 : index
    %23 = vector.load %arg8[%c0_24, %c0_25] : memref<256x256xf32, #tpu.memory_space<vmem>>, vector<256x256xf32>
    tpu.vector_store %arg8[%c0_24, %c0_25], %22 {strides = array<i32>} : memref<256x256xf32, #tpu.memory_space<vmem>>, vector<256x256xf32>,
    %c0_26 = arith.constant 0 : index
    %c0_27 = arith.constant 0 : index
    %c0_28 = arith.constant 0 : index
    %24 = vector.load %arg7[%c0_26, %c0_27, %c0_28] : memref<18x18x128xbf16, #tpu.memory_space<vmem>>, vector<18x18x128xbf16>
    %25 = vector.extract_strided_slice %24 {offsets = [0, 0, 0], sizes = [18, 16, 128], strides = [1, 1, 1]} : vector<18x18x128xbf16> to vector<18x16x128xbf16>
    %26 = vector.extract_strided_slice %25 {offsets = [0, 0, 0], sizes = [16, 16, 128], strides = [1, 1, 1]} : vector<18x16x128xbf16> to vector<16x16x128xbf16>
    %c0_29 = arith.constant 0 : index
    %c0_30 = arith.constant 0 : index
    %27 = vector.load %arg8[%c0_29, %c0_30] : memref<256x256xf32, #tpu.memory_space<vmem>>, vector<256x256xf32>
    %28 = vector.shape_cast %26 : vector<16x16x128xbf16> to vector<256x128xbf16>
    %c0_31 = arith.constant 0 : index
    %c0_32 = arith.constant 0 : index
    %c0_33 = arith.constant 0 : index
    %c0_34 = arith.constant 0 : index
    %29 = vector.load %arg4[%c0_31, %c0_32, %c0_33, %c0_34] : memref<3x3x128x256xbf16, #tpu.memory_space<vmem>>, vector<1x1x128x256xbf16>
    %30 = vector.shape_cast %29 : vector<1x1x128x256xbf16> to vector<128x256xbf16>
    %cst_35 = arith.constant dense<0.000000e+00> : vector<256x256xf32>
    %31 = tpu.matmul %28, %30, %cst_35 {dimension_numbers = #tpu.dot_dimension_numbers<[1], [0], [0], [1], [0, 0, 1, 1], [], []>} : vector<256x128xbf16>, vector<128x256xbf16>, vector<256x256xf32> -> vector<256x256xf32>
    %32 = arith.addf %27, %31 : vector<256x256xf32>
    %c0_36 = arith.constant 0 : index
    %c0_37 = arith.constant 0 : index
    %33 = vector.load %arg8[%c0_36, %c0_37] : memref<256x256xf32, #tpu.memory_space<vmem>>, vector<256x256xf32>
    tpu.vector_store %arg8[%c0_36, %c0_37], %32 {strides = array<i32>} : memref<256x256xf32, #tpu.memory_space<vmem>>, vector<256x256xf32>,
    %34 = vector.extract_strided_slice %25 {offsets = [1, 0, 0], sizes = [16, 16, 128], strides = [1, 1, 1]} : vector<18x16x128xbf16> to vector<16x16x128xbf16>
    %c0_38 = arith.constant 0 : index
    %c0_39 = arith.constant 0 : index
    %35 = vector.load %arg8[%c0_38, %c0_39] : memref<256x256xf32, #tpu.memory_space<vmem>>, vector<256x256xf32>
    %36 = vector.shape_cast %34 : vector<16x16x128xbf16> to vector<256x128xbf16>
    %c1_40 = arith.constant 1 : index
    %c0_41 = arith.constant 0 : index
    %c0_42 = arith.constant 0 : index
    %c0_43 = arith.constant 0 : index
    %37 = vector.load %arg4[%c1_40, %c0_41, %c0_42, %c0_43] : memref<3x3x128x256xbf16, #tpu.memory_space<vmem>>, vector<1x1x128x256xbf16>
    %38 = vector.shape_cast %37 : vector<1x1x128x256xbf16> to vector<128x256xbf16>
    %cst_44 = arith.constant dense<0.000000e+00> : vector<256x256xf32>
    %39 = tpu.matmul %36, %38, %cst_44 {dimension_numbers = #tpu.dot_dimension_numbers<[1], [0], [0], [1], [0, 0, 1, 1], [], []>} : vector<256x128xbf16>, vector<128x256xbf16>, vector<256x256xf32> -> vector<256x256xf32>
    %40 = arith.addf %35, %39 : vector<256x256xf32>
    %c0_45 = arith.constant 0 : index
    %c0_46 = arith.constant 0 : index
    %41 = vector.load %arg8[%c0_45, %c0_46] : memref<256x256xf32, #tpu.memory_space<vmem>>, vector<256x256xf32>
    tpu.vector_store %arg8[%c0_45, %c0_46], %40 {strides = array<i32>} : memref<256x256xf32, #tpu.memory_space<vmem>>, vector<256x256xf32>,
    %42 = vector.extract_strided_slice %25 {offsets = [2, 0, 0], sizes = [16, 16, 128], strides = [1, 1, 1]} : vector<18x16x128xbf16> to vector<16x16x128xbf16>
    %c0_47 = arith.constant 0 : index
    %c0_48 = arith.constant 0 : index
    %43 = vector.load %arg8[%c0_47, %c0_48] : memref<256x256xf32, #tpu.memory_space<vmem>>, vector<256x256xf32>
    %44 = vector.shape_cast %42 : vector<16x16x128xbf16> to vector<256x128xbf16>
    %c2 = arith.constant 2 : index
    %c0_49 = arith.constant 0 : index
    %c0_50 = arith.constant 0 : index
    %c0_51 = arith.constant 0 : index
    %45 = vector.load %arg4[%c2, %c0_49, %c0_50, %c0_51] : memref<3x3x128x256xbf16, #tpu.memory_space<vmem>>, vector<1x1x128x256xbf16>
    %46 = vector.shape_cast %45 : vector<1x1x128x256xbf16> to vector<128x256xbf16>
    %cst_52 = arith.constant dense<0.000000e+00> : vector<256x256xf32>
    %47 = tpu.matmul %44, %46, %cst_52 {dimension_numbers = #tpu.dot_dimension_numbers<[1], [0], [0], [1], [0, 0, 1, 1], [], []>} : vector<256x128xbf16>, vector<128x256xbf16>, vector<256x256xf32> -> vector<256x256xf32>
    %48 = arith.addf %43, %47 : vector<256x256xf32>
    %c0_53 = arith.constant 0 : index
    %c0_54 = arith.constant 0 : index
    %49 = vector.load %arg8[%c0_53, %c0_54] : memref<256x256xf32, #tpu.memory_space<vmem>>, vector<256x256xf32>
    tpu.vector_store %arg8[%c0_53, %c0_54], %48 {strides = array<i32>} : memref<256x256xf32, #tpu.memory_space<vmem>>, vector<256x256xf32>,
    %50 = vector.extract_strided_slice %24 {offsets = [0, 1, 0], sizes = [18, 16, 128], strides = [1, 1, 1]} : vector<18x18x128xbf16> to vector<18x16x128xbf16>
    %51 = vector.extract_strided_slice %50 {offsets = [0, 0, 0], sizes = [16, 16, 128], strides = [1, 1, 1]} : vector<18x16x128xbf16> to vector<16x16x128xbf16>
    %c0_55 = arith.constant 0 : index
    %c0_56 = arith.constant 0 : index
    %52 = vector.load %arg8[%c0_55, %c0_56] : memref<256x256xf32, #tpu.memory_space<vmem>>, vector<256x256xf32>
    %53 = vector.shape_cast %51 : vector<16x16x128xbf16> to vector<256x128xbf16>
    %c0_57 = arith.constant 0 : index
    %c1_58 = arith.constant 1 : index
    %c0_59 = arith.constant 0 : index
    %c0_60 = arith.constant 0 : index
    %54 = vector.load %arg4[%c0_57, %c1_58, %c0_59, %c0_60] : memref<3x3x128x256xbf16, #tpu.memory_space<vmem>>, vector<1x1x128x256xbf16>
    %55 = vector.shape_cast %54 : vector<1x1x128x256xbf16> to vector<128x256xbf16>
    %cst_61 = arith.constant dense<0.000000e+00> : vector<256x256xf32>
    %56 = tpu.matmul %53, %55, %cst_61 {dimension_numbers = #tpu.dot_dimension_numbers<[1], [0], [0], [1], [0, 0, 1, 1], [], []>} : vector<256x128xbf16>, vector<128x256xbf16>, vector<256x256xf32> -> vector<256x256xf32>
    %57 = arith.addf %52, %56 : vector<256x256xf32>
    %c0_62 = arith.constant 0 : index
    %c0_63 = arith.constant 0 : index
    %58 = vector.load %arg8[%c0_62, %c0_63] : memref<256x256xf32, #tpu.memory_space<vmem>>, vector<256x256xf32>
    tpu.vector_store %arg8[%c0_62, %c0_63], %57 {strides = array<i32>} : memref<256x256xf32, #tpu.memory_space<vmem>>, vector<256x256xf32>,
    %59 = vector.extract_strided_slice %50 {offsets = [1, 0, 0], sizes = [16, 16, 128], strides = [1, 1, 1]} : vector<18x16x128xbf16> to vector<16x16x128xbf16>
    %c0_64 = arith.constant 0 : index
    %c0_65 = arith.constant 0 : index
    %60 = vector.load %arg8[%c0_64, %c0_65] : memref<256x256xf32, #tpu.memory_space<vmem>>, vector<256x256xf32>
    %61 = vector.shape_cast %59 : vector<16x16x128xbf16> to vector<256x128xbf16>
    %c1_66 = arith.constant 1 : index
    %c1_67 = arith.constant 1 : index
    %c0_68 = arith.constant 0 : index
    %c0_69 = arith.constant 0 : index
    %62 = vector.load %arg4[%c1_66, %c1_67, %c0_68, %c0_69] : memref<3x3x128x256xbf16, #tpu.memory_space<vmem>>, vector<1x1x128x256xbf16>
    %63 = vector.shape_cast %62 : vector<1x1x128x256xbf16> to vector<128x256xbf16>
    %cst_70 = arith.constant dense<0.000000e+00> : vector<256x256xf32>
    %64 = tpu.matmul %61, %63, %cst_70 {dimension_numbers = #tpu.dot_dimension_numbers<[1], [0], [0], [1], [0, 0, 1, 1], [], []>} : vector<256x128xbf16>, vector<128x256xbf16>, vector<256x256xf32> -> vector<256x256xf32>
    %65 = arith.addf %60, %64 : vector<256x256xf32>
    %c0_71 = arith.constant 0 : index
    %c0_72 = arith.constant 0 : index
    %66 = vector.load %arg8[%c0_71, %c0_72] : memref<256x256xf32, #tpu.memory_space<vmem>>, vector<256x256xf32>
    tpu.vector_store %arg8[%c0_71, %c0_72], %65 {strides = array<i32>} : memref<256x256xf32, #tpu.memory_space<vmem>>, vector<256x256xf32>,
    %67 = vector.extract_strided_slice %50 {offsets = [2, 0, 0], sizes = [16, 16, 128], strides = [1, 1, 1]} : vector<18x16x128xbf16> to vector<16x16x128xbf16>
    %c0_73 = arith.constant 0 : index
    %c0_74 = arith.constant 0 : index
    %68 = vector.load %arg8[%c0_73, %c0_74] : memref<256x256xf32, #tpu.memory_space<vmem>>, vector<256x256xf32>
    %69 = vector.shape_cast %67 : vector<16x16x128xbf16> to vector<256x128xbf16>
    %c2_75 = arith.constant 2 : index
    %c1_76 = arith.constant 1 : index
    %c0_77 = arith.constant 0 : index
    %c0_78 = arith.constant 0 : index
    %70 = vector.load %arg4[%c2_75, %c1_76, %c0_77, %c0_78] : memref<3x3x128x256xbf16, #tpu.memory_space<vmem>>, vector<1x1x128x256xbf16>
    %71 = vector.shape_cast %70 : vector<1x1x128x256xbf16> to vector<128x256xbf16>
    %cst_79 = arith.constant dense<0.000000e+00> : vector<256x256xf32>
    %72 = tpu.matmul %69, %71, %cst_79 {dimension_numbers = #tpu.dot_dimension_numbers<[1], [0], [0], [1], [0, 0, 1, 1], [], []>} : vector<256x128xbf16>, vector<128x256xbf16>, vector<256x256xf32> -> vector<256x256xf32>
    %73 = arith.addf %68, %72 : vector<256x256xf32>
    %c0_80 = arith.constant 0 : index
    %c0_81 = arith.constant 0 : index
    %74 = vector.load %arg8[%c0_80, %c0_81] : memref<256x256xf32, #tpu.memory_space<vmem>>, vector<256x256xf32>
    tpu.vector_store %arg8[%c0_80, %c0_81], %73 {strides = array<i32>} : memref<256x256xf32, #tpu.memory_space<vmem>>, vector<256x256xf32>,
    %75 = vector.extract_strided_slice %24 {offsets = [0, 2, 0], sizes = [18, 16, 128], strides = [1, 1, 1]} : vector<18x18x128xbf16> to vector<18x16x128xbf16>
    %76 = vector.extract_strided_slice %75 {offsets = [0, 0, 0], sizes = [16, 16, 128], strides = [1, 1, 1]} : vector<18x16x128xbf16> to vector<16x16x128xbf16>
    %c0_82 = arith.constant 0 : index
    %c0_83 = arith.constant 0 : index
    %77 = vector.load %arg8[%c0_82, %c0_83] : memref<256x256xf32, #tpu.memory_space<vmem>>, vector<256x256xf32>
    %78 = vector.shape_cast %76 : vector<16x16x128xbf16> to vector<256x128xbf16>
    %c0_84 = arith.constant 0 : index
    %c2_85 = arith.constant 2 : index
    %c0_86 = arith.constant 0 : index
    %c0_87 = arith.constant 0 : index
    %79 = vector.load %arg4[%c0_84, %c2_85, %c0_86, %c0_87] : memref<3x3x128x256xbf16, #tpu.memory_space<vmem>>, vector<1x1x128x256xbf16>
    %80 = vector.shape_cast %79 : vector<1x1x128x256xbf16> to vector<128x256xbf16>
    %cst_88 = arith.constant dense<0.000000e+00> : vector<256x256xf32>
    %81 = tpu.matmul %78, %80, %cst_88 {dimension_numbers = #tpu.dot_dimension_numbers<[1], [0], [0], [1], [0, 0, 1, 1], [], []>} : vector<256x128xbf16>, vector<128x256xbf16>, vector<256x256xf32> -> vector<256x256xf32>
    %82 = arith.addf %77, %81 : vector<256x256xf32>
    %c0_89 = arith.constant 0 : index
    %c0_90 = arith.constant 0 : index
    %83 = vector.load %arg8[%c0_89, %c0_90] : memref<256x256xf32, #tpu.memory_space<vmem>>, vector<256x256xf32>
    tpu.vector_store %arg8[%c0_89, %c0_90], %82 {strides = array<i32>} : memref<256x256xf32, #tpu.memory_space<vmem>>, vector<256x256xf32>,
    %84 = vector.extract_strided_slice %75 {offsets = [1, 0, 0], sizes = [16, 16, 128], strides = [1, 1, 1]} : vector<18x16x128xbf16> to vector<16x16x128xbf16>
    %c0_91 = arith.constant 0 : index
    %c0_92 = arith.constant 0 : index
    %85 = vector.load %arg8[%c0_91, %c0_92] : memref<256x256xf32, #tpu.memory_space<vmem>>, vector<256x256xf32>
    %86 = vector.shape_cast %84 : vector<16x16x128xbf16> to vector<256x128xbf16>
    %c1_93 = arith.constant 1 : index
    %c2_94 = arith.constant 2 : index
    %c0_95 = arith.constant 0 : index
    %c0_96 = arith.constant 0 : index
    %87 = vector.load %arg4[%c1_93, %c2_94, %c0_95, %c0_96] : memref<3x3x128x256xbf16, #tpu.memory_space<vmem>>, vector<1x1x128x256xbf16>
    %88 = vector.shape_cast %87 : vector<1x1x128x256xbf16> to vector<128x256xbf16>
    %cst_97 = arith.constant dense<0.000000e+00> : vector<256x256xf32>
    %89 = tpu.matmul %86, %88, %cst_97 {dimension_numbers = #tpu.dot_dimension_numbers<[1], [0], [0], [1], [0, 0, 1, 1], [], []>} : vector<256x128xbf16>, vector<128x256xbf16>, vector<256x256xf32> -> vector<256x256xf32>
    %90 = arith.addf %85, %89 : vector<256x256xf32>
    %c0_98 = arith.constant 0 : index
    %c0_99 = arith.constant 0 : index
    %91 = vector.load %arg8[%c0_98, %c0_99] : memref<256x256xf32, #tpu.memory_space<vmem>>, vector<256x256xf32>
    tpu.vector_store %arg8[%c0_98, %c0_99], %90 {strides = array<i32>} : memref<256x256xf32, #tpu.memory_space<vmem>>, vector<256x256xf32>,
    %92 = vector.extract_strided_slice %75 {offsets = [2, 0, 0], sizes = [16, 16, 128], strides = [1, 1, 1]} : vector<18x16x128xbf16> to vector<16x16x128xbf16>
    %c0_100 = arith.constant 0 : index
    %c0_101 = arith.constant 0 : index
    %93 = vector.load %arg8[%c0_100, %c0_101] : memref<256x256xf32, #tpu.memory_space<vmem>>, vector<256x256xf32>
    %94 = vector.shape_cast %92 : vector<16x16x128xbf16> to vector<256x128xbf16>
    %c2_102 = arith.constant 2 : index
    %c2_103 = arith.constant 2 : index
    %c0_104 = arith.constant 0 : index
    %c0_105 = arith.constant 0 : index
    %95 = vector.load %arg4[%c2_102, %c2_103, %c0_104, %c0_105] : memref<3x3x128x256xbf16, #tpu.memory_space<vmem>>, vector<1x1x128x256xbf16>
    %96 = vector.shape_cast %95 : vector<1x1x128x256xbf16> to vector<128x256xbf16>
    %cst_106 = arith.constant dense<0.000000e+00> : vector<256x256xf32>
    %97 = tpu.matmul %94, %96, %cst_106 {dimension_numbers = #tpu.dot_dimension_numbers<[1], [0], [0], [1], [0, 0, 1, 1], [], []>} : vector<256x128xbf16>, vector<128x256xbf16>, vector<256x256xf32> -> vector<256x256xf32>
    %98 = arith.addf %93, %97 : vector<256x256xf32>
    %c0_107 = arith.constant 0 : index
    %c0_108 = arith.constant 0 : index
    %99 = vector.load %arg8[%c0_107, %c0_108] : memref<256x256xf32, #tpu.memory_space<vmem>>, vector<256x256xf32>
    tpu.vector_store %arg8[%c0_107, %c0_108], %98 {strides = array<i32>} : memref<256x256xf32, #tpu.memory_space<vmem>>, vector<256x256xf32>,
    %c0_109 = arith.constant 0 : index
    %c0_110 = arith.constant 0 : index
    %100 = vector.load %arg8[%c0_109, %c0_110] : memref<256x256xf32, #tpu.memory_space<vmem>>, vector<256x256xf32>
    %101 = vector.extract_strided_slice %100 {offsets = [0, 0], sizes = [256, 128], strides = [1, 1]} : vector<256x256xf32> to vector<256x128xf32>
    %102 = vector.extract_strided_slice %100 {offsets = [0, 128], sizes = [256, 128], strides = [1, 1]} : vector<256x256xf32> to vector<256x128xf32>
    %103 = arith.maximumf %101, %102 : vector<256x128xf32>
    %104 = vector.shape_cast %103 : vector<256x128xf32> to vector<1x16x16x128xf32>
    %105 = arith.truncf %104 : vector<1x16x16x128xf32> to vector<1x16x16x128xbf16>
    %c0_111 = arith.constant 0 : index
    %c0_112 = arith.constant 0 : index
    %c0_113 = arith.constant 0 : index
    %c0_114 = arith.constant 0 : index
    %106 = vector.load %arg6[%c0_111, %c0_112, %c0_113, %c0_114] : memref<1x16x16x128xbf16, #tpu.memory_space<vmem>>, vector<1x16x16x128xbf16>
    tpu.vector_store %arg6[%c0_111, %c0_112, %c0_113, %c0_114], %105 {strides = array<i32>} : memref<1x16x16x128xbf16, #tpu.memory_space<vmem>>, vector<1x16x16x128xbf16>,
    return
  }
  func.func @transform_0(%arg0: i32) -> (i32, i32, i32, i32) {
    %c0_i32 = arith.constant 0 : i32
    %c0_i32_0 = arith.constant 0 : i32
    %c0_i32_1 = arith.constant 0 : i32
    %c0_i32_2 = arith.constant 0 : i32
    return %arg0, %c0_i32, %c0_i32_0, %c0_i32_1 : i32, i32, i32, i32
  }
  func.func @transform_1(%arg0: i32) -> (i32, i32) {
    %c0_i32 = arith.constant 0 : i32
    %c0_i32_0 = arith.constant 0 : i32
    %c0_i32_1 = arith.constant 0 : i32
    return %c0_i32, %c0_i32_0 : i32, i32
  }
  func.func @transform_2(%arg0: i32) -> (i32, i32) {
    %c0_i32 = arith.constant 0 : i32
    %c0_i32_0 = arith.constant 0 : i32
    %c0_i32_1 = arith.constant 0 : i32
    return %c0_i32, %c0_i32_0 : i32, i32
  }
  func.func @transform_3(%arg0: i32) -> (i32, i32, i32, i32) {
    %c0_i32 = arith.constant 0 : i32
    %c0_i32_0 = arith.constant 0 : i32
    %c0_i32_1 = arith.constant 0 : i32
    %c0_i32_2 = arith.constant 0 : i32
    %c0_i32_3 = arith.constant 0 : i32
    return %c0_i32, %c0_i32_0, %c0_i32_1, %c0_i32_2 : i32, i32, i32, i32
  }
  func.func @transform_4(%arg0: i32) -> (i32, i32) {
    %c0_i32 = arith.constant 0 : i32
    %c0_i32_0 = arith.constant 0 : i32
    %c0_i32_1 = arith.constant 0 : i32
    return %c0_i32, %c0_i32_0 : i32, i32
  }
  func.func @transform_5(%arg0: i32) -> (i32, i32, i32, i32) {
    %c0_i32 = arith.constant 0 : i32
    %c0_i32_0 = arith.constant 0 : i32
    %c0_i32_1 = arith.constant 0 : i32
    %c0_i32_2 = arith.constant 0 : i32
    return %arg0, %c0_i32, %c0_i32_0, %c0_i32_1 : i32, i32, i32, i32
  }
}

</mosaic_0001>

<llo_original>
// kernel: _group_forward_jit.1
$region0: #{_group_forward_jit.1}
  #allocation0 [shape = 'u32[]', space=smem, size = 0x4, offset = 0x4, fixed_abs, tag = 'smem constant byte address 0x4 - core index']
  #allocation1 [shape = 'u32[72,128]{1,0:T(1,128)}', space=vmem, size = 0x9000, scoped, tag = 'internal scratch']
  #allocation2 [shape = 'bf16[18,18,128]{2,1,0:T(8,128)(2,1)}', space=vmem, size = 0x1b000, scoped, tag = 'scratch operand']
  #allocation3 [shape = 'f32[256,256]{1,0:T(8,128)}', space=vmem, size = 0x40000, scoped, tag = 'scratch operand']
  %s0 = inlined_call_operand.vmem [shape: bf16[2,16,16,4], index: 0, kind: input, shape index: {}]
  %s1 = inlined_call_operand.vmem [shape: bf16[4,256], index: 1, kind: input, shape index: {}]
  %s2 = inlined_call_operand.vmem [shape: f32[1,256], index: 2, kind: input, shape index: {}]
  %s3 = inlined_call_operand.vmem [shape: bf16[3,3,128,256], index: 3, kind: input, shape index: {}]
  %s4 = inlined_call_operand.vmem [shape: f32[1,256], index: 4, kind: input, shape index: {}]
  %s5 = inlined_call_operand.vmem [shape: bf16[2,16,16,128], index: 5, kind: output, shape index: {}]
  %s6 = sld [smem:[#allocation0]]
  $region53: #{_group_forward_jit.1} parent=0
    _
  %s8 = ssub.s32 1, %s6
  %s9 = scalar_select 0, %s8, %s6
  loop: start=0, step=1, limit=4
  $region2: #{_group_forward_jit.1} parent=0 // loop_pre_header
    _
  $region3: #{_group_forward_jit.1} parent=0 // loop_header
    %s11 = sphi 0, %s15
    %p12 = scmp.ge.s32.totalorder %s11, 4
    %s21 = sphi 0, %s23
    %s24 = sphi 0, %s21
    %s25 = sphi 0, %s24
    %s41 = sphi 0, %s25
    %s45 = sphi 0, %s45
    %s47 = sphi 0, %s45
    %s48 = sphi 0, %s47
    %s62 = sphi 0, %s48
    %s66 = sphi 0, %s66
    %s68 = sphi 0, %s66
    %s69 = sphi 0, %s68
    %s83 = sphi 0, %s69
    %s87 = sphi 0, %s87
    %s89 = sphi 0, %s87
    %s90 = sphi 0, %s89
    %s104 = sphi 0, %s90
    %s108 = sphi 0, %s108
    %s110 = sphi 0, %s108
    %s111 = sphi 0, %s110
    %s125 = sphi 0, %s111
    %s131 = sphi 0, %s133
    %s134 = sphi 0, %s131
    %s135 = sphi 0, %s134
    %s151 = sphi 0, %s135
  $region4: #{_group_forward_jit.1} parent=0 // loop_header_branch
    %14 = sbr.rel (%p12) target = $region8
  $region5: #{_group_forward_jit.1} parent=0 // loop_body
    %s16 = ssub.s32 %s11, 1
    %s17 = ssub.s32 %s11, 2
    %s18 = sadd.s32 %s11, 1
    %s19 = ssub.s32 %s11, %s18
    %p20 = scmp.eq.s32.totalorder %s19, 0
    %s22 = sadd.s32 %s21, 1
    %s23 = scalar_select %p20, %s21, %s22
    %p26 = pneg %p20
    %p27 = scmp.eq.s32.totalorder %s11, 1
    %p28 = por %p26, %p27
    %p29 = scmp.ne.s32.totalorder %s21, %s24
    %p30 = scmp.eq.s32.totalorder %s11, 0
    %p31 = por %p29, %p30
    %p32 = scmp.ne.s32.totalorder %s21, %s24
    %p33 = scmp.eq.s32.totalorder %s16, 1
    %p34 = por %p32, %p33
    %p35 = scmp.ne.s32.totalorder %s24, %s25
    %p36 = scmp.eq.s32.totalorder %s16, 0
    %p37 = por %p35, %p36
    %p38 = scmp.ne.s32.totalorder %s24, %s25
    %p39 = scmp.eq.s32.totalorder %s17, 1
    %p40 = por %p38, %p39
    %p42 = scmp.ne.s32.totalorder %s25, %s41
    %p43 = scmp.eq.s32.totalorder %s17, 0
    %p44 = por %p42, %p43
    %s46 = sadd.s32 %s45, 1
    %p49 = scmp.eq.s32.totalorder %s11, 1
    %p50 = scmp.ne.s32.totalorder %s45, %s47
    %p51 = scmp.eq.s32.totalorder %s11, 0
    %p52 = por %p50, %p51
    %p53 = scmp.ne.s32.totalorder %s45, %s47
    %p54 = scmp.eq.s32.totalorder %s16, 1
    %p55 = por %p53, %p54
    %p56 = scmp.ne.s32.totalorder %s47, %s48
    %p57 = scmp.eq.s32.totalorder %s16, 0
    %p58 = por %p56, %p57
    %p59 = scmp.ne.s32.totalorder %s47, %s48
    %p60 = scmp.eq.s32.totalorder %s17, 1
    %p61 = por %p59, %p60
    %p63 = scmp.ne.s32.totalorder %s48, %s62
    %p64 = scmp.eq.s32.totalorder %s17, 0
    %p65 = por %p63, %p64
    %s67 = sadd.s32 %s66, 1
    %p70 = scmp.eq.s32.totalorder %s11, 1
    %p71 = scmp.ne.s32.totalorder %s66, %s68
    %p72 = scmp.eq.s32.totalorder %s11, 0
    %p73 = por %p71, %p72
    %p74 = scmp.ne.s32.totalorder %s66, %s68
    %p75 = scmp.eq.s32.totalorder %s16, 1
    %p76 = por %p74, %p75
    %p77 = scmp.ne.s32.totalorder %s68, %s69
    %p78 = scmp.eq.s32.totalorder %s16, 0
    %p79 = por %p77, %p78
    %p80 = scmp.ne.s32.totalorder %s68, %s69
    %p81 = scmp.eq.s32.totalorder %s17, 1
    %p82 = por %p80, %p81
    %p84 = scmp.ne.s32.totalorder %s69, %s83
    %p85 = scmp.eq.s32.totalorder %s17, 0
    %p86 = por %p84, %p85
    %s88 = sadd.s32 %s87, 1
    %p91 = scmp.eq.s32.totalorder %s11, 1
    %p92 = scmp.ne.s32.totalorder %s87, %s89
    %p93 = scmp.eq.s32.totalorder %s11, 0
    %p94 = por %p92, %p93
    %p95 = scmp.ne.s32.totalorder %s87, %s89
    %p96 = scmp.eq.s32.totalorder %s16, 1
    %p97 = por %p95, %p96
    %p98 = scmp.ne.s32.totalorder %s89, %s90
    %p99 = scmp.eq.s32.totalorder %s16, 0
    %p100 = por %p98, %p99
    %p101 = scmp.ne.s32.totalorder %s89, %s90
    %p102 = scmp.eq.s32.totalorder %s17, 1
    %p103 = por %p101, %p102
    %p105 = scmp.ne.s32.totalorder %s90, %s104
    %p106 = scmp.eq.s32.totalorder %s17, 0
    %p107 = por %p105, %p106
    %s109 = sadd.s32 %s108, 1
    %p112 = scmp.eq.s32.totalorder %s11, 1
    %p113 = scmp.ne.s32.totalorder %s108, %s110
    %p114 = scmp.eq.s32.totalorder %s11, 0
    %p115 = por %p113, %p114
    %p116 = scmp.ne.s32.totalorder %s108, %s110
    %p117 = scmp.eq.s32.totalorder %s16, 1
    %p118 = por %p116, %p117
    %p119 = scmp.ne.s32.totalorder %s110, %s111
    %p120 = scmp.eq.s32.totalorder %s16, 0
    %p121 = por %p119, %p120
    %p122 = scmp.ne.s32.totalorder %s110, %s111
    %p123 = scmp.eq.s32.totalorder %s17, 1
    %p124 = por %p122, %p123
    %p126 = scmp.ne.s32.totalorder %s111, %s125
    %p127 = scmp.eq.s32.totalorder %s17, 0
    %p128 = por %p126, %p127
    %s129 = ssub.s32 %s11, %s18
    %p130 = scmp.eq.s32.totalorder %s129, 0
    %s132 = sadd.s32 %s131, 1
    %s133 = scalar_select %p130, %s131, %s132
    %p136 = pneg %p130
    %p137 = scmp.eq.s32.totalorder %s11, 1
    %p138 = por %p136, %p137
    %p139 = scmp.ne.s32.totalorder %s131, %s134
    %p140 = scmp.eq.s32.totalorder %s11, 0
    %p141 = por %p139, %p140
    %p142 = scmp.ne.s32.totalorder %s131, %s134
    %p143 = scmp.eq.s32.totalorder %s16, 1
    %p144 = por %p142, %p143
    %p145 = scmp.ne.s32.totalorder %s134, %s135
    %p146 = scmp.eq.s32.totalorder %s16, 0
    %p147 = por %p145, %p146
    %p148 = scmp.ne.s32.totalorder %s134, %s135
    %p149 = scmp.eq.s32.totalorder %s17, 1
    %p150 = por %p148, %p149
    %p152 = scmp.ne.s32.totalorder %s135, %s151
    %p153 = scmp.eq.s32.totalorder %s17, 0
    %p154 = por %p152, %p153
    %p155 = scmp.le.s32.totalorder 1, %s11
    %p156 = scmp.lt.s32.totalorder %s11, 3
    %p157 = pnand %p155, %p156
    %p158 = pneg %p157
    // Predicated region
    $region9: #{_group_forward_jit.1} parent=5 // pred_check
      _
    $region10: #{_group_forward_jit.1} parent=5 // pred_check_branch
      %160 = sbr.rel (%p157) target = $region12
    $region11: #{_group_forward_jit.1} parent=5 // pred_region
      %s161 = ssub.s32 %s11, 1
      // Predicated region
      $region13: #{_group_forward_jit.1} parent=11 // pred_check
        %p162 = pneg %p58
      $region14: #{_group_forward_jit.1} parent=11 // pred_check_branch
        %164 = sbr.rel (%p162) target = $region16
      $region15: #{_group_forward_jit.1} parent=11 // pred_region
        _
      $region16: #{_group_forward_jit.1} parent=11 // pred_fallthru
        _
      // Predicated region
      $region17: #{_group_forward_jit.1} parent=11 // pred_check
        %p165 = pneg %p79
      $region18: #{_group_forward_jit.1} parent=11 // pred_check_branch
        %167 = sbr.rel (%p165) target = $region20
      $region19: #{_group_forward_jit.1} parent=11 // pred_region
        _
      $region20: #{_group_forward_jit.1} parent=11 // pred_fallthru
        _
      // Predicated region
      $region21: #{_group_forward_jit.1} parent=11 // pred_check
        %p168 = pneg %p100
      $region22: #{_group_forward_jit.1} parent=11 // pred_check_branch
        %170 = sbr.rel (%p168) target = $region24
      $region23: #{_group_forward_jit.1} parent=11 // pred_region
        _
      $region24: #{_group_forward_jit.1} parent=11 // pred_fallthru
        _
      // Predicated region
      $region25: #{_group_forward_jit.1} parent=11 // pred_check
        %p171 = pneg %p121
      $region26: #{_group_forward_jit.1} parent=11 // pred_check_branch
        %173 = sbr.rel (%p171) target = $region28
      $region27: #{_group_forward_jit.1} parent=11 // pred_region
        _
      $region28: #{_group_forward_jit.1} parent=11 // pred_fallthru
        _
    $region12: #{_group_forward_jit.1} parent=5 // pred_fallthru
      _
    %p174 = scmp.lt.s32.totalorder %s11, 2
    // Predicated region
    $region29: #{_group_forward_jit.1} parent=5 // pred_check
      %p175 = pneg %p174
    $region30: #{_group_forward_jit.1} parent=5 // pred_check_branch
      %177 = sbr.rel (%p175) target = $region32
    $region31: #{_group_forward_jit.1} parent=5 // pred_region
      // Predicated region
      $region33: #{_group_forward_jit.1} parent=31 // pred_check
        %p178 = pneg %p31
      $region34: #{_group_forward_jit.1} parent=31 // pred_check_branch
        %180 = sbr.rel (%p178) target = $region36
      $region35: #{_group_forward_jit.1} parent=31 // pred_region
        %p181 = scmp.lt.s32.totalorder %s11, 1
        %s182 = scalar_select %p181, %s11, 1
        %s183 = smul.addr %s182, 32
        %s184 = smul.addr %s183, 4
        %s185 = scalar_lea.vmem %s0, %s184
      $region36: #{_group_forward_jit.1} parent=31 // pred_fallthru
        _
    $region32: #{_group_forward_jit.1} parent=5 // pred_fallthru
      _
    %p186 = scmp.le.s32.totalorder 1, %s11
    %p187 = scmp.lt.s32.totalorder %s11, 3
    %p188 = pnand %p186, %p187
    %p189 = pneg %p188
    // Predicated region
    $region37: #{_group_forward_jit.1} parent=5 // pred_check
      _
    $region38: #{_group_forward_jit.1} parent=5 // pred_check_branch
      %191 = sbr.rel (%p188) target = $region40
    $region39: #{_group_forward_jit.1} parent=5 // pred_region
      %s192 = ssub.s32 %s11, 1
      %p193 = scmp.lt.s32.totalorder %s16, 1
      %s194 = scalar_select %p193, %s16, 1
      %s195 = smul.addr %s194, 32
      %s196 = smul.addr %s195, 4
      %s197 = scalar_lea.vmem %s0, %s196
      %p198 = pneg %p37
      %p199 = pneg %p34
      %p200 = pneg %p58
      %p201 = pneg %p55
      %p202 = pneg %p79
      %p203 = pneg %p76
      %p204 = pneg %p100
      %p205 = pneg %p97
      %p206 = pneg %p121
      %p207 = pneg %p118
      %p208 = pneg %p147
      %p209 = pneg %p144
      %p210 = scmp.lt.s32.totalorder %s16, 1
      %s211 = scalar_select %p210, %s16, 1
      %s212 = smul.addr %s211, 32
      %s213 = smul.addr %s212, 4
      %s214 = scalar_lea.vmem %s5, %s213
      %p215 = scmp.lt.s32.totalorder %s16, 1
      %s216 = scalar_select %p215, %s16, 1
      %s217 = smul.addr %s216, 32
      %s218 = smul.addr %s217, 4
      %s219 = scalar_lea.vmem %s0, %s218
      %p220 = scmp.lt.s32.totalorder %s16, 1
      %s221 = scalar_select %p220, %s16, 1
      %s222 = smul.addr %s221, 32
      %s223 = smul.addr %s222, 4
      %s224 = scalar_lea.vmem %s5, %s223
      %v226 = vld [vmem:[%s219] sm:$0xf]
      %v227 = vld [vmem:[%s219 + $0x4] sm:$0xf]
      %v228 = vld [vmem:[%s219 + $0x8] sm:$0xf]
      %v229 = vld [vmem:[%s219 + $0xc] sm:$0xf]
      %v230 = vld [vmem:[%s219 + $0x10] sm:$0xf]
      %v231 = vld [vmem:[%s219 + $0x14] sm:$0xf]
      %v232 = vld [vmem:[%s219 + $0x18] sm:$0xf]
      %v233 = vld [vmem:[%s219 + $0x1c] sm:$0xf]
      %v234 = vld [vmem:[%s219 + $0x20] sm:$0xf]
      %v235 = vld [vmem:[%s219 + $0x24] sm:$0xf]
      %v236 = vld [vmem:[%s219 + $0x28] sm:$0xf]
      %v237 = vld [vmem:[%s219 + $0x2c] sm:$0xf]
      %v238 = vld [vmem:[%s219 + $0x30] sm:$0xf]
      %v239 = vld [vmem:[%s219 + $0x34] sm:$0xf]
      %v240 = vld [vmem:[%s219 + $0x38] sm:$0xf]
      %v241 = vld [vmem:[%s219 + $0x3c] sm:$0xf]
      %v242 = vld [vmem:[%s219 + $0x40] sm:$0xf]
      %v243 = vld [vmem:[%s219 + $0x44] sm:$0xf]
      %v244 = vld [vmem:[%s219 + $0x48] sm:$0xf]
      %v245 = vld [vmem:[%s219 + $0x4c] sm:$0xf]
      %v246 = vld [vmem:[%s219 + $0x50] sm:$0xf]
      %v247 = vld [vmem:[%s219 + $0x54] sm:$0xf]
      %v248 = vld [vmem:[%s219 + $0x58] sm:$0xf]
      %v249 = vld [vmem:[%s219 + $0x5c] sm:$0xf]
      %v250 = vld [vmem:[%s219 + $0x60] sm:$0xf]
      %v251 = vld [vmem:[%s219 + $0x64] sm:$0xf]
      %v252 = vld [vmem:[%s219 + $0x68] sm:$0xf]
      %v253 = vld [vmem:[%s219 + $0x6c] sm:$0xf]
      %v254 = vld [vmem:[%s219 + $0x70] sm:$0xf]
      %v255 = vld [vmem:[%s219 + $0x74] sm:$0xf]
      %v256 = vld [vmem:[%s219 + $0x78] sm:$0xf]
      %v257 = vld [vmem:[%s219 + $0x7c] sm:$0xf]
      %v258 = vld [vmem:[%s1] sm:$0xf]
      %v259 = vld [vmem:[%s2] sm:$0x3]
      %v261 = vperm.slane %v259, 0
      %v262 = vperm.slane %v259, 1
      %v297 = vunpack.c.l.b16 %v226
      %v298 = vunpack.c.l.b16 %v227
      %v299 = vunpack.c.l.b16 %v228
      %v300 = vunpack.c.l.b16 %v229
      %v301 = vunpack.c.l.b16 %v230
      %v302 = vunpack.c.l.b16 %v231
      %v303 = vunpack.c.l.b16 %v232
      %v304 = vunpack.c.l.b16 %v233
      %v305 = vunpack.c.l.b16 %v234
      %v306 = vunpack.c.l.b16 %v235
      %v307 = vunpack.c.l.b16 %v236
      %v308 = vunpack.c.l.b16 %v237
      %v309 = vunpack.c.l.b16 %v238
      %v310 = vunpack.c.l.b16 %v239
      %v311 = vunpack.c.l.b16 %v240
      %v312 = vunpack.c.l.b16 %v241
      %v313 = vunpack.c.l.b16 %v242
      %v314 = vunpack.c.l.b16 %v243
      %v315 = vunpack.c.l.b16 %v244
      %v316 = vunpack.c.l.b16 %v245
      %v317 = vunpack.c.l.b16 %v246
      %v318 = vunpack.c.l.b16 %v247
      %v319 = vunpack.c.l.b16 %v248
      %v320 = vunpack.c.l.b16 %v249
      %v321 = vunpack.c.l.b16 %v250
      %v322 = vunpack.c.l.b16 %v251
      %v323 = vunpack.c.l.b16 %v252
      %v324 = vunpack.c.l.b16 %v253
      %v325 = vunpack.c.l.b16 %v254
      %v326 = vunpack.c.l.b16 %v255
      %v327 = vunpack.c.l.b16 %v256
      %v328 = vunpack.c.l.b16 %v257
      %v329 = vpack.c.b16 %v298, %v297
      %v330 = vpack.c.b16 %v300, %v299
      %v331 = vpack.c.b16 %v302, %v301
      %v332 = vpack.c.b16 %v304, %v303
      %v333 = vpack.c.b16 %v306, %v305
      %v334 = vpack.c.b16 %v308, %v307
      %v335 = vpack.c.b16 %v310, %v309
      %v336 = vpack.c.b16 %v312, %v311
      %v337 = vpack.c.b16 %v314, %v313
      %v338 = vpack.c.b16 %v316, %v315
      %v339 = vpack.c.b16 %v318, %v317
      %v340 = vpack.c.b16 %v320, %v319
      %v341 = vpack.c.b16 %v322, %v321
      %v342 = vpack.c.b16 %v324, %v323
      %v343 = vpack.c.b16 %v326, %v325
      %v344 = vpack.c.b16 %v328, %v327
      %346 = vst [vmem:[#allocation1] ss:$4 sm:$0xff] %v258
      %v347 = vld.sshfl [vmem:[#allocation1] sm:$0xff pattern:$0x73625140]
      %v348 = vld.sshfl [vmem:[#allocation1 + $0x8] sm:$0xff pattern:$0x73625140]
      %vm349 = vcmask 31744
      %v351 = vsel %vm349, %v329, 0
      %v354 = vsel %vm349, %v330, 0
      %v357 = vsel %vm349, %v331, 0
      %v360 = vsel %vm349, %v332, 0
      %v363 = vsel %vm349, %v333, 0
      %v366 = vsel %vm349, %v334, 0
      %v369 = vsel %vm349, %v335, 0
      %v372 = vsel %vm349, %v336, 0
      %v375 = vsel %vm349, %v337, 0
      %v378 = vsel %vm349, %v338, 0
      %v381 = vsel %vm349, %v339, 0
      %v384 = vsel %vm349, %v340, 0
      %v387 = vsel %vm349, %v341, 0
      %v390 = vsel %vm349, %v342, 0
      %v393 = vsel %vm349, %v343, 0
      %v396 = vsel %vm349, %v344, 0
      %vm398 = vcmask 1041408
      %v399 = vsel %vm398, %v347, 0
      %v401 = vsel %vm398, %v348, 0
      %403 = vmatpush.bf16.msra.mxu0 0
      %404 = vmatpush.bf16.msra.mxu0 0
      %405 = vmatpush.bf16.msra.mxu0 0
      %406 = vmatpush.bf16.msra.mxu0 0
      %407 = vmatpush.bf16.msra.mxu0 0
      %408 = vmatpush.bf16.msra.mxu0 0
      %409 = vmatpush.bf16.msra.mxu0 0
      %410 = vmatpush.bf16.msra.mxu0 %v399
      %411 = vmatmul.bf16.gmra.mxu0 %v351
      %v412 = vpop.f32.mrf.mxu0
      %v413 = vadd.f32 %v261, %v412
      %v414 = vpop.f32.mrf.mxu0
      %v415 = vadd.f32 %v261, %v414
      %416 = vmatmul.bf16.gmra.mxu0 %v354
      %v417 = vpop.f32.mrf.mxu0
      %v418 = vadd.f32 %v261, %v417
      %v419 = vpop.f32.mrf.mxu0
      %v420 = vadd.f32 %v261, %v419
      %421 = vmatmul.bf16.gmra.mxu0 %v357
      %v422 = vpop.f32.mrf.mxu0
      %v423 = vadd.f32 %v261, %v422
      %v424 = vpop.f32.mrf.mxu0
      %v425 = vadd.f32 %v261, %v424
      %426 = vmatmul.bf16.gmra.mxu0 %v360
      %v427 = vpop.f32.mrf.mxu0
      %v428 = vadd.f32 %v261, %v427
      %v429 = vpop.f32.mrf.mxu0
      %v430 = vadd.f32 %v261, %v429
      %431 = vmatmul.bf16.gmra.mxu0 %v363
      %v432 = vpop.f32.mrf.mxu0
      %v433 = vadd.f32 %v261, %v432
      %v434 = vpop.f32.mrf.mxu0
      %v435 = vadd.f32 %v261, %v434
      %436 = vmatmul.bf16.gmra.mxu0 %v366
      %v437 = vpop.f32.mrf.mxu0
      %v438 = vadd.f32 %v261, %v437
      %v439 = vpop.f32.mrf.mxu0
      %v440 = vadd.f32 %v261, %v439
      %441 = vmatmul.bf16.gmra.mxu0 %v369
      %v442 = vpop.f32.mrf.mxu0
      %v443 = vadd.f32 %v261, %v442
      %v444 = vpop.f32.mrf.mxu0
      %v445 = vadd.f32 %v261, %v444
      %446 = vmatmul.bf16.gmra.mxu0 %v372
      %v447 = vpop.f32.mrf.mxu0
      %v448 = vadd.f32 %v261, %v447
      %v449 = vpop.f32.mrf.mxu0
      %v450 = vadd.f32 %v261, %v449
      %451 = vmatmul.bf16.gmra.mxu0 %v375
      %v452 = vpop.f32.mrf.mxu0
      %v453 = vadd.f32 %v261, %v452
      %v454 = vpop.f32.mrf.mxu0
      %v455 = vadd.f32 %v261, %v454
      %456 = vmatmul.bf16.gmra.mxu0 %v378
      %v457 = vpop.f32.mrf.mxu0
      %v458 = vadd.f32 %v261, %v457
      %v459 = vpop.f32.mrf.mxu0
      %v460 = vadd.f32 %v261, %v459
      %461 = vmatmul.bf16.gmra.mxu0 %v381
      %v462 = vpop.f32.mrf.mxu0
      %v463 = vadd.f32 %v261, %v462
      %v464 = vpop.f32.mrf.mxu0
      %v465 = vadd.f32 %v261, %v464
      %466 = vmatmul.bf16.gmra.mxu0 %v384
      %v467 = vpop.f32.mrf.mxu0
      %v468 = vadd.f32 %v261, %v467
      %v469 = vpop.f32.mrf.mxu0
      %v470 = vadd.f32 %v261, %v469
      %471 = vmatmul.bf16.gmra.mxu0 %v387
      %v472 = vpop.f32.mrf.mxu0
      %v473 = vadd.f32 %v261, %v472
      %v474 = vpop.f32.mrf.mxu0
      %v475 = vadd.f32 %v261, %v474
      %476 = vmatmul.bf16.gmra.mxu0 %v390
      %v477 = vpop.f32.mrf.mxu0
      %v478 = vadd.f32 %v261, %v477
      %v479 = vpop.f32.mrf.mxu0
      %v480 = vadd.f32 %v261, %v479
      %481 = vmatmul.bf16.gmra.mxu0 %v393
      %v482 = vpop.f32.mrf.mxu0
      %v483 = vadd.f32 %v261, %v482
      %v484 = vpop.f32.mrf.mxu0
      %v485 = vadd.f32 %v261, %v484
      %486 = vmatmul.bf16.gmra.mxu0 %v396
      %v487 = vpop.f32.mrf.mxu0
      %v488 = vadd.f32 %v261, %v487
      %v489 = vpop.f32.mrf.mxu0
      %v490 = vadd.f32 %v261, %v489
      %491 = vdwg.mxu0
      %492 = vmatpush.bf16.msra.mxu0 0
      %493 = vmatpush.bf16.msra.mxu0 0
      %494 = vmatpush.bf16.msra.mxu0 0
      %495 = vmatpush.bf16.msra.mxu0 0
      %496 = vmatpush.bf16.msra.mxu0 0
      %497 = vmatpush.bf16.msra.mxu0 0
      %498 = vmatpush.bf16.msra.mxu0 0
      %499 = vmatpush.bf16.msra.mxu0 %v401
      %500 = vmatmul.bf16.gmra.mxu0 %v351
      %v501 = vpop.f32.mrf.mxu0
      %v502 = vadd.f32 %v262, %v501
      %v503 = vpop.f32.mrf.mxu0
      %v504 = vadd.f32 %v262, %v503
      %505 = vmatmul.bf16.gmra.mxu0 %v354
      %v506 = vpop.f32.mrf.mxu0
      %v507 = vadd.f32 %v262, %v506
      %v508 = vpop.f32.mrf.mxu0
      %v509 = vadd.f32 %v262, %v508
      %510 = vmatmul.bf16.gmra.mxu0 %v357
      %v511 = vpop.f32.mrf.mxu0
      %v512 = vadd.f32 %v262, %v511
      %v513 = vpop.f32.mrf.mxu0
      %v514 = vadd.f32 %v262, %v513
      %515 = vmatmul.bf16.gmra.mxu0 %v360
      %v516 = vpop.f32.mrf.mxu0
      %v517 = vadd.f32 %v262, %v516
      %v518 = vpop.f32.mrf.mxu0
      %v519 = vadd.f32 %v262, %v518
      %520 = vmatmul.bf16.gmra.mxu0 %v363
      %v521 = vpop.f32.mrf.mxu0
      %v522 = vadd.f32 %v262, %v521
      %v523 = vpop.f32.mrf.mxu0
      %v524 = vadd.f32 %v262, %v523
      %525 = vmatmul.bf16.gmra.mxu0 %v366
      %v526 = vpop.f32.mrf.mxu0
      %v527 = vadd.f32 %v262, %v526
      %v528 = vpop.f32.mrf.mxu0
      %v529 = vadd.f32 %v262, %v528
      %530 = vmatmul.bf16.gmra.mxu0 %v369
      %v531 = vpop.f32.mrf.mxu0
      %v532 = vadd.f32 %v262, %v531
      %v533 = vpop.f32.mrf.mxu0
      %v534 = vadd.f32 %v262, %v533
      %535 = vmatmul.bf16.gmra.mxu0 %v372
      %v536 = vpop.f32.mrf.mxu0
      %v537 = vadd.f32 %v262, %v536
      %v538 = vpop.f32.mrf.mxu0
      %v539 = vadd.f32 %v262, %v538
      %540 = vmatmul.bf16.gmra.mxu0 %v375
      %v541 = vpop.f32.mrf.mxu0
      %v542 = vadd.f32 %v262, %v541
      %v543 = vpop.f32.mrf.mxu0
      %v544 = vadd.f32 %v262, %v543
      %545 = vmatmul.bf16.gmra.mxu0 %v378
      %v546 = vpop.f32.mrf.mxu0
      %v547 = vadd.f32 %v262, %v546
      %v548 = vpop.f32.mrf.mxu0
      %v549 = vadd.f32 %v262, %v548
      %550 = vmatmul.bf16.gmra.mxu0 %v381
      %v551 = vpop.f32.mrf.mxu0
      %v552 = vadd.f32 %v262, %v551
      %v553 = vpop.f32.mrf.mxu0
      %v554 = vadd.f32 %v262, %v553
      %555 = vmatmul.bf16.gmra.mxu0 %v384
      %v556 = vpop.f32.mrf.mxu0
      %v557 = vadd.f32 %v262, %v556
      %v558 = vpop.f32.mrf.mxu0
      %v559 = vadd.f32 %v262, %v558
      %560 = vmatmul.bf16.gmra.mxu0 %v387
      %v561 = vpop.f32.mrf.mxu0
      %v562 = vadd.f32 %v262, %v561
      %v563 = vpop.f32.mrf.mxu0
      %v564 = vadd.f32 %v262, %v563
      %565 = vmatmul.bf16.gmra.mxu0 %v390
      %v566 = vpop.f32.mrf.mxu0
      %v567 = vadd.f32 %v262, %v566
      %v568 = vpop.f32.mrf.mxu0
      %v569 = vadd.f32 %v262, %v568
      %570 = vmatmul.bf16.gmra.mxu0 %v393
      %v571 = vpop.f32.mrf.mxu0
      %v572 = vadd.f32 %v262, %v571
      %v573 = vpop.f32.mrf.mxu0
      %v574 = vadd.f32 %v262, %v573
      %575 = vmatmul.bf16.gmra.mxu0 %v396
      %v576 = vpop.f32.mrf.mxu0
      %v577 = vadd.f32 %v262, %v576
      %v578 = vpop.f32.mrf.mxu0
      %v579 = vadd.f32 %v262, %v578
      %580 = vdwg.mxu0
      %v581 = vmax.f32 %v413, %v502
      %v582 = vmax.f32 %v415, %v504
      %v583 = vmax.f32 %v418, %v507
      %v584 = vmax.f32 %v420, %v509
      %v585 = vmax.f32 %v423, %v512
      %v586 = vmax.f32 %v425, %v514
      %v587 = vmax.f32 %v428, %v517
      %v588 = vmax.f32 %v430, %v519
      %v589 = vmax.f32 %v433, %v522
      %v590 = vmax.f32 %v435, %v524
      %v591 = vmax.f32 %v438, %v527
      %v592 = vmax.f32 %v440, %v529
      %v593 = vmax.f32 %v443, %v532
      %v594 = vmax.f32 %v445, %v534
      %v595 = vmax.f32 %v448, %v537
      %v596 = vmax.f32 %v450, %v539
      %v597 = vmax.f32 %v453, %v542
      %v598 = vmax.f32 %v455, %v544
      %v599 = vmax.f32 %v458, %v547
      %v600 = vmax.f32 %v460, %v549
      %v601 = vmax.f32 %v463, %v552
      %v602 = vmax.f32 %v465, %v554
      %v603 = vmax.f32 %v468, %v557
      %v604 = vmax.f32 %v470, %v559
      %v605 = vmax.f32 %v473, %v562
      %v606 = vmax.f32 %v475, %v564
      %v607 = vmax.f32 %v478, %v567
      %v608 = vmax.f32 %v480, %v569
      %v609 = vmax.f32 %v483, %v572
      %v610 = vmax.f32 %v485, %v574
      %v611 = vmax.f32 %v488, %v577
      %v612 = vmax.f32 %v490, %v579
      %v613 = vpack.c.bf16 %v581, %v581
      %v614 = vpack.c.bf16 %v582, %v582
      %v615 = vpack.c.bf16 %v583, %v583
      %v616 = vpack.c.bf16 %v584, %v584
      %v617 = vpack.c.bf16 %v585, %v585
      %v618 = vpack.c.bf16 %v586, %v586
      %v619 = vpack.c.bf16 %v587, %v587
      %v620 = vpack.c.bf16 %v588, %v588
      %v621 = vpack.c.bf16 %v589, %v589
      %v622 = vpack.c.bf16 %v590, %v590
      %v623 = vpack.c.bf16 %v591, %v591
      %v624 = vpack.c.bf16 %v592, %v592
      %v625 = vpack.c.bf16 %v593, %v593
      %v626 = vpack.c.bf16 %v594, %v594
      %v627 = vpack.c.bf16 %v595, %v595
      %v628 = vpack.c.bf16 %v596, %v596
      %v629 = vpack.c.bf16 %v597, %v597
      %v630 = vpack.c.bf16 %v598, %v598
      %v631 = vpack.c.bf16 %v599, %v599
      %v632 = vpack.c.bf16 %v600, %v600
      %v633 = vpack.c.bf16 %v601, %v601
      %v634 = vpack.c.bf16 %v602, %v602
      %v635 = vpack.c.bf16 %v603, %v603
      %v636 = vpack.c.bf16 %v604, %v604
      %v637 = vpack.c.bf16 %v605, %v605
      %v638 = vpack.c.bf16 %v606, %v606
      %v639 = vpack.c.bf16 %v607, %v607
      %v640 = vpack.c.bf16 %v608, %v608
      %v641 = vpack.c.bf16 %v609, %v609
      %v642 = vpack.c.bf16 %v610, %v610
      %v643 = vpack.c.bf16 %v611, %v611
      %v644 = vpack.c.bf16 %v612, %v612
      %645 = vst [vmem:[#allocation2] sm:$0xf] 0
      %646 = vst [vmem:[#allocation2 + $0x4] sm:$0xf] 0
      %647 = vst [vmem:[#allocation2 + $0x8] sm:$0x1] 0
      %s648 = scalar_lea.vmem [#allocation2], 204
      %649 = vst [vmem:[%s648] sm:$0xf] 0
      %650 = vst [vmem:[%s648 + $0x4] sm:$0xf] 0
      %651 = vst [vmem:[%s648 + $0x8] sm:$0x1] 0
      %s652 = scalar_lea.vmem [#allocation2], 12
      %vm653 = vcmask 1040384
      %vm654 = vsmask.f32 256
      %vm655 = vmand %vm653, %vm654
      %v656 = vld [vmem:[%s652] sm:$0x1]
      %v657 = vsel %vm655, 0, %v656
      %658 = vst [vmem:[%s652] sm:$0x1] %v657
      %v659 = vld [vmem:[%s652 + $0xc] sm:$0x1]
      %v660 = vsel %vm655, 0, %v659
      %661 = vst [vmem:[%s652 + $0xc] sm:$0x1] %v660
      %v662 = vld [vmem:[%s652 + $0x18] sm:$0x1]
      %v663 = vsel %vm655, 0, %v662
      %664 = vst [vmem:[%s652 + $0x18] sm:$0x1] %v663
      %v665 = vld [vmem:[%s652 + $0x24] sm:$0x1]
      %v666 = vsel %vm655, 0, %v665
      %667 = vst [vmem:[%s652 + $0x24] sm:$0x1] %v666
      %v668 = vld [vmem:[%s652 + $0x30] sm:$0x1]
      %v669 = vsel %vm655, 0, %v668
      %670 = vst [vmem:[%s652 + $0x30] sm:$0x1] %v669
      %v671 = vld [vmem:[%s652 + $0x3c] sm:$0x1]
      %v672 = vsel %vm655, 0, %v671
      %673 = vst [vmem:[%s652 + $0x3c] sm:$0x1] %v672
      %v674 = vld [vmem:[%s652 + $0x48] sm:$0x1]
      %v675 = vsel %vm655, 0, %v674
      %676 = vst [vmem:[%s652 + $0x48] sm:$0x1] %v675
      %v677 = vld [vmem:[%s652 + $0x54] sm:$0x1]
      %v678 = vsel %vm655, 0, %v677
      %679 = vst [vmem:[%s652 + $0x54] sm:$0x1] %v678
      %v680 = vld [vmem:[%s652 + $0x60] sm:$0x1]
      %v681 = vsel %vm655, 0, %v680
      %682 = vst [vmem:[%s652 + $0x60] sm:$0x1] %v681
      %v683 = vld [vmem:[%s652 + $0x6c] sm:$0x1]
      %v684 = vsel %vm655, 0, %v683
      %685 = vst [vmem:[%s652 + $0x6c] sm:$0x1] %v684
      %v686 = vld [vmem:[%s652 + $0x78] sm:$0x1]
      %v687 = vsel %vm655, 0, %v686
      %688 = vst [vmem:[%s652 + $0x78] sm:$0x1] %v687
      %v689 = vld [vmem:[%s652 + $0x84] sm:$0x1]
      %v690 = vsel %vm655, 0, %v689
      %691 = vst [vmem:[%s652 + $0x84] sm:$0x1] %v690
      %v692 = vld [vmem:[%s652 + $0x90] sm:$0x1]
      %v693 = vsel %vm655, 0, %v692
      %694 = vst [vmem:[%s652 + $0x90] sm:$0x1] %v693
      %v695 = vld [vmem:[%s652 + $0x9c] sm:$0x1]
      %v696 = vsel %vm655, 0, %v695
      %697 = vst [vmem:[%s652 + $0x9c] sm:$0x1] %v696
      %v698 = vld [vmem:[%s652 + $0xa8] sm:$0x1]
      %v699 = vsel %vm655, 0, %v698
      %700 = vst [vmem:[%s652 + $0xa8] sm:$0x1] %v699
      %v701 = vld [vmem:[%s652 + $0xb4] sm:$0x1]
      %v702 = vsel %vm655, 0, %v701
      %703 = vst [vmem:[%s652 + $0xb4] sm:$0x1] %v702
      %vm704 = vsmask.f32 7938
      %vm705 = vmand %vm653, %vm704
      %v706 = vld [vmem:[%s652 + $0x8] sm:$0x1]
      %v707 = vsel %vm705, 0, %v706
      %708 = vst [vmem:[%s652 + $0x8] sm:$0x1] %v707
      %v709 = vld [vmem:[%s652 + $0x14] sm:$0x1]
      %v710 = vsel %vm705, 0, %v709
      %711 = vst [vmem:[%s652 + $0x14] sm:$0x1] %v710
      %v712 = vld [vmem:[%s652 + $0x20] sm:$0x1]
      %v713 = vsel %vm705, 0, %v712
      %714 = vst [vmem:[%s652 + $0x20] sm:$0x1] %v713
      %v715 = vld [vmem:[%s652 + $0x2c] sm:$0x1]
      %v716 = vsel %vm705, 0, %v715
      %717 = vst [vmem:[%s652 + $0x2c] sm:$0x1] %v716
      %v718 = vld [vmem:[%s652 + $0x38] sm:$0x1]
      %v719 = vsel %vm705, 0, %v718
      %720 = vst [vmem:[%s652 + $0x38] sm:$0x1] %v719
      %v721 = vld [vmem:[%s652 + $0x44] sm:$0x1]
      %v722 = vsel %vm705, 0, %v721
      %723 = vst [vmem:[%s652 + $0x44] sm:$0x1] %v722
      %v724 = vld [vmem:[%s652 + $0x50] sm:$0x1]
      %v725 = vsel %vm705, 0, %v724
      %726 = vst [vmem:[%s652 + $0x50] sm:$0x1] %v725
      %v727 = vld [vmem:[%s652 + $0x5c] sm:$0x1]
      %v728 = vsel %vm705, 0, %v727
      %729 = vst [vmem:[%s652 + $0x5c] sm:$0x1] %v728
      %v730 = vld [vmem:[%s652 + $0x68] sm:$0x1]
      %v731 = vsel %vm705, 0, %v730
      %732 = vst [vmem:[%s652 + $0x68] sm:$0x1] %v731
      %v733 = vld [vmem:[%s652 + $0x74] sm:$0x1]
      %v734 = vsel %vm705, 0, %v733
      %735 = vst [vmem:[%s652 + $0x74] sm:$0x1] %v734
      %v736 = vld [vmem:[%s652 + $0x80] sm:$0x1]
      %v737 = vsel %vm705, 0, %v736
      %738 = vst [vmem:[%s652 + $0x80] sm:$0x1] %v737
      %v739 = vld [vmem:[%s652 + $0x8c] sm:$0x1]
      %v740 = vsel %vm705, 0, %v739
      %741 = vst [vmem:[%s652 + $0x8c] sm:$0x1] %v740
      %v742 = vld [vmem:[%s652 + $0x98] sm:$0x1]
      %v743 = vsel %vm705, 0, %v742
      %744 = vst [vmem:[%s652 + $0x98] sm:$0x1] %v743
      %v745 = vld [vmem:[%s652 + $0xa4] sm:$0x1]
      %v746 = vsel %vm705, 0, %v745
      %747 = vst [vmem:[%s652 + $0xa4] sm:$0x1] %v746
      %v748 = vld [vmem:[%s652 + $0xb0] sm:$0x1]
      %v749 = vsel %vm705, 0, %v748
      %750 = vst [vmem:[%s652 + $0xb0] sm:$0x1] %v749
      %v751 = vld [vmem:[%s652 + $0xbc] sm:$0x1]
      %v752 = vsel %vm705, 0, %v751
      %753 = vst [vmem:[%s652 + $0xbc] sm:$0x1] %v752
      %vm754 = vsmask.f32 4368
      %vm755 = vmor %vm654, %vm754
      %v757 = vshrl.u32 %v613, 16
      %v759 = vrot.slane %v757, 7
      %v760 = vshll.u32 %v613, 16
      %v762 = vor.u32 %v759, %v760
      %v763 = vrot.slane %v759, 4
      %v765 = vshrl.u32 %v614, 16
      %v767 = vrot.slane %v765, 7
      %v768 = vshll.u32 %v614, 16
      %v770 = vor.u32 %v767, %v768
      %v771 = vsel %vm755, %v763, %v770
      %v772 = vrot.slane %v767, 4
      %v774 = vshrl.u32 %v615, 16
      %v776 = vrot.slane %v774, 7
      %v777 = vshll.u32 %v615, 16
      %v779 = vor.u32 %v776, %v777
      %v780 = vrot.slane %v776, 4
      %v782 = vshrl.u32 %v616, 16
      %v784 = vrot.slane %v782, 7
      %v785 = vshll.u32 %v616, 16
      %v787 = vor.u32 %v784, %v785
      %v788 = vsel %vm755, %v780, %v787
      %v789 = vrot.slane %v784, 4
      %v791 = vshrl.u32 %v617, 16
      %v793 = vrot.slane %v791, 7
      %v794 = vshll.u32 %v617, 16
      %v796 = vor.u32 %v793, %v794
      %v797 = vrot.slane %v793, 4
      %v799 = vshrl.u32 %v618, 16
      %v801 = vrot.slane %v799, 7
      %v802 = vshll.u32 %v618, 16
      %v804 = vor.u32 %v801, %v802
      %v805 = vsel %vm755, %v797, %v804
      %v806 = vrot.slane %v801, 4
      %v808 = vshrl.u32 %v619, 16
      %v810 = vrot.slane %v808, 7
      %v811 = vshll.u32 %v619, 16
      %v813 = vor.u32 %v810, %v811
      %v814 = vrot.slane %v810, 4
      %v816 = vshrl.u32 %v620, 16
      %v818 = vrot.slane %v816, 7
      %v819 = vshll.u32 %v620, 16
      %v821 = vor.u32 %v818, %v819
      %v822 = vsel %vm755, %v814, %v821
      %v823 = vrot.slane %v818, 4
      %v825 = vshrl.u32 %v621, 16
      %v827 = vrot.slane %v825, 7
      %v828 = vshll.u32 %v621, 16
      %v830 = vor.u32 %v827, %v828
      %v831 = vrot.slane %v827, 4
      %v833 = vshrl.u32 %v622, 16
      %v835 = vrot.slane %v833, 7
      %v836 = vshll.u32 %v622, 16
      %v838 = vor.u32 %v835, %v836
      %v839 = vsel %vm755, %v831, %v838
      %v840 = vrot.slane %v835, 4
      %v842 = vshrl.u32 %v623, 16
      %v844 = vrot.slane %v842, 7
      %v845 = vshll.u32 %v623, 16
      %v847 = vor.u32 %v844, %v845
      %v848 = vrot.slane %v844, 4
      %v850 = vshrl.u32 %v624, 16
      %v852 = vrot.slane %v850, 7
      %v853 = vshll.u32 %v624, 16
      %v855 = vor.u32 %v852, %v853
      %v856 = vsel %vm755, %v848, %v855
      %v857 = vrot.slane %v852, 4
      %v859 = vshrl.u32 %v625, 16
      %v861 = vrot.slane %v859, 7
      %v862 = vshll.u32 %v625, 16
      %v864 = vor.u32 %v861, %v862
      %v865 = vrot.slane %v861, 4
      %v867 = vshrl.u32 %v626, 16
      %v869 = vrot.slane %v867, 7
      %v870 = vshll.u32 %v626, 16
      %v872 = vor.u32 %v869, %v870
      %v873 = vsel %vm755, %v865, %v872
      %v874 = vrot.slane %v869, 4
      %v876 = vshrl.u32 %v627, 16
      %v878 = vrot.slane %v876, 7
      %v879 = vshll.u32 %v627, 16
      %v881 = vor.u32 %v878, %v879
      %v882 = vrot.slane %v878, 4
      %v884 = vshrl.u32 %v628, 16
      %v886 = vrot.slane %v884, 7
      %v887 = vshll.u32 %v628, 16
      %v889 = vor.u32 %v886, %v887
      %v890 = vsel %vm755, %v882, %v889
      %v891 = vrot.slane %v886, 4
      %v893 = vshrl.u32 %v629, 16
      %v895 = vrot.slane %v893, 7
      %v896 = vshll.u32 %v629, 16
      %v898 = vor.u32 %v895, %v896
      %v899 = vrot.slane %v895, 4
      %v901 = vshrl.u32 %v630, 16
      %v903 = vrot.slane %v901, 7
      %v904 = vshll.u32 %v630, 16
      %v906 = vor.u32 %v903, %v904
      %v907 = vsel %vm755, %v899, %v906
      %v908 = vrot.slane %v903, 4
      %v910 = vshrl.u32 %v631, 16
      %v912 = vrot.slane %v910, 7
      %v913 = vshll.u32 %v631, 16
      %v915 = vor.u32 %v912, %v913
      %v916 = vrot.slane %v912, 4
      %v918 = vshrl.u32 %v632, 16
      %v920 = vrot.slane %v918, 7
      %v921 = vshll.u32 %v632, 16
      %v923 = vor.u32 %v920, %v921
      %v924 = vsel %vm755, %v916, %v923
      %v925 = vrot.slane %v920, 4
      %v927 = vshrl.u32 %v633, 16
      %v929 = vrot.slane %v927, 7
      %v930 = vshll.u32 %v633, 16
      %v932 = vor.u32 %v929, %v930
      %v933 = vrot.slane %v929, 4
      %v935 = vshrl.u32 %v634, 16
      %v937 = vrot.slane %v935, 7
      %v938 = vshll.u32 %v634, 16
      %v940 = vor.u32 %v937, %v938
      %v941 = vsel %vm755, %v933, %v940
      %v942 = vrot.slane %v937, 4
      %v944 = vshrl.u32 %v635, 16
      %v946 = vrot.slane %v944, 7
      %v947 = vshll.u32 %v635, 16
      %v949 = vor.u32 %v946, %v947
      %v950 = vrot.slane %v946, 4
      %v952 = vshrl.u32 %v636, 16
      %v954 = vrot.slane %v952, 7
      %v955 = vshll.u32 %v636, 16
      %v957 = vor.u32 %v954, %v955
      %v958 = vsel %vm755, %v950, %v957
      %v959 = vrot.slane %v954, 4
      %v961 = vshrl.u32 %v637, 16
      %v963 = vrot.slane %v961, 7
      %v964 = vshll.u32 %v637, 16
      %v966 = vor.u32 %v963, %v964
      %v967 = vrot.slane %v963, 4
      %v969 = vshrl.u32 %v638, 16
      %v971 = vrot.slane %v969, 7
      %v972 = vshll.u32 %v638, 16
      %v974 = vor.u32 %v971, %v972
      %v975 = vsel %vm755, %v967, %v974
      %v976 = vrot.slane %v971, 4
      %v978 = vshrl.u32 %v639, 16
      %v980 = vrot.slane %v978, 7
      %v981 = vshll.u32 %v639, 16
      %v983 = vor.u32 %v980, %v981
      %v984 = vrot.slane %v980, 4
      %v986 = vshrl.u32 %v640, 16
      %v988 = vrot.slane %v986, 7
      %v989 = vshll.u32 %v640, 16
      %v991 = vor.u32 %v988, %v989
      %v992 = vsel %vm755, %v984, %v991
      %v993 = vrot.slane %v988, 4
      %v995 = vshrl.u32 %v641, 16
      %v997 = vrot.slane %v995, 7
      %v998 = vshll.u32 %v641, 16
      %v1000 = vor.u32 %v997, %v998
      %v1001 = vrot.slane %v997, 4
      %v1003 = vshrl.u32 %v642, 16
      %v1005 = vrot.slane %v1003, 7
      %v1006 = vshll.u32 %v642, 16
      %v1008 = vor.u32 %v1005, %v1006
      %v1009 = vsel %vm755, %v1001, %v1008
      %v1010 = vrot.slane %v1005, 4
      %v1012 = vshrl.u32 %v643, 16
      %v1014 = vrot.slane %v1012, 7
      %v1015 = vshll.u32 %v643, 16
      %v1017 = vor.u32 %v1014, %v1015
      %v1018 = vrot.slane %v1014, 4
      %v1020 = vshrl.u32 %v644, 16
      %v1022 = vrot.slane %v1020, 7
      %v1023 = vshll.u32 %v644, 16
      %v1025 = vor.u32 %v1022, %v1023
      %v1026 = vsel %vm755, %v1018, %v1025
      %v1027 = vrot.slane %v1022, 4
      %vm1076 = vcmask 1043456
      %vm1077 = vmand %vm1076, %vm704
      %v1078 = vld [vmem:[%s652] sm:$0xf]
      %v1079 = vsel %vm1077, %v762, %v1078
      %1080 = vst [vmem:[%s652] sm:$0xf] %v1079
      %1081 = vst [vmem:[%s652 + $0x4] sm:$0xf] %v771
      %v1082 = vld [vmem:[%s652 + $0x8] sm:$0x1]
      %v1083 = vsel %vm655, %v772, %v1082
      %1084 = vst [vmem:[%s652 + $0x8] sm:$0x1] %v1083
      %v1085 = vld [vmem:[%s652 + $0xc] sm:$0xf]
      %v1086 = vsel %vm1077, %v779, %v1085
      %1087 = vst [vmem:[%s652 + $0xc] sm:$0xf] %v1086
      %1088 = vst [vmem:[%s652 + $0x10] sm:$0xf] %v788
      %v1089 = vld [vmem:[%s652 + $0x14] sm:$0x1]
      %v1090 = vsel %vm655, %v789, %v1089
      %1091 = vst [vmem:[%s652 + $0x14] sm:$0x1] %v1090
      %v1092 = vld [vmem:[%s652 + $0x18] sm:$0xf]
      %v1093 = vsel %vm1077, %v796, %v1092
      %1094 = vst [vmem:[%s652 + $0x18] sm:$0xf] %v1093
      %1095 = vst [vmem:[%s652 + $0x1c] sm:$0xf] %v805
      %v1096 = vld [vmem:[%s652 + $0x20] sm:$0x1]
      %v1097 = vsel %vm655, %v806, %v1096
      %1098 = vst [vmem:[%s652 + $0x20] sm:$0x1] %v1097
      %v1099 = vld [vmem:[%s652 + $0x24] sm:$0xf]
      %v1100 = vsel %vm1077, %v813, %v1099
      %1101 = vst [vmem:[%s652 + $0x24] sm:$0xf] %v1100
      %1102 = vst [vmem:[%s652 + $0x28] sm:$0xf] %v822
      %v1103 = vld [vmem:[%s652 + $0x2c] sm:$0x1]
      %v1104 = vsel %vm655, %v823, %v1103
      %1105 = vst [vmem:[%s652 + $0x2c] sm:$0x1] %v1104
      %v1106 = vld [vmem:[%s652 + $0x30] sm:$0xf]
      %v1107 = vsel %vm1077, %v830, %v1106
      %1108 = vst [vmem:[%s652 + $0x30] sm:$0xf] %v1107
      %1109 = vst [vmem:[%s652 + $0x34] sm:$0xf] %v839
      %v1110 = vld [vmem:[%s652 + $0x38] sm:$0x1]
      %v1111 = vsel %vm655, %v840, %v1110
      %1112 = vst [vmem:[%s652 + $0x38] sm:$0x1] %v1111
      %v1113 = vld [vmem:[%s652 + $0x3c] sm:$0xf]
      %v1114 = vsel %vm1077, %v847, %v1113
      %1115 = vst [vmem:[%s652 + $0x3c] sm:$0xf] %v1114
      %1116 = vst [vmem:[%s652 + $0x40] sm:$0xf] %v856
      %v1117 = vld [vmem:[%s652 + $0x44] sm:$0x1]
      %v1118 = vsel %vm655, %v857, %v1117
      %1119 = vst [vmem:[%s652 + $0x44] sm:$0x1] %v1118
      %v1120 = vld [vmem:[%s652 + $0x48] sm:$0xf]
      %v1121 = vsel %vm1077, %v864, %v1120
      %1122 = vst [vmem:[%s652 + $0x48] sm:$0xf] %v1121
      %1123 = vst [vmem:[%s652 + $0x4c] sm:$0xf] %v873
      %v1124 = vld [vmem:[%s652 + $0x50] sm:$0x1]
      %v1125 = vsel %vm655, %v874, %v1124
      %1126 = vst [vmem:[%s652 + $0x50] sm:$0x1] %v1125
      %v1127 = vld [vmem:[%s652 + $0x54] sm:$0xf]
      %v1128 = vsel %vm1077, %v881, %v1127
      %1129 = vst [vmem:[%s652 + $0x54] sm:$0xf] %v1128
      %1130 = vst [vmem:[%s652 + $0x58] sm:$0xf] %v890
      %v1131 = vld [vmem:[%s652 + $0x5c] sm:$0x1]
      %v1132 = vsel %vm655, %v891, %v1131
      %1133 = vst [vmem:[%s652 + $0x5c] sm:$0x1] %v1132
      %v1134 = vld [vmem:[%s652 + $0x60] sm:$0xf]
      %v1135 = vsel %vm1077, %v898, %v1134
      %1136 = vst [vmem:[%s652 + $0x60] sm:$0xf] %v1135
      %1137 = vst [vmem:[%s652 + $0x64] sm:$0xf] %v907
      %v1138 = vld [vmem:[%s652 + $0x68] sm:$0x1]
      %v1139 = vsel %vm655, %v908, %v1138
      %1140 = vst [vmem:[%s652 + $0x68] sm:$0x1] %v1139
      %v1141 = vld [vmem:[%s652 + $0x6c] sm:$0xf]
      %v1142 = vsel %vm1077, %v915, %v1141
      %1143 = vst [vmem:[%s652 + $0x6c] sm:$0xf] %v1142
      %1144 = vst [vmem:[%s652 + $0x70] sm:$0xf] %v924
      %v1145 = vld [vmem:[%s652 + $0x74] sm:$0x1]
      %v1146 = vsel %vm655, %v925, %v1145
      %1147 = vst [vmem:[%s652 + $0x74] sm:$0x1] %v1146
      %v1148 = vld [vmem:[%s652 + $0x78] sm:$0xf]
      %v1149 = vsel %vm1077, %v932, %v1148
      %1150 = vst [vmem:[%s652 + $0x78] sm:$0xf] %v1149
      %1151 = vst [vmem:[%s652 + $0x7c] sm:$0xf] %v941
      %v1152 = vld [vmem:[%s652 + $0x80] sm:$0x1]
      %v1153 = vsel %vm655, %v942, %v1152
      %1154 = vst [vmem:[%s652 + $0x80] sm:$0x1] %v1153
      %v1155 = vld [vmem:[%s652 + $0x84] sm:$0xf]
      %v1156 = vsel %vm1077, %v949, %v1155
      %1157 = vst [vmem:[%s652 + $0x84] sm:$0xf] %v1156
      %1158 = vst [vmem:[%s652 + $0x88] sm:$0xf] %v958
      %v1159 = vld [vmem:[%s652 + $0x8c] sm:$0x1]
      %v1160 = vsel %vm655, %v959, %v1159
      %1161 = vst [vmem:[%s652 + $0x8c] sm:$0x1] %v1160
      %v1162 = vld [vmem:[%s652 + $0x90] sm:$0xf]
      %v1163 = vsel %vm1077, %v966, %v1162
      %1164 = vst [vmem:[%s652 + $0x90] sm:$0xf] %v1163
      %1165 = vst [vmem:[%s652 + $0x94] sm:$0xf] %v975
      %v1166 = vld [vmem:[%s652 + $0x98] sm:$0x1]
      %v1167 = vsel %vm655, %v976, %v1166
      %1168 = vst [vmem:[%s652 + $0x98] sm:$0x1] %v1167
      %v1169 = vld [vmem:[%s652 + $0x9c] sm:$0xf]
      %v1170 = vsel %vm1077, %v983, %v1169
      %1171 = vst [vmem:[%s652 + $0x9c] sm:$0xf] %v1170
      %1172 = vst [vmem:[%s652 + $0xa0] sm:$0xf] %v992
      %v1173 = vld [vmem:[%s652 + $0xa4] sm:$0x1]
      %v1174 = vsel %vm655, %v993, %v1173
      %1175 = vst [vmem:[%s652 + $0xa4] sm:$0x1] %v1174
      %v1176 = vld [vmem:[%s652 + $0xa8] sm:$0xf]
      %v1177 = vsel %vm1077, %v1000, %v1176
      %1178 = vst [vmem:[%s652 + $0xa8] sm:$0xf] %v1177
      %1179 = vst [vmem:[%s652 + $0xac] sm:$0xf] %v1009
      %v1180 = vld [vmem:[%s652 + $0xb0] sm:$0x1]
      %v1181 = vsel %vm655, %v1010, %v1180
      %1182 = vst [vmem:[%s652 + $0xb0] sm:$0x1] %v1181
      %v1183 = vld [vmem:[%s652 + $0xb4] sm:$0xf]
      %v1184 = vsel %vm1077, %v1017, %v1183
      %1185 = vst [vmem:[%s652 + $0xb4] sm:$0xf] %v1184
      %1186 = vst [vmem:[%s652 + $0xb8] sm:$0xf] %v1026
      %v1187 = vld [vmem:[%s652 + $0xbc] sm:$0x1]
      %v1188 = vsel %vm655, %v1027, %v1187
      %1189 = vst [vmem:[%s652 + $0xbc] sm:$0x1] %v1188
      %v1190 = vld [vmem:[%s4] sm:$0x3]
      %v1192 = vperm.slane %v1190, 0
      %v1193 = vperm.slane %v1190, 1
      %1196 = vst [vmem:[#allocation3] sm:$0xff] %v1192
      %1197 = vst [vmem:[#allocation3 + $0x8] sm:$0xff] %v1193
      %1198 = vst [vmem:[#allocation3 + $0x10] sm:$0xff] %v1192
      %1199 = vst [vmem:[#allocation3 + $0x18] sm:$0xff] %v1193
      %1200 = vst [vmem:[#allocation3 + $0x20] sm:$0xff] %v1192
      %1201 = vst [vmem:[#allocation3 + $0x28] sm:$0xff] %v1193
      %1202 = vst [vmem:[#allocation3 + $0x30] sm:$0xff] %v1192
      %1203 = vst [vmem:[#allocation3 + $0x38] sm:$0xff] %v1193
      %1204 = vst [vmem:[#allocation3 + $0x40] sm:$0xff] %v1192
      %1205 = vst [vmem:[#allocation3 + $0x48] sm:$0xff] %v1193
      %1206 = vst [vmem:[#allocation3 + $0x50] sm:$0xff] %v1192
      %1207 = vst [vmem:[#allocation3 + $0x58] sm:$0xff] %v1193
      %1208 = vst [vmem:[#allocation3 + $0x60] sm:$0xff] %v1192
      %1209 = vst [vmem:[#allocation3 + $0x68] sm:$0xff] %v1193
      %1210 = vst [vmem:[#allocation3 + $0x70] sm:$0xff] %v1192
      %1211 = vst [vmem:[#allocation3 + $0x78] sm:$0xff] %v1193
      %1212 = vst [vmem:[#allocation3 + $0x80] sm:$0xff] %v1192
      %1213 = vst [vmem:[#allocation3 + $0x88] sm:$0xff] %v1193
      %1214 = vst [vmem:[#allocation3 + $0x90] sm:$0xff] %v1192
      %1215 = vst [vmem:[#allocation3 + $0x98] sm:$0xff] %v1193
      %1216 = vst [vmem:[#allocation3 + $0xa0] sm:$0xff] %v1192
      %1217 = vst [vmem:[#allocation3 + $0xa8] sm:$0xff] %v1193
      %1218 = vst [vmem:[#allocation3 + $0xb0] sm:$0xff] %v1192
      %1219 = vst [vmem:[#allocation3 + $0xb8] sm:$0xff] %v1193
      %1220 = vst [vmem:[#allocation3 + $0xc0] sm:$0xff] %v1192
      %1221 = vst [vmem:[#allocation3 + $0xc8] sm:$0xff] %v1193
      %1222 = vst [vmem:[#allocation3 + $0xd0] sm:$0xff] %v1192
      %1223 = vst [vmem:[#allocation3 + $0xd8] sm:$0xff] %v1193
      %1224 = vst [vmem:[#allocation3 + $0xe0] sm:$0xff] %v1192
      %1225 = vst [vmem:[#allocation3 + $0xe8] sm:$0xff] %v1193
      %1226 = vst [vmem:[#allocation3 + $0xf0] sm:$0xff] %v1192
      %1227 = vst [vmem:[#allocation3 + $0xf8] sm:$0xff] %v1193
      %1228 = vst [vmem:[#allocation3 + $0x100] sm:$0xff] %v1192
      %1229 = vst [vmem:[#allocation3 + $0x108] sm:$0xff] %v1193
      %1230 = vst [vmem:[#allocation3 + $0x110] sm:$0xff] %v1192
      %1231 = vst [vmem:[#allocation3 + $0x118] sm:$0xff] %v1193
      %1232 = vst [vmem:[#allocation3 + $0x120] sm:$0xff] %v1192
      %1233 = vst [vmem:[#allocation3 + $0x128] sm:$0xff] %v1193
      %1234 = vst [vmem:[#allocation3 + $0x130] sm:$0xff] %v1192
      %1235 = vst [vmem:[#allocation3 + $0x138] sm:$0xff] %v1193
      %1236 = vst [vmem:[#allocation3 + $0x140] sm:$0xff] %v1192
      %1237 = vst [vmem:[#allocation3 + $0x148] sm:$0xff] %v1193
      %1238 = vst [vmem:[#allocation3 + $0x150] sm:$0xff] %v1192
      %1239 = vst [vmem:[#allocation3 + $0x158] sm:$0xff] %v1193
      %1240 = vst [vmem:[#allocation3 + $0x160] sm:$0xff] %v1192
      %1241 = vst [vmem:[#allocation3 + $0x168] sm:$0xff] %v1193
      %1242 = vst [vmem:[#allocation3 + $0x170] sm:$0xff] %v1192
      %1243 = vst [vmem:[#allocation3 + $0x178] sm:$0xff] %v1193
      %1244 = vst [vmem:[#allocation3 + $0x180] sm:$0xff] %v1192
      %1245 = vst [vmem:[#allocation3 + $0x188] sm:$0xff] %v1193
      %1246 = vst [vmem:[#allocation3 + $0x190] sm:$0xff] %v1192
      %1247 = vst [vmem:[#allocation3 + $0x198] sm:$0xff] %v1193
      %1248 = vst [vmem:[#allocation3 + $0x1a0] sm:$0xff] %v1192
      %1249 = vst [vmem:[#allocation3 + $0x1a8] sm:$0xff] %v1193
      %1250 = vst [vmem:[#allocation3 + $0x1b0] sm:$0xff] %v1192
      %1251 = vst [vmem:[#allocation3 + $0x1b8] sm:$0xff] %v1193
      %1252 = vst [vmem:[#allocation3 + $0x1c0] sm:$0xff] %v1192
      %1253 = vst [vmem:[#allocation3 + $0x1c8] sm:$0xff] %v1193
      %1254 = vst [vmem:[#allocation3 + $0x1d0] sm:$0xff] %v1192
      %1255 = vst [vmem:[#allocation3 + $0x1d8] sm:$0xff] %v1193
      %1256 = vst [vmem:[#allocation3 + $0x1e0] sm:$0xff] %v1192
      %1257 = vst [vmem:[#allocation3 + $0x1e8] sm:$0xff] %v1193
      %1258 = vst [vmem:[#allocation3 + $0x1f0] sm:$0xff] %v1192
      %1259 = vst [vmem:[#allocation3 + $0x1f8] sm:$0xff] %v1193
      %v1260 = vld [vmem:[#allocation2] sm:$0xf]
      %v1261 = vld [vmem:[#allocation2 + $0x4] sm:$0xf]
      %v1262 = vld [vmem:[#allocation2 + $0x8] sm:$0x1]
      %v1263 = vld [vmem:[#allocation2 + $0xc] sm:$0xf]
      %v1264 = vld [vmem:[#allocation2 + $0x10] sm:$0xf]
      %v1265 = vld [vmem:[#allocation2 + $0x14] sm:$0x1]
      %v1266 = vld [vmem:[#allocation2 + $0x18] sm:$0xf]
      %v1267 = vld [vmem:[#allocation2 + $0x1c] sm:$0xf]
      %v1268 = vld [vmem:[#allocation2 + $0x20] sm:$0x1]
      %v1269 = vld [vmem:[#allocation2 + $0x24] sm:$0xf]
      %v1270 = vld [vmem:[#allocation2 + $0x28] sm:$0xf]
      %v1271 = vld [vmem:[#allocation2 + $0x2c] sm:$0x1]
      %v1272 = vld [vmem:[#allocation2 + $0x30] sm:$0xf]
      %v1273 = vld [vmem:[#allocation2 + $0x34] sm:$0xf]
      %v1274 = vld [vmem:[#allocation2 + $0x38] sm:$0x1]
      %v1275 = vld [vmem:[#allocation2 + $0x3c] sm:$0xf]
      %v1276 = vld [vmem:[#allocation2 + $0x40] sm:$0xf]
      %v1277 = vld [vmem:[#allocation2 + $0x44] sm:$0x1]
      %v1278 = vld [vmem:[#allocation2 + $0x48] sm:$0xf]
      %v1279 = vld [vmem:[#allocation2 + $0x4c] sm:$0xf]
      %v1280 = vld [vmem:[#allocation2 + $0x50] sm:$0x1]
      %v1281 = vld [vmem:[#allocation2 + $0x54] sm:$0xf]
      %v1282 = vld [vmem:[#allocation2 + $0x58] sm:$0xf]
      %v1283 = vld [vmem:[#allocation2 + $0x5c] sm:$0x1]
      %v1284 = vld [vmem:[#allocation2 + $0x60] sm:$0xf]
      %v1285 = vld [vmem:[#allocation2 + $0x64] sm:$0xf]
      %v1286 = vld [vmem:[#allocation2 + $0x68] sm:$0x1]
      %v1287 = vld [vmem:[#allocation2 + $0x6c] sm:$0xf]
      %v1288 = vld [vmem:[#allocation2 + $0x70] sm:$0xf]
      %v1289 = vld [vmem:[#allocation2 + $0x74] sm:$0x1]
      %v1290 = vld [vmem:[#allocation2 + $0x78] sm:$0xf]
      %v1291 = vld [vmem:[#allocation2 + $0x7c] sm:$0xf]
      %v1292 = vld [vmem:[#allocation2 + $0x80] sm:$0x1]
      %v1293 = vld [vmem:[#allocation2 + $0x84] sm:$0xf]
      %v1294 = vld [vmem:[#allocation2 + $0x88] sm:$0xf]
      %v1295 = vld [vmem:[#allocation2 + $0x8c] sm:$0x1]
      %v1296 = vld [vmem:[#allocation2 + $0x90] sm:$0xf]
      %v1297 = vld [vmem:[#allocation2 + $0x94] sm:$0xf]
      %v1298 = vld [vmem:[#allocation2 + $0x98] sm:$0x1]
      %v1299 = vld [vmem:[#allocation2 + $0x9c] sm:$0xf]
      %v1300 = vld [vmem:[#allocation2 + $0xa0] sm:$0xf]
      %v1301 = vld [vmem:[#allocation2 + $0xa4] sm:$0x1]
      %v1302 = vld [vmem:[#allocation2 + $0xa8] sm:$0xf]
      %v1303 = vld [vmem:[#allocation2 + $0xac] sm:$0xf]
      %v1304 = vld [vmem:[#allocation2 + $0xb0] sm:$0x1]
      %v1305 = vld [vmem:[#allocation2 + $0xb4] sm:$0xf]
      %v1306 = vld [vmem:[#allocation2 + $0xb8] sm:$0xf]
      %v1307 = vld [vmem:[#allocation2 + $0xbc] sm:$0x1]
      %v1308 = vld [vmem:[#allocation2 + $0xc0] sm:$0xf]
      %v1309 = vld [vmem:[#allocation2 + $0xc4] sm:$0xf]
      %v1310 = vld [vmem:[#allocation2 + $0xc8] sm:$0x1]
      %v1311 = vld [vmem:[#allocation2 + $0xcc] sm:$0xf]
      %v1312 = vld [vmem:[#allocation2 + $0xd0] sm:$0xf]
      %v1313 = vld [vmem:[#allocation2 + $0xd4] sm:$0x1]
      %v1314 = vld [vmem:[#allocation3] sm:$0xff]
      %v1315 = vld [vmem:[#allocation3 + $0x8] sm:$0xff]
      %v1316 = vld [vmem:[#allocation3 + $0x10] sm:$0xff]
      %v1317 = vld [vmem:[#allocation3 + $0x18] sm:$0xff]
      %v1318 = vld [vmem:[#allocation3 + $0x20] sm:$0xff]
      %v1319 = vld [vmem:[#allocation3 + $0x28] sm:$0xff]
      %v1320 = vld [vmem:[#allocation3 + $0x30] sm:$0xff]
      %v1321 = vld [vmem:[#allocation3 + $0x38] sm:$0xff]
      %v1322 = vld [vmem:[#allocation3 + $0x40] sm:$0xff]
      %v1323 = vld [vmem:[#allocation3 + $0x48] sm:$0xff]
      %v1324 = vld [vmem:[#allocation3 + $0x50] sm:$0xff]
      %v1325 = vld [vmem:[#allocation3 + $0x58] sm:$0xff]
      %v1326 = vld [vmem:[#allocation3 + $0x60] sm:$0xff]
      %v1327 = vld [vmem:[#allocation3 + $0x68] sm:$0xff]
      %v1328 = vld [vmem:[#allocation3 + $0x70] sm:$0xff]
      %v1329 = vld [vmem:[#allocation3 + $0x78] sm:$0xff]
      %v1330 = vld [vmem:[#allocation3 + $0x80] sm:$0xff]
      %v1331 = vld [vmem:[#allocation3 + $0x88] sm:$0xff]
      %v1332 = vld [vmem:[#allocation3 + $0x90] sm:$0xff]
      %v1333 = vld [vmem:[#allocation3 + $0x98] sm:$0xff]
      %v1334 = vld [vmem:[#allocation3 + $0xa0] sm:$0xff]
      %v1335 = vld [vmem:[#allocation3 + $0xa8] sm:$0xff]
      %v1336 = vld [vmem:[#allocation3 + $0xb0] sm:$0xff]
      %v1337 = vld [vmem:[#allocation3 + $0xb8] sm:$0xff]
      %v1338 = vld [vmem:[#allocation3 + $0xc0] sm:$0xff]
      %v1339 = vld [vmem:[#allocation3 + $0xc8] sm:$0xff]
      %v1340 = vld [vmem:[#allocation3 + $0xd0] sm:$0xff]
      %v1341 = vld [vmem:[#allocation3 + $0xd8] sm:$0xff]
      %v1342 = vld [vmem:[#allocation3 + $0xe0] sm:$0xff]
      %v1343 = vld [vmem:[#allocation3 + $0xe8] sm:$0xff]
      %v1344 = vld [vmem:[#allocation3 + $0xf0] sm:$0xff]
      %v1345 = vld [vmem:[#allocation3 + $0xf8] sm:$0xff]
      %v1346 = vld [vmem:[#allocation3 + $0x100] sm:$0xff]
      %v1347 = vld [vmem:[#allocation3 + $0x108] sm:$0xff]
      %v1348 = vld [vmem:[#allocation3 + $0x110] sm:$0xff]
      %v1349 = vld [vmem:[#allocation3 + $0x118] sm:$0xff]
      %v1350 = vld [vmem:[#allocation3 + $0x120] sm:$0xff]
      %v1351 = vld [vmem:[#allocation3 + $0x128] sm:$0xff]
      %v1352 = vld [vmem:[#allocation3 + $0x130] sm:$0xff]
      %v1353 = vld [vmem:[#allocation3 + $0x138] sm:$0xff]
      %v1354 = vld [vmem:[#allocation3 + $0x140] sm:$0xff]
      %v1355 = vld [vmem:[#allocation3 + $0x148] sm:$0xff]
      %v1356 = vld [vmem:[#allocation3 + $0x150] sm:$0xff]
      %v1357 = vld [vmem:[#allocation3 + $0x158] sm:$0xff]
      %v1358 = vld [vmem:[#allocation3 + $0x160] sm:$0xff]
      %v1359 = vld [vmem:[#allocation3 + $0x168] sm:$0xff]
      %v1360 = vld [vmem:[#allocation3 + $0x170] sm:$0xff]
      %v1361 = vld [vmem:[#allocation3 + $0x178] sm:$0xff]
      %v1362 = vld [vmem:[#allocation3 + $0x180] sm:$0xff]
      %v1363 = vld [vmem:[#allocation3 + $0x188] sm:$0xff]
      %v1364 = vld [vmem:[#allocation3 + $0x190] sm:$0xff]
      %v1365 = vld [vmem:[#allocation3 + $0x198] sm:$0xff]
      %v1366 = vld [vmem:[#allocation3 + $0x1a0] sm:$0xff]
      %v1367 = vld [vmem:[#allocation3 + $0x1a8] sm:$0xff]
      %v1368 = vld [vmem:[#allocation3 + $0x1b0] sm:$0xff]
      %v1369 = vld [vmem:[#allocation3 + $0x1b8] sm:$0xff]
      %v1370 = vld [vmem:[#allocation3 + $0x1c0] sm:$0xff]
      %v1371 = vld [vmem:[#allocation3 + $0x1c8] sm:$0xff]
      %v1372 = vld [vmem:[#allocation3 + $0x1d0] sm:$0xff]
      %v1373 = vld [vmem:[#allocation3 + $0x1d8] sm:$0xff]
      %v1374 = vld [vmem:[#allocation3 + $0x1e0] sm:$0xff]
      %v1375 = vld [vmem:[#allocation3 + $0x1e8] sm:$0xff]
      %v1376 = vld [vmem:[#allocation3 + $0x1f0] sm:$0xff]
      %v1377 = vld [vmem:[#allocation3 + $0x1f8] sm:$0xff]
      %v1378 = vld [vmem:[%s3] sm:$0xff]
      %v1379 = vld [vmem:[%s3 + $0x8] sm:$0xff]
      %v1380 = vld [vmem:[%s3 + $0x10] sm:$0xff]
      %v1381 = vld [vmem:[%s3 + $0x18] sm:$0xff]
      %v1382 = vld [vmem:[%s3 + $0x20] sm:$0xff]
      %v1383 = vld [vmem:[%s3 + $0x28] sm:$0xff]
      %v1384 = vld [vmem:[%s3 + $0x30] sm:$0xff]
      %v1385 = vld [vmem:[%s3 + $0x38] sm:$0xff]
      %v1386 = vld [vmem:[%s3 + $0x40] sm:$0xff]
      %v1387 = vld [vmem:[%s3 + $0x48] sm:$0xff]
      %v1388 = vld [vmem:[%s3 + $0x50] sm:$0xff]
      %v1389 = vld [vmem:[%s3 + $0x58] sm:$0xff]
      %v1390 = vld [vmem:[%s3 + $0x60] sm:$0xff]
      %v1391 = vld [vmem:[%s3 + $0x68] sm:$0xff]
      %v1392 = vld [vmem:[%s3 + $0x70] sm:$0xff]
      %v1393 = vld [vmem:[%s3 + $0x78] sm:$0xff]
      %v1426 = vunpack.c.l.b16 %v1260
      %v1427 = vunpack.c.l.b16 %v1261
      %v1428 = vunpack.c.l.b16 %v1263
      %v1429 = vunpack.c.l.b16 %v1264
      %v1430 = vunpack.c.l.b16 %v1266
      %v1431 = vunpack.c.l.b16 %v1267
      %v1432 = vunpack.c.l.b16 %v1269
      %v1433 = vunpack.c.l.b16 %v1270
      %v1434 = vunpack.c.l.b16 %v1272
      %v1435 = vunpack.c.l.b16 %v1273
      %v1436 = vunpack.c.l.b16 %v1275
      %v1437 = vunpack.c.l.b16 %v1276
      %v1438 = vunpack.c.l.b16 %v1278
      %v1439 = vunpack.c.l.b16 %v1279
      %v1440 = vunpack.c.l.b16 %v1281
      %v1441 = vunpack.c.l.b16 %v1282
      %v1442 = vunpack.c.l.b16 %v1284
      %v1443 = vunpack.c.l.b16 %v1285
      %v1444 = vunpack.c.l.b16 %v1287
      %v1445 = vunpack.c.l.b16 %v1288
      %v1446 = vunpack.c.l.b16 %v1290
      %v1447 = vunpack.c.l.b16 %v1291
      %v1448 = vunpack.c.l.b16 %v1293
      %v1449 = vunpack.c.l.b16 %v1294
      %v1450 = vunpack.c.l.b16 %v1296
      %v1451 = vunpack.c.l.b16 %v1297
      %v1452 = vunpack.c.l.b16 %v1299
      %v1453 = vunpack.c.l.b16 %v1300
      %v1454 = vunpack.c.l.b16 %v1302
      %v1455 = vunpack.c.l.b16 %v1303
      %v1456 = vunpack.c.l.b16 %v1305
      %v1457 = vunpack.c.l.b16 %v1306
      %v1458 = vpack.c.b16 %v1427, %v1426
      %v1459 = vpack.c.b16 %v1429, %v1428
      %v1460 = vpack.c.b16 %v1431, %v1430
      %v1461 = vpack.c.b16 %v1433, %v1432
      %v1462 = vpack.c.b16 %v1435, %v1434
      %v1463 = vpack.c.b16 %v1437, %v1436
      %v1464 = vpack.c.b16 %v1439, %v1438
      %v1465 = vpack.c.b16 %v1441, %v1440
      %v1466 = vpack.c.b16 %v1443, %v1442
      %v1467 = vpack.c.b16 %v1445, %v1444
      %v1468 = vpack.c.b16 %v1447, %v1446
      %v1469 = vpack.c.b16 %v1449, %v1448
      %v1470 = vpack.c.b16 %v1451, %v1450
      %v1471 = vpack.c.b16 %v1453, %v1452
      %v1472 = vpack.c.b16 %v1455, %v1454
      %v1473 = vpack.c.b16 %v1457, %v1456
      %v1506 = vunpack.c.l.b16 %v1378
      %v1507 = vunpack.c.h.b16 %v1378
      %v1508 = vunpack.c.l.b16 %v1379
      %v1509 = vunpack.c.h.b16 %v1379
      %v1510 = vunpack.c.l.b16 %v1380
      %v1511 = vunpack.c.h.b16 %v1380
      %v1512 = vunpack.c.l.b16 %v1381
      %v1513 = vunpack.c.h.b16 %v1381
      %v1514 = vunpack.c.l.b16 %v1382
      %v1515 = vunpack.c.h.b16 %v1382
      %v1516 = vunpack.c.l.b16 %v1383
      %v1517 = vunpack.c.h.b16 %v1383
      %v1518 = vunpack.c.l.b16 %v1384
      %v1519 = vunpack.c.h.b16 %v1384
      %v1520 = vunpack.c.l.b16 %v1385
      %v1521 = vunpack.c.h.b16 %v1385
      %v1522 = vunpack.c.l.b16 %v1386
      %v1523 = vunpack.c.h.b16 %v1386
      %v1524 = vunpack.c.l.b16 %v1387
      %v1525 = vunpack.c.h.b16 %v1387
      %v1526 = vunpack.c.l.b16 %v1388
      %v1527 = vunpack.c.h.b16 %v1388
      %v1528 = vunpack.c.l.b16 %v1389
      %v1529 = vunpack.c.h.b16 %v1389
      %v1530 = vunpack.c.l.b16 %v1390
      %v1531 = vunpack.c.h.b16 %v1390
      %v1532 = vunpack.c.l.b16 %v1391
      %v1533 = vunpack.c.h.b16 %v1391
      %v1534 = vunpack.c.l.b16 %v1392
      %v1535 = vunpack.c.h.b16 %v1392
      %v1536 = vunpack.c.l.b16 %v1393
      %v1537 = vunpack.c.h.b16 %v1393
      %v1538 = vpack.c.b16 %v1508, %v1506
      %v1539 = vpack.c.b16 %v1509, %v1507
      %v1540 = vpack.c.b16 %v1512, %v1510
      %v1541 = vpack.c.b16 %v1513, %v1511
      %v1542 = vpack.c.b16 %v1516, %v1514
      %v1543 = vpack.c.b16 %v1517, %v1515
      %v1544 = vpack.c.b16 %v1520, %v1518
      %v1545 = vpack.c.b16 %v1521, %v1519
      %v1546 = vpack.c.b16 %v1524, %v1522
      %v1547 = vpack.c.b16 %v1525, %v1523
      %v1548 = vpack.c.b16 %v1528, %v1526
      %v1549 = vpack.c.b16 %v1529, %v1527
      %v1550 = vpack.c.b16 %v1532, %v1530
      %v1551 = vpack.c.b16 %v1533, %v1531
      %v1552 = vpack.c.b16 %v1536, %v1534
      %v1553 = vpack.c.b16 %v1537, %v1535
      %1570 = vmatpush.bf16.msra.mxu0 %v1552
      %1571 = vmatpush.bf16.msra.mxu0 %v1550
      %1572 = vmatpush.bf16.msra.mxu0 %v1548
      %1573 = vmatpush.bf16.msra.mxu0 %v1546
      %1574 = vmatpush.bf16.msra.mxu0 %v1544
      %1575 = vmatpush.bf16.msra.mxu0 %v1542
      %1576 = vmatpush.bf16.msra.mxu0 %v1540
      %1577 = vmatpush.bf16.msra.mxu0 %v1538
      %1578 = vmatmul.bf16.gmra.mxu0 %v1458
      %v1579 = vpop.f32.mrf.mxu0
      %v1580 = vadd.f32 0.0, %v1579
      %v1581 = vpop.f32.mrf.mxu0
      %v1582 = vadd.f32 0.0, %v1581
      %1583 = vmatmul.bf16.gmra.mxu0 %v1459
      %v1584 = vpop.f32.mrf.mxu0
      %v1585 = vadd.f32 0.0, %v1584
      %v1586 = vpop.f32.mrf.mxu0
      %v1587 = vadd.f32 0.0, %v1586
      %1588 = vmatmul.bf16.gmra.mxu0 %v1460
      %v1589 = vpop.f32.mrf.mxu0
      %v1590 = vadd.f32 0.0, %v1589
      %v1591 = vpop.f32.mrf.mxu0
      %v1592 = vadd.f32 0.0, %v1591
      %1593 = vmatmul.bf16.gmra.mxu0 %v1461
      %v1594 = vpop.f32.mrf.mxu0
      %v1595 = vadd.f32 0.0, %v1594
      %v1596 = vpop.f32.mrf.mxu0
      %v1597 = vadd.f32 0.0, %v1596
      %1598 = vmatmul.bf16.gmra.mxu0 %v1462
      %v1599 = vpop.f32.mrf.mxu0
      %v1600 = vadd.f32 0.0, %v1599
      %v1601 = vpop.f32.mrf.mxu0
      %v1602 = vadd.f32 0.0, %v1601
      %1603 = vmatmul.bf16.gmra.mxu0 %v1463
      %v1604 = vpop.f32.mrf.mxu0
      %v1605 = vadd.f32 0.0, %v1604
      %v1606 = vpop.f32.mrf.mxu0
      %v1607 = vadd.f32 0.0, %v1606
      %1608 = vmatmul.bf16.gmra.mxu0 %v1464
      %v1609 = vpop.f32.mrf.mxu0
      %v1610 = vadd.f32 0.0, %v1609
      %v1611 = vpop.f32.mrf.mxu0
      %v1612 = vadd.f32 0.0, %v1611
      %1613 = vmatmul.bf16.gmra.mxu0 %v1465
      %v1614 = vpop.f32.mrf.mxu0
      %v1615 = vadd.f32 0.0, %v1614
      %v1616 = vpop.f32.mrf.mxu0
      %v1617 = vadd.f32 0.0, %v1616
      %1618 = vmatmul.bf16.gmra.mxu0 %v1466
      %v1619 = vpop.f32.mrf.mxu0
      %v1620 = vadd.f32 0.0, %v1619
      %v1621 = vpop.f32.mrf.mxu0
      %v1622 = vadd.f32 0.0, %v1621
      %1623 = vmatmul.bf16.gmra.mxu0 %v1467
      %v1624 = vpop.f32.mrf.mxu0
      %v1625 = vadd.f32 0.0, %v1624
      %v1626 = vpop.f32.mrf.mxu0
      %v1627 = vadd.f32 0.0, %v1626
      %1628 = vmatmul.bf16.gmra.mxu0 %v1468
      %v1629 = vpop.f32.mrf.mxu0
      %v1630 = vadd.f32 0.0, %v1629
      %v1631 = vpop.f32.mrf.mxu0
      %v1632 = vadd.f32 0.0, %v1631
      %1633 = vmatmul.bf16.gmra.mxu0 %v1469
      %v1634 = vpop.f32.mrf.mxu0
      %v1635 = vadd.f32 0.0, %v1634
      %v1636 = vpop.f32.mrf.mxu0
      %v1637 = vadd.f32 0.0, %v1636
      %1638 = vmatmul.bf16.gmra.mxu0 %v1470
      %v1639 = vpop.f32.mrf.mxu0
      %v1640 = vadd.f32 0.0, %v1639
      %v1641 = vpop.f32.mrf.mxu0
      %v1642 = vadd.f32 0.0, %v1641
      %1643 = vmatmul.bf16.gmra.mxu0 %v1471
      %v1644 = vpop.f32.mrf.mxu0
      %v1645 = vadd.f32 0.0, %v1644
      %v1646 = vpop.f32.mrf.mxu0
      %v1647 = vadd.f32 0.0, %v1646
      %1648 = vmatmul.bf16.gmra.mxu0 %v1472
      %v1649 = vpop.f32.mrf.mxu0
      %v1650 = vadd.f32 0.0, %v1649
      %v1651 = vpop.f32.mrf.mxu0
      %v1652 = vadd.f32 0.0, %v1651
      %1653 = vmatmul.bf16.gmra.mxu0 %v1473
      %v1654 = vpop.f32.mrf.mxu0
      %v1655 = vadd.f32 0.0, %v1654
      %v1656 = vpop.f32.mrf.mxu0
      %v1657 = vadd.f32 0.0, %v1656
      %1658 = vdwg.mxu0
      %1659 = vmatpush.bf16.msra.mxu0 %v1553
      %1660 = vmatpush.bf16.msra.mxu0 %v1551
      %1661 = vmatpush.bf16.msra.mxu0 %v1549
      %1662 = vmatpush.bf16.msra.mxu0 %v1547
      %1663 = vmatpush.bf16.msra.mxu0 %v1545
      %1664 = vmatpush.bf16.msra.mxu0 %v1543
      %1665 = vmatpush.bf16.msra.mxu0 %v1541
      %1666 = vmatpush.bf16.msra.mxu0 %v1539
      %1667 = vmatmul.bf16.gmra.mxu0 %v1458
      %v1668 = vpop.f32.mrf.mxu0
      %v1669 = vadd.f32 0.0, %v1668
      %v1670 = vpop.f32.mrf.mxu0
      %v1671 = vadd.f32 0.0, %v1670
      %1672 = vmatmul.bf16.gmra.mxu0 %v1459
      %v1673 = vpop.f32.mrf.mxu0
      %v1674 = vadd.f32 0.0, %v1673
      %v1675 = vpop.f32.mrf.mxu0
      %v1676 = vadd.f32 0.0, %v1675
      %1677 = vmatmul.bf16.gmra.mxu0 %v1460
      %v1678 = vpop.f32.mrf.mxu0
      %v1679 = vadd.f32 0.0, %v1678
      %v1680 = vpop.f32.mrf.mxu0
      %v1681 = vadd.f32 0.0, %v1680
      %1682 = vmatmul.bf16.gmra.mxu0 %v1461
      %v1683 = vpop.f32.mrf.mxu0
      %v1684 = vadd.f32 0.0, %v1683
      %v1685 = vpop.f32.mrf.mxu0
      %v1686 = vadd.f32 0.0, %v1685
      %1687 = vmatmul.bf16.gmra.mxu0 %v1462
      %v1688 = vpop.f32.mrf.mxu0
      %v1689 = vadd.f32 0.0, %v1688
      %v1690 = vpop.f32.mrf.mxu0
      %v1691 = vadd.f32 0.0, %v1690
      %1692 = vmatmul.bf16.gmra.mxu0 %v1463
      %v1693 = vpop.f32.mrf.mxu0
      %v1694 = vadd.f32 0.0, %v1693
      %v1695 = vpop.f32.mrf.mxu0
      %v1696 = vadd.f32 0.0, %v1695
      %1697 = vmatmul.bf16.gmra.mxu0 %v1464
      %v1698 = vpop.f32.mrf.mxu0
      %v1699 = vadd.f32 0.0, %v1698
      %v1700 = vpop.f32.mrf.mxu0
      %v1701 = vadd.f32 0.0, %v1700
      %1702 = vmatmul.bf16.gmra.mxu0 %v1465
      %v1703 = vpop.f32.mrf.mxu0
      %v1704 = vadd.f32 0.0, %v1703
      %v1705 = vpop.f32.mrf.mxu0
      %v1706 = vadd.f32 0.0, %v1705
      %1707 = vmatmul.bf16.gmra.mxu0 %v1466
      %v1708 = vpop.f32.mrf.mxu0
      %v1709 = vadd.f32 0.0, %v1708
      %v1710 = vpop.f32.mrf.mxu0
      %v1711 = vadd.f32 0.0, %v1710
      %1712 = vmatmul.bf16.gmra.mxu0 %v1467
      %v1713 = vpop.f32.mrf.mxu0
      %v1714 = vadd.f32 0.0, %v1713
      %v1715 = vpop.f32.mrf.mxu0
      %v1716 = vadd.f32 0.0, %v1715
      %1717 = vmatmul.bf16.gmra.mxu0 %v1468
      %v1718 = vpop.f32.mrf.mxu0
      %v1719 = vadd.f32 0.0, %v1718
      %v1720 = vpop.f32.mrf.mxu0
      %v1721 = vadd.f32 0.0, %v1720
      %1722 = vmatmul.bf16.gmra.mxu0 %v1469
      %v1723 = vpop.f32.mrf.mxu0
      %v1724 = vadd.f32 0.0, %v1723
      %v1725 = vpop.f32.mrf.mxu0
      %v1726 = vadd.f32 0.0, %v1725
      %1727 = vmatmul.bf16.gmra.mxu0 %v1470
      %v1728 = vpop.f32.mrf.mxu0
      %v1729 = vadd.f32 0.0, %v1728
      %v1730 = vpop.f32.mrf.mxu0
      %v1731 = vadd.f32 0.0, %v1730
      %1732 = vmatmul.bf16.gmra.mxu0 %v1471
      %v1733 = vpop.f32.mrf.mxu0
      %v1734 = vadd.f32 0.0, %v1733
      %v1735 = vpop.f32.mrf.mxu0
      %v1736 = vadd.f32 0.0, %v1735
      %1737 = vmatmul.bf16.gmra.mxu0 %v1472
      %v1738 = vpop.f32.mrf.mxu0
      %v1739 = vadd.f32 0.0, %v1738
      %v1740 = vpop.f32.mrf.mxu0
      %v1741 = vadd.f32 0.0, %v1740
      %1742 = vmatmul.bf16.gmra.mxu0 %v1473
      %v1743 = vpop.f32.mrf.mxu0
      %v1744 = vadd.f32 0.0, %v1743
      %v1745 = vpop.f32.mrf.mxu0
      %v1746 = vadd.f32 0.0, %v1745
      %1747 = vdwg.mxu0
      %v1748 = vadd.f32 %v1314, %v1580
      %v1749 = vadd.f32 %v1315, %v1669
      %v1750 = vadd.f32 %v1316, %v1582
      %v1751 = vadd.f32 %v1317, %v1671
      %v1752 = vadd.f32 %v1318, %v1585
      %v1753 = vadd.f32 %v1319, %v1674
      %v1754 = vadd.f32 %v1320, %v1587
      %v1755 = vadd.f32 %v1321, %v1676
      %v1756 = vadd.f32 %v1322, %v1590
      %v1757 = vadd.f32 %v1323, %v1679
      %v1758 = vadd.f32 %v1324, %v1592
      %v1759 = vadd.f32 %v1325, %v1681
      %v1760 = vadd.f32 %v1326, %v1595
      %v1761 = vadd.f32 %v1327, %v1684
      %v1762 = vadd.f32 %v1328, %v1597
      %v1763 = vadd.f32 %v1329, %v1686
      %v1764 = vadd.f32 %v1330, %v1600
      %v1765 = vadd.f32 %v1331, %v1689
      %v1766 = vadd.f32 %v1332, %v1602
      %v1767 = vadd.f32 %v1333, %v1691
      %v1768 = vadd.f32 %v1334, %v1605
      %v1769 = vadd.f32 %v1335, %v1694
      %v1770 = vadd.f32 %v1336, %v1607
      %v1771 = vadd.f32 %v1337, %v1696
      %v1772 = vadd.f32 %v1338, %v1610
      %v1773 = vadd.f32 %v1339, %v1699
      %v1774 = vadd.f32 %v1340, %v1612
      %v1775 = vadd.f32 %v1341, %v1701
      %v1776 = vadd.f32 %v1342, %v1615
      %v1777 = vadd.f32 %v1343, %v1704
      %v1778 = vadd.f32 %v1344, %v1617
      %v1779 = vadd.f32 %v1345, %v1706
      %v1780 = vadd.f32 %v1346, %v1620
      %v1781 = vadd.f32 %v1347, %v1709
      %v1782 = vadd.f32 %v1348, %v1622
      %v1783 = vadd.f32 %v1349, %v1711
      %v1784 = vadd.f32 %v1350, %v1625
      %v1785 = vadd.f32 %v1351, %v1714
      %v1786 = vadd.f32 %v1352, %v1627
      %v1787 = vadd.f32 %v1353, %v1716
      %v1788 = vadd.f32 %v1354, %v1630
      %v1789 = vadd.f32 %v1355, %v1719
      %v1790 = vadd.f32 %v1356, %v1632
      %v1791 = vadd.f32 %v1357, %v1721
      %v1792 = vadd.f32 %v1358, %v1635
      %v1793 = vadd.f32 %v1359, %v1724
      %v1794 = vadd.f32 %v1360, %v1637
      %v1795 = vadd.f32 %v1361, %v1726
      %v1796 = vadd.f32 %v1362, %v1640
      %v1797 = vadd.f32 %v1363, %v1729
      %v1798 = vadd.f32 %v1364, %v1642
      %v1799 = vadd.f32 %v1365, %v1731
      %v1800 = vadd.f32 %v1366, %v1645
      %v1801 = vadd.f32 %v1367, %v1734
      %v1802 = vadd.f32 %v1368, %v1647
      %v1803 = vadd.f32 %v1369, %v1736
      %v1804 = vadd.f32 %v1370, %v1650
      %v1805 = vadd.f32 %v1371, %v1739
      %v1806 = vadd.f32 %v1372, %v1652
      %v1807 = vadd.f32 %v1373, %v1741
      %v1808 = vadd.f32 %v1374, %v1655
      %v1809 = vadd.f32 %v1375, %v1744
      %v1810 = vadd.f32 %v1376, %v1657
      %v1811 = vadd.f32 %v1377, %v1746
      %1812 = vst [vmem:[#allocation3] sm:$0xff] %v1748
      %1813 = vst [vmem:[#allocation3 + $0x8] sm:$0xff] %v1749
      %1814 = vst [vmem:[#allocation3 + $0x10] sm:$0xff] %v1750
      %1815 = vst [vmem:[#allocation3 + $0x18] sm:$0xff] %v1751
      %1816 = vst [vmem:[#allocation3 + $0x20] sm:$0xff] %v1752
      %1817 = vst [vmem:[#allocation3 + $0x28] sm:$0xff] %v1753
      %1818 = vst [vmem:[#allocation3 + $0x30] sm:$0xff] %v1754
      %1819 = vst [vmem:[#allocation3 + $0x38] sm:$0xff] %v1755
      %1820 = vst [vmem:[#allocation3 + $0x40] sm:$0xff] %v1756
      %1821 = vst [vmem:[#allocation3 + $0x48] sm:$0xff] %v1757
      %1822 = vst [vmem:[#allocation3 + $0x50] sm:$0xff] %v1758
      %1823 = vst [vmem:[#allocation3 + $0x58] sm:$0xff] %v1759
      %1824 = vst [vmem:[#allocation3 + $0x60] sm:$0xff] %v1760
      %1825 = vst [vmem:[#allocation3 + $0x68] sm:$0xff] %v1761
      %1826 = vst [vmem:[#allocation3 + $0x70] sm:$0xff] %v1762
      %1827 = vst [vmem:[#allocation3 + $0x78] sm:$0xff] %v1763
      %1828 = vst [vmem:[#allocation3 + $0x80] sm:$0xff] %v1764
      %1829 = vst [vmem:[#allocation3 + $0x88] sm:$0xff] %v1765
      %1830 = vst [vmem:[#allocation3 + $0x90] sm:$0xff] %v1766
      %1831 = vst [vmem:[#allocation3 + $0x98] sm:$0xff] %v1767
      %1832 = vst [vmem:[#allocation3 + $0xa0] sm:$0xff] %v1768
      %1833 = vst [vmem:[#allocation3 + $0xa8] sm:$0xff] %v1769
      %1834 = vst [vmem:[#allocation3 + $0xb0] sm:$0xff] %v1770
      %1835 = vst [vmem:[#allocation3 + $0xb8] sm:$0xff] %v1771
      %1836 = vst [vmem:[#allocation3 + $0xc0] sm:$0xff] %v1772
      %1837 = vst [vmem:[#allocation3 + $0xc8] sm:$0xff] %v1773
      %1838 = vst [vmem:[#allocation3 + $0xd0] sm:$0xff] %v1774
      %1839 = vst [vmem:[#allocation3 + $0xd8] sm:$0xff] %v1775
      %1840 = vst [vmem:[#allocation3 + $0xe0] sm:$0xff] %v1776
      %1841 = vst [vmem:[#allocation3 + $0xe8] sm:$0xff] %v1777
      %1842 = vst [vmem:[#allocation3 + $0xf0] sm:$0xff] %v1778
      %1843 = vst [vmem:[#allocation3 + $0xf8] sm:$0xff] %v1779
      %1844 = vst [vmem:[#allocation3 + $0x100] sm:$0xff] %v1780
      %1845 = vst [vmem:[#allocation3 + $0x108] sm:$0xff] %v1781
      %1846 = vst [vmem:[#allocation3 + $0x110] sm:$0xff] %v1782
      %1847 = vst [vmem:[#allocation3 + $0x118] sm:$0xff] %v1783
      %1848 = vst [vmem:[#allocation3 + $0x120] sm:$0xff] %v1784
      %1849 = vst [vmem:[#allocation3 + $0x128] sm:$0xff] %v1785
      %1850 = vst [vmem:[#allocation3 + $0x130] sm:$0xff] %v1786
      %1851 = vst [vmem:[#allocation3 + $0x138] sm:$0xff] %v1787
      %1852 = vst [vmem:[#allocation3 + $0x140] sm:$0xff] %v1788
      %1853 = vst [vmem:[#allocation3 + $0x148] sm:$0xff] %v1789
      %1854 = vst [vmem:[#allocation3 + $0x150] sm:$0xff] %v1790
      %1855 = vst [vmem:[#allocation3 + $0x158] sm:$0xff] %v1791
      %1856 = vst [vmem:[#allocation3 + $0x160] sm:$0xff] %v1792
      %1857 = vst [vmem:[#allocation3 + $0x168] sm:$0xff] %v1793
      %1858 = vst [vmem:[#allocation3 + $0x170] sm:$0xff] %v1794
      %1859 = vst [vmem:[#allocation3 + $0x178] sm:$0xff] %v1795
      %1860 = vst [vmem:[#allocation3 + $0x180] sm:$0xff] %v1796
      %1861 = vst [vmem:[#allocation3 + $0x188] sm:$0xff] %v1797
      %1862 = vst [vmem:[#allocation3 + $0x190] sm:$0xff] %v1798
      %1863 = vst [vmem:[#allocation3 + $0x198] sm:$0xff] %v1799
      %1864 = vst [vmem:[#allocation3 + $0x1a0] sm:$0xff] %v1800
      %1865 = vst [vmem:[#allocation3 + $0x1a8] sm:$0xff] %v1801
      %1866 = vst [vmem:[#allocation3 + $0x1b0] sm:$0xff] %v1802
      %1867 = vst [vmem:[#allocation3 + $0x1b8] sm:$0xff] %v1803
      %1868 = vst [vmem:[#allocation3 + $0x1c0] sm:$0xff] %v1804
      %1869 = vst [vmem:[#allocation3 + $0x1c8] sm:$0xff] %v1805
      %1870 = vst [vmem:[#allocation3 + $0x1d0] sm:$0xff] %v1806
      %1871 = vst [vmem:[#allocation3 + $0x1d8] sm:$0xff] %v1807
      %1872 = vst [vmem:[#allocation3 + $0x1e0] sm:$0xff] %v1808
      %1873 = vst [vmem:[#allocation3 + $0x1e8] sm:$0xff] %v1809
      %1874 = vst [vmem:[#allocation3 + $0x1f0] sm:$0xff] %v1810
      %1875 = vst [vmem:[#allocation3 + $0x1f8] sm:$0xff] %v1811
      %v1876 = vld [vmem:[#allocation3] sm:$0xff]
      %v1877 = vld [vmem:[#allocation3 + $0x8] sm:$0xff]
      %v1878 = vld [vmem:[#allocation3 + $0x10] sm:$0xff]
      %v1879 = vld [vmem:[#allocation3 + $0x18] sm:$0xff]
      %v1880 = vld [vmem:[#allocation3 + $0x20] sm:$0xff]
      %v1881 = vld [vmem:[#allocation3 + $0x28] sm:$0xff]
      %v1882 = vld [vmem:[#allocation3 + $0x30] sm:$0xff]
      %v1883 = vld [vmem:[#allocation3 + $0x38] sm:$0xff]
      %v1884 = vld [vmem:[#allocation3 + $0x40] sm:$0xff]
      %v1885 = vld [vmem:[#allocation3 + $0x48] sm:$0xff]
      %v1886 = vld [vmem:[#allocation3 + $0x50] sm:$0xff]
      %v1887 = vld [vmem:[#allocation3 + $0x58] sm:$0xff]
      %v1888 = vld [vmem:[#allocation3 + $0x60] sm:$0xff]
      %v1889 = vld [vmem:[#allocation3 + $0x68] sm:$0xff]
      %v1890 = vld [vmem:[#allocation3 + $0x70] sm:$0xff]
      %v1891 = vld [vmem:[#allocation3 + $0x78] sm:$0xff]
      %v1892 = vld [vmem:[#allocation3 + $0x80] sm:$0xff]
      %v1893 = vld [vmem:[#allocation3 + $0x88] sm:$0xff]
      %v1894 = vld [vmem:[#allocation3 + $0x90] sm:$0xff]
      %v1895 = vld [vmem:[#allocation3 + $0x98] sm:$0xff]
      %v1896 = vld [vmem:[#allocation3 + $0xa0] sm:$0xff]
      %v1897 = vld [vmem:[#allocation3 + $0xa8] sm:$0xff]
      %v1898 = vld [vmem:[#allocation3 + $0xb0] sm:$0xff]
      %v1899 = vld [vmem:[#allocation3 + $0xb8] sm:$0xff]
      %v1900 = vld [vmem:[#allocation3 + $0xc0] sm:$0xff]
      %v1901 = vld [vmem:[#allocation3 + $0xc8] sm:$0xff]
      %v1902 = vld [vmem:[#allocation3 + $0xd0] sm:$0xff]
      %v1903 = vld [vmem:[#allocation3 + $0xd8] sm:$0xff]
      %v1904 = vld [vmem:[#allocation3 + $0xe0] sm:$0xff]
      %v1905 = vld [vmem:[#allocation3 + $0xe8] sm:$0xff]
      %v1906 = vld [vmem:[#allocation3 + $0xf0] sm:$0xff]
      %v1907 = vld [vmem:[#allocation3 + $0xf8] sm:$0xff]
      %v1908 = vld [vmem:[#allocation3 + $0x100] sm:$0xff]
      %v1909 = vld [vmem:[#allocation3 + $0x108] sm:$0xff]
      %v1910 = vld [vmem:[#allocation3 + $0x110] sm:$0xff]
      %v1911 = vld [vmem:[#allocation3 + $0x118] sm:$0xff]
      %v1912 = vld [vmem:[#allocation3 + $0x120] sm:$0xff]
      %v1913 = vld [vmem:[#allocation3 + $0x128] sm:$0xff]
      %v1914 = vld [vmem:[#allocation3 + $0x130] sm:$0xff]
      %v1915 = vld [vmem:[#allocation3 + $0x138] sm:$0xff]
      %v1916 = vld [vmem:[#allocation3 + $0x140] sm:$0xff]
      %v1917 = vld [vmem:[#allocation3 + $0x148] sm:$0xff]
      %v1918 = vld [vmem:[#allocation3 + $0x150] sm:$0xff]
      %v1919 = vld [vmem:[#allocation3 + $0x158] sm:$0xff]
      %v1920 = vld [vmem:[#allocation3 + $0x160] sm:$0xff]
      %v1921 = vld [vmem:[#allocation3 + $0x168] sm:$0xff]
      %v1922 = vld [vmem:[#allocation3 + $0x170] sm:$0xff]
      %v1923 = vld [vmem:[#allocation3 + $0x178] sm:$0xff]
      %v1924 = vld [vmem:[#allocation3 + $0x180] sm:$0xff]
      %v1925 = vld [vmem:[#allocation3 + $0x188] sm:$0xff]
      %v1926 = vld [vmem:[#allocation3 + $0x190] sm:$0xff]
      %v1927 = vld [vmem:[#allocation3 + $0x198] sm:$0xff]
      %v1928 = vld [vmem:[#allocation3 + $0x1a0] sm:$0xff]
      %v1929 = vld [vmem:[#allocation3 + $0x1a8] sm:$0xff]
      %v1930 = vld [vmem:[#allocation3 + $0x1b0] sm:$0xff]
      %v1931 = vld [vmem:[#allocation3 + $0x1b8] sm:$0xff]
      %v1932 = vld [vmem:[#allocation3 + $0x1c0] sm:$0xff]
      %v1933 = vld [vmem:[#allocation3 + $0x1c8] sm:$0xff]
      %v1934 = vld [vmem:[#allocation3 + $0x1d0] sm:$0xff]
      %v1935 = vld [vmem:[#allocation3 + $0x1d8] sm:$0xff]
      %v1936 = vld [vmem:[#allocation3 + $0x1e0] sm:$0xff]
      %v1937 = vld [vmem:[#allocation3 + $0x1e8] sm:$0xff]
      %v1938 = vld [vmem:[#allocation3 + $0x1f0] sm:$0xff]
      %v1939 = vld [vmem:[#allocation3 + $0x1f8] sm:$0xff]
      %s1940 = scalar_lea.vmem %s3, 384
      %v1941 = vld [vmem:[%s1940] sm:$0xff]
      %v1942 = vld [vmem:[%s1940 + $0x8] sm:$0xff]
      %v1943 = vld [vmem:[%s1940 + $0x10] sm:$0xff]
      %v1944 = vld [vmem:[%s1940 + $0x18] sm:$0xff]
      %v1945 = vld [vmem:[%s1940 + $0x20] sm:$0xff]
      %v1946 = vld [vmem:[%s1940 + $0x28] sm:$0xff]
      %v1947 = vld [vmem:[%s1940 + $0x30] sm:$0xff]
      %v1948 = vld [vmem:[%s1940 + $0x38] sm:$0xff]
      %v1949 = vld [vmem:[%s1940 + $0x40] sm:$0xff]
      %v1950 = vld [vmem:[%s1940 + $0x48] sm:$0xff]
      %v1951 = vld [vmem:[%s1940 + $0x50] sm:$0xff]
      %v1952 = vld [vmem:[%s1940 + $0x58] sm:$0xff]
      %v1953 = vld [vmem:[%s1940 + $0x60] sm:$0xff]
      %v1954 = vld [vmem:[%s1940 + $0x68] sm:$0xff]
      %v1955 = vld [vmem:[%s1940 + $0x70] sm:$0xff]
      %v1956 = vld [vmem:[%s1940 + $0x78] sm:$0xff]
      %v1959 = vunpack.c.l.b16 %v1308
      %v1960 = vunpack.c.l.b16 %v1309
      %v1961 = vpack.c.b16 %v1960, %v1959
      %v1979 = vunpack.c.l.b16 %v1941
      %v1980 = vunpack.c.h.b16 %v1941
      %v1981 = vunpack.c.l.b16 %v1942
      %v1982 = vunpack.c.h.b16 %v1942
      %v1983 = vunpack.c.l.b16 %v1943
      %v1984 = vunpack.c.h.b16 %v1943
      %v1985 = vunpack.c.l.b16 %v1944
      %v1986 = vunpack.c.h.b16 %v1944
      %v1987 = vunpack.c.l.b16 %v1945
      %v1988 = vunpack.c.h.b16 %v1945
      %v1989 = vunpack.c.l.b16 %v1946
      %v1990 = vunpack.c.h.b16 %v1946
      %v1991 = vunpack.c.l.b16 %v1947
      %v1992 = vunpack.c.h.b16 %v1947
      %v1993 = vunpack.c.l.b16 %v1948
      %v1994 = vunpack.c.h.b16 %v1948
      %v1995 = vunpack.c.l.b16 %v1949
      %v1996 = vunpack.c.h.b16 %v1949
      %v1997 = vunpack.c.l.b16 %v1950
      %v1998 = vunpack.c.h.b16 %v1950
      %v1999 = vunpack.c.l.b16 %v1951
      %v2000 = vunpack.c.h.b16 %v1951
      %v2001 = vunpack.c.l.b16 %v1952
      %v2002 = vunpack.c.h.b16 %v1952
      %v2003 = vunpack.c.l.b16 %v1953
      %v2004 = vunpack.c.h.b16 %v1953
      %v2005 = vunpack.c.l.b16 %v1954
      %v2006 = vunpack.c.h.b16 %v1954
      %v2007 = vunpack.c.l.b16 %v1955
      %v2008 = vunpack.c.h.b16 %v1955
      %v2009 = vunpack.c.l.b16 %v1956
      %v2010 = vunpack.c.h.b16 %v1956
      %v2011 = vpack.c.b16 %v1981, %v1979
      %v2012 = vpack.c.b16 %v1982, %v1980
      %v2013 = vpack.c.b16 %v1985, %v1983
      %v2014 = vpack.c.b16 %v1986, %v1984
      %v2015 = vpack.c.b16 %v1989, %v1987
      %v2016 = vpack.c.b16 %v1990, %v1988
      %v2017 = vpack.c.b16 %v1993, %v1991
      %v2018 = vpack.c.b16 %v1994, %v1992
      %v2019 = vpack.c.b16 %v1997, %v1995
      %v2020 = vpack.c.b16 %v1998, %v1996
      %v2021 = vpack.c.b16 %v2001, %v1999
      %v2022 = vpack.c.b16 %v2002, %v2000
      %v2023 = vpack.c.b16 %v2005, %v2003
      %v2024 = vpack.c.b16 %v2006, %v2004
      %v2025 = vpack.c.b16 %v2009, %v2007
      %v2026 = vpack.c.b16 %v2010, %v2008
      %2043 = vmatpush.bf16.msra.mxu0 %v2025
      %2044 = vmatpush.bf16.msra.mxu0 %v2023
      %2045 = vmatpush.bf16.msra.mxu0 %v2021
      %2046 = vmatpush.bf16.msra.mxu0 %v2019
      %2047 = vmatpush.bf16.msra.mxu0 %v2017
      %2048 = vmatpush.bf16.msra.mxu0 %v2015
      %2049 = vmatpush.bf16.msra.mxu0 %v2013
      %2050 = vmatpush.bf16.msra.mxu0 %v2011
      %2051 = vmatmul.bf16.gmra.mxu0 %v1459
      %v2052 = vpop.f32.mrf.mxu0
      %v2053 = vadd.f32 0.0, %v2052
      %v2054 = vpop.f32.mrf.mxu0
      %v2055 = vadd.f32 0.0, %v2054
      %2056 = vmatmul.bf16.gmra.mxu0 %v1460
      %v2057 = vpop.f32.mrf.mxu0
      %v2058 = vadd.f32 0.0, %v2057
      %v2059 = vpop.f32.mrf.mxu0
      %v2060 = vadd.f32 0.0, %v2059
      %2061 = vmatmul.bf16.gmra.mxu0 %v1461
      %v2062 = vpop.f32.mrf.mxu0
      %v2063 = vadd.f32 0.0, %v2062
      %v2064 = vpop.f32.mrf.mxu0
      %v2065 = vadd.f32 0.0, %v2064
      %2066 = vmatmul.bf16.gmra.mxu0 %v1462
      %v2067 = vpop.f32.mrf.mxu0
      %v2068 = vadd.f32 0.0, %v2067
      %v2069 = vpop.f32.mrf.mxu0
      %v2070 = vadd.f32 0.0, %v2069
      %2071 = vmatmul.bf16.gmra.mxu0 %v1463
      %v2072 = vpop.f32.mrf.mxu0
      %v2073 = vadd.f32 0.0, %v2072
      %v2074 = vpop.f32.mrf.mxu0
      %v2075 = vadd.f32 0.0, %v2074
      %2076 = vmatmul.bf16.gmra.mxu0 %v1464
      %v2077 = vpop.f32.mrf.mxu0
      %v2078 = vadd.f32 0.0, %v2077
      %v2079 = vpop.f32.mrf.mxu0
      %v2080 = vadd.f32 0.0, %v2079
      %2081 = vmatmul.bf16.gmra.mxu0 %v1465
      %v2082 = vpop.f32.mrf.mxu0
      %v2083 = vadd.f32 0.0, %v2082
      %v2084 = vpop.f32.mrf.mxu0
      %v2085 = vadd.f32 0.0, %v2084
      %2086 = vmatmul.bf16.gmra.mxu0 %v1466
      %v2087 = vpop.f32.mrf.mxu0
      %v2088 = vadd.f32 0.0, %v2087
      %v2089 = vpop.f32.mrf.mxu0
      %v2090 = vadd.f32 0.0, %v2089
      %2091 = vmatmul.bf16.gmra.mxu0 %v1467
      %v2092 = vpop.f32.mrf.mxu0
      %v2093 = vadd.f32 0.0, %v2092
      %v2094 = vpop.f32.mrf.mxu0
      %v2095 = vadd.f32 0.0, %v2094
      %2096 = vmatmul.bf16.gmra.mxu0 %v1468
      %v2097 = vpop.f32.mrf.mxu0
      %v2098 = vadd.f32 0.0, %v2097
      %v2099 = vpop.f32.mrf.mxu0
      %v2100 = vadd.f32 0.0, %v2099
      %2101 = vmatmul.bf16.gmra.mxu0 %v1469
      %v2102 = vpop.f32.mrf.mxu0
      %v2103 = vadd.f32 0.0, %v2102
      %v2104 = vpop.f32.mrf.mxu0
      %v2105 = vadd.f32 0.0, %v2104
      %2106 = vmatmul.bf16.gmra.mxu0 %v1470
      %v2107 = vpop.f32.mrf.mxu0
      %v2108 = vadd.f32 0.0, %v2107
      %v2109 = vpop.f32.mrf.mxu0
      %v2110 = vadd.f32 0.0, %v2109
      %2111 = vmatmul.bf16.gmra.mxu0 %v1471
      %v2112 = vpop.f32.mrf.mxu0
      %v2113 = vadd.f32 0.0, %v2112
      %v2114 = vpop.f32.mrf.mxu0
      %v2115 = vadd.f32 0.0, %v2114
      %2116 = vmatmul.bf16.gmra.mxu0 %v1472
      %v2117 = vpop.f32.mrf.mxu0
      %v2118 = vadd.f32 0.0, %v2117
      %v2119 = vpop.f32.mrf.mxu0
      %v2120 = vadd.f32 0.0, %v2119
      %2121 = vmatmul.bf16.gmra.mxu0 %v1473
      %v2122 = vpop.f32.mrf.mxu0
      %v2123 = vadd.f32 0.0, %v2122
      %v2124 = vpop.f32.mrf.mxu0
      %v2125 = vadd.f32 0.0, %v2124
      %2126 = vmatmul.bf16.gmra.mxu0 %v1961
      %v2127 = vpop.f32.mrf.mxu0
      %v2128 = vadd.f32 0.0, %v2127
      %v2129 = vpop.f32.mrf.mxu0
      %v2130 = vadd.f32 0.0, %v2129
      %2131 = vdwg.mxu0
      %2132 = vmatpush.bf16.msra.mxu0 %v2026
      %2133 = vmatpush.bf16.msra.mxu0 %v2024
      %2134 = vmatpush.bf16.msra.mxu0 %v2022
      %2135 = vmatpush.bf16.msra.mxu0 %v2020
      %2136 = vmatpush.bf16.msra.mxu0 %v2018
      %2137 = vmatpush.bf16.msra.mxu0 %v2016
      %2138 = vmatpush.bf16.msra.mxu0 %v2014
      %2139 = vmatpush.bf16.msra.mxu0 %v2012
      %2140 = vmatmul.bf16.gmra.mxu0 %v1459
      %v2141 = vpop.f32.mrf.mxu0
      %v2142 = vadd.f32 0.0, %v2141
      %v2143 = vpop.f32.mrf.mxu0
      %v2144 = vadd.f32 0.0, %v2143
      %2145 = vmatmul.bf16.gmra.mxu0 %v1460
      %v2146 = vpop.f32.mrf.mxu0
      %v2147 = vadd.f32 0.0, %v2146
      %v2148 = vpop.f32.mrf.mxu0
      %v2149 = vadd.f32 0.0, %v2148
      %2150 = vmatmul.bf16.gmra.mxu0 %v1461
      %v2151 = vpop.f32.mrf.mxu0
      %v2152 = vadd.f32 0.0, %v2151
      %v2153 = vpop.f32.mrf.mxu0
      %v2154 = vadd.f32 0.0, %v2153
      %2155 = vmatmul.bf16.gmra.mxu0 %v1462
      %v2156 = vpop.f32.mrf.mxu0
      %v2157 = vadd.f32 0.0, %v2156
      %v2158 = vpop.f32.mrf.mxu0
      %v2159 = vadd.f32 0.0, %v2158
      %2160 = vmatmul.bf16.gmra.mxu0 %v1463
      %v2161 = vpop.f32.mrf.mxu0
      %v2162 = vadd.f32 0.0, %v2161
      %v2163 = vpop.f32.mrf.mxu0
      %v2164 = vadd.f32 0.0, %v2163
      %2165 = vmatmul.bf16.gmra.mxu0 %v1464
      %v2166 = vpop.f32.mrf.mxu0
      %v2167 = vadd.f32 0.0, %v2166
      %v2168 = vpop.f32.mrf.mxu0
      %v2169 = vadd.f32 0.0, %v2168
      %2170 = vmatmul.bf16.gmra.mxu0 %v1465
      %v2171 = vpop.f32.mrf.mxu0
      %v2172 = vadd.f32 0.0, %v2171
      %v2173 = vpop.f32.mrf.mxu0
      %v2174 = vadd.f32 0.0, %v2173
      %2175 = vmatmul.bf16.gmra.mxu0 %v1466
      %v2176 = vpop.f32.mrf.mxu0
      %v2177 = vadd.f32 0.0, %v2176
      %v2178 = vpop.f32.mrf.mxu0
      %v2179 = vadd.f32 0.0, %v2178
      %2180 = vmatmul.bf16.gmra.mxu0 %v1467
      %v2181 = vpop.f32.mrf.mxu0
      %v2182 = vadd.f32 0.0, %v2181
      %v2183 = vpop.f32.mrf.mxu0
      %v2184 = vadd.f32 0.0, %v2183
      %2185 = vmatmul.bf16.gmra.mxu0 %v1468
      %v2186 = vpop.f32.mrf.mxu0
      %v2187 = vadd.f32 0.0, %v2186
      %v2188 = vpop.f32.mrf.mxu0
      %v2189 = vadd.f32 0.0, %v2188
      %2190 = vmatmul.bf16.gmra.mxu0 %v1469
      %v2191 = vpop.f32.mrf.mxu0
      %v2192 = vadd.f32 0.0, %v2191
      %v2193 = vpop.f32.mrf.mxu0
      %v2194 = vadd.f32 0.0, %v2193
      %2195 = vmatmul.bf16.gmra.mxu0 %v1470
      %v2196 = vpop.f32.mrf.mxu0
      %v2197 = vadd.f32 0.0, %v2196
      %v2198 = vpop.f32.mrf.mxu0
      %v2199 = vadd.f32 0.0, %v2198
      %2200 = vmatmul.bf16.gmra.mxu0 %v1471
      %v2201 = vpop.f32.mrf.mxu0
      %v2202 = vadd.f32 0.0, %v2201
      %v2203 = vpop.f32.mrf.mxu0
      %v2204 = vadd.f32 0.0, %v2203
      %2205 = vmatmul.bf16.gmra.mxu0 %v1472
      %v2206 = vpop.f32.mrf.mxu0
      %v2207 = vadd.f32 0.0, %v2206
      %v2208 = vpop.f32.mrf.mxu0
      %v2209 = vadd.f32 0.0, %v2208
      %2210 = vmatmul.bf16.gmra.mxu0 %v1473
      %v2211 = vpop.f32.mrf.mxu0
      %v2212 = vadd.f32 0.0, %v2211
      %v2213 = vpop.f32.mrf.mxu0
      %v2214 = vadd.f32 0.0, %v2213
      %2215 = vmatmul.bf16.gmra.mxu0 %v1961
      %v2216 = vpop.f32.mrf.mxu0
      %v2217 = vadd.f32 0.0, %v2216
      %v2218 = vpop.f32.mrf.mxu0
      %v2219 = vadd.f32 0.0, %v2218
      %2220 = vdwg.mxu0
      %v2221 = vadd.f32 %v1876, %v2053
      %v2222 = vadd.f32 %v1877, %v2142
      %v2223 = vadd.f32 %v1878, %v2055
      %v2224 = vadd.f32 %v1879, %v2144
      %v2225 = vadd.f32 %v1880, %v2058
      %v2226 = vadd.f32 %v1881, %v2147
      %v2227 = vadd.f32 %v1882, %v2060
      %v2228 = vadd.f32 %v1883, %v2149
      %v2229 = vadd.f32 %v1884, %v2063
      %v2230 = vadd.f32 %v1885, %v2152
      %v2231 = vadd.f32 %v1886, %v2065
      %v2232 = vadd.f32 %v1887, %v2154
      %v2233 = vadd.f32 %v1888, %v2068
      %v2234 = vadd.f32 %v1889, %v2157
      %v2235 = vadd.f32 %v1890, %v2070
      %v2236 = vadd.f32 %v1891, %v2159
      %v2237 = vadd.f32 %v1892, %v2073
      %v2238 = vadd.f32 %v1893, %v2162
      %v2239 = vadd.f32 %v1894, %v2075
      %v2240 = vadd.f32 %v1895, %v2164
      %v2241 = vadd.f32 %v1896, %v2078
      %v2242 = vadd.f32 %v1897, %v2167
      %v2243 = vadd.f32 %v1898, %v2080
      %v2244 = vadd.f32 %v1899, %v2169
      %v2245 = vadd.f32 %v1900, %v2083
      %v2246 = vadd.f32 %v1901, %v2172
      %v2247 = vadd.f32 %v1902, %v2085
      %v2248 = vadd.f32 %v1903, %v2174
      %v2249 = vadd.f32 %v1904, %v2088
      %v2250 = vadd.f32 %v1905, %v2177
      %v2251 = vadd.f32 %v1906, %v2090
      %v2252 = vadd.f32 %v1907, %v2179
      %v2253 = vadd.f32 %v1908, %v2093
      %v2254 = vadd.f32 %v1909, %v2182
      %v2255 = vadd.f32 %v1910, %v2095
      %v2256 = vadd.f32 %v1911, %v2184
      %v2257 = vadd.f32 %v1912, %v2098
      %v2258 = vadd.f32 %v1913, %v2187
      %v2259 = vadd.f32 %v1914, %v2100
      %v2260 = vadd.f32 %v1915, %v2189
      %v2261 = vadd.f32 %v1916, %v2103
      %v2262 = vadd.f32 %v1917, %v2192
      %v2263 = vadd.f32 %v1918, %v2105
      %v2264 = vadd.f32 %v1919, %v2194
      %v2265 = vadd.f32 %v1920, %v2108
      %v2266 = vadd.f32 %v1921, %v2197
      %v2267 = vadd.f32 %v1922, %v2110
      %v2268 = vadd.f32 %v1923, %v2199
      %v2269 = vadd.f32 %v1924, %v2113
      %v2270 = vadd.f32 %v1925, %v2202
      %v2271 = vadd.f32 %v1926, %v2115
      %v2272 = vadd.f32 %v1927, %v2204
      %v2273 = vadd.f32 %v1928, %v2118
      %v2274 = vadd.f32 %v1929, %v2207
      %v2275 = vadd.f32 %v1930, %v2120
      %v2276 = vadd.f32 %v1931, %v2209
      %v2277 = vadd.f32 %v1932, %v2123
      %v2278 = vadd.f32 %v1933, %v2212
      %v2279 = vadd.f32 %v1934, %v2125
      %v2280 = vadd.f32 %v1935, %v2214
      %v2281 = vadd.f32 %v1936, %v2128
      %v2282 = vadd.f32 %v1937, %v2217
      %v2283 = vadd.f32 %v1938, %v2130
      %v2284 = vadd.f32 %v1939, %v2219
      %2285 = vst [vmem:[#allocation3] sm:$0xff] %v2221
      %2286 = vst [vmem:[#allocation3 + $0x8] sm:$0xff] %v2222
      %2287 = vst [vmem:[#allocation3 + $0x10] sm:$0xff] %v2223
      %2288 = vst [vmem:[#allocation3 + $0x18] sm:$0xff] %v2224
      %2289 = vst [vmem:[#allocation3 + $0x20] sm:$0xff] %v2225
      %2290 = vst [vmem:[#allocation3 + $0x28] sm:$0xff] %v2226
      %2291 = vst [vmem:[#allocation3 + $0x30] sm:$0xff] %v2227
      %2292 = vst [vmem:[#allocation3 + $0x38] sm:$0xff] %v2228
      %2293 = vst [vmem:[#allocation3 + $0x40] sm:$0xff] %v2229
      %2294 = vst [vmem:[#allocation3 + $0x48] sm:$0xff] %v2230
      %2295 = vst [vmem:[#allocation3 + $0x50] sm:$0xff] %v2231
      %2296 = vst [vmem:[#allocation3 + $0x58] sm:$0xff] %v2232
      %2297 = vst [vmem:[#allocation3 + $0x60] sm:$0xff] %v2233
      %2298 = vst [vmem:[#allocation3 + $0x68] sm:$0xff] %v2234
      %2299 = vst [vmem:[#allocation3 + $0x70] sm:$0xff] %v2235
      %2300 = vst [vmem:[#allocation3 + $0x78] sm:$0xff] %v2236
      %2301 = vst [vmem:[#allocation3 + $0x80] sm:$0xff] %v2237
      %2302 = vst [vmem:[#allocation3 + $0x88] sm:$0xff] %v2238
      %2303 = vst [vmem:[#allocation3 + $0x90] sm:$0xff] %v2239
      %2304 = vst [vmem:[#allocation3 + $0x98] sm:$0xff] %v2240
      %2305 = vst [vmem:[#allocation3 + $0xa0] sm:$0xff] %v2241
      %2306 = vst [vmem:[#allocation3 + $0xa8] sm:$0xff] %v2242
      %2307 = vst [vmem:[#allocation3 + $0xb0] sm:$0xff] %v2243
      %2308 = vst [vmem:[#allocation3 + $0xb8] sm:$0xff] %v2244
      %2309 = vst [vmem:[#allocation3 + $0xc0] sm:$0xff] %v2245
      %2310 = vst [vmem:[#allocation3 + $0xc8] sm:$0xff] %v2246
      %2311 = vst [vmem:[#allocation3 + $0xd0] sm:$0xff] %v2247
      %2312 = vst [vmem:[#allocation3 + $0xd8] sm:$0xff] %v2248
      %2313 = vst [vmem:[#allocation3 + $0xe0] sm:$0xff] %v2249
      %2314 = vst [vmem:[#allocation3 + $0xe8] sm:$0xff] %v2250
      %2315 = vst [vmem:[#allocation3 + $0xf0] sm:$0xff] %v2251
      %2316 = vst [vmem:[#allocation3 + $0xf8] sm:$0xff] %v2252
      %2317 = vst [vmem:[#allocation3 + $0x100] sm:$0xff] %v2253
      %2318 = vst [vmem:[#allocation3 + $0x108] sm:$0xff] %v2254
      %2319 = vst [vmem:[#allocation3 + $0x110] sm:$0xff] %v2255
      %2320 = vst [vmem:[#allocation3 + $0x118] sm:$0xff] %v2256
      %2321 = vst [vmem:[#allocation3 + $0x120] sm:$0xff] %v2257
      %2322 = vst [vmem:[#allocation3 + $0x128] sm:$0xff] %v2258
      %2323 = vst [vmem:[#allocation3 + $0x130] sm:$0xff] %v2259
      %2324 = vst [vmem:[#allocation3 + $0x138] sm:$0xff] %v2260
      %2325 = vst [vmem:[#allocation3 + $0x140] sm:$0xff] %v2261
      %2326 = vst [vmem:[#allocation3 + $0x148] sm:$0xff] %v2262
      %2327 = vst [vmem:[#allocation3 + $0x150] sm:$0xff] %v2263
      %2328 = vst [vmem:[#allocation3 + $0x158] sm:$0xff] %v2264
      %2329 = vst [vmem:[#allocation3 + $0x160] sm:$0xff] %v2265
      %2330 = vst [vmem:[#allocation3 + $0x168] sm:$0xff] %v2266
      %2331 = vst [vmem:[#allocation3 + $0x170] sm:$0xff] %v2267
      %2332 = vst [vmem:[#allocation3 + $0x178] sm:$0xff] %v2268
      %2333 = vst [vmem:[#allocation3 + $0x180] sm:$0xff] %v2269
      %2334 = vst [vmem:[#allocation3 + $0x188] sm:$0xff] %v2270
      %2335 = vst [vmem:[#allocation3 + $0x190] sm:$0xff] %v2271
      %2336 = vst [vmem:[#allocation3 + $0x198] sm:$0xff] %v2272
      %2337 = vst [vmem:[#allocation3 + $0x1a0] sm:$0xff] %v2273
      %2338 = vst [vmem:[#allocation3 + $0x1a8] sm:$0xff] %v2274
      %2339 = vst [vmem:[#allocation3 + $0x1b0] sm:$0xff] %v2275
      %2340 = vst [vmem:[#allocation3 + $0x1b8] sm:$0xff] %v2276
      %2341 = vst [vmem:[#allocation3 + $0x1c0] sm:$0xff] %v2277
      %2342 = vst [vmem:[#allocation3 + $0x1c8] sm:$0xff] %v2278
      %2343 = vst [vmem:[#allocation3 + $0x1d0] sm:$0xff] %v2279
      %2344 = vst [vmem:[#allocation3 + $0x1d8] sm:$0xff] %v2280
      %2345 = vst [vmem:[#allocation3 + $0x1e0] sm:$0xff] %v2281
      %2346 = vst [vmem:[#allocation3 + $0x1e8] sm:$0xff] %v2282
      %2347 = vst [vmem:[#allocation3 + $0x1f0] sm:$0xff] %v2283
      %2348 = vst [vmem:[#allocation3 + $0x1f8] sm:$0xff] %v2284
      %v2349 = vld [vmem:[#allocation3] sm:$0xff]
      %v2350 = vld [vmem:[#allocation3 + $0x8] sm:$0xff]
      %v2351 = vld [vmem:[#allocation3 + $0x10] sm:$0xff]
      %v2352 = vld [vmem:[#allocation3 + $0x18] sm:$0xff]
      %v2353 = vld [vmem:[#allocation3 + $0x20] sm:$0xff]
      %v2354 = vld [vmem:[#allocation3 + $0x28] sm:$0xff]
      %v2355 = vld [vmem:[#allocation3 + $0x30] sm:$0xff]
      %v2356 = vld [vmem:[#allocation3 + $0x38] sm:$0xff]
      %v2357 = vld [vmem:[#allocation3 + $0x40] sm:$0xff]
      %v2358 = vld [vmem:[#allocation3 + $0x48] sm:$0xff]
      %v2359 = vld [vmem:[#allocation3 + $0x50] sm:$0xff]
      %v2360 = vld [vmem:[#allocation3 + $0x58] sm:$0xff]
      %v2361 = vld [vmem:[#allocation3 + $0x60] sm:$0xff]
      %v2362 = vld [vmem:[#allocation3 + $0x68] sm:$0xff]
      %v2363 = vld [vmem:[#allocation3 + $0x70] sm:$0xff]
      %v2364 = vld [vmem:[#allocation3 + $0x78] sm:$0xff]
      %v2365 = vld [vmem:[#allocation3 + $0x80] sm:$0xff]
      %v2366 = vld [vmem:[#allocation3 + $0x88] sm:$0xff]
      %v2367 = vld [vmem:[#allocation3 + $0x90] sm:$0xff]
      %v2368 = vld [vmem:[#allocation3 + $0x98] sm:$0xff]
      %v2369 = vld [vmem:[#allocation3 + $0xa0] sm:$0xff]
      %v2370 = vld [vmem:[#allocation3 + $0xa8] sm:$0xff]
      %v2371 = vld [vmem:[#allocation3 + $0xb0] sm:$0xff]
      %v2372 = vld [vmem:[#allocation3 + $0xb8] sm:$0xff]
      %v2373 = vld [vmem:[#allocation3 + $0xc0] sm:$0xff]
      %v2374 = vld [vmem:[#allocation3 + $0xc8] sm:$0xff]
      %v2375 = vld [vmem:[#allocation3 + $0xd0] sm:$0xff]
      %v2376 = vld [vmem:[#allocation3 + $0xd8] sm:$0xff]
      %v2377 = vld [vmem:[#allocation3 + $0xe0] sm:$0xff]
      %v2378 = vld [vmem:[#allocation3 + $0xe8] sm:$0xff]
      %v2379 = vld [vmem:[#allocation3 + $0xf0] sm:$0xff]
      %v2380 = vld [vmem:[#allocation3 + $0xf8] sm:$0xff]
      %v2381 = vld [vmem:[#allocation3 + $0x100] sm:$0xff]
      %v2382 = vld [vmem:[#allocation3 + $0x108] sm:$0xff]
      %v2383 = vld [vmem:[#allocation3 + $0x110] sm:$0xff]
      %v2384 = vld [vmem:[#allocation3 + $0x118] sm:$0xff]
      %v2385 = vld [vmem:[#allocation3 + $0x120] sm:$0xff]
      %v2386 = vld [vmem:[#allocation3 + $0x128] sm:$0xff]
      %v2387 = vld [vmem:[#allocation3 + $0x130] sm:$0xff]
      %v2388 = vld [vmem:[#allocation3 + $0x138] sm:$0xff]
      %v2389 = vld [vmem:[#allocation3 + $0x140] sm:$0xff]
      %v2390 = vld [vmem:[#allocation3 + $0x148] sm:$0xff]
      %v2391 = vld [vmem:[#allocation3 + $0x150] sm:$0xff]
      %v2392 = vld [vmem:[#allocation3 + $0x158] sm:$0xff]
      %v2393 = vld [vmem:[#allocation3 + $0x160] sm:$0xff]
      %v2394 = vld [vmem:[#allocation3 + $0x168] sm:$0xff]
      %v2395 = vld [vmem:[#allocation3 + $0x170] sm:$0xff]
      %v2396 = vld [vmem:[#allocation3 + $0x178] sm:$0xff]
      %v2397 = vld [vmem:[#allocation3 + $0x180] sm:$0xff]
      %v2398 = vld [vmem:[#allocation3 + $0x188] sm:$0xff]
      %v2399 = vld [vmem:[#allocation3 + $0x190] sm:$0xff]
      %v2400 = vld [vmem:[#allocation3 + $0x198] sm:$0xff]
      %v2401 = vld [vmem:[#allocation3 + $0x1a0] sm:$0xff]
      %v2402 = vld [vmem:[#allocation3 + $0x1a8] sm:$0xff]
      %v2403 = vld [vmem:[#allocation3 + $0x1b0] sm:$0xff]
      %v2404 = vld [vmem:[#allocation3 + $0x1b8] sm:$0xff]
      %v2405 = vld [vmem:[#allocation3 + $0x1c0] sm:$0xff]
      %v2406 = vld [vmem:[#allocation3 + $0x1c8] sm:$0xff]
      %v2407 = vld [vmem:[#allocation3 + $0x1d0] sm:$0xff]
      %v2408 = vld [vmem:[#allocation3 + $0x1d8] sm:$0xff]
      %v2409 = vld [vmem:[#allocation3 + $0x1e0] sm:$0xff]
      %v2410 = vld [vmem:[#allocation3 + $0x1e8] sm:$0xff]
      %v2411 = vld [vmem:[#allocation3 + $0x1f0] sm:$0xff]
      %v2412 = vld [vmem:[#allocation3 + $0x1f8] sm:$0xff]
      %s2413 = scalar_lea.vmem %s3, 768
      %v2414 = vld [vmem:[%s2413] sm:$0xff]
      %v2415 = vld [vmem:[%s2413 + $0x8] sm:$0xff]
      %v2416 = vld [vmem:[%s2413 + $0x10] sm:$0xff]
      %v2417 = vld [vmem:[%s2413 + $0x18] sm:$0xff]
      %v2418 = vld [vmem:[%s2413 + $0x20] sm:$0xff]
      %v2419 = vld [vmem:[%s2413 + $0x28] sm:$0xff]
      %v2420 = vld [vmem:[%s2413 + $0x30] sm:$0xff]
      %v2421 = vld [vmem:[%s2413 + $0x38] sm:$0xff]
      %v2422 = vld [vmem:[%s2413 + $0x40] sm:$0xff]
      %v2423 = vld [vmem:[%s2413 + $0x48] sm:$0xff]
      %v2424 = vld [vmem:[%s2413 + $0x50] sm:$0xff]
      %v2425 = vld [vmem:[%s2413 + $0x58] sm:$0xff]
      %v2426 = vld [vmem:[%s2413 + $0x60] sm:$0xff]
      %v2427 = vld [vmem:[%s2413 + $0x68] sm:$0xff]
      %v2428 = vld [vmem:[%s2413 + $0x70] sm:$0xff]
      %v2429 = vld [vmem:[%s2413 + $0x78] sm:$0xff]
      %v2432 = vunpack.c.l.b16 %v1311
      %v2433 = vunpack.c.l.b16 %v1312
      %v2434 = vpack.c.b16 %v2433, %v2432
      %v2452 = vunpack.c.l.b16 %v2414
      %v2453 = vunpack.c.h.b16 %v2414
      %v2454 = vunpack.c.l.b16 %v2415
      %v2455 = vunpack.c.h.b16 %v2415
      %v2456 = vunpack.c.l.b16 %v2416
      %v2457 = vunpack.c.h.b16 %v2416
      %v2458 = vunpack.c.l.b16 %v2417
      %v2459 = vunpack.c.h.b16 %v2417
      %v2460 = vunpack.c.l.b16 %v2418
      %v2461 = vunpack.c.h.b16 %v2418
      %v2462 = vunpack.c.l.b16 %v2419
      %v2463 = vunpack.c.h.b16 %v2419
      %v2464 = vunpack.c.l.b16 %v2420
      %v2465 = vunpack.c.h.b16 %v2420
      %v2466 = vunpack.c.l.b16 %v2421
      %v2467 = vunpack.c.h.b16 %v2421
      %v2468 = vunpack.c.l.b16 %v2422
      %v2469 = vunpack.c.h.b16 %v2422
      %v2470 = vunpack.c.l.b16 %v2423
      %v2471 = vunpack.c.h.b16 %v2423
      %v2472 = vunpack.c.l.b16 %v2424
      %v2473 = vunpack.c.h.b16 %v2424
      %v2474 = vunpack.c.l.b16 %v2425
      %v2475 = vunpack.c.h.b16 %v2425
      %v2476 = vunpack.c.l.b16 %v2426
      %v2477 = vunpack.c.h.b16 %v2426
      %v2478 = vunpack.c.l.b16 %v2427
      %v2479 = vunpack.c.h.b16 %v2427
      %v2480 = vunpack.c.l.b16 %v2428
      %v2481 = vunpack.c.h.b16 %v2428
      %v2482 = vunpack.c.l.b16 %v2429
      %v2483 = vunpack.c.h.b16 %v2429
      %v2484 = vpack.c.b16 %v2454, %v2452
      %v2485 = vpack.c.b16 %v2455, %v2453
      %v2486 = vpack.c.b16 %v2458, %v2456
      %v2487 = vpack.c.b16 %v2459, %v2457
      %v2488 = vpack.c.b16 %v2462, %v2460
      %v2489 = vpack.c.b16 %v2463, %v2461
      %v2490 = vpack.c.b16 %v2466, %v2464
      %v2491 = vpack.c.b16 %v2467, %v2465
      %v2492 = vpack.c.b16 %v2470, %v2468
      %v2493 = vpack.c.b16 %v2471, %v2469
      %v2494 = vpack.c.b16 %v2474, %v2472
      %v2495 = vpack.c.b16 %v2475, %v2473
      %v2496 = vpack.c.b16 %v2478, %v2476
      %v2497 = vpack.c.b16 %v2479, %v2477
      %v2498 = vpack.c.b16 %v2482, %v2480
      %v2499 = vpack.c.b16 %v2483, %v2481
      %2516 = vmatpush.bf16.msra.mxu0 %v2498
      %2517 = vmatpush.bf16.msra.mxu0 %v2496
      %2518 = vmatpush.bf16.msra.mxu0 %v2494
      %2519 = vmatpush.bf16.msra.mxu0 %v2492
      %2520 = vmatpush.bf16.msra.mxu0 %v2490
      %2521 = vmatpush.bf16.msra.mxu0 %v2488
      %2522 = vmatpush.bf16.msra.mxu0 %v2486
      %2523 = vmatpush.bf16.msra.mxu0 %v2484
      %2524 = vmatmul.bf16.gmra.mxu0 %v1460
      %v2525 = vpop.f32.mrf.mxu0
      %v2526 = vadd.f32 0.0, %v2525
      %v2527 = vpop.f32.mrf.mxu0
      %v2528 = vadd.f32 0.0, %v2527
      %2529 = vmatmul.bf16.gmra.mxu0 %v1461
      %v2530 = vpop.f32.mrf.mxu0
      %v2531 = vadd.f32 0.0, %v2530
      %v2532 = vpop.f32.mrf.mxu0
      %v2533 = vadd.f32 0.0, %v2532
      %2534 = vmatmul.bf16.gmra.mxu0 %v1462
      %v2535 = vpop.f32.mrf.mxu0
      %v2536 = vadd.f32 0.0, %v2535
      %v2537 = vpop.f32.mrf.mxu0
      %v2538 = vadd.f32 0.0, %v2537
      %2539 = vmatmul.bf16.gmra.mxu0 %v1463
      %v2540 = vpop.f32.mrf.mxu0
      %v2541 = vadd.f32 0.0, %v2540
      %v2542 = vpop.f32.mrf.mxu0
      %v2543 = vadd.f32 0.0, %v2542
      %2544 = vmatmul.bf16.gmra.mxu0 %v1464
      %v2545 = vpop.f32.mrf.mxu0
      %v2546 = vadd.f32 0.0, %v2545
      %v2547 = vpop.f32.mrf.mxu0
      %v2548 = vadd.f32 0.0, %v2547
      %2549 = vmatmul.bf16.gmra.mxu0 %v1465
      %v2550 = vpop.f32.mrf.mxu0
      %v2551 = vadd.f32 0.0, %v2550
      %v2552 = vpop.f32.mrf.mxu0
      %v2553 = vadd.f32 0.0, %v2552
      %2554 = vmatmul.bf16.gmra.mxu0 %v1466
      %v2555 = vpop.f32.mrf.mxu0
      %v2556 = vadd.f32 0.0, %v2555
      %v2557 = vpop.f32.mrf.mxu0
      %v2558 = vadd.f32 0.0, %v2557
      %2559 = vmatmul.bf16.gmra.mxu0 %v1467
      %v2560 = vpop.f32.mrf.mxu0
      %v2561 = vadd.f32 0.0, %v2560
      %v2562 = vpop.f32.mrf.mxu0
      %v2563 = vadd.f32 0.0, %v2562
      %2564 = vmatmul.bf16.gmra.mxu0 %v1468
      %v2565 = vpop.f32.mrf.mxu0
      %v2566 = vadd.f32 0.0, %v2565
      %v2567 = vpop.f32.mrf.mxu0
      %v2568 = vadd.f32 0.0, %v2567
      %2569 = vmatmul.bf16.gmra.mxu0 %v1469
      %v2570 = vpop.f32.mrf.mxu0
      %v2571 = vadd.f32 0.0, %v2570
      %v2572 = vpop.f32.mrf.mxu0
      %v2573 = vadd.f32 0.0, %v2572
      %2574 = vmatmul.bf16.gmra.mxu0 %v1470
      %v2575 = vpop.f32.mrf.mxu0
      %v2576 = vadd.f32 0.0, %v2575
      %v2577 = vpop.f32.mrf.mxu0
      %v2578 = vadd.f32 0.0, %v2577
      %2579 = vmatmul.bf16.gmra.mxu0 %v1471
      %v2580 = vpop.f32.mrf.mxu0
      %v2581 = vadd.f32 0.0, %v2580
      %v2582 = vpop.f32.mrf.mxu0
      %v2583 = vadd.f32 0.0, %v2582
      %2584 = vmatmul.bf16.gmra.mxu0 %v1472
      %v2585 = vpop.f32.mrf.mxu0
      %v2586 = vadd.f32 0.0, %v2585
      %v2587 = vpop.f32.mrf.mxu0
      %v2588 = vadd.f32 0.0, %v2587
      %2589 = vmatmul.bf16.gmra.mxu0 %v1473
      %v2590 = vpop.f32.mrf.mxu0
      %v2591 = vadd.f32 0.0, %v2590
      %v2592 = vpop.f32.mrf.mxu0
      %v2593 = vadd.f32 0.0, %v2592
      %2594 = vmatmul.bf16.gmra.mxu0 %v1961
      %v2595 = vpop.f32.mrf.mxu0
      %v2596 = vadd.f32 0.0, %v2595
      %v2597 = vpop.f32.mrf.mxu0
      %v2598 = vadd.f32 0.0, %v2597
      %2599 = vmatmul.bf16.gmra.mxu0 %v2434
      %v2600 = vpop.f32.mrf.mxu0
      %v2601 = vadd.f32 0.0, %v2600
      %v2602 = vpop.f32.mrf.mxu0
      %v2603 = vadd.f32 0.0, %v2602
      %2604 = vdwg.mxu0
      %2605 = vmatpush.bf16.msra.mxu0 %v2499
      %2606 = vmatpush.bf16.msra.mxu0 %v2497
      %2607 = vmatpush.bf16.msra.mxu0 %v2495
      %2608 = vmatpush.bf16.msra.mxu0 %v2493
      %2609 = vmatpush.bf16.msra.mxu0 %v2491
      %2610 = vmatpush.bf16.msra.mxu0 %v2489
      %2611 = vmatpush.bf16.msra.mxu0 %v2487
      %2612 = vmatpush.bf16.msra.mxu0 %v2485
      %2613 = vmatmul.bf16.gmra.mxu0 %v1460
      %v2614 = vpop.f32.mrf.mxu0
      %v2615 = vadd.f32 0.0, %v2614
      %v2616 = vpop.f32.mrf.mxu0
      %v2617 = vadd.f32 0.0, %v2616
      %2618 = vmatmul.bf16.gmra.mxu0 %v1461
      %v2619 = vpop.f32.mrf.mxu0
      %v2620 = vadd.f32 0.0, %v2619
      %v2621 = vpop.f32.mrf.mxu0
      %v2622 = vadd.f32 0.0, %v2621
      %2623 = vmatmul.bf16.gmra.mxu0 %v1462
      %v2624 = vpop.f32.mrf.mxu0
      %v2625 = vadd.f32 0.0, %v2624
      %v2626 = vpop.f32.mrf.mxu0
      %v2627 = vadd.f32 0.0, %v2626
      %2628 = vmatmul.bf16.gmra.mxu0 %v1463
      %v2629 = vpop.f32.mrf.mxu0
      %v2630 = vadd.f32 0.0, %v2629
      %v2631 = vpop.f32.mrf.mxu0
      %v2632 = vadd.f32 0.0, %v2631
      %2633 = vmatmul.bf16.gmra.mxu0 %v1464
      %v2634 = vpop.f32.mrf.mxu0
      %v2635 = vadd.f32 0.0, %v2634
      %v2636 = vpop.f32.mrf.mxu0
      %v2637 = vadd.f32 0.0, %v2636
      %2638 = vmatmul.bf16.gmra.mxu0 %v1465
      %v2639 = vpop.f32.mrf.mxu0
      %v2640 = vadd.f32 0.0, %v2639
      %v2641 = vpop.f32.mrf.mxu0
      %v2642 = vadd.f32 0.0, %v2641
      %2643 = vmatmul.bf16.gmra.mxu0 %v1466
      %v2644 = vpop.f32.mrf.mxu0
      %v2645 = vadd.f32 0.0, %v2644
      %v2646 = vpop.f32.mrf.mxu0
      %v2647 = vadd.f32 0.0, %v2646
      %2648 = vmatmul.bf16.gmra.mxu0 %v1467
      %v2649 = vpop.f32.mrf.mxu0
      %v2650 = vadd.f32 0.0, %v2649
      %v2651 = vpop.f32.mrf.mxu0
      %v2652 = vadd.f32 0.0, %v2651
      %2653 = vmatmul.bf16.gmra.mxu0 %v1468
      %v2654 = vpop.f32.mrf.mxu0
      %v2655 = vadd.f32 0.0, %v2654
      %v2656 = vpop.f32.mrf.mxu0
      %v2657 = vadd.f32 0.0, %v2656
      %2658 = vmatmul.bf16.gmra.mxu0 %v1469
      %v2659 = vpop.f32.mrf.mxu0
      %v2660 = vadd.f32 0.0, %v2659
      %v2661 = vpop.f32.mrf.mxu0
      %v2662 = vadd.f32 0.0, %v2661
      %2663 = vmatmul.bf16.gmra.mxu0 %v1470
      %v2664 = vpop.f32.mrf.mxu0
      %v2665 = vadd.f32 0.0, %v2664
      %v2666 = vpop.f32.mrf.mxu0
      %v2667 = vadd.f32 0.0, %v2666
      %2668 = vmatmul.bf16.gmra.mxu0 %v1471
      %v2669 = vpop.f32.mrf.mxu0
      %v2670 = vadd.f32 0.0, %v2669
      %v2671 = vpop.f32.mrf.mxu0
      %v2672 = vadd.f32 0.0, %v2671
      %2673 = vmatmul.bf16.gmra.mxu0 %v1472
      %v2674 = vpop.f32.mrf.mxu0
      %v2675 = vadd.f32 0.0, %v2674
      %v2676 = vpop.f32.mrf.mxu0
      %v2677 = vadd.f32 0.0, %v2676
      %2678 = vmatmul.bf16.gmra.mxu0 %v1473
      %v2679 = vpop.f32.mrf.mxu0
      %v2680 = vadd.f32 0.0, %v2679
      %v2681 = vpop.f32.mrf.mxu0
      %v2682 = vadd.f32 0.0, %v2681
      %2683 = vmatmul.bf16.gmra.mxu0 %v1961
      %v2684 = vpop.f32.mrf.mxu0
      %v2685 = vadd.f32 0.0, %v2684
      %v2686 = vpop.f32.mrf.mxu0
      %v2687 = vadd.f32 0.0, %v2686
      %2688 = vmatmul.bf16.gmra.mxu0 %v2434
      %v2689 = vpop.f32.mrf.mxu0
      %v2690 = vadd.f32 0.0, %v2689
      %v2691 = vpop.f32.mrf.mxu0
      %v2692 = vadd.f32 0.0, %v2691
      %2693 = vdwg.mxu0
      %v2694 = vadd.f32 %v2349, %v2526
      %v2695 = vadd.f32 %v2350, %v2615
      %v2696 = vadd.f32 %v2351, %v2528
      %v2697 = vadd.f32 %v2352, %v2617
      %v2698 = vadd.f32 %v2353, %v2531
      %v2699 = vadd.f32 %v2354, %v2620
      %v2700 = vadd.f32 %v2355, %v2533
      %v2701 = vadd.f32 %v2356, %v2622
      %v2702 = vadd.f32 %v2357, %v2536
      %v2703 = vadd.f32 %v2358, %v2625
      %v2704 = vadd.f32 %v2359, %v2538
      %v2705 = vadd.f32 %v2360, %v2627
      %v2706 = vadd.f32 %v2361, %v2541
      %v2707 = vadd.f32 %v2362, %v2630
      %v2708 = vadd.f32 %v2363, %v2543
      %v2709 = vadd.f32 %v2364, %v2632
      %v2710 = vadd.f32 %v2365, %v2546
      %v2711 = vadd.f32 %v2366, %v2635
      %v2712 = vadd.f32 %v2367, %v2548
      %v2713 = vadd.f32 %v2368, %v2637
      %v2714 = vadd.f32 %v2369, %v2551
      %v2715 = vadd.f32 %v2370, %v2640
      %v2716 = vadd.f32 %v2371, %v2553
      %v2717 = vadd.f32 %v2372, %v2642
      %v2718 = vadd.f32 %v2373, %v2556
      %v2719 = vadd.f32 %v2374, %v2645
      %v2720 = vadd.f32 %v2375, %v2558
      %v2721 = vadd.f32 %v2376, %v2647
      %v2722 = vadd.f32 %v2377, %v2561
      %v2723 = vadd.f32 %v2378, %v2650
      %v2724 = vadd.f32 %v2379, %v2563
      %v2725 = vadd.f32 %v2380, %v2652
      %v2726 = vadd.f32 %v2381, %v2566
      %v2727 = vadd.f32 %v2382, %v2655
      %v2728 = vadd.f32 %v2383, %v2568
      %v2729 = vadd.f32 %v2384, %v2657
      %v2730 = vadd.f32 %v2385, %v2571
      %v2731 = vadd.f32 %v2386, %v2660
      %v2732 = vadd.f32 %v2387, %v2573
      %v2733 = vadd.f32 %v2388, %v2662
      %v2734 = vadd.f32 %v2389, %v2576
      %v2735 = vadd.f32 %v2390, %v2665
      %v2736 = vadd.f32 %v2391, %v2578
      %v2737 = vadd.f32 %v2392, %v2667
      %v2738 = vadd.f32 %v2393, %v2581
      %v2739 = vadd.f32 %v2394, %v2670
      %v2740 = vadd.f32 %v2395, %v2583
      %v2741 = vadd.f32 %v2396, %v2672
      %v2742 = vadd.f32 %v2397, %v2586
      %v2743 = vadd.f32 %v2398, %v2675
      %v2744 = vadd.f32 %v2399, %v2588
      %v2745 = vadd.f32 %v2400, %v2677
      %v2746 = vadd.f32 %v2401, %v2591
      %v2747 = vadd.f32 %v2402, %v2680
      %v2748 = vadd.f32 %v2403, %v2593
      %v2749 = vadd.f32 %v2404, %v2682
      %v2750 = vadd.f32 %v2405, %v2596
      %v2751 = vadd.f32 %v2406, %v2685
      %v2752 = vadd.f32 %v2407, %v2598
      %v2753 = vadd.f32 %v2408, %v2687
      %v2754 = vadd.f32 %v2409, %v2601
      %v2755 = vadd.f32 %v2410, %v2690
      %v2756 = vadd.f32 %v2411, %v2603
      %v2757 = vadd.f32 %v2412, %v2692
      %2758 = vst [vmem:[#allocation3] sm:$0xff] %v2694
      %2759 = vst [vmem:[#allocation3 + $0x8] sm:$0xff] %v2695
      %2760 = vst [vmem:[#allocation3 + $0x10] sm:$0xff] %v2696
      %2761 = vst [vmem:[#allocation3 + $0x18] sm:$0xff] %v2697
      %2762 = vst [vmem:[#allocation3 + $0x20] sm:$0xff] %v2698
      %2763 = vst [vmem:[#allocation3 + $0x28] sm:$0xff] %v2699
      %2764 = vst [vmem:[#allocation3 + $0x30] sm:$0xff] %v2700
      %2765 = vst [vmem:[#allocation3 + $0x38] sm:$0xff] %v2701
      %2766 = vst [vmem:[#allocation3 + $0x40] sm:$0xff] %v2702
      %2767 = vst [vmem:[#allocation3 + $0x48] sm:$0xff] %v2703
      %2768 = vst [vmem:[#allocation3 + $0x50] sm:$0xff] %v2704
      %2769 = vst [vmem:[#allocation3 + $0x58] sm:$0xff] %v2705
      %2770 = vst [vmem:[#allocation3 + $0x60] sm:$0xff] %v2706
      %2771 = vst [vmem:[#allocation3 + $0x68] sm:$0xff] %v2707
      %2772 = vst [vmem:[#allocation3 + $0x70] sm:$0xff] %v2708
      %2773 = vst [vmem:[#allocation3 + $0x78] sm:$0xff] %v2709
      %2774 = vst [vmem:[#allocation3 + $0x80] sm:$0xff] %v2710
      %2775 = vst [vmem:[#allocation3 + $0x88] sm:$0xff] %v2711
      %2776 = vst [vmem:[#allocation3 + $0x90] sm:$0xff] %v2712
      %2777 = vst [vmem:[#allocation3 + $0x98] sm:$0xff] %v2713
      %2778 = vst [vmem:[#allocation3 + $0xa0] sm:$0xff] %v2714
      %2779 = vst [vmem:[#allocation3 + $0xa8] sm:$0xff] %v2715
      %2780 = vst [vmem:[#allocation3 + $0xb0] sm:$0xff] %v2716
      %2781 = vst [vmem:[#allocation3 + $0xb8] sm:$0xff] %v2717
      %2782 = vst [vmem:[#allocation3 + $0xc0] sm:$0xff] %v2718
      %2783 = vst [vmem:[#allocation3 + $0xc8] sm:$0xff] %v2719
      %2784 = vst [vmem:[#allocation3 + $0xd0] sm:$0xff] %v2720
      %2785 = vst [vmem:[#allocation3 + $0xd8] sm:$0xff] %v2721
      %2786 = vst [vmem:[#allocation3 + $0xe0] sm:$0xff] %v2722
      %2787 = vst [vmem:[#allocation3 + $0xe8] sm:$0xff] %v2723
      %2788 = vst [vmem:[#allocation3 + $0xf0] sm:$0xff] %v2724
      %2789 = vst [vmem:[#allocation3 + $0xf8] sm:$0xff] %v2725
      %2790 = vst [vmem:[#allocation3 + $0x100] sm:$0xff] %v2726
      %2791 = vst [vmem:[#allocation3 + $0x108] sm:$0xff] %v2727
      %2792 = vst [vmem:[#allocation3 + $0x110] sm:$0xff] %v2728
      %2793 = vst [vmem:[#allocation3 + $0x118] sm:$0xff] %v2729
      %2794 = vst [vmem:[#allocation3 + $0x120] sm:$0xff] %v2730
      %2795 = vst [vmem:[#allocation3 + $0x128] sm:$0xff] %v2731
      %2796 = vst [vmem:[#allocation3 + $0x130] sm:$0xff] %v2732
      %2797 = vst [vmem:[#allocation3 + $0x138] sm:$0xff] %v2733
      %2798 = vst [vmem:[#allocation3 + $0x140] sm:$0xff] %v2734
      %2799 = vst [vmem:[#allocation3 + $0x148] sm:$0xff] %v2735
      %2800 = vst [vmem:[#allocation3 + $0x150] sm:$0xff] %v2736
      %2801 = vst [vmem:[#allocation3 + $0x158] sm:$0xff] %v2737
      %2802 = vst [vmem:[#allocation3 + $0x160] sm:$0xff] %v2738
      %2803 = vst [vmem:[#allocation3 + $0x168] sm:$0xff] %v2739
      %2804 = vst [vmem:[#allocation3 + $0x170] sm:$0xff] %v2740
      %2805 = vst [vmem:[#allocation3 + $0x178] sm:$0xff] %v2741
      %2806 = vst [vmem:[#allocation3 + $0x180] sm:$0xff] %v2742
      %2807 = vst [vmem:[#allocation3 + $0x188] sm:$0xff] %v2743
      %2808 = vst [vmem:[#allocation3 + $0x190] sm:$0xff] %v2744
      %2809 = vst [vmem:[#allocation3 + $0x198] sm:$0xff] %v2745
      %2810 = vst [vmem:[#allocation3 + $0x1a0] sm:$0xff] %v2746
      %2811 = vst [vmem:[#allocation3 + $0x1a8] sm:$0xff] %v2747
      %2812 = vst [vmem:[#allocation3 + $0x1b0] sm:$0xff] %v2748
      %2813 = vst [vmem:[#allocation3 + $0x1b8] sm:$0xff] %v2749
      %2814 = vst [vmem:[#allocation3 + $0x1c0] sm:$0xff] %v2750
      %2815 = vst [vmem:[#allocation3 + $0x1c8] sm:$0xff] %v2751
      %2816 = vst [vmem:[#allocation3 + $0x1d0] sm:$0xff] %v2752
      %2817 = vst [vmem:[#allocation3 + $0x1d8] sm:$0xff] %v2753
      %2818 = vst [vmem:[#allocation3 + $0x1e0] sm:$0xff] %v2754
      %2819 = vst [vmem:[#allocation3 + $0x1e8] sm:$0xff] %v2755
      %2820 = vst [vmem:[#allocation3 + $0x1f0] sm:$0xff] %v2756
      %2821 = vst [vmem:[#allocation3 + $0x1f8] sm:$0xff] %v2757
      %v2822 = vld [vmem:[#allocation3] sm:$0xff]
      %v2823 = vld [vmem:[#allocation3 + $0x8] sm:$0xff]
      %v2824 = vld [vmem:[#allocation3 + $0x10] sm:$0xff]
      %v2825 = vld [vmem:[#allocation3 + $0x18] sm:$0xff]
      %v2826 = vld [vmem:[#allocation3 + $0x20] sm:$0xff]
      %v2827 = vld [vmem:[#allocation3 + $0x28] sm:$0xff]
      %v2828 = vld [vmem:[#allocation3 + $0x30] sm:$0xff]
      %v2829 = vld [vmem:[#allocation3 + $0x38] sm:$0xff]
      %v2830 = vld [vmem:[#allocation3 + $0x40] sm:$0xff]
      %v2831 = vld [vmem:[#allocation3 + $0x48] sm:$0xff]
      %v2832 = vld [vmem:[#allocation3 + $0x50] sm:$0xff]
      %v2833 = vld [vmem:[#allocation3 + $0x58] sm:$0xff]
      %v2834 = vld [vmem:[#allocation3 + $0x60] sm:$0xff]
      %v2835 = vld [vmem:[#allocation3 + $0x68] sm:$0xff]
      %v2836 = vld [vmem:[#allocation3 + $0x70] sm:$0xff]
      %v2837 = vld [vmem:[#allocation3 + $0x78] sm:$0xff]
      %v2838 = vld [vmem:[#allocation3 + $0x80] sm:$0xff]
      %v2839 = vld [vmem:[#allocation3 + $0x88] sm:$0xff]
      %v2840 = vld [vmem:[#allocation3 + $0x90] sm:$0xff]
      %v2841 = vld [vmem:[#allocation3 + $0x98] sm:$0xff]
      %v2842 = vld [vmem:[#allocation3 + $0xa0] sm:$0xff]
      %v2843 = vld [vmem:[#allocation3 + $0xa8] sm:$0xff]
      %v2844 = vld [vmem:[#allocation3 + $0xb0] sm:$0xff]
      %v2845 = vld [vmem:[#allocation3 + $0xb8] sm:$0xff]
      %v2846 = vld [vmem:[#allocation3 + $0xc0] sm:$0xff]
      %v2847 = vld [vmem:[#allocation3 + $0xc8] sm:$0xff]
      %v2848 = vld [vmem:[#allocation3 + $0xd0] sm:$0xff]
      %v2849 = vld [vmem:[#allocation3 + $0xd8] sm:$0xff]
      %v2850 = vld [vmem:[#allocation3 + $0xe0] sm:$0xff]
      %v2851 = vld [vmem:[#allocation3 + $0xe8] sm:$0xff]
      %v2852 = vld [vmem:[#allocation3 + $0xf0] sm:$0xff]
      %v2853 = vld [vmem:[#allocation3 + $0xf8] sm:$0xff]
      %v2854 = vld [vmem:[#allocation3 + $0x100] sm:$0xff]
      %v2855 = vld [vmem:[#allocation3 + $0x108] sm:$0xff]
      %v2856 = vld [vmem:[#allocation3 + $0x110] sm:$0xff]
      %v2857 = vld [vmem:[#allocation3 + $0x118] sm:$0xff]
      %v2858 = vld [vmem:[#allocation3 + $0x120] sm:$0xff]
      %v2859 = vld [vmem:[#allocation3 + $0x128] sm:$0xff]
      %v2860 = vld [vmem:[#allocation3 + $0x130] sm:$0xff]
      %v2861 = vld [vmem:[#allocation3 + $0x138] sm:$0xff]
      %v2862 = vld [vmem:[#allocation3 + $0x140] sm:$0xff]
      %v2863 = vld [vmem:[#allocation3 + $0x148] sm:$0xff]
      %v2864 = vld [vmem:[#allocation3 + $0x150] sm:$0xff]
      %v2865 = vld [vmem:[#allocation3 + $0x158] sm:$0xff]
      %v2866 = vld [vmem:[#allocation3 + $0x160] sm:$0xff]
      %v2867 = vld [vmem:[#allocation3 + $0x168] sm:$0xff]
      %v2868 = vld [vmem:[#allocation3 + $0x170] sm:$0xff]
      %v2869 = vld [vmem:[#allocation3 + $0x178] sm:$0xff]
      %v2870 = vld [vmem:[#allocation3 + $0x180] sm:$0xff]
      %v2871 = vld [vmem:[#allocation3 + $0x188] sm:$0xff]
      %v2872 = vld [vmem:[#allocation3 + $0x190] sm:$0xff]
      %v2873 = vld [vmem:[#allocation3 + $0x198] sm:$0xff]
      %v2874 = vld [vmem:[#allocation3 + $0x1a0] sm:$0xff]
      %v2875 = vld [vmem:[#allocation3 + $0x1a8] sm:$0xff]
      %v2876 = vld [vmem:[#allocation3 + $0x1b0] sm:$0xff]
      %v2877 = vld [vmem:[#allocation3 + $0x1b8] sm:$0xff]
      %v2878 = vld [vmem:[#allocation3 + $0x1c0] sm:$0xff]
      %v2879 = vld [vmem:[#allocation3 + $0x1c8] sm:$0xff]
      %v2880 = vld [vmem:[#allocation3 + $0x1d0] sm:$0xff]
      %v2881 = vld [vmem:[#allocation3 + $0x1d8] sm:$0xff]
      %v2882 = vld [vmem:[#allocation3 + $0x1e0] sm:$0xff]
      %v2883 = vld [vmem:[#allocation3 + $0x1e8] sm:$0xff]
      %v2884 = vld [vmem:[#allocation3 + $0x1f0] sm:$0xff]
      %v2885 = vld [vmem:[#allocation3 + $0x1f8] sm:$0xff]
      %vm2886 = vsmask.f32 3328
      %vm2887 = vsmask.f32 7440
      %vm2888 = vmor %vm2886, %vm2887
      %v2890 = vshrl.u32 %v1260, 16
      %v2892 = vrot.slane %v2890, 4
      %v2893 = vshll.u32 %v1260, 16
      %v2895 = vrot.slane %v2893, 5
      %v2896 = vor.u32 %v2892, %v2895
      %v2897 = vrot.slane %v2896, 4
      %v2899 = vshll.u32 %v1261, 16
      %v2901 = vrot.slane %v2899, 5
      %v2902 = vsel %vm2888, %v2897, %v2901
      %v2903 = vshrl.u32 %v1261, 16
      %v2905 = vrot.slane %v2903, 4
      %v2906 = vor.u32 %v2905, %v2901
      %v2907 = vrot.slane %v2906, 4
      %v2909 = vshll.u32 %v1262, 16
      %v2911 = vrot.slane %v2909, 5
      %v2912 = vsel %vm2888, %v2907, %v2911
      %v2914 = vshrl.u32 %v1263, 16
      %v2916 = vrot.slane %v2914, 4
      %v2917 = vshll.u32 %v1263, 16
      %v2919 = vrot.slane %v2917, 5
      %v2920 = vor.u32 %v2916, %v2919
      %v2921 = vrot.slane %v2920, 4
      %v2923 = vshll.u32 %v1264, 16
      %v2925 = vrot.slane %v2923, 5
      %v2926 = vsel %vm2888, %v2921, %v2925
      %v2927 = vshrl.u32 %v1264, 16
      %v2929 = vrot.slane %v2927, 4
      %v2930 = vor.u32 %v2929, %v2925
      %v2931 = vrot.slane %v2930, 4
      %v2933 = vshll.u32 %v1265, 16
      %v2935 = vrot.slane %v2933, 5
      %v2936 = vsel %vm2888, %v2931, %v2935
      %v2938 = vshrl.u32 %v1266, 16
      %v2940 = vrot.slane %v2938, 4
      %v2941 = vshll.u32 %v1266, 16
      %v2943 = vrot.slane %v2941, 5
      %v2944 = vor.u32 %v2940, %v2943
      %v2945 = vrot.slane %v2944, 4
      %v2947 = vshll.u32 %v1267, 16
      %v2949 = vrot.slane %v2947, 5
      %v2950 = vsel %vm2888, %v2945, %v2949
      %v2951 = vshrl.u32 %v1267, 16
      %v2953 = vrot.slane %v2951, 4
      %v2954 = vor.u32 %v2953, %v2949
      %v2955 = vrot.slane %v2954, 4
      %v2957 = vshll.u32 %v1268, 16
      %v2959 = vrot.slane %v2957, 5
      %v2960 = vsel %vm2888, %v2955, %v2959
      %v2962 = vshrl.u32 %v1269, 16
      %v2964 = vrot.slane %v2962, 4
      %v2965 = vshll.u32 %v1269, 16
      %v2967 = vrot.slane %v2965, 5
      %v2968 = vor.u32 %v2964, %v2967
      %v2969 = vrot.slane %v2968, 4
      %v2971 = vshll.u32 %v1270, 16
      %v2973 = vrot.slane %v2971, 5
      %v2974 = vsel %vm2888, %v2969, %v2973
      %v2975 = vshrl.u32 %v1270, 16
      %v2977 = vrot.slane %v2975, 4
      %v2978 = vor.u32 %v2977, %v2973
      %v2979 = vrot.slane %v2978, 4
      %v2981 = vshll.u32 %v1271, 16
      %v2983 = vrot.slane %v2981, 5
      %v2984 = vsel %vm2888, %v2979, %v2983
      %v2986 = vshrl.u32 %v1272, 16
      %v2988 = vrot.slane %v2986, 4
      %v2989 = vshll.u32 %v1272, 16
      %v2991 = vrot.slane %v2989, 5
      %v2992 = vor.u32 %v2988, %v2991
      %v2993 = vrot.slane %v2992, 4
      %v2995 = vshll.u32 %v1273, 16
      %v2997 = vrot.slane %v2995, 5
      %v2998 = vsel %vm2888, %v2993, %v2997
      %v2999 = vshrl.u32 %v1273, 16
      %v3001 = vrot.slane %v2999, 4
      %v3002 = vor.u32 %v3001, %v2997
      %v3003 = vrot.slane %v3002, 4
      %v3005 = vshll.u32 %v1274, 16
      %v3007 = vrot.slane %v3005, 5
      %v3008 = vsel %vm2888, %v3003, %v3007
      %v3010 = vshrl.u32 %v1275, 16
      %v3012 = vrot.slane %v3010, 4
      %v3013 = vshll.u32 %v1275, 16
      %v3015 = vrot.slane %v3013, 5
      %v3016 = vor.u32 %v3012, %v3015
      %v3017 = vrot.slane %v3016, 4
      %v3019 = vshll.u32 %v1276, 16
      %v3021 = vrot.slane %v3019, 5
      %v3022 = vsel %vm2888, %v3017, %v3021
      %v3023 = vshrl.u32 %v1276, 16
      %v3025 = vrot.slane %v3023, 4
      %v3026 = vor.u32 %v3025, %v3021
      %v3027 = vrot.slane %v3026, 4
      %v3029 = vshll.u32 %v1277, 16
      %v3031 = vrot.slane %v3029, 5
      %v3032 = vsel %vm2888, %v3027, %v3031
      %v3034 = vshrl.u32 %v1278, 16
      %v3036 = vrot.slane %v3034, 4
      %v3037 = vshll.u32 %v1278, 16
      %v3039 = vrot.slane %v3037, 5
      %v3040 = vor.u32 %v3036, %v3039
      %v3041 = vrot.slane %v3040, 4
      %v3043 = vshll.u32 %v1279, 16
      %v3045 = vrot.slane %v3043, 5
      %v3046 = vsel %vm2888, %v3041, %v3045
      %v3047 = vshrl.u32 %v1279, 16
      %v3049 = vrot.slane %v3047, 4
      %v3050 = vor.u32 %v3049, %v3045
      %v3051 = vrot.slane %v3050, 4
      %v3053 = vshll.u32 %v1280, 16
      %v3055 = vrot.slane %v3053, 5
      %v3056 = vsel %vm2888, %v3051, %v3055
      %v3058 = vshrl.u32 %v1281, 16
      %v3060 = vrot.slane %v3058, 4
      %v3061 = vshll.u32 %v1281, 16
      %v3063 = vrot.slane %v3061, 5
      %v3064 = vor.u32 %v3060, %v3063
      %v3065 = vrot.slane %v3064, 4
      %v3067 = vshll.u32 %v1282, 16
      %v3069 = vrot.slane %v3067, 5
      %v3070 = vsel %vm2888, %v3065, %v3069
      %v3071 = vshrl.u32 %v1282, 16
      %v3073 = vrot.slane %v3071, 4
      %v3074 = vor.u32 %v3073, %v3069
      %v3075 = vrot.slane %v3074, 4
      %v3077 = vshll.u32 %v1283, 16
      %v3079 = vrot.slane %v3077, 5
      %v3080 = vsel %vm2888, %v3075, %v3079
      %v3082 = vshrl.u32 %v1284, 16
      %v3084 = vrot.slane %v3082, 4
      %v3085 = vshll.u32 %v1284, 16
      %v3087 = vrot.slane %v3085, 5
      %v3088 = vor.u32 %v3084, %v3087
      %v3089 = vrot.slane %v3088, 4
      %v3091 = vshll.u32 %v1285, 16
      %v3093 = vrot.slane %v3091, 5
      %v3094 = vsel %vm2888, %v3089, %v3093
      %v3095 = vshrl.u32 %v1285, 16
      %v3097 = vrot.slane %v3095, 4
      %v3098 = vor.u32 %v3097, %v3093
      %v3099 = vrot.slane %v3098, 4
      %v3101 = vshll.u32 %v1286, 16
      %v3103 = vrot.slane %v3101, 5
      %v3104 = vsel %vm2888, %v3099, %v3103
      %v3106 = vshrl.u32 %v1287, 16
      %v3108 = vrot.slane %v3106, 4
      %v3109 = vshll.u32 %v1287, 16
      %v3111 = vrot.slane %v3109, 5
      %v3112 = vor.u32 %v3108, %v3111
      %v3113 = vrot.slane %v3112, 4
      %v3115 = vshll.u32 %v1288, 16
      %v3117 = vrot.slane %v3115, 5
      %v3118 = vsel %vm2888, %v3113, %v3117
      %v3119 = vshrl.u32 %v1288, 16
      %v3121 = vrot.slane %v3119, 4
      %v3122 = vor.u32 %v3121, %v3117
      %v3123 = vrot.slane %v3122, 4
      %v3125 = vshll.u32 %v1289, 16
      %v3127 = vrot.slane %v3125, 5
      %v3128 = vsel %vm2888, %v3123, %v3127
      %v3130 = vshrl.u32 %v1290, 16
      %v3132 = vrot.slane %v3130, 4
      %v3133 = vshll.u32 %v1290, 16
      %v3135 = vrot.slane %v3133, 5
      %v3136 = vor.u32 %v3132, %v3135
      %v3137 = vrot.slane %v3136, 4
      %v3139 = vshll.u32 %v1291, 16
      %v3141 = vrot.slane %v3139, 5
      %v3142 = vsel %vm2888, %v3137, %v3141
      %v3143 = vshrl.u32 %v1291, 16
      %v3145 = vrot.slane %v3143, 4
      %v3146 = vor.u32 %v3145, %v3141
      %v3147 = vrot.slane %v3146, 4
      %v3149 = vshll.u32 %v1292, 16
      %v3151 = vrot.slane %v3149, 5
      %v3152 = vsel %vm2888, %v3147, %v3151
      %v3154 = vshrl.u32 %v1293, 16
      %v3156 = vrot.slane %v3154, 4
      %v3157 = vshll.u32 %v1293, 16
      %v3159 = vrot.slane %v3157, 5
      %v3160 = vor.u32 %v3156, %v3159
      %v3161 = vrot.slane %v3160, 4
      %v3163 = vshll.u32 %v1294, 16
      %v3165 = vrot.slane %v3163, 5
      %v3166 = vsel %vm2888, %v3161, %v3165
      %v3167 = vshrl.u32 %v1294, 16
      %v3169 = vrot.slane %v3167, 4
      %v3170 = vor.u32 %v3169, %v3165
      %v3171 = vrot.slane %v3170, 4
      %v3173 = vshll.u32 %v1295, 16
      %v3175 = vrot.slane %v3173, 5
      %v3176 = vsel %vm2888, %v3171, %v3175
      %v3178 = vshrl.u32 %v1296, 16
      %v3180 = vrot.slane %v3178, 4
      %v3181 = vshll.u32 %v1296, 16
      %v3183 = vrot.slane %v3181, 5
      %v3184 = vor.u32 %v3180, %v3183
      %v3185 = vrot.slane %v3184, 4
      %v3187 = vshll.u32 %v1297, 16
      %v3189 = vrot.slane %v3187, 5
      %v3190 = vsel %vm2888, %v3185, %v3189
      %v3191 = vshrl.u32 %v1297, 16
      %v3193 = vrot.slane %v3191, 4
      %v3194 = vor.u32 %v3193, %v3189
      %v3195 = vrot.slane %v3194, 4
      %v3197 = vshll.u32 %v1298, 16
      %v3199 = vrot.slane %v3197, 5
      %v3200 = vsel %vm2888, %v3195, %v3199
      %v3202 = vshrl.u32 %v1299, 16
      %v3204 = vrot.slane %v3202, 4
      %v3205 = vshll.u32 %v1299, 16
      %v3207 = vrot.slane %v3205, 5
      %v3208 = vor.u32 %v3204, %v3207
      %v3209 = vrot.slane %v3208, 4
      %v3211 = vshll.u32 %v1300, 16
      %v3213 = vrot.slane %v3211, 5
      %v3214 = vsel %vm2888, %v3209, %v3213
      %v3215 = vshrl.u32 %v1300, 16
      %v3217 = vrot.slane %v3215, 4
      %v3218 = vor.u32 %v3217, %v3213
      %v3219 = vrot.slane %v3218, 4
      %v3221 = vshll.u32 %v1301, 16
      %v3223 = vrot.slane %v3221, 5
      %v3224 = vsel %vm2888, %v3219, %v3223
      %v3226 = vshrl.u32 %v1302, 16
      %v3228 = vrot.slane %v3226, 4
      %v3229 = vshll.u32 %v1302, 16
      %v3231 = vrot.slane %v3229, 5
      %v3232 = vor.u32 %v3228, %v3231
      %v3233 = vrot.slane %v3232, 4
      %v3235 = vshll.u32 %v1303, 16
      %v3237 = vrot.slane %v3235, 5
      %v3238 = vsel %vm2888, %v3233, %v3237
      %v3239 = vshrl.u32 %v1303, 16
      %v3241 = vrot.slane %v3239, 4
      %v3242 = vor.u32 %v3241, %v3237
      %v3243 = vrot.slane %v3242, 4
      %v3245 = vshll.u32 %v1304, 16
      %v3247 = vrot.slane %v3245, 5
      %v3248 = vsel %vm2888, %v3243, %v3247
      %v3250 = vshrl.u32 %v1305, 16
      %v3252 = vrot.slane %v3250, 4
      %v3253 = vshll.u32 %v1305, 16
      %v3255 = vrot.slane %v3253, 5
      %v3256 = vor.u32 %v3252, %v3255
      %v3257 = vrot.slane %v3256, 4
      %v3259 = vshll.u32 %v1306, 16
      %v3261 = vrot.slane %v3259, 5
      %v3262 = vsel %vm2888, %v3257, %v3261
      %v3263 = vshrl.u32 %v1306, 16
      %v3265 = vrot.slane %v3263, 4
      %v3266 = vor.u32 %v3265, %v3261
      %v3267 = vrot.slane %v3266, 4
      %v3269 = vshll.u32 %v1307, 16
      %v3271 = vrot.slane %v3269, 5
      %v3272 = vsel %vm2888, %v3267, %v3271
      %s3273 = scalar_lea.vmem %s3, 128
      %v3274 = vld [vmem:[%s3273] sm:$0xff]
      %v3275 = vld [vmem:[%s3273 + $0x8] sm:$0xff]
      %v3276 = vld [vmem:[%s3273 + $0x10] sm:$0xff]
      %v3277 = vld [vmem:[%s3273 + $0x18] sm:$0xff]
      %v3278 = vld [vmem:[%s3273 + $0x20] sm:$0xff]
      %v3279 = vld [vmem:[%s3273 + $0x28] sm:$0xff]
      %v3280 = vld [vmem:[%s3273 + $0x30] sm:$0xff]
      %v3281 = vld [vmem:[%s3273 + $0x38] sm:$0xff]
      %v3282 = vld [vmem:[%s3273 + $0x40] sm:$0xff]
      %v3283 = vld [vmem:[%s3273 + $0x48] sm:$0xff]
      %v3284 = vld [vmem:[%s3273 + $0x50] sm:$0xff]
      %v3285 = vld [vmem:[%s3273 + $0x58] sm:$0xff]
      %v3286 = vld [vmem:[%s3273 + $0x60] sm:$0xff]
      %v3287 = vld [vmem:[%s3273 + $0x68] sm:$0xff]
      %v3288 = vld [vmem:[%s3273 + $0x70] sm:$0xff]
      %v3289 = vld [vmem:[%s3273 + $0x78] sm:$0xff]
      %v3290 = vunpack.c.l.b16 %v2902
      %v3291 = vunpack.c.l.b16 %v2912
      %v3292 = vunpack.c.l.b16 %v2926
      %v3293 = vunpack.c.l.b16 %v2936
      %v3294 = vunpack.c.l.b16 %v2950
      %v3295 = vunpack.c.l.b16 %v2960
      %v3296 = vunpack.c.l.b16 %v2974
      %v3297 = vunpack.c.l.b16 %v2984
      %v3298 = vunpack.c.l.b16 %v2998
      %v3299 = vunpack.c.l.b16 %v3008
      %v3300 = vunpack.c.l.b16 %v3022
      %v3301 = vunpack.c.l.b16 %v3032
      %v3302 = vunpack.c.l.b16 %v3046
      %v3303 = vunpack.c.l.b16 %v3056
      %v3304 = vunpack.c.l.b16 %v3070
      %v3305 = vunpack.c.l.b16 %v3080
      %v3306 = vunpack.c.l.b16 %v3094
      %v3307 = vunpack.c.l.b16 %v3104
      %v3308 = vunpack.c.l.b16 %v3118
      %v3309 = vunpack.c.l.b16 %v3128
      %v3310 = vunpack.c.l.b16 %v3142
      %v3311 = vunpack.c.l.b16 %v3152
      %v3312 = vunpack.c.l.b16 %v3166
      %v3313 = vunpack.c.l.b16 %v3176
      %v3314 = vunpack.c.l.b16 %v3190
      %v3315 = vunpack.c.l.b16 %v3200
      %v3316 = vunpack.c.l.b16 %v3214
      %v3317 = vunpack.c.l.b16 %v3224
      %v3318 = vunpack.c.l.b16 %v3238
      %v3319 = vunpack.c.l.b16 %v3248
      %v3320 = vunpack.c.l.b16 %v3262
      %v3321 = vunpack.c.l.b16 %v3272
      %v3322 = vpack.c.b16 %v3291, %v3290
      %v3323 = vpack.c.b16 %v3293, %v3292
      %v3324 = vpack.c.b16 %v3295, %v3294
      %v3325 = vpack.c.b16 %v3297, %v3296
      %v3326 = vpack.c.b16 %v3299, %v3298
      %v3327 = vpack.c.b16 %v3301, %v3300
      %v3328 = vpack.c.b16 %v3303, %v3302
      %v3329 = vpack.c.b16 %v3305, %v3304
      %v3330 = vpack.c.b16 %v3307, %v3306
      %v3331 = vpack.c.b16 %v3309, %v3308
      %v3332 = vpack.c.b16 %v3311, %v3310
      %v3333 = vpack.c.b16 %v3313, %v3312
      %v3334 = vpack.c.b16 %v3315, %v3314
      %v3335 = vpack.c.b16 %v3317, %v3316
      %v3336 = vpack.c.b16 %v3319, %v3318
      %v3337 = vpack.c.b16 %v3321, %v3320
      %v3370 = vunpack.c.l.b16 %v3274
      %v3371 = vunpack.c.h.b16 %v3274
      %v3372 = vunpack.c.l.b16 %v3275
      %v3373 = vunpack.c.h.b16 %v3275
      %v3374 = vunpack.c.l.b16 %v3276
      %v3375 = vunpack.c.h.b16 %v3276
      %v3376 = vunpack.c.l.b16 %v3277
      %v3377 = vunpack.c.h.b16 %v3277
      %v3378 = vunpack.c.l.b16 %v3278
      %v3379 = vunpack.c.h.b16 %v3278
      %v3380 = vunpack.c.l.b16 %v3279
      %v3381 = vunpack.c.h.b16 %v3279
      %v3382 = vunpack.c.l.b16 %v3280
      %v3383 = vunpack.c.h.b16 %v3280
      %v3384 = vunpack.c.l.b16 %v3281
      %v3385 = vunpack.c.h.b16 %v3281
      %v3386 = vunpack.c.l.b16 %v3282
      %v3387 = vunpack.c.h.b16 %v3282
      %v3388 = vunpack.c.l.b16 %v3283
      %v3389 = vunpack.c.h.b16 %v3283
      %v3390 = vunpack.c.l.b16 %v3284
      %v3391 = vunpack.c.h.b16 %v3284
      %v3392 = vunpack.c.l.b16 %v3285
      %v3393 = vunpack.c.h.b16 %v3285
      %v3394 = vunpack.c.l.b16 %v3286
      %v3395 = vunpack.c.h.b16 %v3286
      %v3396 = vunpack.c.l.b16 %v3287
      %v3397 = vunpack.c.h.b16 %v3287
      %v3398 = vunpack.c.l.b16 %v3288
      %v3399 = vunpack.c.h.b16 %v3288
      %v3400 = vunpack.c.l.b16 %v3289
      %v3401 = vunpack.c.h.b16 %v3289
      %v3402 = vpack.c.b16 %v3372, %v3370
      %v3403 = vpack.c.b16 %v3373, %v3371
      %v3404 = vpack.c.b16 %v3376, %v3374
      %v3405 = vpack.c.b16 %v3377, %v3375
      %v3406 = vpack.c.b16 %v3380, %v3378
      %v3407 = vpack.c.b16 %v3381, %v3379
      %v3408 = vpack.c.b16 %v3384, %v3382
      %v3409 = vpack.c.b16 %v3385, %v3383
      %v3410 = vpack.c.b16 %v3388, %v3386
      %v3411 = vpack.c.b16 %v3389, %v3387
      %v3412 = vpack.c.b16 %v3392, %v3390
      %v3413 = vpack.c.b16 %v3393, %v3391
      %v3414 = vpack.c.b16 %v3396, %v3394
      %v3415 = vpack.c.b16 %v3397, %v3395
      %v3416 = vpack.c.b16 %v3400, %v3398
      %v3417 = vpack.c.b16 %v3401, %v3399
      %3434 = vmatpush.bf16.msra.mxu0 %v3416
      %3435 = vmatpush.bf16.msra.mxu0 %v3414
      %3436 = vmatpush.bf16.msra.mxu0 %v3412
      %3437 = vmatpush.bf16.msra.mxu0 %v3410
      %3438 = vmatpush.bf16.msra.mxu0 %v3408
      %3439 = vmatpush.bf16.msra.mxu0 %v3406
      %3440 = vmatpush.bf16.msra.mxu0 %v3404
      %3441 = vmatpush.bf16.msra.mxu0 %v3402
      %3442 = vmatmul.bf16.gmra.mxu0 %v3322
      %v3443 = vpop.f32.mrf.mxu0
      %v3444 = vadd.f32 0.0, %v3443
      %v3445 = vpop.f32.mrf.mxu0
      %v3446 = vadd.f32 0.0, %v3445
      %3447 = vmatmul.bf16.gmra.mxu0 %v3323
      %v3448 = vpop.f32.mrf.mxu0
      %v3449 = vadd.f32 0.0, %v3448
      %v3450 = vpop.f32.mrf.mxu0
      %v3451 = vadd.f32 0.0, %v3450
      %3452 = vmatmul.bf16.gmra.mxu0 %v3324
      %v3453 = vpop.f32.mrf.mxu0
      %v3454 = vadd.f32 0.0, %v3453
      %v3455 = vpop.f32.mrf.mxu0
      %v3456 = vadd.f32 0.0, %v3455
      %3457 = vmatmul.bf16.gmra.mxu0 %v3325
      %v3458 = vpop.f32.mrf.mxu0
      %v3459 = vadd.f32 0.0, %v3458
      %v3460 = vpop.f32.mrf.mxu0
      %v3461 = vadd.f32 0.0, %v3460
      %3462 = vmatmul.bf16.gmra.mxu0 %v3326
      %v3463 = vpop.f32.mrf.mxu0
      %v3464 = vadd.f32 0.0, %v3463
      %v3465 = vpop.f32.mrf.mxu0
      %v3466 = vadd.f32 0.0, %v3465
      %3467 = vmatmul.bf16.gmra.mxu0 %v3327
      %v3468 = vpop.f32.mrf.mxu0
      %v3469 = vadd.f32 0.0, %v3468
      %v3470 = vpop.f32.mrf.mxu0
      %v3471 = vadd.f32 0.0, %v3470
      %3472 = vmatmul.bf16.gmra.mxu0 %v3328
      %v3473 = vpop.f32.mrf.mxu0
      %v3474 = vadd.f32 0.0, %v3473
      %v3475 = vpop.f32.mrf.mxu0
      %v3476 = vadd.f32 0.0, %v3475
      %3477 = vmatmul.bf16.gmra.mxu0 %v3329
      %v3478 = vpop.f32.mrf.mxu0
      %v3479 = vadd.f32 0.0, %v3478
      %v3480 = vpop.f32.mrf.mxu0
      %v3481 = vadd.f32 0.0, %v3480
      %3482 = vmatmul.bf16.gmra.mxu0 %v3330
      %v3483 = vpop.f32.mrf.mxu0
      %v3484 = vadd.f32 0.0, %v3483
      %v3485 = vpop.f32.mrf.mxu0
      %v3486 = vadd.f32 0.0, %v3485
      %3487 = vmatmul.bf16.gmra.mxu0 %v3331
      %v3488 = vpop.f32.mrf.mxu0
      %v3489 = vadd.f32 0.0, %v3488
      %v3490 = vpop.f32.mrf.mxu0
      %v3491 = vadd.f32 0.0, %v3490
      %3492 = vmatmul.bf16.gmra.mxu0 %v3332
      %v3493 = vpop.f32.mrf.mxu0
      %v3494 = vadd.f32 0.0, %v3493
      %v3495 = vpop.f32.mrf.mxu0
      %v3496 = vadd.f32 0.0, %v3495
      %3497 = vmatmul.bf16.gmra.mxu0 %v3333
      %v3498 = vpop.f32.mrf.mxu0
      %v3499 = vadd.f32 0.0, %v3498
      %v3500 = vpop.f32.mrf.mxu0
      %v3501 = vadd.f32 0.0, %v3500
      %3502 = vmatmul.bf16.gmra.mxu0 %v3334
      %v3503 = vpop.f32.mrf.mxu0
      %v3504 = vadd.f32 0.0, %v3503
      %v3505 = vpop.f32.mrf.mxu0
      %v3506 = vadd.f32 0.0, %v3505
      %3507 = vmatmul.bf16.gmra.mxu0 %v3335
      %v3508 = vpop.f32.mrf.mxu0
      %v3509 = vadd.f32 0.0, %v3508
      %v3510 = vpop.f32.mrf.mxu0
      %v3511 = vadd.f32 0.0, %v3510
      %3512 = vmatmul.bf16.gmra.mxu0 %v3336
      %v3513 = vpop.f32.mrf.mxu0
      %v3514 = vadd.f32 0.0, %v3513
      %v3515 = vpop.f32.mrf.mxu0
      %v3516 = vadd.f32 0.0, %v3515
      %3517 = vmatmul.bf16.gmra.mxu0 %v3337
      %v3518 = vpop.f32.mrf.mxu0
      %v3519 = vadd.f32 0.0, %v3518
      %v3520 = vpop.f32.mrf.mxu0
      %v3521 = vadd.f32 0.0, %v3520
      %3522 = vdwg.mxu0
      %3523 = vmatpush.bf16.msra.mxu0 %v3417
      %3524 = vmatpush.bf16.msra.mxu0 %v3415
      %3525 = vmatpush.bf16.msra.mxu0 %v3413
      %3526 = vmatpush.bf16.msra.mxu0 %v3411
      %3527 = vmatpush.bf16.msra.mxu0 %v3409
      %3528 = vmatpush.bf16.msra.mxu0 %v3407
      %3529 = vmatpush.bf16.msra.mxu0 %v3405
      %3530 = vmatpush.bf16.msra.mxu0 %v3403
      %3531 = vmatmul.bf16.gmra.mxu0 %v3322
      %v3532 = vpop.f32.mrf.mxu0
      %v3533 = vadd.f32 0.0, %v3532
      %v3534 = vpop.f32.mrf.mxu0
      %v3535 = vadd.f32 0.0, %v3534
      %3536 = vmatmul.bf16.gmra.mxu0 %v3323
      %v3537 = vpop.f32.mrf.mxu0
      %v3538 = vadd.f32 0.0, %v3537
      %v3539 = vpop.f32.mrf.mxu0
      %v3540 = vadd.f32 0.0, %v3539
      %3541 = vmatmul.bf16.gmra.mxu0 %v3324
      %v3542 = vpop.f32.mrf.mxu0
      %v3543 = vadd.f32 0.0, %v3542
      %v3544 = vpop.f32.mrf.mxu0
      %v3545 = vadd.f32 0.0, %v3544
      %3546 = vmatmul.bf16.gmra.mxu0 %v3325
      %v3547 = vpop.f32.mrf.mxu0
      %v3548 = vadd.f32 0.0, %v3547
      %v3549 = vpop.f32.mrf.mxu0
      %v3550 = vadd.f32 0.0, %v3549
      %3551 = vmatmul.bf16.gmra.mxu0 %v3326
      %v3552 = vpop.f32.mrf.mxu0
      %v3553 = vadd.f32 0.0, %v3552
      %v3554 = vpop.f32.mrf.mxu0
      %v3555 = vadd.f32 0.0, %v3554
      %3556 = vmatmul.bf16.gmra.mxu0 %v3327
      %v3557 = vpop.f32.mrf.mxu0
      %v3558 = vadd.f32 0.0, %v3557
      %v3559 = vpop.f32.mrf.mxu0
      %v3560 = vadd.f32 0.0, %v3559
      %3561 = vmatmul.bf16.gmra.mxu0 %v3328
      %v3562 = vpop.f32.mrf.mxu0
      %v3563 = vadd.f32 0.0, %v3562
      %v3564 = vpop.f32.mrf.mxu0
      %v3565 = vadd.f32 0.0, %v3564
      %3566 = vmatmul.bf16.gmra.mxu0 %v3329
      %v3567 = vpop.f32.mrf.mxu0
      %v3568 = vadd.f32 0.0, %v3567
      %v3569 = vpop.f32.mrf.mxu0
      %v3570 = vadd.f32 0.0, %v3569
      %3571 = vmatmul.bf16.gmra.mxu0 %v3330
      %v3572 = vpop.f32.mrf.mxu0
      %v3573 = vadd.f32 0.0, %v3572
      %v3574 = vpop.f32.mrf.mxu0
      %v3575 = vadd.f32 0.0, %v3574
      %3576 = vmatmul.bf16.gmra.mxu0 %v3331
      %v3577 = vpop.f32.mrf.mxu0
      %v3578 = vadd.f32 0.0, %v3577
      %v3579 = vpop.f32.mrf.mxu0
      %v3580 = vadd.f32 0.0, %v3579
      %3581 = vmatmul.bf16.gmra.mxu0 %v3332
      %v3582 = vpop.f32.mrf.mxu0
      %v3583 = vadd.f32 0.0, %v3582
      %v3584 = vpop.f32.mrf.mxu0
      %v3585 = vadd.f32 0.0, %v3584
      %3586 = vmatmul.bf16.gmra.mxu0 %v3333
      %v3587 = vpop.f32.mrf.mxu0
      %v3588 = vadd.f32 0.0, %v3587
      %v3589 = vpop.f32.mrf.mxu0
      %v3590 = vadd.f32 0.0, %v3589
      %3591 = vmatmul.bf16.gmra.mxu0 %v3334
      %v3592 = vpop.f32.mrf.mxu0
      %v3593 = vadd.f32 0.0, %v3592
      %v3594 = vpop.f32.mrf.mxu0
      %v3595 = vadd.f32 0.0, %v3594
      %3596 = vmatmul.bf16.gmra.mxu0 %v3335
      %v3597 = vpop.f32.mrf.mxu0
      %v3598 = vadd.f32 0.0, %v3597
      %v3599 = vpop.f32.mrf.mxu0
      %v3600 = vadd.f32 0.0, %v3599
      %3601 = vmatmul.bf16.gmra.mxu0 %v3336
      %v3602 = vpop.f32.mrf.mxu0
      %v3603 = vadd.f32 0.0, %v3602
      %v3604 = vpop.f32.mrf.mxu0
      %v3605 = vadd.f32 0.0, %v3604
      %3606 = vmatmul.bf16.gmra.mxu0 %v3337
      %v3607 = vpop.f32.mrf.mxu0
      %v3608 = vadd.f32 0.0, %v3607
      %v3609 = vpop.f32.mrf.mxu0
      %v3610 = vadd.f32 0.0, %v3609
      %3611 = vdwg.mxu0
      %v3612 = vadd.f32 %v2822, %v3444
      %v3613 = vadd.f32 %v2823, %v3533
      %v3614 = vadd.f32 %v2824, %v3446
      %v3615 = vadd.f32 %v2825, %v3535
      %v3616 = vadd.f32 %v2826, %v3449
      %v3617 = vadd.f32 %v2827, %v3538
      %v3618 = vadd.f32 %v2828, %v3451
      %v3619 = vadd.f32 %v2829, %v3540
      %v3620 = vadd.f32 %v2830, %v3454
      %v3621 = vadd.f32 %v2831, %v3543
      %v3622 = vadd.f32 %v2832, %v3456
      %v3623 = vadd.f32 %v2833, %v3545
      %v3624 = vadd.f32 %v2834, %v3459
      %v3625 = vadd.f32 %v2835, %v3548
      %v3626 = vadd.f32 %v2836, %v3461
      %v3627 = vadd.f32 %v2837, %v3550
      %v3628 = vadd.f32 %v2838, %v3464
      %v3629 = vadd.f32 %v2839, %v3553
      %v3630 = vadd.f32 %v2840, %v3466
      %v3631 = vadd.f32 %v2841, %v3555
      %v3632 = vadd.f32 %v2842, %v3469
      %v3633 = vadd.f32 %v2843, %v3558
      %v3634 = vadd.f32 %v2844, %v3471
      %v3635 = vadd.f32 %v2845, %v3560
      %v3636 = vadd.f32 %v2846, %v3474
      %v3637 = vadd.f32 %v2847, %v3563
      %v3638 = vadd.f32 %v2848, %v3476
      %v3639 = vadd.f32 %v2849, %v3565
      %v3640 = vadd.f32 %v2850, %v3479
      %v3641 = vadd.f32 %v2851, %v3568
      %v3642 = vadd.f32 %v2852, %v3481
      %v3643 = vadd.f32 %v2853, %v3570
      %v3644 = vadd.f32 %v2854, %v3484
      %v3645 = vadd.f32 %v2855, %v3573
      %v3646 = vadd.f32 %v2856, %v3486
      %v3647 = vadd.f32 %v2857, %v3575
      %v3648 = vadd.f32 %v2858, %v3489
      %v3649 = vadd.f32 %v2859, %v3578
      %v3650 = vadd.f32 %v2860, %v3491
      %v3651 = vadd.f32 %v2861, %v3580
      %v3652 = vadd.f32 %v2862, %v3494
      %v3653 = vadd.f32 %v2863, %v3583
      %v3654 = vadd.f32 %v2864, %v3496
      %v3655 = vadd.f32 %v2865, %v3585
      %v3656 = vadd.f32 %v2866, %v3499
      %v3657 = vadd.f32 %v2867, %v3588
      %v3658 = vadd.f32 %v2868, %v3501
      %v3659 = vadd.f32 %v2869, %v3590
      %v3660 = vadd.f32 %v2870, %v3504
      %v3661 = vadd.f32 %v2871, %v3593
      %v3662 = vadd.f32 %v2872, %v3506
      %v3663 = vadd.f32 %v2873, %v3595
      %v3664 = vadd.f32 %v2874, %v3509
      %v3665 = vadd.f32 %v2875, %v3598
      %v3666 = vadd.f32 %v2876, %v3511
      %v3667 = vadd.f32 %v2877, %v3600
      %v3668 = vadd.f32 %v2878, %v3514
      %v3669 = vadd.f32 %v2879, %v3603
      %v3670 = vadd.f32 %v2880, %v3516
      %v3671 = vadd.f32 %v2881, %v3605
      %v3672 = vadd.f32 %v2882, %v3519
      %v3673 = vadd.f32 %v2883, %v3608
      %v3674 = vadd.f32 %v2884, %v3521
      %v3675 = vadd.f32 %v2885, %v3610
      %3676 = vst [vmem:[#allocation3] sm:$0xff] %v3612
      %3677 = vst [vmem:[#allocation3 + $0x8] sm:$0xff] %v3613
      %3678 = vst [vmem:[#allocation3 + $0x10] sm:$0xff] %v3614
      %3679 = vst [vmem:[#allocation3 + $0x18] sm:$0xff] %v3615
      %3680 = vst [vmem:[#allocation3 + $0x20] sm:$0xff] %v3616
      %3681 = vst [vmem:[#allocation3 + $0x28] sm:$0xff] %v3617
      %3682 = vst [vmem:[#allocation3 + $0x30] sm:$0xff] %v3618
      %3683 = vst [vmem:[#allocation3 + $0x38] sm:$0xff] %v3619
      %3684 = vst [vmem:[#allocation3 + $0x40] sm:$0xff] %v3620
      %3685 = vst [vmem:[#allocation3 + $0x48] sm:$0xff] %v3621
      %3686 = vst [vmem:[#allocation3 + $0x50] sm:$0xff] %v3622
      %3687 = vst [vmem:[#allocation3 + $0x58] sm:$0xff] %v3623
      %3688 = vst [vmem:[#allocation3 + $0x60] sm:$0xff] %v3624
      %3689 = vst [vmem:[#allocation3 + $0x68] sm:$0xff] %v3625
      %3690 = vst [vmem:[#allocation3 + $0x70] sm:$0xff] %v3626
      %3691 = vst [vmem:[#allocation3 + $0x78] sm:$0xff] %v3627
      %3692 = vst [vmem:[#allocation3 + $0x80] sm:$0xff] %v3628
      %3693 = vst [vmem:[#allocation3 + $0x88] sm:$0xff] %v3629
      %3694 = vst [vmem:[#allocation3 + $0x90] sm:$0xff] %v3630
      %3695 = vst [vmem:[#allocation3 + $0x98] sm:$0xff] %v3631
      %3696 = vst [vmem:[#allocation3 + $0xa0] sm:$0xff] %v3632
      %3697 = vst [vmem:[#allocation3 + $0xa8] sm:$0xff] %v3633
      %3698 = vst [vmem:[#allocation3 + $0xb0] sm:$0xff] %v3634
      %3699 = vst [vmem:[#allocation3 + $0xb8] sm:$0xff] %v3635
      %3700 = vst [vmem:[#allocation3 + $0xc0] sm:$0xff] %v3636
      %3701 = vst [vmem:[#allocation3 + $0xc8] sm:$0xff] %v3637
      %3702 = vst [vmem:[#allocation3 + $0xd0] sm:$0xff] %v3638
      %3703 = vst [vmem:[#allocation3 + $0xd8] sm:$0xff] %v3639
      %3704 = vst [vmem:[#allocation3 + $0xe0] sm:$0xff] %v3640
      %3705 = vst [vmem:[#allocation3 + $0xe8] sm:$0xff] %v3641
      %3706 = vst [vmem:[#allocation3 + $0xf0] sm:$0xff] %v3642
      %3707 = vst [vmem:[#allocation3 + $0xf8] sm:$0xff] %v3643
      %3708 = vst [vmem:[#allocation3 + $0x100] sm:$0xff] %v3644
      %3709 = vst [vmem:[#allocation3 + $0x108] sm:$0xff] %v3645
      %3710 = vst [vmem:[#allocation3 + $0x110] sm:$0xff] %v3646
      %3711 = vst [vmem:[#allocation3 + $0x118] sm:$0xff] %v3647
      %3712 = vst [vmem:[#allocation3 + $0x120] sm:$0xff] %v3648
      %3713 = vst [vmem:[#allocation3 + $0x128] sm:$0xff] %v3649
      %3714 = vst [vmem:[#allocation3 + $0x130] sm:$0xff] %v3650
      %3715 = vst [vmem:[#allocation3 + $0x138] sm:$0xff] %v3651
      %3716 = vst [vmem:[#allocation3 + $0x140] sm:$0xff] %v3652
      %3717 = vst [vmem:[#allocation3 + $0x148] sm:$0xff] %v3653
      %3718 = vst [vmem:[#allocation3 + $0x150] sm:$0xff] %v3654
      %3719 = vst [vmem:[#allocation3 + $0x158] sm:$0xff] %v3655
      %3720 = vst [vmem:[#allocation3 + $0x160] sm:$0xff] %v3656
      %3721 = vst [vmem:[#allocation3 + $0x168] sm:$0xff] %v3657
      %3722 = vst [vmem:[#allocation3 + $0x170] sm:$0xff] %v3658
      %3723 = vst [vmem:[#allocation3 + $0x178] sm:$0xff] %v3659
      %3724 = vst [vmem:[#allocation3 + $0x180] sm:$0xff] %v3660
      %3725 = vst [vmem:[#allocation3 + $0x188] sm:$0xff] %v3661
      %3726 = vst [vmem:[#allocation3 + $0x190] sm:$0xff] %v3662
      %3727 = vst [vmem:[#allocation3 + $0x198] sm:$0xff] %v3663
      %3728 = vst [vmem:[#allocation3 + $0x1a0] sm:$0xff] %v3664
      %3729 = vst [vmem:[#allocation3 + $0x1a8] sm:$0xff] %v3665
      %3730 = vst [vmem:[#allocation3 + $0x1b0] sm:$0xff] %v3666
      %3731 = vst [vmem:[#allocation3 + $0x1b8] sm:$0xff] %v3667
      %3732 = vst [vmem:[#allocation3 + $0x1c0] sm:$0xff] %v3668
      %3733 = vst [vmem:[#allocation3 + $0x1c8] sm:$0xff] %v3669
      %3734 = vst [vmem:[#allocation3 + $0x1d0] sm:$0xff] %v3670
      %3735 = vst [vmem:[#allocation3 + $0x1d8] sm:$0xff] %v3671
      %3736 = vst [vmem:[#allocation3 + $0x1e0] sm:$0xff] %v3672
      %3737 = vst [vmem:[#allocation3 + $0x1e8] sm:$0xff] %v3673
      %3738 = vst [vmem:[#allocation3 + $0x1f0] sm:$0xff] %v3674
      %3739 = vst [vmem:[#allocation3 + $0x1f8] sm:$0xff] %v3675
      %v3740 = vld [vmem:[#allocation3] sm:$0xff]
      %v3741 = vld [vmem:[#allocation3 + $0x8] sm:$0xff]
      %v3742 = vld [vmem:[#allocation3 + $0x10] sm:$0xff]
      %v3743 = vld [vmem:[#allocation3 + $0x18] sm:$0xff]
      %v3744 = vld [vmem:[#allocation3 + $0x20] sm:$0xff]
      %v3745 = vld [vmem:[#allocation3 + $0x28] sm:$0xff]
      %v3746 = vld [vmem:[#allocation3 + $0x30] sm:$0xff]
      %v3747 = vld [vmem:[#allocation3 + $0x38] sm:$0xff]
      %v3748 = vld [vmem:[#allocation3 + $0x40] sm:$0xff]
      %v3749 = vld [vmem:[#allocation3 + $0x48] sm:$0xff]
      %v3750 = vld [vmem:[#allocation3 + $0x50] sm:$0xff]
      %v3751 = vld [vmem:[#allocation3 + $0x58] sm:$0xff]
      %v3752 = vld [vmem:[#allocation3 + $0x60] sm:$0xff]
      %v3753 = vld [vmem:[#allocation3 + $0x68] sm:$0xff]
      %v3754 = vld [vmem:[#allocation3 + $0x70] sm:$0xff]
      %v3755 = vld [vmem:[#allocation3 + $0x78] sm:$0xff]
      %v3756 = vld [vmem:[#allocation3 + $0x80] sm:$0xff]
      %v3757 = vld [vmem:[#allocation3 + $0x88] sm:$0xff]
      %v3758 = vld [vmem:[#allocation3 + $0x90] sm:$0xff]
      %v3759 = vld [vmem:[#allocation3 + $0x98] sm:$0xff]
      %v3760 = vld [vmem:[#allocation3 + $0xa0] sm:$0xff]
      %v3761 = vld [vmem:[#allocation3 + $0xa8] sm:$0xff]
      %v3762 = vld [vmem:[#allocation3 + $0xb0] sm:$0xff]
      %v3763 = vld [vmem:[#allocation3 + $0xb8] sm:$0xff]
      %v3764 = vld [vmem:[#allocation3 + $0xc0] sm:$0xff]
      %v3765 = vld [vmem:[#allocation3 + $0xc8] sm:$0xff]
      %v3766 = vld [vmem:[#allocation3 + $0xd0] sm:$0xff]
      %v3767 = vld [vmem:[#allocation3 + $0xd8] sm:$0xff]
      %v3768 = vld [vmem:[#allocation3 + $0xe0] sm:$0xff]
      %v3769 = vld [vmem:[#allocation3 + $0xe8] sm:$0xff]
      %v3770 = vld [vmem:[#allocation3 + $0xf0] sm:$0xff]
      %v3771 = vld [vmem:[#allocation3 + $0xf8] sm:$0xff]
      %v3772 = vld [vmem:[#allocation3 + $0x100] sm:$0xff]
      %v3773 = vld [vmem:[#allocation3 + $0x108] sm:$0xff]
      %v3774 = vld [vmem:[#allocation3 + $0x110] sm:$0xff]
      %v3775 = vld [vmem:[#allocation3 + $0x118] sm:$0xff]
      %v3776 = vld [vmem:[#allocation3 + $0x120] sm:$0xff]
      %v3777 = vld [vmem:[#allocation3 + $0x128] sm:$0xff]
      %v3778 = vld [vmem:[#allocation3 + $0x130] sm:$0xff]
      %v3779 = vld [vmem:[#allocation3 + $0x138] sm:$0xff]
      %v3780 = vld [vmem:[#allocation3 + $0x140] sm:$0xff]
      %v3781 = vld [vmem:[#allocation3 + $0x148] sm:$0xff]
      %v3782 = vld [vmem:[#allocation3 + $0x150] sm:$0xff]
      %v3783 = vld [vmem:[#allocation3 + $0x158] sm:$0xff]
      %v3784 = vld [vmem:[#allocation3 + $0x160] sm:$0xff]
      %v3785 = vld [vmem:[#allocation3 + $0x168] sm:$0xff]
      %v3786 = vld [vmem:[#allocation3 + $0x170] sm:$0xff]
      %v3787 = vld [vmem:[#allocation3 + $0x178] sm:$0xff]
      %v3788 = vld [vmem:[#allocation3 + $0x180] sm:$0xff]
      %v3789 = vld [vmem:[#allocation3 + $0x188] sm:$0xff]
      %v3790 = vld [vmem:[#allocation3 + $0x190] sm:$0xff]
      %v3791 = vld [vmem:[#allocation3 + $0x198] sm:$0xff]
      %v3792 = vld [vmem:[#allocation3 + $0x1a0] sm:$0xff]
      %v3793 = vld [vmem:[#allocation3 + $0x1a8] sm:$0xff]
      %v3794 = vld [vmem:[#allocation3 + $0x1b0] sm:$0xff]
      %v3795 = vld [vmem:[#allocation3 + $0x1b8] sm:$0xff]
      %v3796 = vld [vmem:[#allocation3 + $0x1c0] sm:$0xff]
      %v3797 = vld [vmem:[#allocation3 + $0x1c8] sm:$0xff]
      %v3798 = vld [vmem:[#allocation3 + $0x1d0] sm:$0xff]
      %v3799 = vld [vmem:[#allocation3 + $0x1d8] sm:$0xff]
      %v3800 = vld [vmem:[#allocation3 + $0x1e0] sm:$0xff]
      %v3801 = vld [vmem:[#allocation3 + $0x1e8] sm:$0xff]
      %v3802 = vld [vmem:[#allocation3 + $0x1f0] sm:$0xff]
      %v3803 = vld [vmem:[#allocation3 + $0x1f8] sm:$0xff]
      %v3805 = vshrl.u32 %v1308, 16
      %v3807 = vrot.slane %v3805, 4
      %v3808 = vshll.u32 %v1308, 16
      %v3810 = vrot.slane %v3808, 5
      %v3811 = vor.u32 %v3807, %v3810
      %v3812 = vrot.slane %v3811, 4
      %v3814 = vshll.u32 %v1309, 16
      %v3816 = vrot.slane %v3814, 5
      %v3817 = vsel %vm2888, %v3812, %v3816
      %v3818 = vshrl.u32 %v1309, 16
      %v3820 = vrot.slane %v3818, 4
      %v3821 = vor.u32 %v3820, %v3816
      %v3822 = vrot.slane %v3821, 4
      %v3824 = vshll.u32 %v1310, 16
      %v3826 = vrot.slane %v3824, 5
      %v3827 = vsel %vm2888, %v3822, %v3826
      %s3828 = scalar_lea.vmem %s3, 512
      %v3829 = vld [vmem:[%s3828] sm:$0xff]
      %v3830 = vld [vmem:[%s3828 + $0x8] sm:$0xff]
      %v3831 = vld [vmem:[%s3828 + $0x10] sm:$0xff]
      %v3832 = vld [vmem:[%s3828 + $0x18] sm:$0xff]
      %v3833 = vld [vmem:[%s3828 + $0x20] sm:$0xff]
      %v3834 = vld [vmem:[%s3828 + $0x28] sm:$0xff]
      %v3835 = vld [vmem:[%s3828 + $0x30] sm:$0xff]
      %v3836 = vld [vmem:[%s3828 + $0x38] sm:$0xff]
      %v3837 = vld [vmem:[%s3828 + $0x40] sm:$0xff]
      %v3838 = vld [vmem:[%s3828 + $0x48] sm:$0xff]
      %v3839 = vld [vmem:[%s3828 + $0x50] sm:$0xff]
      %v3840 = vld [vmem:[%s3828 + $0x58] sm:$0xff]
      %v3841 = vld [vmem:[%s3828 + $0x60] sm:$0xff]
      %v3842 = vld [vmem:[%s3828 + $0x68] sm:$0xff]
      %v3843 = vld [vmem:[%s3828 + $0x70] sm:$0xff]
      %v3844 = vld [vmem:[%s3828 + $0x78] sm:$0xff]
      %v3845 = vunpack.c.l.b16 %v3817
      %v3846 = vunpack.c.l.b16 %v3827
      %v3847 = vpack.c.b16 %v3846, %v3845
      %v3865 = vunpack.c.l.b16 %v3829
      %v3866 = vunpack.c.h.b16 %v3829
      %v3867 = vunpack.c.l.b16 %v3830
      %v3868 = vunpack.c.h.b16 %v3830
      %v3869 = vunpack.c.l.b16 %v3831
      %v3870 = vunpack.c.h.b16 %v3831
      %v3871 = vunpack.c.l.b16 %v3832
      %v3872 = vunpack.c.h.b16 %v3832
      %v3873 = vunpack.c.l.b16 %v3833
      %v3874 = vunpack.c.h.b16 %v3833
      %v3875 = vunpack.c.l.b16 %v3834
      %v3876 = vunpack.c.h.b16 %v3834
      %v3877 = vunpack.c.l.b16 %v3835
      %v3878 = vunpack.c.h.b16 %v3835
      %v3879 = vunpack.c.l.b16 %v3836
      %v3880 = vunpack.c.h.b16 %v3836
      %v3881 = vunpack.c.l.b16 %v3837
      %v3882 = vunpack.c.h.b16 %v3837
      %v3883 = vunpack.c.l.b16 %v3838
      %v3884 = vunpack.c.h.b16 %v3838
      %v3885 = vunpack.c.l.b16 %v3839
      %v3886 = vunpack.c.h.b16 %v3839
      %v3887 = vunpack.c.l.b16 %v3840
      %v3888 = vunpack.c.h.b16 %v3840
      %v3889 = vunpack.c.l.b16 %v3841
      %v3890 = vunpack.c.h.b16 %v3841
      %v3891 = vunpack.c.l.b16 %v3842
      %v3892 = vunpack.c.h.b16 %v3842
      %v3893 = vunpack.c.l.b16 %v3843
      %v3894 = vunpack.c.h.b16 %v3843
      %v3895 = vunpack.c.l.b16 %v3844
      %v3896 = vunpack.c.h.b16 %v3844
      %v3897 = vpack.c.b16 %v3867, %v3865
      %v3898 = vpack.c.b16 %v3868, %v3866
      %v3899 = vpack.c.b16 %v3871, %v3869
      %v3900 = vpack.c.b16 %v3872, %v3870
      %v3901 = vpack.c.b16 %v3875, %v3873
      %v3902 = vpack.c.b16 %v3876, %v3874
      %v3903 = vpack.c.b16 %v3879, %v3877
      %v3904 = vpack.c.b16 %v3880, %v3878
      %v3905 = vpack.c.b16 %v3883, %v3881
      %v3906 = vpack.c.b16 %v3884, %v3882
      %v3907 = vpack.c.b16 %v3887, %v3885
      %v3908 = vpack.c.b16 %v3888, %v3886
      %v3909 = vpack.c.b16 %v3891, %v3889
      %v3910 = vpack.c.b16 %v3892, %v3890
      %v3911 = vpack.c.b16 %v3895, %v3893
      %v3912 = vpack.c.b16 %v3896, %v3894
      %3929 = vmatpush.bf16.msra.mxu0 %v3911
      %3930 = vmatpush.bf16.msra.mxu0 %v3909
      %3931 = vmatpush.bf16.msra.mxu0 %v3907
      %3932 = vmatpush.bf16.msra.mxu0 %v3905
      %3933 = vmatpush.bf16.msra.mxu0 %v3903
      %3934 = vmatpush.bf16.msra.mxu0 %v3901
      %3935 = vmatpush.bf16.msra.mxu0 %v3899
      %3936 = vmatpush.bf16.msra.mxu0 %v3897
      %3937 = vmatmul.bf16.gmra.mxu0 %v3323
      %v3938 = vpop.f32.mrf.mxu0
      %v3939 = vadd.f32 0.0, %v3938
      %v3940 = vpop.f32.mrf.mxu0
      %v3941 = vadd.f32 0.0, %v3940
      %3942 = vmatmul.bf16.gmra.mxu0 %v3324
      %v3943 = vpop.f32.mrf.mxu0
      %v3944 = vadd.f32 0.0, %v3943
      %v3945 = vpop.f32.mrf.mxu0
      %v3946 = vadd.f32 0.0, %v3945
      %3947 = vmatmul.bf16.gmra.mxu0 %v3325
      %v3948 = vpop.f32.mrf.mxu0
      %v3949 = vadd.f32 0.0, %v3948
      %v3950 = vpop.f32.mrf.mxu0
      %v3951 = vadd.f32 0.0, %v3950
      %3952 = vmatmul.bf16.gmra.mxu0 %v3326
      %v3953 = vpop.f32.mrf.mxu0
      %v3954 = vadd.f32 0.0, %v3953
      %v3955 = vpop.f32.mrf.mxu0
      %v3956 = vadd.f32 0.0, %v3955
      %3957 = vmatmul.bf16.gmra.mxu0 %v3327
      %v3958 = vpop.f32.mrf.mxu0
      %v3959 = vadd.f32 0.0, %v3958
      %v3960 = vpop.f32.mrf.mxu0
      %v3961 = vadd.f32 0.0, %v3960
      %3962 = vmatmul.bf16.gmra.mxu0 %v3328
      %v3963 = vpop.f32.mrf.mxu0
      %v3964 = vadd.f32 0.0, %v3963
      %v3965 = vpop.f32.mrf.mxu0
      %v3966 = vadd.f32 0.0, %v3965
      %3967 = vmatmul.bf16.gmra.mxu0 %v3329
      %v3968 = vpop.f32.mrf.mxu0
      %v3969 = vadd.f32 0.0, %v3968
      %v3970 = vpop.f32.mrf.mxu0
      %v3971 = vadd.f32 0.0, %v3970
      %3972 = vmatmul.bf16.gmra.mxu0 %v3330
      %v3973 = vpop.f32.mrf.mxu0
      %v3974 = vadd.f32 0.0, %v3973
      %v3975 = vpop.f32.mrf.mxu0
      %v3976 = vadd.f32 0.0, %v3975
      %3977 = vmatmul.bf16.gmra.mxu0 %v3331
      %v3978 = vpop.f32.mrf.mxu0
      %v3979 = vadd.f32 0.0, %v3978
      %v3980 = vpop.f32.mrf.mxu0
      %v3981 = vadd.f32 0.0, %v3980
      %3982 = vmatmul.bf16.gmra.mxu0 %v3332
      %v3983 = vpop.f32.mrf.mxu0
      %v3984 = vadd.f32 0.0, %v3983
      %v3985 = vpop.f32.mrf.mxu0
      %v3986 = vadd.f32 0.0, %v3985
      %3987 = vmatmul.bf16.gmra.mxu0 %v3333
      %v3988 = vpop.f32.mrf.mxu0
      %v3989 = vadd.f32 0.0, %v3988
      %v3990 = vpop.f32.mrf.mxu0
      %v3991 = vadd.f32 0.0, %v3990
      %3992 = vmatmul.bf16.gmra.mxu0 %v3334
      %v3993 = vpop.f32.mrf.mxu0
      %v3994 = vadd.f32 0.0, %v3993
      %v3995 = vpop.f32.mrf.mxu0
      %v3996 = vadd.f32 0.0, %v3995
      %3997 = vmatmul.bf16.gmra.mxu0 %v3335
      %v3998 = vpop.f32.mrf.mxu0
      %v3999 = vadd.f32 0.0, %v3998
      %v4000 = vpop.f32.mrf.mxu0
      %v4001 = vadd.f32 0.0, %v4000
      %4002 = vmatmul.bf16.gmra.mxu0 %v3336
      %v4003 = vpop.f32.mrf.mxu0
      %v4004 = vadd.f32 0.0, %v4003
      %v4005 = vpop.f32.mrf.mxu0
      %v4006 = vadd.f32 0.0, %v4005
      %4007 = vmatmul.bf16.gmra.mxu0 %v3337
      %v4008 = vpop.f32.mrf.mxu0
      %v4009 = vadd.f32 0.0, %v4008
      %v4010 = vpop.f32.mrf.mxu0
      %v4011 = vadd.f32 0.0, %v4010
      %4012 = vmatmul.bf16.gmra.mxu0 %v3847
      %v4013 = vpop.f32.mrf.mxu0
      %v4014 = vadd.f32 0.0, %v4013
      %v4015 = vpop.f32.mrf.mxu0
      %v4016 = vadd.f32 0.0, %v4015
      %4017 = vdwg.mxu0
      %4018 = vmatpush.bf16.msra.mxu0 %v3912
      %4019 = vmatpush.bf16.msra.mxu0 %v3910
      %4020 = vmatpush.bf16.msra.mxu0 %v3908
      %4021 = vmatpush.bf16.msra.mxu0 %v3906
      %4022 = vmatpush.bf16.msra.mxu0 %v3904
      %4023 = vmatpush.bf16.msra.mxu0 %v3902
      %4024 = vmatpush.bf16.msra.mxu0 %v3900
      %4025 = vmatpush.bf16.msra.mxu0 %v3898
      %4026 = vmatmul.bf16.gmra.mxu0 %v3323
      %v4027 = vpop.f32.mrf.mxu0
      %v4028 = vadd.f32 0.0, %v4027
      %v4029 = vpop.f32.mrf.mxu0
      %v4030 = vadd.f32 0.0, %v4029
      %4031 = vmatmul.bf16.gmra.mxu0 %v3324
      %v4032 = vpop.f32.mrf.mxu0
      %v4033 = vadd.f32 0.0, %v4032
      %v4034 = vpop.f32.mrf.mxu0
      %v4035 = vadd.f32 0.0, %v4034
      %4036 = vmatmul.bf16.gmra.mxu0 %v3325
      %v4037 = vpop.f32.mrf.mxu0
      %v4038 = vadd.f32 0.0, %v4037
      %v4039 = vpop.f32.mrf.mxu0
      %v4040 = vadd.f32 0.0, %v4039
      %4041 = vmatmul.bf16.gmra.mxu0 %v3326
      %v4042 = vpop.f32.mrf.mxu0
      %v4043 = vadd.f32 0.0, %v4042
      %v4044 = vpop.f32.mrf.mxu0
      %v4045 = vadd.f32 0.0, %v4044
      %4046 = vmatmul.bf16.gmra.mxu0 %v3327
      %v4047 = vpop.f32.mrf.mxu0
      %v4048 = vadd.f32 0.0, %v4047
      %v4049 = vpop.f32.mrf.mxu0
      %v4050 = vadd.f32 0.0, %v4049
      %4051 = vmatmul.bf16.gmra.mxu0 %v3328
      %v4052 = vpop.f32.mrf.mxu0
      %v4053 = vadd.f32 0.0, %v4052
      %v4054 = vpop.f32.mrf.mxu0
      %v4055 = vadd.f32 0.0, %v4054
      %4056 = vmatmul.bf16.gmra.mxu0 %v3329
      %v4057 = vpop.f32.mrf.mxu0
      %v4058 = vadd.f32 0.0, %v4057
      %v4059 = vpop.f32.mrf.mxu0
      %v4060 = vadd.f32 0.0, %v4059
      %4061 = vmatmul.bf16.gmra.mxu0 %v3330
      %v4062 = vpop.f32.mrf.mxu0
      %v4063 = vadd.f32 0.0, %v4062
      %v4064 = vpop.f32.mrf.mxu0
      %v4065 = vadd.f32 0.0, %v4064
      %4066 = vmatmul.bf16.gmra.mxu0 %v3331
      %v4067 = vpop.f32.mrf.mxu0
      %v4068 = vadd.f32 0.0, %v4067
      %v4069 = vpop.f32.mrf.mxu0
      %v4070 = vadd.f32 0.0, %v4069
      %4071 = vmatmul.bf16.gmra.mxu0 %v3332
      %v4072 = vpop.f32.mrf.mxu0
      %v4073 = vadd.f32 0.0, %v4072
      %v4074 = vpop.f32.mrf.mxu0
      %v4075 = vadd.f32 0.0, %v4074
      %4076 = vmatmul.bf16.gmra.mxu0 %v3333
      %v4077 = vpop.f32.mrf.mxu0
      %v4078 = vadd.f32 0.0, %v4077
      %v4079 = vpop.f32.mrf.mxu0
      %v4080 = vadd.f32 0.0, %v4079
      %4081 = vmatmul.bf16.gmra.mxu0 %v3334
      %v4082 = vpop.f32.mrf.mxu0
      %v4083 = vadd.f32 0.0, %v4082
      %v4084 = vpop.f32.mrf.mxu0
      %v4085 = vadd.f32 0.0, %v4084
      %4086 = vmatmul.bf16.gmra.mxu0 %v3335
      %v4087 = vpop.f32.mrf.mxu0
      %v4088 = vadd.f32 0.0, %v4087
      %v4089 = vpop.f32.mrf.mxu0
      %v4090 = vadd.f32 0.0, %v4089
      %4091 = vmatmul.bf16.gmra.mxu0 %v3336
      %v4092 = vpop.f32.mrf.mxu0
      %v4093 = vadd.f32 0.0, %v4092
      %v4094 = vpop.f32.mrf.mxu0
      %v4095 = vadd.f32 0.0, %v4094
      %4096 = vmatmul.bf16.gmra.mxu0 %v3337
      %v4097 = vpop.f32.mrf.mxu0
      %v4098 = vadd.f32 0.0, %v4097
      %v4099 = vpop.f32.mrf.mxu0
      %v4100 = vadd.f32 0.0, %v4099
      %4101 = vmatmul.bf16.gmra.mxu0 %v3847
      %v4102 = vpop.f32.mrf.mxu0
      %v4103 = vadd.f32 0.0, %v4102
      %v4104 = vpop.f32.mrf.mxu0
      %v4105 = vadd.f32 0.0, %v4104
      %4106 = vdwg.mxu0
      %v4107 = vadd.f32 %v3740, %v3939
      %v4108 = vadd.f32 %v3741, %v4028
      %v4109 = vadd.f32 %v3742, %v3941
      %v4110 = vadd.f32 %v3743, %v4030
      %v4111 = vadd.f32 %v3744, %v3944
      %v4112 = vadd.f32 %v3745, %v4033
      %v4113 = vadd.f32 %v3746, %v3946
      %v4114 = vadd.f32 %v3747, %v4035
      %v4115 = vadd.f32 %v3748, %v3949
      %v4116 = vadd.f32 %v3749, %v4038
      %v4117 = vadd.f32 %v3750, %v3951
      %v4118 = vadd.f32 %v3751, %v4040
      %v4119 = vadd.f32 %v3752, %v3954
      %v4120 = vadd.f32 %v3753, %v4043
      %v4121 = vadd.f32 %v3754, %v3956
      %v4122 = vadd.f32 %v3755, %v4045
      %v4123 = vadd.f32 %v3756, %v3959
      %v4124 = vadd.f32 %v3757, %v4048
      %v4125 = vadd.f32 %v3758, %v3961
      %v4126 = vadd.f32 %v3759, %v4050
      %v4127 = vadd.f32 %v3760, %v3964
      %v4128 = vadd.f32 %v3761, %v4053
      %v4129 = vadd.f32 %v3762, %v3966
      %v4130 = vadd.f32 %v3763, %v4055
      %v4131 = vadd.f32 %v3764, %v3969
      %v4132 = vadd.f32 %v3765, %v4058
      %v4133 = vadd.f32 %v3766, %v3971
      %v4134 = vadd.f32 %v3767, %v4060
      %v4135 = vadd.f32 %v3768, %v3974
      %v4136 = vadd.f32 %v3769, %v4063
      %v4137 = vadd.f32 %v3770, %v3976
      %v4138 = vadd.f32 %v3771, %v4065
      %v4139 = vadd.f32 %v3772, %v3979
      %v4140 = vadd.f32 %v3773, %v4068
      %v4141 = vadd.f32 %v3774, %v3981
      %v4142 = vadd.f32 %v3775, %v4070
      %v4143 = vadd.f32 %v3776, %v3984
      %v4144 = vadd.f32 %v3777, %v4073
      %v4145 = vadd.f32 %v3778, %v3986
      %v4146 = vadd.f32 %v3779, %v4075
      %v4147 = vadd.f32 %v3780, %v3989
      %v4148 = vadd.f32 %v3781, %v4078
      %v4149 = vadd.f32 %v3782, %v3991
      %v4150 = vadd.f32 %v3783, %v4080
      %v4151 = vadd.f32 %v3784, %v3994
      %v4152 = vadd.f32 %v3785, %v4083
      %v4153 = vadd.f32 %v3786, %v3996
      %v4154 = vadd.f32 %v3787, %v4085
      %v4155 = vadd.f32 %v3788, %v3999
      %v4156 = vadd.f32 %v3789, %v4088
      %v4157 = vadd.f32 %v3790, %v4001
      %v4158 = vadd.f32 %v3791, %v4090
      %v4159 = vadd.f32 %v3792, %v4004
      %v4160 = vadd.f32 %v3793, %v4093
      %v4161 = vadd.f32 %v3794, %v4006
      %v4162 = vadd.f32 %v3795, %v4095
      %v4163 = vadd.f32 %v3796, %v4009
      %v4164 = vadd.f32 %v3797, %v4098
      %v4165 = vadd.f32 %v3798, %v4011
      %v4166 = vadd.f32 %v3799, %v4100
      %v4167 = vadd.f32 %v3800, %v4014
      %v4168 = vadd.f32 %v3801, %v4103
      %v4169 = vadd.f32 %v3802, %v4016
      %v4170 = vadd.f32 %v3803, %v4105
      %4171 = vst [vmem:[#allocation3] sm:$0xff] %v4107
      %4172 = vst [vmem:[#allocation3 + $0x8] sm:$0xff] %v4108
      %4173 = vst [vmem:[#allocation3 + $0x10] sm:$0xff] %v4109
      %4174 = vst [vmem:[#allocation3 + $0x18] sm:$0xff] %v4110
      %4175 = vst [vmem:[#allocation3 + $0x20] sm:$0xff] %v4111
      %4176 = vst [vmem:[#allocation3 + $0x28] sm:$0xff] %v4112
      %4177 = vst [vmem:[#allocation3 + $0x30] sm:$0xff] %v4113
      %4178 = vst [vmem:[#allocation3 + $0x38] sm:$0xff] %v4114
      %4179 = vst [vmem:[#allocation3 + $0x40] sm:$0xff] %v4115
      %4180 = vst [vmem:[#allocation3 + $0x48] sm:$0xff] %v4116
      %4181 = vst [vmem:[#allocation3 + $0x50] sm:$0xff] %v4117
      %4182 = vst [vmem:[#allocation3 + $0x58] sm:$0xff] %v4118
      %4183 = vst [vmem:[#allocation3 + $0x60] sm:$0xff] %v4119
      %4184 = vst [vmem:[#allocation3 + $0x68] sm:$0xff] %v4120
      %4185 = vst [vmem:[#allocation3 + $0x70] sm:$0xff] %v4121
      %4186 = vst [vmem:[#allocation3 + $0x78] sm:$0xff] %v4122
      %4187 = vst [vmem:[#allocation3 + $0x80] sm:$0xff] %v4123
      %4188 = vst [vmem:[#allocation3 + $0x88] sm:$0xff] %v4124
      %4189 = vst [vmem:[#allocation3 + $0x90] sm:$0xff] %v4125
      %4190 = vst [vmem:[#allocation3 + $0x98] sm:$0xff] %v4126
      %4191 = vst [vmem:[#allocation3 + $0xa0] sm:$0xff] %v4127
      %4192 = vst [vmem:[#allocation3 + $0xa8] sm:$0xff] %v4128
      %4193 = vst [vmem:[#allocation3 + $0xb0] sm:$0xff] %v4129
      %4194 = vst [vmem:[#allocation3 + $0xb8] sm:$0xff] %v4130
      %4195 = vst [vmem:[#allocation3 + $0xc0] sm:$0xff] %v4131
      %4196 = vst [vmem:[#allocation3 + $0xc8] sm:$0xff] %v4132
      %4197 = vst [vmem:[#allocation3 + $0xd0] sm:$0xff] %v4133
      %4198 = vst [vmem:[#allocation3 + $0xd8] sm:$0xff] %v4134
      %4199 = vst [vmem:[#allocation3 + $0xe0] sm:$0xff] %v4135
      %4200 = vst [vmem:[#allocation3 + $0xe8] sm:$0xff] %v4136
      %4201 = vst [vmem:[#allocation3 + $0xf0] sm:$0xff] %v4137
      %4202 = vst [vmem:[#allocation3 + $0xf8] sm:$0xff] %v4138
      %4203 = vst [vmem:[#allocation3 + $0x100] sm:$0xff] %v4139
      %4204 = vst [vmem:[#allocation3 + $0x108] sm:$0xff] %v4140
      %4205 = vst [vmem:[#allocation3 + $0x110] sm:$0xff] %v4141
      %4206 = vst [vmem:[#allocation3 + $0x118] sm:$0xff] %v4142
      %4207 = vst [vmem:[#allocation3 + $0x120] sm:$0xff] %v4143
      %4208 = vst [vmem:[#allocation3 + $0x128] sm:$0xff] %v4144
      %4209 = vst [vmem:[#allocation3 + $0x130] sm:$0xff] %v4145
      %4210 = vst [vmem:[#allocation3 + $0x138] sm:$0xff] %v4146
      %4211 = vst [vmem:[#allocation3 + $0x140] sm:$0xff] %v4147
      %4212 = vst [vmem:[#allocation3 + $0x148] sm:$0xff] %v4148
      %4213 = vst [vmem:[#allocation3 + $0x150] sm:$0xff] %v4149
      %4214 = vst [vmem:[#allocation3 + $0x158] sm:$0xff] %v4150
      %4215 = vst [vmem:[#allocation3 + $0x160] sm:$0xff] %v4151
      %4216 = vst [vmem:[#allocation3 + $0x168] sm:$0xff] %v4152
      %4217 = vst [vmem:[#allocation3 + $0x170] sm:$0xff] %v4153
      %4218 = vst [vmem:[#allocation3 + $0x178] sm:$0xff] %v4154
      %4219 = vst [vmem:[#allocation3 + $0x180] sm:$0xff] %v4155
      %4220 = vst [vmem:[#allocation3 + $0x188] sm:$0xff] %v4156
      %4221 = vst [vmem:[#allocation3 + $0x190] sm:$0xff] %v4157
      %4222 = vst [vmem:[#allocation3 + $0x198] sm:$0xff] %v4158
      %4223 = vst [vmem:[#allocation3 + $0x1a0] sm:$0xff] %v4159
      %4224 = vst [vmem:[#allocation3 + $0x1a8] sm:$0xff] %v4160
      %4225 = vst [vmem:[#allocation3 + $0x1b0] sm:$0xff] %v4161
      %4226 = vst [vmem:[#allocation3 + $0x1b8] sm:$0xff] %v4162
      %4227 = vst [vmem:[#allocation3 + $0x1c0] sm:$0xff] %v4163
      %4228 = vst [vmem:[#allocation3 + $0x1c8] sm:$0xff] %v4164
      %4229 = vst [vmem:[#allocation3 + $0x1d0] sm:$0xff] %v4165
      %4230 = vst [vmem:[#allocation3 + $0x1d8] sm:$0xff] %v4166
      %4231 = vst [vmem:[#allocation3 + $0x1e0] sm:$0xff] %v4167
      %4232 = vst [vmem:[#allocation3 + $0x1e8] sm:$0xff] %v4168
      %4233 = vst [vmem:[#allocation3 + $0x1f0] sm:$0xff] %v4169
      %4234 = vst [vmem:[#allocation3 + $0x1f8] sm:$0xff] %v4170
      %v4235 = vld [vmem:[#allocation3] sm:$0xff]
      %v4236 = vld [vmem:[#allocation3 + $0x8] sm:$0xff]
      %v4237 = vld [vmem:[#allocation3 + $0x10] sm:$0xff]
      %v4238 = vld [vmem:[#allocation3 + $0x18] sm:$0xff]
      %v4239 = vld [vmem:[#allocation3 + $0x20] sm:$0xff]
      %v4240 = vld [vmem:[#allocation3 + $0x28] sm:$0xff]
      %v4241 = vld [vmem:[#allocation3 + $0x30] sm:$0xff]
      %v4242 = vld [vmem:[#allocation3 + $0x38] sm:$0xff]
      %v4243 = vld [vmem:[#allocation3 + $0x40] sm:$0xff]
      %v4244 = vld [vmem:[#allocation3 + $0x48] sm:$0xff]
      %v4245 = vld [vmem:[#allocation3 + $0x50] sm:$0xff]
      %v4246 = vld [vmem:[#allocation3 + $0x58] sm:$0xff]
      %v4247 = vld [vmem:[#allocation3 + $0x60] sm:$0xff]
      %v4248 = vld [vmem:[#allocation3 + $0x68] sm:$0xff]
      %v4249 = vld [vmem:[#allocation3 + $0x70] sm:$0xff]
      %v4250 = vld [vmem:[#allocation3 + $0x78] sm:$0xff]
      %v4251 = vld [vmem:[#allocation3 + $0x80] sm:$0xff]
      %v4252 = vld [vmem:[#allocation3 + $0x88] sm:$0xff]
      %v4253 = vld [vmem:[#allocation3 + $0x90] sm:$0xff]
      %v4254 = vld [vmem:[#allocation3 + $0x98] sm:$0xff]
      %v4255 = vld [vmem:[#allocation3 + $0xa0] sm:$0xff]
      %v4256 = vld [vmem:[#allocation3 + $0xa8] sm:$0xff]
      %v4257 = vld [vmem:[#allocation3 + $0xb0] sm:$0xff]
      %v4258 = vld [vmem:[#allocation3 + $0xb8] sm:$0xff]
      %v4259 = vld [vmem:[#allocation3 + $0xc0] sm:$0xff]
      %v4260 = vld [vmem:[#allocation3 + $0xc8] sm:$0xff]
      %v4261 = vld [vmem:[#allocation3 + $0xd0] sm:$0xff]
      %v4262 = vld [vmem:[#allocation3 + $0xd8] sm:$0xff]
      %v4263 = vld [vmem:[#allocation3 + $0xe0] sm:$0xff]
      %v4264 = vld [vmem:[#allocation3 + $0xe8] sm:$0xff]
      %v4265 = vld [vmem:[#allocation3 + $0xf0] sm:$0xff]
      %v4266 = vld [vmem:[#allocation3 + $0xf8] sm:$0xff]
      %v4267 = vld [vmem:[#allocation3 + $0x100] sm:$0xff]
      %v4268 = vld [vmem:[#allocation3 + $0x108] sm:$0xff]
      %v4269 = vld [vmem:[#allocation3 + $0x110] sm:$0xff]
      %v4270 = vld [vmem:[#allocation3 + $0x118] sm:$0xff]
      %v4271 = vld [vmem:[#allocation3 + $0x120] sm:$0xff]
      %v4272 = vld [vmem:[#allocation3 + $0x128] sm:$0xff]
      %v4273 = vld [vmem:[#allocation3 + $0x130] sm:$0xff]
      %v4274 = vld [vmem:[#allocation3 + $0x138] sm:$0xff]
      %v4275 = vld [vmem:[#allocation3 + $0x140] sm:$0xff]
      %v4276 = vld [vmem:[#allocation3 + $0x148] sm:$0xff]
      %v4277 = vld [vmem:[#allocation3 + $0x150] sm:$0xff]
      %v4278 = vld [vmem:[#allocation3 + $0x158] sm:$0xff]
      %v4279 = vld [vmem:[#allocation3 + $0x160] sm:$0xff]
      %v4280 = vld [vmem:[#allocation3 + $0x168] sm:$0xff]
      %v4281 = vld [vmem:[#allocation3 + $0x170] sm:$0xff]
      %v4282 = vld [vmem:[#allocation3 + $0x178] sm:$0xff]
      %v4283 = vld [vmem:[#allocation3 + $0x180] sm:$0xff]
      %v4284 = vld [vmem:[#allocation3 + $0x188] sm:$0xff]
      %v4285 = vld [vmem:[#allocation3 + $0x190] sm:$0xff]
      %v4286 = vld [vmem:[#allocation3 + $0x198] sm:$0xff]
      %v4287 = vld [vmem:[#allocation3 + $0x1a0] sm:$0xff]
      %v4288 = vld [vmem:[#allocation3 + $0x1a8] sm:$0xff]
      %v4289 = vld [vmem:[#allocation3 + $0x1b0] sm:$0xff]
      %v4290 = vld [vmem:[#allocation3 + $0x1b8] sm:$0xff]
      %v4291 = vld [vmem:[#allocation3 + $0x1c0] sm:$0xff]
      %v4292 = vld [vmem:[#allocation3 + $0x1c8] sm:$0xff]
      %v4293 = vld [vmem:[#allocation3 + $0x1d0] sm:$0xff]
      %v4294 = vld [vmem:[#allocation3 + $0x1d8] sm:$0xff]
      %v4295 = vld [vmem:[#allocation3 + $0x1e0] sm:$0xff]
      %v4296 = vld [vmem:[#allocation3 + $0x1e8] sm:$0xff]
      %v4297 = vld [vmem:[#allocation3 + $0x1f0] sm:$0xff]
      %v4298 = vld [vmem:[#allocation3 + $0x1f8] sm:$0xff]
      %v4300 = vshrl.u32 %v1311, 16
      %v4302 = vrot.slane %v4300, 4
      %v4303 = vshll.u32 %v1311, 16
      %v4305 = vrot.slane %v4303, 5
      %v4306 = vor.u32 %v4302, %v4305
      %v4307 = vrot.slane %v4306, 4
      %v4309 = vshll.u32 %v1312, 16
      %v4311 = vrot.slane %v4309, 5
      %v4312 = vsel %vm2888, %v4307, %v4311
      %v4313 = vshrl.u32 %v1312, 16
      %v4315 = vrot.slane %v4313, 4
      %v4316 = vor.u32 %v4315, %v4311
      %v4317 = vrot.slane %v4316, 4
      %v4319 = vshll.u32 %v1313, 16
      %v4321 = vrot.slane %v4319, 5
      %v4322 = vsel %vm2888, %v4317, %v4321
      %s4323 = scalar_lea.vmem %s3, 896
      %v4324 = vld [vmem:[%s4323] sm:$0xff]
      %v4325 = vld [vmem:[%s4323 + $0x8] sm:$0xff]
      %v4326 = vld [vmem:[%s4323 + $0x10] sm:$0xff]
      %v4327 = vld [vmem:[%s4323 + $0x18] sm:$0xff]
      %v4328 = vld [vmem:[%s4323 + $0x20] sm:$0xff]
      %v4329 = vld [vmem:[%s4323 + $0x28] sm:$0xff]
      %v4330 = vld [vmem:[%s4323 + $0x30] sm:$0xff]
      %v4331 = vld [vmem:[%s4323 + $0x38] sm:$0xff]
      %v4332 = vld [vmem:[%s4323 + $0x40] sm:$0xff]
      %v4333 = vld [vmem:[%s4323 + $0x48] sm:$0xff]
      %v4334 = vld [vmem:[%s4323 + $0x50] sm:$0xff]
      %v4335 = vld [vmem:[%s4323 + $0x58] sm:$0xff]
      %v4336 = vld [vmem:[%s4323 + $0x60] sm:$0xff]
      %v4337 = vld [vmem:[%s4323 + $0x68] sm:$0xff]
      %v4338 = vld [vmem:[%s4323 + $0x70] sm:$0xff]
      %v4339 = vld [vmem:[%s4323 + $0x78] sm:$0xff]
      %v4340 = vunpack.c.l.b16 %v4312
      %v4341 = vunpack.c.l.b16 %v4322
      %v4342 = vpack.c.b16 %v4341, %v4340
      %v4360 = vunpack.c.l.b16 %v4324
      %v4361 = vunpack.c.h.b16 %v4324
      %v4362 = vunpack.c.l.b16 %v4325
      %v4363 = vunpack.c.h.b16 %v4325
      %v4364 = vunpack.c.l.b16 %v4326
      %v4365 = vunpack.c.h.b16 %v4326
      %v4366 = vunpack.c.l.b16 %v4327
      %v4367 = vunpack.c.h.b16 %v4327
      %v4368 = vunpack.c.l.b16 %v4328
      %v4369 = vunpack.c.h.b16 %v4328
      %v4370 = vunpack.c.l.b16 %v4329
      %v4371 = vunpack.c.h.b16 %v4329
      %v4372 = vunpack.c.l.b16 %v4330
      %v4373 = vunpack.c.h.b16 %v4330
      %v4374 = vunpack.c.l.b16 %v4331
      %v4375 = vunpack.c.h.b16 %v4331
      %v4376 = vunpack.c.l.b16 %v4332
      %v4377 = vunpack.c.h.b16 %v4332
      %v4378 = vunpack.c.l.b16 %v4333
      %v4379 = vunpack.c.h.b16 %v4333
      %v4380 = vunpack.c.l.b16 %v4334
      %v4381 = vunpack.c.h.b16 %v4334
      %v4382 = vunpack.c.l.b16 %v4335
      %v4383 = vunpack.c.h.b16 %v4335
      %v4384 = vunpack.c.l.b16 %v4336
      %v4385 = vunpack.c.h.b16 %v4336
      %v4386 = vunpack.c.l.b16 %v4337
      %v4387 = vunpack.c.h.b16 %v4337
      %v4388 = vunpack.c.l.b16 %v4338
      %v4389 = vunpack.c.h.b16 %v4338
      %v4390 = vunpack.c.l.b16 %v4339
      %v4391 = vunpack.c.h.b16 %v4339
      %v4392 = vpack.c.b16 %v4362, %v4360
      %v4393 = vpack.c.b16 %v4363, %v4361
      %v4394 = vpack.c.b16 %v4366, %v4364
      %v4395 = vpack.c.b16 %v4367, %v4365
      %v4396 = vpack.c.b16 %v4370, %v4368
      %v4397 = vpack.c.b16 %v4371, %v4369
      %v4398 = vpack.c.b16 %v4374, %v4372
      %v4399 = vpack.c.b16 %v4375, %v4373
      %v4400 = vpack.c.b16 %v4378, %v4376
      %v4401 = vpack.c.b16 %v4379, %v4377
      %v4402 = vpack.c.b16 %v4382, %v4380
      %v4403 = vpack.c.b16 %v4383, %v4381
      %v4404 = vpack.c.b16 %v4386, %v4384
      %v4405 = vpack.c.b16 %v4387, %v4385
      %v4406 = vpack.c.b16 %v4390, %v4388
      %v4407 = vpack.c.b16 %v4391, %v4389
      %4424 = vmatpush.bf16.msra.mxu0 %v4406
      %4425 = vmatpush.bf16.msra.mxu0 %v4404
      %4426 = vmatpush.bf16.msra.mxu0 %v4402
      %4427 = vmatpush.bf16.msra.mxu0 %v4400
      %4428 = vmatpush.bf16.msra.mxu0 %v4398
      %4429 = vmatpush.bf16.msra.mxu0 %v4396
      %4430 = vmatpush.bf16.msra.mxu0 %v4394
      %4431 = vmatpush.bf16.msra.mxu0 %v4392
      %4432 = vmatmul.bf16.gmra.mxu0 %v3324
      %v4433 = vpop.f32.mrf.mxu0
      %v4434 = vadd.f32 0.0, %v4433
      %v4435 = vpop.f32.mrf.mxu0
      %v4436 = vadd.f32 0.0, %v4435
      %4437 = vmatmul.bf16.gmra.mxu0 %v3325
      %v4438 = vpop.f32.mrf.mxu0
      %v4439 = vadd.f32 0.0, %v4438
      %v4440 = vpop.f32.mrf.mxu0
      %v4441 = vadd.f32 0.0, %v4440
      %4442 = vmatmul.bf16.gmra.mxu0 %v3326
      %v4443 = vpop.f32.mrf.mxu0
      %v4444 = vadd.f32 0.0, %v4443
      %v4445 = vpop.f32.mrf.mxu0
      %v4446 = vadd.f32 0.0, %v4445
      %4447 = vmatmul.bf16.gmra.mxu0 %v3327
      %v4448 = vpop.f32.mrf.mxu0
      %v4449 = vadd.f32 0.0, %v4448
      %v4450 = vpop.f32.mrf.mxu0
      %v4451 = vadd.f32 0.0, %v4450
      %4452 = vmatmul.bf16.gmra.mxu0 %v3328
      %v4453 = vpop.f32.mrf.mxu0
      %v4454 = vadd.f32 0.0, %v4453
      %v4455 = vpop.f32.mrf.mxu0
      %v4456 = vadd.f32 0.0, %v4455
      %4457 = vmatmul.bf16.gmra.mxu0 %v3329
      %v4458 = vpop.f32.mrf.mxu0
      %v4459 = vadd.f32 0.0, %v4458
      %v4460 = vpop.f32.mrf.mxu0
      %v4461 = vadd.f32 0.0, %v4460
      %4462 = vmatmul.bf16.gmra.mxu0 %v3330
      %v4463 = vpop.f32.mrf.mxu0
      %v4464 = vadd.f32 0.0, %v4463
      %v4465 = vpop.f32.mrf.mxu0
      %v4466 = vadd.f32 0.0, %v4465
      %4467 = vmatmul.bf16.gmra.mxu0 %v3331
      %v4468 = vpop.f32.mrf.mxu0
      %v4469 = vadd.f32 0.0, %v4468
      %v4470 = vpop.f32.mrf.mxu0
      %v4471 = vadd.f32 0.0, %v4470
      %4472 = vmatmul.bf16.gmra.mxu0 %v3332
      %v4473 = vpop.f32.mrf.mxu0
      %v4474 = vadd.f32 0.0, %v4473
      %v4475 = vpop.f32.mrf.mxu0
      %v4476 = vadd.f32 0.0, %v4475
      %4477 = vmatmul.bf16.gmra.mxu0 %v3333
      %v4478 = vpop.f32.mrf.mxu0
      %v4479 = vadd.f32 0.0, %v4478
      %v4480 = vpop.f32.mrf.mxu0
      %v4481 = vadd.f32 0.0, %v4480
      %4482 = vmatmul.bf16.gmra.mxu0 %v3334
      %v4483 = vpop.f32.mrf.mxu0
      %v4484 = vadd.f32 0.0, %v4483
      %v4485 = vpop.f32.mrf.mxu0
      %v4486 = vadd.f32 0.0, %v4485
      %4487 = vmatmul.bf16.gmra.mxu0 %v3335
      %v4488 = vpop.f32.mrf.mxu0
      %v4489 = vadd.f32 0.0, %v4488
      %v4490 = vpop.f32.mrf.mxu0
      %v4491 = vadd.f32 0.0, %v4490
      %4492 = vmatmul.bf16.gmra.mxu0 %v3336
      %v4493 = vpop.f32.mrf.mxu0
      %v4494 = vadd.f32 0.0, %v4493
      %v4495 = vpop.f32.mrf.mxu0
      %v4496 = vadd.f32 0.0, %v4495
      %4497 = vmatmul.bf16.gmra.mxu0 %v3337
      %v4498 = vpop.f32.mrf.mxu0
      %v4499 = vadd.f32 0.0, %v4498
      %v4500 = vpop.f32.mrf.mxu0
      %v4501 = vadd.f32 0.0, %v4500
      %4502 = vmatmul.bf16.gmra.mxu0 %v3847
      %v4503 = vpop.f32.mrf.mxu0
      %v4504 = vadd.f32 0.0, %v4503
      %v4505 = vpop.f32.mrf.mxu0
      %v4506 = vadd.f32 0.0, %v4505
      %4507 = vmatmul.bf16.gmra.mxu0 %v4342
      %v4508 = vpop.f32.mrf.mxu0
      %v4509 = vadd.f32 0.0, %v4508
      %v4510 = vpop.f32.mrf.mxu0
      %v4511 = vadd.f32 0.0, %v4510
      %4512 = vdwg.mxu0
      %4513 = vmatpush.bf16.msra.mxu0 %v4407
      %4514 = vmatpush.bf16.msra.mxu0 %v4405
      %4515 = vmatpush.bf16.msra.mxu0 %v4403
      %4516 = vmatpush.bf16.msra.mxu0 %v4401
      %4517 = vmatpush.bf16.msra.mxu0 %v4399
      %4518 = vmatpush.bf16.msra.mxu0 %v4397
      %4519 = vmatpush.bf16.msra.mxu0 %v4395
      %4520 = vmatpush.bf16.msra.mxu0 %v4393
      %4521 = vmatmul.bf16.gmra.mxu0 %v3324
      %v4522 = vpop.f32.mrf.mxu0
      %v4523 = vadd.f32 0.0, %v4522
      %v4524 = vpop.f32.mrf.mxu0
      %v4525 = vadd.f32 0.0, %v4524
      %4526 = vmatmul.bf16.gmra.mxu0 %v3325
      %v4527 = vpop.f32.mrf.mxu0
      %v4528 = vadd.f32 0.0, %v4527
      %v4529 = vpop.f32.mrf.mxu0
      %v4530 = vadd.f32 0.0, %v4529
      %4531 = vmatmul.bf16.gmra.mxu0 %v3326
      %v4532 = vpop.f32.mrf.mxu0
      %v4533 = vadd.f32 0.0, %v4532
      %v4534 = vpop.f32.mrf.mxu0
      %v4535 = vadd.f32 0.0, %v4534
      %4536 = vmatmul.bf16.gmra.mxu0 %v3327
      %v4537 = vpop.f32.mrf.mxu0
      %v4538 = vadd.f32 0.0, %v4537
      %v4539 = vpop.f32.mrf.mxu0
      %v4540 = vadd.f32 0.0, %v4539
      %4541 = vmatmul.bf16.gmra.mxu0 %v3328
      %v4542 = vpop.f32.mrf.mxu0
      %v4543 = vadd.f32 0.0, %v4542
      %v4544 = vpop.f32.mrf.mxu0
      %v4545 = vadd.f32 0.0, %v4544
      %4546 = vmatmul.bf16.gmra.mxu0 %v3329
      %v4547 = vpop.f32.mrf.mxu0
      %v4548 = vadd.f32 0.0, %v4547
      %v4549 = vpop.f32.mrf.mxu0
      %v4550 = vadd.f32 0.0, %v4549
      %4551 = vmatmul.bf16.gmra.mxu0 %v3330
      %v4552 = vpop.f32.mrf.mxu0
      %v4553 = vadd.f32 0.0, %v4552
      %v4554 = vpop.f32.mrf.mxu0
      %v4555 = vadd.f32 0.0, %v4554
      %4556 = vmatmul.bf16.gmra.mxu0 %v3331
      %v4557 = vpop.f32.mrf.mxu0
      %v4558 = vadd.f32 0.0, %v4557
      %v4559 = vpop.f32.mrf.mxu0
      %v4560 = vadd.f32 0.0, %v4559
      %4561 = vmatmul.bf16.gmra.mxu0 %v3332
      %v4562 = vpop.f32.mrf.mxu0
      %v4563 = vadd.f32 0.0, %v4562
      %v4564 = vpop.f32.mrf.mxu0
      %v4565 = vadd.f32 0.0, %v4564
      %4566 = vmatmul.bf16.gmra.mxu0 %v3333
      %v4567 = vpop.f32.mrf.mxu0
      %v4568 = vadd.f32 0.0, %v4567
      %v4569 = vpop.f32.mrf.mxu0
      %v4570 = vadd.f32 0.0, %v4569
      %4571 = vmatmul.bf16.gmra.mxu0 %v3334
      %v4572 = vpop.f32.mrf.mxu0
      %v4573 = vadd.f32 0.0, %v4572
      %v4574 = vpop.f32.mrf.mxu0
      %v4575 = vadd.f32 0.0, %v4574
      %4576 = vmatmul.bf16.gmra.mxu0 %v3335
      %v4577 = vpop.f32.mrf.mxu0
      %v4578 = vadd.f32 0.0, %v4577
      %v4579 = vpop.f32.mrf.mxu0
      %v4580 = vadd.f32 0.0, %v4579
      %4581 = vmatmul.bf16.gmra.mxu0 %v3336
      %v4582 = vpop.f32.mrf.mxu0
      %v4583 = vadd.f32 0.0, %v4582
      %v4584 = vpop.f32.mrf.mxu0
      %v4585 = vadd.f32 0.0, %v4584
      %4586 = vmatmul.bf16.gmra.mxu0 %v3337
      %v4587 = vpop.f32.mrf.mxu0
      %v4588 = vadd.f32 0.0, %v4587
      %v4589 = vpop.f32.mrf.mxu0
      %v4590 = vadd.f32 0.0, %v4589
      %4591 = vmatmul.bf16.gmra.mxu0 %v3847
      %v4592 = vpop.f32.mrf.mxu0
      %v4593 = vadd.f32 0.0, %v4592
      %v4594 = vpop.f32.mrf.mxu0
      %v4595 = vadd.f32 0.0, %v4594
      %4596 = vmatmul.bf16.gmra.mxu0 %v4342
      %v4597 = vpop.f32.mrf.mxu0
      %v4598 = vadd.f32 0.0, %v4597
      %v4599 = vpop.f32.mrf.mxu0
      %v4600 = vadd.f32 0.0, %v4599
      %4601 = vdwg.mxu0
      %v4602 = vadd.f32 %v4235, %v4434
      %v4603 = vadd.f32 %v4236, %v4523
      %v4604 = vadd.f32 %v4237, %v4436
      %v4605 = vadd.f32 %v4238, %v4525
      %v4606 = vadd.f32 %v4239, %v4439
      %v4607 = vadd.f32 %v4240, %v4528
      %v4608 = vadd.f32 %v4241, %v4441
      %v4609 = vadd.f32 %v4242, %v4530
      %v4610 = vadd.f32 %v4243, %v4444
      %v4611 = vadd.f32 %v4244, %v4533
      %v4612 = vadd.f32 %v4245, %v4446
      %v4613 = vadd.f32 %v4246, %v4535
      %v4614 = vadd.f32 %v4247, %v4449
      %v4615 = vadd.f32 %v4248, %v4538
      %v4616 = vadd.f32 %v4249, %v4451
      %v4617 = vadd.f32 %v4250, %v4540
      %v4618 = vadd.f32 %v4251, %v4454
      %v4619 = vadd.f32 %v4252, %v4543
      %v4620 = vadd.f32 %v4253, %v4456
      %v4621 = vadd.f32 %v4254, %v4545
      %v4622 = vadd.f32 %v4255, %v4459
      %v4623 = vadd.f32 %v4256, %v4548
      %v4624 = vadd.f32 %v4257, %v4461
      %v4625 = vadd.f32 %v4258, %v4550
      %v4626 = vadd.f32 %v4259, %v4464
      %v4627 = vadd.f32 %v4260, %v4553
      %v4628 = vadd.f32 %v4261, %v4466
      %v4629 = vadd.f32 %v4262, %v4555
      %v4630 = vadd.f32 %v4263, %v4469
      %v4631 = vadd.f32 %v4264, %v4558
      %v4632 = vadd.f32 %v4265, %v4471
      %v4633 = vadd.f32 %v4266, %v4560
      %v4634 = vadd.f32 %v4267, %v4474
      %v4635 = vadd.f32 %v4268, %v4563
      %v4636 = vadd.f32 %v4269, %v4476
      %v4637 = vadd.f32 %v4270, %v4565
      %v4638 = vadd.f32 %v4271, %v4479
      %v4639 = vadd.f32 %v4272, %v4568
      %v4640 = vadd.f32 %v4273, %v4481
      %v4641 = vadd.f32 %v4274, %v4570
      %v4642 = vadd.f32 %v4275, %v4484
      %v4643 = vadd.f32 %v4276, %v4573
      %v4644 = vadd.f32 %v4277, %v4486
      %v4645 = vadd.f32 %v4278, %v4575
      %v4646 = vadd.f32 %v4279, %v4489
      %v4647 = vadd.f32 %v4280, %v4578
      %v4648 = vadd.f32 %v4281, %v4491
      %v4649 = vadd.f32 %v4282, %v4580
      %v4650 = vadd.f32 %v4283, %v4494
      %v4651 = vadd.f32 %v4284, %v4583
      %v4652 = vadd.f32 %v4285, %v4496
      %v4653 = vadd.f32 %v4286, %v4585
      %v4654 = vadd.f32 %v4287, %v4499
      %v4655 = vadd.f32 %v4288, %v4588
      %v4656 = vadd.f32 %v4289, %v4501
      %v4657 = vadd.f32 %v4290, %v4590
      %v4658 = vadd.f32 %v4291, %v4504
      %v4659 = vadd.f32 %v4292, %v4593
      %v4660 = vadd.f32 %v4293, %v4506
      %v4661 = vadd.f32 %v4294, %v4595
      %v4662 = vadd.f32 %v4295, %v4509
      %v4663 = vadd.f32 %v4296, %v4598
      %v4664 = vadd.f32 %v4297, %v4511
      %v4665 = vadd.f32 %v4298, %v4600
      %4666 = vst [vmem:[#allocation3] sm:$0xff] %v4602
      %4667 = vst [vmem:[#allocation3 + $0x8] sm:$0xff] %v4603
      %4668 = vst [vmem:[#allocation3 + $0x10] sm:$0xff] %v4604
      %4669 = vst [vmem:[#allocation3 + $0x18] sm:$0xff] %v4605
      %4670 = vst [vmem:[#allocation3 + $0x20] sm:$0xff] %v4606
      %4671 = vst [vmem:[#allocation3 + $0x28] sm:$0xff] %v4607
      %4672 = vst [vmem:[#allocation3 + $0x30] sm:$0xff] %v4608
      %4673 = vst [vmem:[#allocation3 + $0x38] sm:$0xff] %v4609
      %4674 = vst [vmem:[#allocation3 + $0x40] sm:$0xff] %v4610
      %4675 = vst [vmem:[#allocation3 + $0x48] sm:$0xff] %v4611
      %4676 = vst [vmem:[#allocation3 + $0x50] sm:$0xff] %v4612
      %4677 = vst [vmem:[#allocation3 + $0x58] sm:$0xff] %v4613
      %4678 = vst [vmem:[#allocation3 + $0x60] sm:$0xff] %v4614
      %4679 = vst [vmem:[#allocation3 + $0x68] sm:$0xff] %v4615
      %4680 = vst [vmem:[#allocation3 + $0x70] sm:$0xff] %v4616
      %4681 = vst [vmem:[#allocation3 + $0x78] sm:$0xff] %v4617
      %4682 = vst [vmem:[#allocation3 + $0x80] sm:$0xff] %v4618
      %4683 = vst [vmem:[#allocation3 + $0x88] sm:$0xff] %v4619
      %4684 = vst [vmem:[#allocation3 + $0x90] sm:$0xff] %v4620
      %4685 = vst [vmem:[#allocation3 + $0x98] sm:$0xff] %v4621
      %4686 = vst [vmem:[#allocation3 + $0xa0] sm:$0xff] %v4622
      %4687 = vst [vmem:[#allocation3 + $0xa8] sm:$0xff] %v4623
      %4688 = vst [vmem:[#allocation3 + $0xb0] sm:$0xff] %v4624
      %4689 = vst [vmem:[#allocation3 + $0xb8] sm:$0xff] %v4625
      %4690 = vst [vmem:[#allocation3 + $0xc0] sm:$0xff] %v4626
      %4691 = vst [vmem:[#allocation3 + $0xc8] sm:$0xff] %v4627
      %4692 = vst [vmem:[#allocation3 + $0xd0] sm:$0xff] %v4628
      %4693 = vst [vmem:[#allocation3 + $0xd8] sm:$0xff] %v4629
      %4694 = vst [vmem:[#allocation3 + $0xe0] sm:$0xff] %v4630
      %4695 = vst [vmem:[#allocation3 + $0xe8] sm:$0xff] %v4631
      %4696 = vst [vmem:[#allocation3 + $0xf0] sm:$0xff] %v4632
      %4697 = vst [vmem:[#allocation3 + $0xf8] sm:$0xff] %v4633
      %4698 = vst [vmem:[#allocation3 + $0x100] sm:$0xff] %v4634
      %4699 = vst [vmem:[#allocation3 + $0x108] sm:$0xff] %v4635
      %4700 = vst [vmem:[#allocation3 + $0x110] sm:$0xff] %v4636
      %4701 = vst [vmem:[#allocation3 + $0x118] sm:$0xff] %v4637
      %4702 = vst [vmem:[#allocation3 + $0x120] sm:$0xff] %v4638
      %4703 = vst [vmem:[#allocation3 + $0x128] sm:$0xff] %v4639
      %4704 = vst [vmem:[#allocation3 + $0x130] sm:$0xff] %v4640
      %4705 = vst [vmem:[#allocation3 + $0x138] sm:$0xff] %v4641
      %4706 = vst [vmem:[#allocation3 + $0x140] sm:$0xff] %v4642
      %4707 = vst [vmem:[#allocation3 + $0x148] sm:$0xff] %v4643
      %4708 = vst [vmem:[#allocation3 + $0x150] sm:$0xff] %v4644
      %4709 = vst [vmem:[#allocation3 + $0x158] sm:$0xff] %v4645
      %4710 = vst [vmem:[#allocation3 + $0x160] sm:$0xff] %v4646
      %4711 = vst [vmem:[#allocation3 + $0x168] sm:$0xff] %v4647
      %4712 = vst [vmem:[#allocation3 + $0x170] sm:$0xff] %v4648
      %4713 = vst [vmem:[#allocation3 + $0x178] sm:$0xff] %v4649
      %4714 = vst [vmem:[#allocation3 + $0x180] sm:$0xff] %v4650
      %4715 = vst [vmem:[#allocation3 + $0x188] sm:$0xff] %v4651
      %4716 = vst [vmem:[#allocation3 + $0x190] sm:$0xff] %v4652
      %4717 = vst [vmem:[#allocation3 + $0x198] sm:$0xff] %v4653
      %4718 = vst [vmem:[#allocation3 + $0x1a0] sm:$0xff] %v4654
      %4719 = vst [vmem:[#allocation3 + $0x1a8] sm:$0xff] %v4655
      %4720 = vst [vmem:[#allocation3 + $0x1b0] sm:$0xff] %v4656
      %4721 = vst [vmem:[#allocation3 + $0x1b8] sm:$0xff] %v4657
      %4722 = vst [vmem:[#allocation3 + $0x1c0] sm:$0xff] %v4658
      %4723 = vst [vmem:[#allocation3 + $0x1c8] sm:$0xff] %v4659
      %4724 = vst [vmem:[#allocation3 + $0x1d0] sm:$0xff] %v4660
      %4725 = vst [vmem:[#allocation3 + $0x1d8] sm:$0xff] %v4661
      %4726 = vst [vmem:[#allocation3 + $0x1e0] sm:$0xff] %v4662
      %4727 = vst [vmem:[#allocation3 + $0x1e8] sm:$0xff] %v4663
      %4728 = vst [vmem:[#allocation3 + $0x1f0] sm:$0xff] %v4664
      %4729 = vst [vmem:[#allocation3 + $0x1f8] sm:$0xff] %v4665
      %v4730 = vld [vmem:[#allocation3] sm:$0xff]
      %v4731 = vld [vmem:[#allocation3 + $0x8] sm:$0xff]
      %v4732 = vld [vmem:[#allocation3 + $0x10] sm:$0xff]
      %v4733 = vld [vmem:[#allocation3 + $0x18] sm:$0xff]
      %v4734 = vld [vmem:[#allocation3 + $0x20] sm:$0xff]
      %v4735 = vld [vmem:[#allocation3 + $0x28] sm:$0xff]
      %v4736 = vld [vmem:[#allocation3 + $0x30] sm:$0xff]
      %v4737 = vld [vmem:[#allocation3 + $0x38] sm:$0xff]
      %v4738 = vld [vmem:[#allocation3 + $0x40] sm:$0xff]
      %v4739 = vld [vmem:[#allocation3 + $0x48] sm:$0xff]
      %v4740 = vld [vmem:[#allocation3 + $0x50] sm:$0xff]
      %v4741 = vld [vmem:[#allocation3 + $0x58] sm:$0xff]
      %v4742 = vld [vmem:[#allocation3 + $0x60] sm:$0xff]
      %v4743 = vld [vmem:[#allocation3 + $0x68] sm:$0xff]
      %v4744 = vld [vmem:[#allocation3 + $0x70] sm:$0xff]
      %v4745 = vld [vmem:[#allocation3 + $0x78] sm:$0xff]
      %v4746 = vld [vmem:[#allocation3 + $0x80] sm:$0xff]
      %v4747 = vld [vmem:[#allocation3 + $0x88] sm:$0xff]
      %v4748 = vld [vmem:[#allocation3 + $0x90] sm:$0xff]
      %v4749 = vld [vmem:[#allocation3 + $0x98] sm:$0xff]
      %v4750 = vld [vmem:[#allocation3 + $0xa0] sm:$0xff]
      %v4751 = vld [vmem:[#allocation3 + $0xa8] sm:$0xff]
      %v4752 = vld [vmem:[#allocation3 + $0xb0] sm:$0xff]
      %v4753 = vld [vmem:[#allocation3 + $0xb8] sm:$0xff]
      %v4754 = vld [vmem:[#allocation3 + $0xc0] sm:$0xff]
      %v4755 = vld [vmem:[#allocation3 + $0xc8] sm:$0xff]
      %v4756 = vld [vmem:[#allocation3 + $0xd0] sm:$0xff]
      %v4757 = vld [vmem:[#allocation3 + $0xd8] sm:$0xff]
      %v4758 = vld [vmem:[#allocation3 + $0xe0] sm:$0xff]
      %v4759 = vld [vmem:[#allocation3 + $0xe8] sm:$0xff]
      %v4760 = vld [vmem:[#allocation3 + $0xf0] sm:$0xff]
      %v4761 = vld [vmem:[#allocation3 + $0xf8] sm:$0xff]
      %v4762 = vld [vmem:[#allocation3 + $0x100] sm:$0xff]
      %v4763 = vld [vmem:[#allocation3 + $0x108] sm:$0xff]
      %v4764 = vld [vmem:[#allocation3 + $0x110] sm:$0xff]
      %v4765 = vld [vmem:[#allocation3 + $0x118] sm:$0xff]
      %v4766 = vld [vmem:[#allocation3 + $0x120] sm:$0xff]
      %v4767 = vld [vmem:[#allocation3 + $0x128] sm:$0xff]
      %v4768 = vld [vmem:[#allocation3 + $0x130] sm:$0xff]
      %v4769 = vld [vmem:[#allocation3 + $0x138] sm:$0xff]
      %v4770 = vld [vmem:[#allocation3 + $0x140] sm:$0xff]
      %v4771 = vld [vmem:[#allocation3 + $0x148] sm:$0xff]
      %v4772 = vld [vmem:[#allocation3 + $0x150] sm:$0xff]
      %v4773 = vld [vmem:[#allocation3 + $0x158] sm:$0xff]
      %v4774 = vld [vmem:[#allocation3 + $0x160] sm:$0xff]
      %v4775 = vld [vmem:[#allocation3 + $0x168] sm:$0xff]
      %v4776 = vld [vmem:[#allocation3 + $0x170] sm:$0xff]
      %v4777 = vld [vmem:[#allocation3 + $0x178] sm:$0xff]
      %v4778 = vld [vmem:[#allocation3 + $0x180] sm:$0xff]
      %v4779 = vld [vmem:[#allocation3 + $0x188] sm:$0xff]
      %v4780 = vld [vmem:[#allocation3 + $0x190] sm:$0xff]
      %v4781 = vld [vmem:[#allocation3 + $0x198] sm:$0xff]
      %v4782 = vld [vmem:[#allocation3 + $0x1a0] sm:$0xff]
      %v4783 = vld [vmem:[#allocation3 + $0x1a8] sm:$0xff]
      %v4784 = vld [vmem:[#allocation3 + $0x1b0] sm:$0xff]
      %v4785 = vld [vmem:[#allocation3 + $0x1b8] sm:$0xff]
      %v4786 = vld [vmem:[#allocation3 + $0x1c0] sm:$0xff]
      %v4787 = vld [vmem:[#allocation3 + $0x1c8] sm:$0xff]
      %v4788 = vld [vmem:[#allocation3 + $0x1d0] sm:$0xff]
      %v4789 = vld [vmem:[#allocation3 + $0x1d8] sm:$0xff]
      %v4790 = vld [vmem:[#allocation3 + $0x1e0] sm:$0xff]
      %v4791 = vld [vmem:[#allocation3 + $0x1e8] sm:$0xff]
      %v4792 = vld [vmem:[#allocation3 + $0x1f0] sm:$0xff]
      %v4793 = vld [vmem:[#allocation3 + $0x1f8] sm:$0xff]
      %vm4810 = vcmask 1042432
      %vm4811 = vcmask 1046532
      %vm4812 = vmor %vm4810, %vm4811
      %v4813 = vrot.slane %v1260, 5
      %v4814 = vrot.slane %v4813, 4
      %v4815 = vrot.slane %v1261, 5
      %v4816 = vsel %vm4812, %v4814, %v4815
      %v4817 = vrot.slane %v4815, 4
      %v4818 = vrot.slane %v1262, 5
      %v4819 = vsel %vm4812, %v4817, %v4818
      %v4820 = vrot.slane %v1263, 5
      %v4821 = vrot.slane %v4820, 4
      %v4822 = vrot.slane %v1264, 5
      %v4823 = vsel %vm4812, %v4821, %v4822
      %v4824 = vrot.slane %v4822, 4
      %v4825 = vrot.slane %v1265, 5
      %v4826 = vsel %vm4812, %v4824, %v4825
      %v4827 = vrot.slane %v1266, 5
      %v4828 = vrot.slane %v4827, 4
      %v4829 = vrot.slane %v1267, 5
      %v4830 = vsel %vm4812, %v4828, %v4829
      %v4831 = vrot.slane %v4829, 4
      %v4832 = vrot.slane %v1268, 5
      %v4833 = vsel %vm4812, %v4831, %v4832
      %v4834 = vrot.slane %v1269, 5
      %v4835 = vrot.slane %v4834, 4
      %v4836 = vrot.slane %v1270, 5
      %v4837 = vsel %vm4812, %v4835, %v4836
      %v4838 = vrot.slane %v4836, 4
      %v4839 = vrot.slane %v1271, 5
      %v4840 = vsel %vm4812, %v4838, %v4839
      %v4841 = vrot.slane %v1272, 5
      %v4842 = vrot.slane %v4841, 4
      %v4843 = vrot.slane %v1273, 5
      %v4844 = vsel %vm4812, %v4842, %v4843
      %v4845 = vrot.slane %v4843, 4
      %v4846 = vrot.slane %v1274, 5
      %v4847 = vsel %vm4812, %v4845, %v4846
      %v4848 = vrot.slane %v1275, 5
      %v4849 = vrot.slane %v4848, 4
      %v4850 = vrot.slane %v1276, 5
      %v4851 = vsel %vm4812, %v4849, %v4850
      %v4852 = vrot.slane %v4850, 4
      %v4853 = vrot.slane %v1277, 5
      %v4854 = vsel %vm4812, %v4852, %v4853
      %v4855 = vrot.slane %v1278, 5
      %v4856 = vrot.slane %v4855, 4
      %v4857 = vrot.slane %v1279, 5
      %v4858 = vsel %vm4812, %v4856, %v4857
      %v4859 = vrot.slane %v4857, 4
      %v4860 = vrot.slane %v1280, 5
      %v4861 = vsel %vm4812, %v4859, %v4860
      %v4862 = vrot.slane %v1281, 5
      %v4863 = vrot.slane %v4862, 4
      %v4864 = vrot.slane %v1282, 5
      %v4865 = vsel %vm4812, %v4863, %v4864
      %v4866 = vrot.slane %v4864, 4
      %v4867 = vrot.slane %v1283, 5
      %v4868 = vsel %vm4812, %v4866, %v4867
      %v4869 = vrot.slane %v1284, 5
      %v4870 = vrot.slane %v4869, 4
      %v4871 = vrot.slane %v1285, 5
      %v4872 = vsel %vm4812, %v4870, %v4871
      %v4873 = vrot.slane %v4871, 4
      %v4874 = vrot.slane %v1286, 5
      %v4875 = vsel %vm4812, %v4873, %v4874
      %v4876 = vrot.slane %v1287, 5
      %v4877 = vrot.slane %v4876, 4
      %v4878 = vrot.slane %v1288, 5
      %v4879 = vsel %vm4812, %v4877, %v4878
      %v4880 = vrot.slane %v4878, 4
      %v4881 = vrot.slane %v1289, 5
      %v4882 = vsel %vm4812, %v4880, %v4881
      %v4883 = vrot.slane %v1290, 5
      %v4884 = vrot.slane %v4883, 4
      %v4885 = vrot.slane %v1291, 5
      %v4886 = vsel %vm4812, %v4884, %v4885
      %v4887 = vrot.slane %v4885, 4
      %v4888 = vrot.slane %v1292, 5
      %v4889 = vsel %vm4812, %v4887, %v4888
      %v4890 = vrot.slane %v1293, 5
      %v4891 = vrot.slane %v4890, 4
      %v4892 = vrot.slane %v1294, 5
      %v4893 = vsel %vm4812, %v4891, %v4892
      %v4894 = vrot.slane %v4892, 4
      %v4895 = vrot.slane %v1295, 5
      %v4896 = vsel %vm4812, %v4894, %v4895
      %v4897 = vrot.slane %v1296, 5
      %v4898 = vrot.slane %v4897, 4
      %v4899 = vrot.slane %v1297, 5
      %v4900 = vsel %vm4812, %v4898, %v4899
      %v4901 = vrot.slane %v4899, 4
      %v4902 = vrot.slane %v1298, 5
      %v4903 = vsel %vm4812, %v4901, %v4902
      %v4904 = vrot.slane %v1299, 5
      %v4905 = vrot.slane %v4904, 4
      %v4906 = vrot.slane %v1300, 5
      %v4907 = vsel %vm4812, %v4905, %v4906
      %v4908 = vrot.slane %v4906, 4
      %v4909 = vrot.slane %v1301, 5
      %v4910 = vsel %vm4812, %v4908, %v4909
      %v4911 = vrot.slane %v1302, 5
      %v4912 = vrot.slane %v4911, 4
      %v4913 = vrot.slane %v1303, 5
      %v4914 = vsel %vm4812, %v4912, %v4913
      %v4915 = vrot.slane %v4913, 4
      %v4916 = vrot.slane %v1304, 5
      %v4917 = vsel %vm4812, %v4915, %v4916
      %v4918 = vrot.slane %v1305, 5
      %v4919 = vrot.slane %v4918, 4
      %v4920 = vrot.slane %v1306, 5
      %v4921 = vsel %vm4812, %v4919, %v4920
      %v4922 = vrot.slane %v4920, 4
      %v4923 = vrot.slane %v1307, 5
      %v4924 = vsel %vm4812, %v4922, %v4923
      %s4925 = scalar_lea.vmem %s3, 256
      %v4926 = vld [vmem:[%s4925] sm:$0xff]
      %v4927 = vld [vmem:[%s4925 + $0x8] sm:$0xff]
      %v4928 = vld [vmem:[%s4925 + $0x10] sm:$0xff]
      %v4929 = vld [vmem:[%s4925 + $0x18] sm:$0xff]
      %v4930 = vld [vmem:[%s4925 + $0x20] sm:$0xff]
      %v4931 = vld [vmem:[%s4925 + $0x28] sm:$0xff]
      %v4932 = vld [vmem:[%s4925 + $0x30] sm:$0xff]
      %v4933 = vld [vmem:[%s4925 + $0x38] sm:$0xff]
      %v4934 = vld [vmem:[%s4925 + $0x40] sm:$0xff]
      %v4935 = vld [vmem:[%s4925 + $0x48] sm:$0xff]
      %v4936 = vld [vmem:[%s4925 + $0x50] sm:$0xff]
      %v4937 = vld [vmem:[%s4925 + $0x58] sm:$0xff]
      %v4938 = vld [vmem:[%s4925 + $0x60] sm:$0xff]
      %v4939 = vld [vmem:[%s4925 + $0x68] sm:$0xff]
      %v4940 = vld [vmem:[%s4925 + $0x70] sm:$0xff]
      %v4941 = vld [vmem:[%s4925 + $0x78] sm:$0xff]
      %v4942 = vunpack.c.l.b16 %v4816
      %v4943 = vunpack.c.l.b16 %v4819
      %v4944 = vunpack.c.l.b16 %v4823
      %v4945 = vunpack.c.l.b16 %v4826
      %v4946 = vunpack.c.l.b16 %v4830
      %v4947 = vunpack.c.l.b16 %v4833
      %v4948 = vunpack.c.l.b16 %v4837
      %v4949 = vunpack.c.l.b16 %v4840
      %v4950 = vunpack.c.l.b16 %v4844
      %v4951 = vunpack.c.l.b16 %v4847
      %v4952 = vunpack.c.l.b16 %v4851
      %v4953 = vunpack.c.l.b16 %v4854
      %v4954 = vunpack.c.l.b16 %v4858
      %v4955 = vunpack.c.l.b16 %v4861
      %v4956 = vunpack.c.l.b16 %v4865
      %v4957 = vunpack.c.l.b16 %v4868
      %v4958 = vunpack.c.l.b16 %v4872
      %v4959 = vunpack.c.l.b16 %v4875
      %v4960 = vunpack.c.l.b16 %v4879
      %v4961 = vunpack.c.l.b16 %v4882
      %v4962 = vunpack.c.l.b16 %v4886
      %v4963 = vunpack.c.l.b16 %v4889
      %v4964 = vunpack.c.l.b16 %v4893
      %v4965 = vunpack.c.l.b16 %v4896
      %v4966 = vunpack.c.l.b16 %v4900
      %v4967 = vunpack.c.l.b16 %v4903
      %v4968 = vunpack.c.l.b16 %v4907
      %v4969 = vunpack.c.l.b16 %v4910
      %v4970 = vunpack.c.l.b16 %v4914
      %v4971 = vunpack.c.l.b16 %v4917
      %v4972 = vunpack.c.l.b16 %v4921
      %v4973 = vunpack.c.l.b16 %v4924
      %v4974 = vpack.c.b16 %v4943, %v4942
      %v4975 = vpack.c.b16 %v4945, %v4944
      %v4976 = vpack.c.b16 %v4947, %v4946
      %v4977 = vpack.c.b16 %v4949, %v4948
      %v4978 = vpack.c.b16 %v4951, %v4950
      %v4979 = vpack.c.b16 %v4953, %v4952
      %v4980 = vpack.c.b16 %v4955, %v4954
      %v4981 = vpack.c.b16 %v4957, %v4956
      %v4982 = vpack.c.b16 %v4959, %v4958
      %v4983 = vpack.c.b16 %v4961, %v4960
      %v4984 = vpack.c.b16 %v4963, %v4962
      %v4985 = vpack.c.b16 %v4965, %v4964
      %v4986 = vpack.c.b16 %v4967, %v4966
      %v4987 = vpack.c.b16 %v4969, %v4968
      %v4988 = vpack.c.b16 %v4971, %v4970
      %v4989 = vpack.c.b16 %v4973, %v4972
      %v5022 = vunpack.c.l.b16 %v4926
      %v5023 = vunpack.c.h.b16 %v4926
      %v5024 = vunpack.c.l.b16 %v4927
      %v5025 = vunpack.c.h.b16 %v4927
      %v5026 = vunpack.c.l.b16 %v4928
      %v5027 = vunpack.c.h.b16 %v4928
      %v5028 = vunpack.c.l.b16 %v4929
      %v5029 = vunpack.c.h.b16 %v4929
      %v5030 = vunpack.c.l.b16 %v4930
      %v5031 = vunpack.c.h.b16 %v4930
      %v5032 = vunpack.c.l.b16 %v4931
      %v5033 = vunpack.c.h.b16 %v4931
      %v5034 = vunpack.c.l.b16 %v4932
      %v5035 = vunpack.c.h.b16 %v4932
      %v5036 = vunpack.c.l.b16 %v4933
      %v5037 = vunpack.c.h.b16 %v4933
      %v5038 = vunpack.c.l.b16 %v4934
      %v5039 = vunpack.c.h.b16 %v4934
      %v5040 = vunpack.c.l.b16 %v4935
      %v5041 = vunpack.c.h.b16 %v4935
      %v5042 = vunpack.c.l.b16 %v4936
      %v5043 = vunpack.c.h.b16 %v4936
      %v5044 = vunpack.c.l.b16 %v4937
      %v5045 = vunpack.c.h.b16 %v4937
      %v5046 = vunpack.c.l.b16 %v4938
      %v5047 = vunpack.c.h.b16 %v4938
      %v5048 = vunpack.c.l.b16 %v4939
      %v5049 = vunpack.c.h.b16 %v4939
      %v5050 = vunpack.c.l.b16 %v4940
      %v5051 = vunpack.c.h.b16 %v4940
      %v5052 = vunpack.c.l.b16 %v4941
      %v5053 = vunpack.c.h.b16 %v4941
      %v5054 = vpack.c.b16 %v5024, %v5022
      %v5055 = vpack.c.b16 %v5025, %v5023
      %v5056 = vpack.c.b16 %v5028, %v5026
      %v5057 = vpack.c.b16 %v5029, %v5027
      %v5058 = vpack.c.b16 %v5032, %v5030
      %v5059 = vpack.c.b16 %v5033, %v5031
      %v5060 = vpack.c.b16 %v5036, %v5034
      %v5061 = vpack.c.b16 %v5037, %v5035
      %v5062 = vpack.c.b16 %v5040, %v5038
      %v5063 = vpack.c.b16 %v5041, %v5039
      %v5064 = vpack.c.b16 %v5044, %v5042
      %v5065 = vpack.c.b16 %v5045, %v5043
      %v5066 = vpack.c.b16 %v5048, %v5046
      %v5067 = vpack.c.b16 %v5049, %v5047
      %v5068 = vpack.c.b16 %v5052, %v5050
      %v5069 = vpack.c.b16 %v5053, %v5051
      %5086 = vmatpush.bf16.msra.mxu0 %v5068
      %5087 = vmatpush.bf16.msra.mxu0 %v5066
      %5088 = vmatpush.bf16.msra.mxu0 %v5064
      %5089 = vmatpush.bf16.msra.mxu0 %v5062
      %5090 = vmatpush.bf16.msra.mxu0 %v5060
      %5091 = vmatpush.bf16.msra.mxu0 %v5058
      %5092 = vmatpush.bf16.msra.mxu0 %v5056
      %5093 = vmatpush.bf16.msra.mxu0 %v5054
      %5094 = vmatmul.bf16.gmra.mxu0 %v4974
      %v5095 = vpop.f32.mrf.mxu0
      %v5096 = vadd.f32 0.0, %v5095
      %v5097 = vpop.f32.mrf.mxu0
      %v5098 = vadd.f32 0.0, %v5097
      %5099 = vmatmul.bf16.gmra.mxu0 %v4975
      %v5100 = vpop.f32.mrf.mxu0
      %v5101 = vadd.f32 0.0, %v5100
      %v5102 = vpop.f32.mrf.mxu0
      %v5103 = vadd.f32 0.0, %v5102
      %5104 = vmatmul.bf16.gmra.mxu0 %v4976
      %v5105 = vpop.f32.mrf.mxu0
      %v5106 = vadd.f32 0.0, %v5105
      %v5107 = vpop.f32.mrf.mxu0
      %v5108 = vadd.f32 0.0, %v5107
      %5109 = vmatmul.bf16.gmra.mxu0 %v4977
      %v5110 = vpop.f32.mrf.mxu0
      %v5111 = vadd.f32 0.0, %v5110
      %v5112 = vpop.f32.mrf.mxu0
      %v5113 = vadd.f32 0.0, %v5112
      %5114 = vmatmul.bf16.gmra.mxu0 %v4978
      %v5115 = vpop.f32.mrf.mxu0
      %v5116 = vadd.f32 0.0, %v5115
      %v5117 = vpop.f32.mrf.mxu0
      %v5118 = vadd.f32 0.0, %v5117
      %5119 = vmatmul.bf16.gmra.mxu0 %v4979
      %v5120 = vpop.f32.mrf.mxu0
      %v5121 = vadd.f32 0.0, %v5120
      %v5122 = vpop.f32.mrf.mxu0
      %v5123 = vadd.f32 0.0, %v5122
      %5124 = vmatmul.bf16.gmra.mxu0 %v4980
      %v5125 = vpop.f32.mrf.mxu0
      %v5126 = vadd.f32 0.0, %v5125
      %v5127 = vpop.f32.mrf.mxu0
      %v5128 = vadd.f32 0.0, %v5127
      %5129 = vmatmul.bf16.gmra.mxu0 %v4981
      %v5130 = vpop.f32.mrf.mxu0
      %v5131 = vadd.f32 0.0, %v5130
      %v5132 = vpop.f32.mrf.mxu0
      %v5133 = vadd.f32 0.0, %v5132
      %5134 = vmatmul.bf16.gmra.mxu0 %v4982
      %v5135 = vpop.f32.mrf.mxu0
      %v5136 = vadd.f32 0.0, %v5135
      %v5137 = vpop.f32.mrf.mxu0
      %v5138 = vadd.f32 0.0, %v5137
      %5139 = vmatmul.bf16.gmra.mxu0 %v4983
      %v5140 = vpop.f32.mrf.mxu0
      %v5141 = vadd.f32 0.0, %v5140
      %v5142 = vpop.f32.mrf.mxu0
      %v5143 = vadd.f32 0.0, %v5142
      %5144 = vmatmul.bf16.gmra.mxu0 %v4984
      %v5145 = vpop.f32.mrf.mxu0
      %v5146 = vadd.f32 0.0, %v5145
      %v5147 = vpop.f32.mrf.mxu0
      %v5148 = vadd.f32 0.0, %v5147
      %5149 = vmatmul.bf16.gmra.mxu0 %v4985
      %v5150 = vpop.f32.mrf.mxu0
      %v5151 = vadd.f32 0.0, %v5150
      %v5152 = vpop.f32.mrf.mxu0
      %v5153 = vadd.f32 0.0, %v5152
      %5154 = vmatmul.bf16.gmra.mxu0 %v4986
      %v5155 = vpop.f32.mrf.mxu0
      %v5156 = vadd.f32 0.0, %v5155
      %v5157 = vpop.f32.mrf.mxu0
      %v5158 = vadd.f32 0.0, %v5157
      %5159 = vmatmul.bf16.gmra.mxu0 %v4987
      %v5160 = vpop.f32.mrf.mxu0
      %v5161 = vadd.f32 0.0, %v5160
      %v5162 = vpop.f32.mrf.mxu0
      %v5163 = vadd.f32 0.0, %v5162
      %5164 = vmatmul.bf16.gmra.mxu0 %v4988
      %v5165 = vpop.f32.mrf.mxu0
      %v5166 = vadd.f32 0.0, %v5165
      %v5167 = vpop.f32.mrf.mxu0
      %v5168 = vadd.f32 0.0, %v5167
      %5169 = vmatmul.bf16.gmra.mxu0 %v4989
      %v5170 = vpop.f32.mrf.mxu0
      %v5171 = vadd.f32 0.0, %v5170
      %v5172 = vpop.f32.mrf.mxu0
      %v5173 = vadd.f32 0.0, %v5172
      %5174 = vdwg.mxu0
      %5175 = vmatpush.bf16.msra.mxu0 %v5069
      %5176 = vmatpush.bf16.msra.mxu0 %v5067
      %5177 = vmatpush.bf16.msra.mxu0 %v5065
      %5178 = vmatpush.bf16.msra.mxu0 %v5063
      %5179 = vmatpush.bf16.msra.mxu0 %v5061
      %5180 = vmatpush.bf16.msra.mxu0 %v5059
      %5181 = vmatpush.bf16.msra.mxu0 %v5057
      %5182 = vmatpush.bf16.msra.mxu0 %v5055
      %5183 = vmatmul.bf16.gmra.mxu0 %v4974
      %v5184 = vpop.f32.mrf.mxu0
      %v5185 = vadd.f32 0.0, %v5184
      %v5186 = vpop.f32.mrf.mxu0
      %v5187 = vadd.f32 0.0, %v5186
      %5188 = vmatmul.bf16.gmra.mxu0 %v4975
      %v5189 = vpop.f32.mrf.mxu0
      %v5190 = vadd.f32 0.0, %v5189
      %v5191 = vpop.f32.mrf.mxu0
      %v5192 = vadd.f32 0.0, %v5191
      %5193 = vmatmul.bf16.gmra.mxu0 %v4976
      %v5194 = vpop.f32.mrf.mxu0
      %v5195 = vadd.f32 0.0, %v5194
      %v5196 = vpop.f32.mrf.mxu0
      %v5197 = vadd.f32 0.0, %v5196
      %5198 = vmatmul.bf16.gmra.mxu0 %v4977
      %v5199 = vpop.f32.mrf.mxu0
      %v5200 = vadd.f32 0.0, %v5199
      %v5201 = vpop.f32.mrf.mxu0
      %v5202 = vadd.f32 0.0, %v5201
      %5203 = vmatmul.bf16.gmra.mxu0 %v4978
      %v5204 = vpop.f32.mrf.mxu0
      %v5205 = vadd.f32 0.0, %v5204
      %v5206 = vpop.f32.mrf.mxu0
      %v5207 = vadd.f32 0.0, %v5206
      %5208 = vmatmul.bf16.gmra.mxu0 %v4979
      %v5209 = vpop.f32.mrf.mxu0
      %v5210 = vadd.f32 0.0, %v5209
      %v5211 = vpop.f32.mrf.mxu0
      %v5212 = vadd.f32 0.0, %v5211
      %5213 = vmatmul.bf16.gmra.mxu0 %v4980
      %v5214 = vpop.f32.mrf.mxu0
      %v5215 = vadd.f32 0.0, %v5214
      %v5216 = vpop.f32.mrf.mxu0
      %v5217 = vadd.f32 0.0, %v5216
      %5218 = vmatmul.bf16.gmra.mxu0 %v4981
      %v5219 = vpop.f32.mrf.mxu0
      %v5220 = vadd.f32 0.0, %v5219
      %v5221 = vpop.f32.mrf.mxu0
      %v5222 = vadd.f32 0.0, %v5221
      %5223 = vmatmul.bf16.gmra.mxu0 %v4982
      %v5224 = vpop.f32.mrf.mxu0
      %v5225 = vadd.f32 0.0, %v5224
      %v5226 = vpop.f32.mrf.mxu0
      %v5227 = vadd.f32 0.0, %v5226
      %5228 = vmatmul.bf16.gmra.mxu0 %v4983
      %v5229 = vpop.f32.mrf.mxu0
      %v5230 = vadd.f32 0.0, %v5229
      %v5231 = vpop.f32.mrf.mxu0
      %v5232 = vadd.f32 0.0, %v5231
      %5233 = vmatmul.bf16.gmra.mxu0 %v4984
      %v5234 = vpop.f32.mrf.mxu0
      %v5235 = vadd.f32 0.0, %v5234
      %v5236 = vpop.f32.mrf.mxu0
      %v5237 = vadd.f32 0.0, %v5236
      %5238 = vmatmul.bf16.gmra.mxu0 %v4985
      %v5239 = vpop.f32.mrf.mxu0
      %v5240 = vadd.f32 0.0, %v5239
      %v5241 = vpop.f32.mrf.mxu0
      %v5242 = vadd.f32 0.0, %v5241
      %5243 = vmatmul.bf16.gmra.mxu0 %v4986
      %v5244 = vpop.f32.mrf.mxu0
      %v5245 = vadd.f32 0.0, %v5244
      %v5246 = vpop.f32.mrf.mxu0
      %v5247 = vadd.f32 0.0, %v5246
      %5248 = vmatmul.bf16.gmra.mxu0 %v4987
      %v5249 = vpop.f32.mrf.mxu0
      %v5250 = vadd.f32 0.0, %v5249
      %v5251 = vpop.f32.mrf.mxu0
      %v5252 = vadd.f32 0.0, %v5251
      %5253 = vmatmul.bf16.gmra.mxu0 %v4988
      %v5254 = vpop.f32.mrf.mxu0
      %v5255 = vadd.f32 0.0, %v5254
      %v5256 = vpop.f32.mrf.mxu0
      %v5257 = vadd.f32 0.0, %v5256
      %5258 = vmatmul.bf16.gmra.mxu0 %v4989
      %v5259 = vpop.f32.mrf.mxu0
      %v5260 = vadd.f32 0.0, %v5259
      %v5261 = vpop.f32.mrf.mxu0
      %v5262 = vadd.f32 0.0, %v5261
      %5263 = vdwg.mxu0
      %v5264 = vadd.f32 %v4730, %v5096
      %v5265 = vadd.f32 %v4731, %v5185
      %v5266 = vadd.f32 %v4732, %v5098
      %v5267 = vadd.f32 %v4733, %v5187
      %v5268 = vadd.f32 %v4734, %v5101
      %v5269 = vadd.f32 %v4735, %v5190
      %v5270 = vadd.f32 %v4736, %v5103
      %v5271 = vadd.f32 %v4737, %v5192
      %v5272 = vadd.f32 %v4738, %v5106
      %v5273 = vadd.f32 %v4739, %v5195
      %v5274 = vadd.f32 %v4740, %v5108
      %v5275 = vadd.f32 %v4741, %v5197
      %v5276 = vadd.f32 %v4742, %v5111
      %v5277 = vadd.f32 %v4743, %v5200
      %v5278 = vadd.f32 %v4744, %v5113
      %v5279 = vadd.f32 %v4745, %v5202
      %v5280 = vadd.f32 %v4746, %v5116
      %v5281 = vadd.f32 %v4747, %v5205
      %v5282 = vadd.f32 %v4748, %v5118
      %v5283 = vadd.f32 %v4749, %v5207
      %v5284 = vadd.f32 %v4750, %v5121
      %v5285 = vadd.f32 %v4751, %v5210
      %v5286 = vadd.f32 %v4752, %v5123
      %v5287 = vadd.f32 %v4753, %v5212
      %v5288 = vadd.f32 %v4754, %v5126
      %v5289 = vadd.f32 %v4755, %v5215
      %v5290 = vadd.f32 %v4756, %v5128
      %v5291 = vadd.f32 %v4757, %v5217
      %v5292 = vadd.f32 %v4758, %v5131
      %v5293 = vadd.f32 %v4759, %v5220
      %v5294 = vadd.f32 %v4760, %v5133
      %v5295 = vadd.f32 %v4761, %v5222
      %v5296 = vadd.f32 %v4762, %v5136
      %v5297 = vadd.f32 %v4763, %v5225
      %v5298 = vadd.f32 %v4764, %v5138
      %v5299 = vadd.f32 %v4765, %v5227
      %v5300 = vadd.f32 %v4766, %v5141
      %v5301 = vadd.f32 %v4767, %v5230
      %v5302 = vadd.f32 %v4768, %v5143
      %v5303 = vadd.f32 %v4769, %v5232
      %v5304 = vadd.f32 %v4770, %v5146
      %v5305 = vadd.f32 %v4771, %v5235
      %v5306 = vadd.f32 %v4772, %v5148
      %v5307 = vadd.f32 %v4773, %v5237
      %v5308 = vadd.f32 %v4774, %v5151
      %v5309 = vadd.f32 %v4775, %v5240
      %v5310 = vadd.f32 %v4776, %v5153
      %v5311 = vadd.f32 %v4777, %v5242
      %v5312 = vadd.f32 %v4778, %v5156
      %v5313 = vadd.f32 %v4779, %v5245
      %v5314 = vadd.f32 %v4780, %v5158
      %v5315 = vadd.f32 %v4781, %v5247
      %v5316 = vadd.f32 %v4782, %v5161
      %v5317 = vadd.f32 %v4783, %v5250
      %v5318 = vadd.f32 %v4784, %v5163
      %v5319 = vadd.f32 %v4785, %v5252
      %v5320 = vadd.f32 %v4786, %v5166
      %v5321 = vadd.f32 %v4787, %v5255
      %v5322 = vadd.f32 %v4788, %v5168
      %v5323 = vadd.f32 %v4789, %v5257
      %v5324 = vadd.f32 %v4790, %v5171
      %v5325 = vadd.f32 %v4791, %v5260
      %v5326 = vadd.f32 %v4792, %v5173
      %v5327 = vadd.f32 %v4793, %v5262
      %5328 = vst [vmem:[#allocation3] sm:$0xff] %v5264
      %5329 = vst [vmem:[#allocation3 + $0x8] sm:$0xff] %v5265
      %5330 = vst [vmem:[#allocation3 + $0x10] sm:$0xff] %v5266
      %5331 = vst [vmem:[#allocation3 + $0x18] sm:$0xff] %v5267
      %5332 = vst [vmem:[#allocation3 + $0x20] sm:$0xff] %v5268
      %5333 = vst [vmem:[#allocation3 + $0x28] sm:$0xff] %v5269
      %5334 = vst [vmem:[#allocation3 + $0x30] sm:$0xff] %v5270
      %5335 = vst [vmem:[#allocation3 + $0x38] sm:$0xff] %v5271
      %5336 = vst [vmem:[#allocation3 + $0x40] sm:$0xff] %v5272
      %5337 = vst [vmem:[#allocation3 + $0x48] sm:$0xff] %v5273
      %5338 = vst [vmem:[#allocation3 + $0x50] sm:$0xff] %v5274
      %5339 = vst [vmem:[#allocation3 + $0x58] sm:$0xff] %v5275
      %5340 = vst [vmem:[#allocation3 + $0x60] sm:$0xff] %v5276
      %5341 = vst [vmem:[#allocation3 + $0x68] sm:$0xff] %v5277
      %5342 = vst [vmem:[#allocation3 + $0x70] sm:$0xff] %v5278
      %5343 = vst [vmem:[#allocation3 + $0x78] sm:$0xff] %v5279
      %5344 = vst [vmem:[#allocation3 + $0x80] sm:$0xff] %v5280
      %5345 = vst [vmem:[#allocation3 + $0x88] sm:$0xff] %v5281
      %5346 = vst [vmem:[#allocation3 + $0x90] sm:$0xff] %v5282
      %5347 = vst [vmem:[#allocation3 + $0x98] sm:$0xff] %v5283
      %5348 = vst [vmem:[#allocation3 + $0xa0] sm:$0xff] %v5284
      %5349 = vst [vmem:[#allocation3 + $0xa8] sm:$0xff] %v5285
      %5350 = vst [vmem:[#allocation3 + $0xb0] sm:$0xff] %v5286
      %5351 = vst [vmem:[#allocation3 + $0xb8] sm:$0xff] %v5287
      %5352 = vst [vmem:[#allocation3 + $0xc0] sm:$0xff] %v5288
      %5353 = vst [vmem:[#allocation3 + $0xc8] sm:$0xff] %v5289
      %5354 = vst [vmem:[#allocation3 + $0xd0] sm:$0xff] %v5290
      %5355 = vst [vmem:[#allocation3 + $0xd8] sm:$0xff] %v5291
      %5356 = vst [vmem:[#allocation3 + $0xe0] sm:$0xff] %v5292
      %5357 = vst [vmem:[#allocation3 + $0xe8] sm:$0xff] %v5293
      %5358 = vst [vmem:[#allocation3 + $0xf0] sm:$0xff] %v5294
      %5359 = vst [vmem:[#allocation3 + $0xf8] sm:$0xff] %v5295
      %5360 = vst [vmem:[#allocation3 + $0x100] sm:$0xff] %v5296
      %5361 = vst [vmem:[#allocation3 + $0x108] sm:$0xff] %v5297
      %5362 = vst [vmem:[#allocation3 + $0x110] sm:$0xff] %v5298
      %5363 = vst [vmem:[#allocation3 + $0x118] sm:$0xff] %v5299
      %5364 = vst [vmem:[#allocation3 + $0x120] sm:$0xff] %v5300
      %5365 = vst [vmem:[#allocation3 + $0x128] sm:$0xff] %v5301
      %5366 = vst [vmem:[#allocation3 + $0x130] sm:$0xff] %v5302
      %5367 = vst [vmem:[#allocation3 + $0x138] sm:$0xff] %v5303
      %5368 = vst [vmem:[#allocation3 + $0x140] sm:$0xff] %v5304
      %5369 = vst [vmem:[#allocation3 + $0x148] sm:$0xff] %v5305
      %5370 = vst [vmem:[#allocation3 + $0x150] sm:$0xff] %v5306
      %5371 = vst [vmem:[#allocation3 + $0x158] sm:$0xff] %v5307
      %5372 = vst [vmem:[#allocation3 + $0x160] sm:$0xff] %v5308
      %5373 = vst [vmem:[#allocation3 + $0x168] sm:$0xff] %v5309
      %5374 = vst [vmem:[#allocation3 + $0x170] sm:$0xff] %v5310
      %5375 = vst [vmem:[#allocation3 + $0x178] sm:$0xff] %v5311
      %5376 = vst [vmem:[#allocation3 + $0x180] sm:$0xff] %v5312
      %5377 = vst [vmem:[#allocation3 + $0x188] sm:$0xff] %v5313
      %5378 = vst [vmem:[#allocation3 + $0x190] sm:$0xff] %v5314
      %5379 = vst [vmem:[#allocation3 + $0x198] sm:$0xff] %v5315
      %5380 = vst [vmem:[#allocation3 + $0x1a0] sm:$0xff] %v5316
      %5381 = vst [vmem:[#allocation3 + $0x1a8] sm:$0xff] %v5317
      %5382 = vst [vmem:[#allocation3 + $0x1b0] sm:$0xff] %v5318
      %5383 = vst [vmem:[#allocation3 + $0x1b8] sm:$0xff] %v5319
      %5384 = vst [vmem:[#allocation3 + $0x1c0] sm:$0xff] %v5320
      %5385 = vst [vmem:[#allocation3 + $0x1c8] sm:$0xff] %v5321
      %5386 = vst [vmem:[#allocation3 + $0x1d0] sm:$0xff] %v5322
      %5387 = vst [vmem:[#allocation3 + $0x1d8] sm:$0xff] %v5323
      %5388 = vst [vmem:[#allocation3 + $0x1e0] sm:$0xff] %v5324
      %5389 = vst [vmem:[#allocation3 + $0x1e8] sm:$0xff] %v5325
      %5390 = vst [vmem:[#allocation3 + $0x1f0] sm:$0xff] %v5326
      %5391 = vst [vmem:[#allocation3 + $0x1f8] sm:$0xff] %v5327
      %v5392 = vld [vmem:[#allocation3] sm:$0xff]
      %v5393 = vld [vmem:[#allocation3 + $0x8] sm:$0xff]
      %v5394 = vld [vmem:[#allocation3 + $0x10] sm:$0xff]
      %v5395 = vld [vmem:[#allocation3 + $0x18] sm:$0xff]
      %v5396 = vld [vmem:[#allocation3 + $0x20] sm:$0xff]
      %v5397 = vld [vmem:[#allocation3 + $0x28] sm:$0xff]
      %v5398 = vld [vmem:[#allocation3 + $0x30] sm:$0xff]
      %v5399 = vld [vmem:[#allocation3 + $0x38] sm:$0xff]
      %v5400 = vld [vmem:[#allocation3 + $0x40] sm:$0xff]
      %v5401 = vld [vmem:[#allocation3 + $0x48] sm:$0xff]
      %v5402 = vld [vmem:[#allocation3 + $0x50] sm:$0xff]
      %v5403 = vld [vmem:[#allocation3 + $0x58] sm:$0xff]
      %v5404 = vld [vmem:[#allocation3 + $0x60] sm:$0xff]
      %v5405 = vld [vmem:[#allocation3 + $0x68] sm:$0xff]
      %v5406 = vld [vmem:[#allocation3 + $0x70] sm:$0xff]
      %v5407 = vld [vmem:[#allocation3 + $0x78] sm:$0xff]
      %v5408 = vld [vmem:[#allocation3 + $0x80] sm:$0xff]
      %v5409 = vld [vmem:[#allocation3 + $0x88] sm:$0xff]
      %v5410 = vld [vmem:[#allocation3 + $0x90] sm:$0xff]
      %v5411 = vld [vmem:[#allocation3 + $0x98] sm:$0xff]
      %v5412 = vld [vmem:[#allocation3 + $0xa0] sm:$0xff]
      %v5413 = vld [vmem:[#allocation3 + $0xa8] sm:$0xff]
      %v5414 = vld [vmem:[#allocation3 + $0xb0] sm:$0xff]
      %v5415 = vld [vmem:[#allocation3 + $0xb8] sm:$0xff]
      %v5416 = vld [vmem:[#allocation3 + $0xc0] sm:$0xff]
      %v5417 = vld [vmem:[#allocation3 + $0xc8] sm:$0xff]
      %v5418 = vld [vmem:[#allocation3 + $0xd0] sm:$0xff]
      %v5419 = vld [vmem:[#allocation3 + $0xd8] sm:$0xff]
      %v5420 = vld [vmem:[#allocation3 + $0xe0] sm:$0xff]
      %v5421 = vld [vmem:[#allocation3 + $0xe8] sm:$0xff]
      %v5422 = vld [vmem:[#allocation3 + $0xf0] sm:$0xff]
      %v5423 = vld [vmem:[#allocation3 + $0xf8] sm:$0xff]
      %v5424 = vld [vmem:[#allocation3 + $0x100] sm:$0xff]
      %v5425 = vld [vmem:[#allocation3 + $0x108] sm:$0xff]
      %v5426 = vld [vmem:[#allocation3 + $0x110] sm:$0xff]
      %v5427 = vld [vmem:[#allocation3 + $0x118] sm:$0xff]
      %v5428 = vld [vmem:[#allocation3 + $0x120] sm:$0xff]
      %v5429 = vld [vmem:[#allocation3 + $0x128] sm:$0xff]
      %v5430 = vld [vmem:[#allocation3 + $0x130] sm:$0xff]
      %v5431 = vld [vmem:[#allocation3 + $0x138] sm:$0xff]
      %v5432 = vld [vmem:[#allocation3 + $0x140] sm:$0xff]
      %v5433 = vld [vmem:[#allocation3 + $0x148] sm:$0xff]
      %v5434 = vld [vmem:[#allocation3 + $0x150] sm:$0xff]
      %v5435 = vld [vmem:[#allocation3 + $0x158] sm:$0xff]
      %v5436 = vld [vmem:[#allocation3 + $0x160] sm:$0xff]
      %v5437 = vld [vmem:[#allocation3 + $0x168] sm:$0xff]
      %v5438 = vld [vmem:[#allocation3 + $0x170] sm:$0xff]
      %v5439 = vld [vmem:[#allocation3 + $0x178] sm:$0xff]
      %v5440 = vld [vmem:[#allocation3 + $0x180] sm:$0xff]
      %v5441 = vld [vmem:[#allocation3 + $0x188] sm:$0xff]
      %v5442 = vld [vmem:[#allocation3 + $0x190] sm:$0xff]
      %v5443 = vld [vmem:[#allocation3 + $0x198] sm:$0xff]
      %v5444 = vld [vmem:[#allocation3 + $0x1a0] sm:$0xff]
      %v5445 = vld [vmem:[#allocation3 + $0x1a8] sm:$0xff]
      %v5446 = vld [vmem:[#allocation3 + $0x1b0] sm:$0xff]
      %v5447 = vld [vmem:[#allocation3 + $0x1b8] sm:$0xff]
      %v5448 = vld [vmem:[#allocation3 + $0x1c0] sm:$0xff]
      %v5449 = vld [vmem:[#allocation3 + $0x1c8] sm:$0xff]
      %v5450 = vld [vmem:[#allocation3 + $0x1d0] sm:$0xff]
      %v5451 = vld [vmem:[#allocation3 + $0x1d8] sm:$0xff]
      %v5452 = vld [vmem:[#allocation3 + $0x1e0] sm:$0xff]
      %v5453 = vld [vmem:[#allocation3 + $0x1e8] sm:$0xff]
      %v5454 = vld [vmem:[#allocation3 + $0x1f0] sm:$0xff]
      %v5455 = vld [vmem:[#allocation3 + $0x1f8] sm:$0xff]
      %v5457 = vrot.slane %v1308, 5
      %v5458 = vrot.slane %v5457, 4
      %v5459 = vrot.slane %v1309, 5
      %v5460 = vsel %vm4812, %v5458, %v5459
      %v5461 = vrot.slane %v5459, 4
      %v5462 = vrot.slane %v1310, 5
      %v5463 = vsel %vm4812, %v5461, %v5462
      %s5464 = scalar_lea.vmem %s3, 640
      %v5465 = vld [vmem:[%s5464] sm:$0xff]
      %v5466 = vld [vmem:[%s5464 + $0x8] sm:$0xff]
      %v5467 = vld [vmem:[%s5464 + $0x10] sm:$0xff]
      %v5468 = vld [vmem:[%s5464 + $0x18] sm:$0xff]
      %v5469 = vld [vmem:[%s5464 + $0x20] sm:$0xff]
      %v5470 = vld [vmem:[%s5464 + $0x28] sm:$0xff]
      %v5471 = vld [vmem:[%s5464 + $0x30] sm:$0xff]
      %v5472 = vld [vmem:[%s5464 + $0x38] sm:$0xff]
      %v5473 = vld [vmem:[%s5464 + $0x40] sm:$0xff]
      %v5474 = vld [vmem:[%s5464 + $0x48] sm:$0xff]
      %v5475 = vld [vmem:[%s5464 + $0x50] sm:$0xff]
      %v5476 = vld [vmem:[%s5464 + $0x58] sm:$0xff]
      %v5477 = vld [vmem:[%s5464 + $0x60] sm:$0xff]
      %v5478 = vld [vmem:[%s5464 + $0x68] sm:$0xff]
      %v5479 = vld [vmem:[%s5464 + $0x70] sm:$0xff]
      %v5480 = vld [vmem:[%s5464 + $0x78] sm:$0xff]
      %v5481 = vunpack.c.l.b16 %v5460
      %v5482 = vunpack.c.l.b16 %v5463
      %v5483 = vpack.c.b16 %v5482, %v5481
      %v5501 = vunpack.c.l.b16 %v5465
      %v5502 = vunpack.c.h.b16 %v5465
      %v5503 = vunpack.c.l.b16 %v5466
      %v5504 = vunpack.c.h.b16 %v5466
      %v5505 = vunpack.c.l.b16 %v5467
      %v5506 = vunpack.c.h.b16 %v5467
      %v5507 = vunpack.c.l.b16 %v5468
      %v5508 = vunpack.c.h.b16 %v5468
      %v5509 = vunpack.c.l.b16 %v5469
      %v5510 = vunpack.c.h.b16 %v5469
      %v5511 = vunpack.c.l.b16 %v5470
      %v5512 = vunpack.c.h.b16 %v5470
      %v5513 = vunpack.c.l.b16 %v5471
      %v5514 = vunpack.c.h.b16 %v5471
      %v5515 = vunpack.c.l.b16 %v5472
      %v5516 = vunpack.c.h.b16 %v5472
      %v5517 = vunpack.c.l.b16 %v5473
      %v5518 = vunpack.c.h.b16 %v5473
      %v5519 = vunpack.c.l.b16 %v5474
      %v5520 = vunpack.c.h.b16 %v5474
      %v5521 = vunpack.c.l.b16 %v5475
      %v5522 = vunpack.c.h.b16 %v5475
      %v5523 = vunpack.c.l.b16 %v5476
      %v5524 = vunpack.c.h.b16 %v5476
      %v5525 = vunpack.c.l.b16 %v5477
      %v5526 = vunpack.c.h.b16 %v5477
      %v5527 = vunpack.c.l.b16 %v5478
      %v5528 = vunpack.c.h.b16 %v5478
      %v5529 = vunpack.c.l.b16 %v5479
      %v5530 = vunpack.c.h.b16 %v5479
      %v5531 = vunpack.c.l.b16 %v5480
      %v5532 = vunpack.c.h.b16 %v5480
      %v5533 = vpack.c.b16 %v5503, %v5501
      %v5534 = vpack.c.b16 %v5504, %v5502
      %v5535 = vpack.c.b16 %v5507, %v5505
      %v5536 = vpack.c.b16 %v5508, %v5506
      %v5537 = vpack.c.b16 %v5511, %v5509
      %v5538 = vpack.c.b16 %v5512, %v5510
      %v5539 = vpack.c.b16 %v5515, %v5513
      %v5540 = vpack.c.b16 %v5516, %v5514
      %v5541 = vpack.c.b16 %v5519, %v5517
      %v5542 = vpack.c.b16 %v5520, %v5518
      %v5543 = vpack.c.b16 %v5523, %v5521
      %v5544 = vpack.c.b16 %v5524, %v5522
      %v5545 = vpack.c.b16 %v5527, %v5525
      %v5546 = vpack.c.b16 %v5528, %v5526
      %v5547 = vpack.c.b16 %v5531, %v5529
      %v5548 = vpack.c.b16 %v5532, %v5530
      %5565 = vmatpush.bf16.msra.mxu0 %v5547
      %5566 = vmatpush.bf16.msra.mxu0 %v5545
      %5567 = vmatpush.bf16.msra.mxu0 %v5543
      %5568 = vmatpush.bf16.msra.mxu0 %v5541
      %5569 = vmatpush.bf16.msra.mxu0 %v5539
      %5570 = vmatpush.bf16.msra.mxu0 %v5537
      %5571 = vmatpush.bf16.msra.mxu0 %v5535
      %5572 = vmatpush.bf16.msra.mxu0 %v5533
      %5573 = vmatmul.bf16.gmra.mxu0 %v4975
      %v5574 = vpop.f32.mrf.mxu0
      %v5575 = vadd.f32 0.0, %v5574
      %v5576 = vpop.f32.mrf.mxu0
      %v5577 = vadd.f32 0.0, %v5576
      %5578 = vmatmul.bf16.gmra.mxu0 %v4976
      %v5579 = vpop.f32.mrf.mxu0
      %v5580 = vadd.f32 0.0, %v5579
      %v5581 = vpop.f32.mrf.mxu0
      %v5582 = vadd.f32 0.0, %v5581
      %5583 = vmatmul.bf16.gmra.mxu0 %v4977
      %v5584 = vpop.f32.mrf.mxu0
      %v5585 = vadd.f32 0.0, %v5584
      %v5586 = vpop.f32.mrf.mxu0
      %v5587 = vadd.f32 0.0, %v5586
      %5588 = vmatmul.bf16.gmra.mxu0 %v4978
      %v5589 = vpop.f32.mrf.mxu0
      %v5590 = vadd.f32 0.0, %v5589
      %v5591 = vpop.f32.mrf.mxu0
      %v5592 = vadd.f32 0.0, %v5591
      %5593 = vmatmul.bf16.gmra.mxu0 %v4979
      %v5594 = vpop.f32.mrf.mxu0
      %v5595 = vadd.f32 0.0, %v5594
      %v5596 = vpop.f32.mrf.mxu0
      %v5597 = vadd.f32 0.0, %v5596
      %5598 = vmatmul.bf16.gmra.mxu0 %v4980
      %v5599 = vpop.f32.mrf.mxu0
      %v5600 = vadd.f32 0.0, %v5599
      %v5601 = vpop.f32.mrf.mxu0
      %v5602 = vadd.f32 0.0, %v5601
      %5603 = vmatmul.bf16.gmra.mxu0 %v4981
      %v5604 = vpop.f32.mrf.mxu0
      %v5605 = vadd.f32 0.0, %v5604
      %v5606 = vpop.f32.mrf.mxu0
      %v5607 = vadd.f32 0.0, %v5606
      %5608 = vmatmul.bf16.gmra.mxu0 %v4982
      %v5609 = vpop.f32.mrf.mxu0
      %v5610 = vadd.f32 0.0, %v5609
      %v5611 = vpop.f32.mrf.mxu0
      %v5612 = vadd.f32 0.0, %v5611
      %5613 = vmatmul.bf16.gmra.mxu0 %v4983
      %v5614 = vpop.f32.mrf.mxu0
      %v5615 = vadd.f32 0.0, %v5614
      %v5616 = vpop.f32.mrf.mxu0
      %v5617 = vadd.f32 0.0, %v5616
      %5618 = vmatmul.bf16.gmra.mxu0 %v4984
      %v5619 = vpop.f32.mrf.mxu0
      %v5620 = vadd.f32 0.0, %v5619
      %v5621 = vpop.f32.mrf.mxu0
      %v5622 = vadd.f32 0.0, %v5621
      %5623 = vmatmul.bf16.gmra.mxu0 %v4985
      %v5624 = vpop.f32.mrf.mxu0
      %v5625 = vadd.f32 0.0, %v5624
      %v5626 = vpop.f32.mrf.mxu0
      %v5627 = vadd.f32 0.0, %v5626
      %5628 = vmatmul.bf16.gmra.mxu0 %v4986
      %v5629 = vpop.f32.mrf.mxu0
      %v5630 = vadd.f32 0.0, %v5629
      %v5631 = vpop.f32.mrf.mxu0
      %v5632 = vadd.f32 0.0, %v5631
      %5633 = vmatmul.bf16.gmra.mxu0 %v4987
      %v5634 = vpop.f32.mrf.mxu0
      %v5635 = vadd.f32 0.0, %v5634
      %v5636 = vpop.f32.mrf.mxu0
      %v5637 = vadd.f32 0.0, %v5636
      %5638 = vmatmul.bf16.gmra.mxu0 %v4988
      %v5639 = vpop.f32.mrf.mxu0
      %v5640 = vadd.f32 0.0, %v5639
      %v5641 = vpop.f32.mrf.mxu0
      %v5642 = vadd.f32 0.0, %v5641
      %5643 = vmatmul.bf16.gmra.mxu0 %v4989
      %v5644 = vpop.f32.mrf.mxu0
      %v5645 = vadd.f32 0.0, %v5644
      %v5646 = vpop.f32.mrf.mxu0
      %v5647 = vadd.f32 0.0, %v5646
      %5648 = vmatmul.bf16.gmra.mxu0 %v5483
      %v5649 = vpop.f32.mrf.mxu0
      %v5650 = vadd.f32 0.0, %v5649
      %v5651 = vpop.f32.mrf.mxu0
      %v5652 = vadd.f32 0.0, %v5651
      %5653 = vdwg.mxu0
      %5654 = vmatpush.bf16.msra.mxu0 %v5548
      %5655 = vmatpush.bf16.msra.mxu0 %v5546
      %5656 = vmatpush.bf16.msra.mxu0 %v5544
      %5657 = vmatpush.bf16.msra.mxu0 %v5542
      %5658 = vmatpush.bf16.msra.mxu0 %v5540
      %5659 = vmatpush.bf16.msra.mxu0 %v5538
      %5660 = vmatpush.bf16.msra.mxu0 %v5536
      %5661 = vmatpush.bf16.msra.mxu0 %v5534
      %5662 = vmatmul.bf16.gmra.mxu0 %v4975
      %v5663 = vpop.f32.mrf.mxu0
      %v5664 = vadd.f32 0.0, %v5663
      %v5665 = vpop.f32.mrf.mxu0
      %v5666 = vadd.f32 0.0, %v5665
      %5667 = vmatmul.bf16.gmra.mxu0 %v4976
      %v5668 = vpop.f32.mrf.mxu0
      %v5669 = vadd.f32 0.0, %v5668
      %v5670 = vpop.f32.mrf.mxu0
      %v5671 = vadd.f32 0.0, %v5670
      %5672 = vmatmul.bf16.gmra.mxu0 %v4977
      %v5673 = vpop.f32.mrf.mxu0
      %v5674 = vadd.f32 0.0, %v5673
      %v5675 = vpop.f32.mrf.mxu0
      %v5676 = vadd.f32 0.0, %v5675
      %5677 = vmatmul.bf16.gmra.mxu0 %v4978
      %v5678 = vpop.f32.mrf.mxu0
      %v5679 = vadd.f32 0.0, %v5678
      %v5680 = vpop.f32.mrf.mxu0
      %v5681 = vadd.f32 0.0, %v5680
      %5682 = vmatmul.bf16.gmra.mxu0 %v4979
      %v5683 = vpop.f32.mrf.mxu0
      %v5684 = vadd.f32 0.0, %v5683
      %v5685 = vpop.f32.mrf.mxu0
      %v5686 = vadd.f32 0.0, %v5685
      %5687 = vmatmul.bf16.gmra.mxu0 %v4980
      %v5688 = vpop.f32.mrf.mxu0
      %v5689 = vadd.f32 0.0, %v5688
      %v5690 = vpop.f32.mrf.mxu0
      %v5691 = vadd.f32 0.0, %v5690
      %5692 = vmatmul.bf16.gmra.mxu0 %v4981
      %v5693 = vpop.f32.mrf.mxu0
      %v5694 = vadd.f32 0.0, %v5693
      %v5695 = vpop.f32.mrf.mxu0
      %v5696 = vadd.f32 0.0, %v5695
      %5697 = vmatmul.bf16.gmra.mxu0 %v4982
      %v5698 = vpop.f32.mrf.mxu0
      %v5699 = vadd.f32 0.0, %v5698
      %v5700 = vpop.f32.mrf.mxu0
      %v5701 = vadd.f32 0.0, %v5700
      %5702 = vmatmul.bf16.gmra.mxu0 %v4983
      %v5703 = vpop.f32.mrf.mxu0
      %v5704 = vadd.f32 0.0, %v5703
      %v5705 = vpop.f32.mrf.mxu0
      %v5706 = vadd.f32 0.0, %v5705
      %5707 = vmatmul.bf16.gmra.mxu0 %v4984
      %v5708 = vpop.f32.mrf.mxu0
      %v5709 = vadd.f32 0.0, %v5708
      %v5710 = vpop.f32.mrf.mxu0
      %v5711 = vadd.f32 0.0, %v5710
      %5712 = vmatmul.bf16.gmra.mxu0 %v4985
      %v5713 = vpop.f32.mrf.mxu0
      %v5714 = vadd.f32 0.0, %v5713
      %v5715 = vpop.f32.mrf.mxu0
      %v5716 = vadd.f32 0.0, %v5715
      %5717 = vmatmul.bf16.gmra.mxu0 %v4986
      %v5718 = vpop.f32.mrf.mxu0
      %v5719 = vadd.f32 0.0, %v5718
      %v5720 = vpop.f32.mrf.mxu0
      %v5721 = vadd.f32 0.0, %v5720
      %5722 = vmatmul.bf16.gmra.mxu0 %v4987
      %v5723 = vpop.f32.mrf.mxu0
      %v5724 = vadd.f32 0.0, %v5723
      %v5725 = vpop.f32.mrf.mxu0
      %v5726 = vadd.f32 0.0, %v5725
      %5727 = vmatmul.bf16.gmra.mxu0 %v4988
      %v5728 = vpop.f32.mrf.mxu0
      %v5729 = vadd.f32 0.0, %v5728
      %v5730 = vpop.f32.mrf.mxu0
      %v5731 = vadd.f32 0.0, %v5730
      %5732 = vmatmul.bf16.gmra.mxu0 %v4989
      %v5733 = vpop.f32.mrf.mxu0
      %v5734 = vadd.f32 0.0, %v5733
      %v5735 = vpop.f32.mrf.mxu0
      %v5736 = vadd.f32 0.0, %v5735
      %5737 = vmatmul.bf16.gmra.mxu0 %v5483
      %v5738 = vpop.f32.mrf.mxu0
      %v5739 = vadd.f32 0.0, %v5738
      %v5740 = vpop.f32.mrf.mxu0
      %v5741 = vadd.f32 0.0, %v5740
      %5742 = vdwg.mxu0
      %v5743 = vadd.f32 %v5392, %v5575
      %v5744 = vadd.f32 %v5393, %v5664
      %v5745 = vadd.f32 %v5394, %v5577
      %v5746 = vadd.f32 %v5395, %v5666
      %v5747 = vadd.f32 %v5396, %v5580
      %v5748 = vadd.f32 %v5397, %v5669
      %v5749 = vadd.f32 %v5398, %v5582
      %v5750 = vadd.f32 %v5399, %v5671
      %v5751 = vadd.f32 %v5400, %v5585
      %v5752 = vadd.f32 %v5401, %v5674
      %v5753 = vadd.f32 %v5402, %v5587
      %v5754 = vadd.f32 %v5403, %v5676
      %v5755 = vadd.f32 %v5404, %v5590
      %v5756 = vadd.f32 %v5405, %v5679
      %v5757 = vadd.f32 %v5406, %v5592
      %v5758 = vadd.f32 %v5407, %v5681
      %v5759 = vadd.f32 %v5408, %v5595
      %v5760 = vadd.f32 %v5409, %v5684
      %v5761 = vadd.f32 %v5410, %v5597
      %v5762 = vadd.f32 %v5411, %v5686
      %v5763 = vadd.f32 %v5412, %v5600
      %v5764 = vadd.f32 %v5413, %v5689
      %v5765 = vadd.f32 %v5414, %v5602
      %v5766 = vadd.f32 %v5415, %v5691
      %v5767 = vadd.f32 %v5416, %v5605
      %v5768 = vadd.f32 %v5417, %v5694
      %v5769 = vadd.f32 %v5418, %v5607
      %v5770 = vadd.f32 %v5419, %v5696
      %v5771 = vadd.f32 %v5420, %v5610
      %v5772 = vadd.f32 %v5421, %v5699
      %v5773 = vadd.f32 %v5422, %v5612
      %v5774 = vadd.f32 %v5423, %v5701
      %v5775 = vadd.f32 %v5424, %v5615
      %v5776 = vadd.f32 %v5425, %v5704
      %v5777 = vadd.f32 %v5426, %v5617
      %v5778 = vadd.f32 %v5427, %v5706
      %v5779 = vadd.f32 %v5428, %v5620
      %v5780 = vadd.f32 %v5429, %v5709
      %v5781 = vadd.f32 %v5430, %v5622
      %v5782 = vadd.f32 %v5431, %v5711
      %v5783 = vadd.f32 %v5432, %v5625
      %v5784 = vadd.f32 %v5433, %v5714
      %v5785 = vadd.f32 %v5434, %v5627
      %v5786 = vadd.f32 %v5435, %v5716
      %v5787 = vadd.f32 %v5436, %v5630
      %v5788 = vadd.f32 %v5437, %v5719
      %v5789 = vadd.f32 %v5438, %v5632
      %v5790 = vadd.f32 %v5439, %v5721
      %v5791 = vadd.f32 %v5440, %v5635
      %v5792 = vadd.f32 %v5441, %v5724
      %v5793 = vadd.f32 %v5442, %v5637
      %v5794 = vadd.f32 %v5443, %v5726
      %v5795 = vadd.f32 %v5444, %v5640
      %v5796 = vadd.f32 %v5445, %v5729
      %v5797 = vadd.f32 %v5446, %v5642
      %v5798 = vadd.f32 %v5447, %v5731
      %v5799 = vadd.f32 %v5448, %v5645
      %v5800 = vadd.f32 %v5449, %v5734
      %v5801 = vadd.f32 %v5450, %v5647
      %v5802 = vadd.f32 %v5451, %v5736
      %v5803 = vadd.f32 %v5452, %v5650
      %v5804 = vadd.f32 %v5453, %v5739
      %v5805 = vadd.f32 %v5454, %v5652
      %v5806 = vadd.f32 %v5455, %v5741
      %5807 = vst [vmem:[#allocation3] sm:$0xff] %v5743
      %5808 = vst [vmem:[#allocation3 + $0x8] sm:$0xff] %v5744
      %5809 = vst [vmem:[#allocation3 + $0x10] sm:$0xff] %v5745
      %5810 = vst [vmem:[#allocation3 + $0x18] sm:$0xff] %v5746
      %5811 = vst [vmem:[#allocation3 + $0x20] sm:$0xff] %v5747
      %5812 = vst [vmem:[#allocation3 + $0x28] sm:$0xff] %v5748
      %5813 = vst [vmem:[#allocation3 + $0x30] sm:$0xff] %v5749
      %5814 = vst [vmem:[#allocation3 + $0x38] sm:$0xff] %v5750
      %5815 = vst [vmem:[#allocation3 + $0x40] sm:$0xff] %v5751
      %5816 = vst [vmem:[#allocation3 + $0x48] sm:$0xff] %v5752
      %5817 = vst [vmem:[#allocation3 + $0x50] sm:$0xff] %v5753
      %5818 = vst [vmem:[#allocation3 + $0x58] sm:$0xff] %v5754
      %5819 = vst [vmem:[#allocation3 + $0x60] sm:$0xff] %v5755
      %5820 = vst [vmem:[#allocation3 + $0x68] sm:$0xff] %v5756
      %5821 = vst [vmem:[#allocation3 + $0x70] sm:$0xff] %v5757
      %5822 = vst [vmem:[#allocation3 + $0x78] sm:$0xff] %v5758
      %5823 = vst [vmem:[#allocation3 + $0x80] sm:$0xff] %v5759
      %5824 = vst [vmem:[#allocation3 + $0x88] sm:$0xff] %v5760
      %5825 = vst [vmem:[#allocation3 + $0x90] sm:$0xff] %v5761
      %5826 = vst [vmem:[#allocation3 + $0x98] sm:$0xff] %v5762
      %5827 = vst [vmem:[#allocation3 + $0xa0] sm:$0xff] %v5763
      %5828 = vst [vmem:[#allocation3 + $0xa8] sm:$0xff] %v5764
      %5829 = vst [vmem:[#allocation3 + $0xb0] sm:$0xff] %v5765
      %5830 = vst [vmem:[#allocation3 + $0xb8] sm:$0xff] %v5766
      %5831 = vst [vmem:[#allocation3 + $0xc0] sm:$0xff] %v5767
      %5832 = vst [vmem:[#allocation3 + $0xc8] sm:$0xff] %v5768
      %5833 = vst [vmem:[#allocation3 + $0xd0] sm:$0xff] %v5769
      %5834 = vst [vmem:[#allocation3 + $0xd8] sm:$0xff] %v5770
      %5835 = vst [vmem:[#allocation3 + $0xe0] sm:$0xff] %v5771
      %5836 = vst [vmem:[#allocation3 + $0xe8] sm:$0xff] %v5772
      %5837 = vst [vmem:[#allocation3 + $0xf0] sm:$0xff] %v5773
      %5838 = vst [vmem:[#allocation3 + $0xf8] sm:$0xff] %v5774
      %5839 = vst [vmem:[#allocation3 + $0x100] sm:$0xff] %v5775
      %5840 = vst [vmem:[#allocation3 + $0x108] sm:$0xff] %v5776
      %5841 = vst [vmem:[#allocation3 + $0x110] sm:$0xff] %v5777
      %5842 = vst [vmem:[#allocation3 + $0x118] sm:$0xff] %v5778
      %5843 = vst [vmem:[#allocation3 + $0x120] sm:$0xff] %v5779
      %5844 = vst [vmem:[#allocation3 + $0x128] sm:$0xff] %v5780
      %5845 = vst [vmem:[#allocation3 + $0x130] sm:$0xff] %v5781
      %5846 = vst [vmem:[#allocation3 + $0x138] sm:$0xff] %v5782
      %5847 = vst [vmem:[#allocation3 + $0x140] sm:$0xff] %v5783
      %5848 = vst [vmem:[#allocation3 + $0x148] sm:$0xff] %v5784
      %5849 = vst [vmem:[#allocation3 + $0x150] sm:$0xff] %v5785
      %5850 = vst [vmem:[#allocation3 + $0x158] sm:$0xff] %v5786
      %5851 = vst [vmem:[#allocation3 + $0x160] sm:$0xff] %v5787
      %5852 = vst [vmem:[#allocation3 + $0x168] sm:$0xff] %v5788
      %5853 = vst [vmem:[#allocation3 + $0x170] sm:$0xff] %v5789
      %5854 = vst [vmem:[#allocation3 + $0x178] sm:$0xff] %v5790
      %5855 = vst [vmem:[#allocation3 + $0x180] sm:$0xff] %v5791
      %5856 = vst [vmem:[#allocation3 + $0x188] sm:$0xff] %v5792
      %5857 = vst [vmem:[#allocation3 + $0x190] sm:$0xff] %v5793
      %5858 = vst [vmem:[#allocation3 + $0x198] sm:$0xff] %v5794
      %5859 = vst [vmem:[#allocation3 + $0x1a0] sm:$0xff] %v5795
      %5860 = vst [vmem:[#allocation3 + $0x1a8] sm:$0xff] %v5796
      %5861 = vst [vmem:[#allocation3 + $0x1b0] sm:$0xff] %v5797
      %5862 = vst [vmem:[#allocation3 + $0x1b8] sm:$0xff] %v5798
      %5863 = vst [vmem:[#allocation3 + $0x1c0] sm:$0xff] %v5799
      %5864 = vst [vmem:[#allocation3 + $0x1c8] sm:$0xff] %v5800
      %5865 = vst [vmem:[#allocation3 + $0x1d0] sm:$0xff] %v5801
      %5866 = vst [vmem:[#allocation3 + $0x1d8] sm:$0xff] %v5802
      %5867 = vst [vmem:[#allocation3 + $0x1e0] sm:$0xff] %v5803
      %5868 = vst [vmem:[#allocation3 + $0x1e8] sm:$0xff] %v5804
      %5869 = vst [vmem:[#allocation3 + $0x1f0] sm:$0xff] %v5805
      %5870 = vst [vmem:[#allocation3 + $0x1f8] sm:$0xff] %v5806
      %v5871 = vld [vmem:[#allocation3] sm:$0xff]
      %v5872 = vld [vmem:[#allocation3 + $0x8] sm:$0xff]
      %v5873 = vld [vmem:[#allocation3 + $0x10] sm:$0xff]
      %v5874 = vld [vmem:[#allocation3 + $0x18] sm:$0xff]
      %v5875 = vld [vmem:[#allocation3 + $0x20] sm:$0xff]
      %v5876 = vld [vmem:[#allocation3 + $0x28] sm:$0xff]
      %v5877 = vld [vmem:[#allocation3 + $0x30] sm:$0xff]
      %v5878 = vld [vmem:[#allocation3 + $0x38] sm:$0xff]
      %v5879 = vld [vmem:[#allocation3 + $0x40] sm:$0xff]
      %v5880 = vld [vmem:[#allocation3 + $0x48] sm:$0xff]
      %v5881 = vld [vmem:[#allocation3 + $0x50] sm:$0xff]
      %v5882 = vld [vmem:[#allocation3 + $0x58] sm:$0xff]
      %v5883 = vld [vmem:[#allocation3 + $0x60] sm:$0xff]
      %v5884 = vld [vmem:[#allocation3 + $0x68] sm:$0xff]
      %v5885 = vld [vmem:[#allocation3 + $0x70] sm:$0xff]
      %v5886 = vld [vmem:[#allocation3 + $0x78] sm:$0xff]
      %v5887 = vld [vmem:[#allocation3 + $0x80] sm:$0xff]
      %v5888 = vld [vmem:[#allocation3 + $0x88] sm:$0xff]
      %v5889 = vld [vmem:[#allocation3 + $0x90] sm:$0xff]
      %v5890 = vld [vmem:[#allocation3 + $0x98] sm:$0xff]
      %v5891 = vld [vmem:[#allocation3 + $0xa0] sm:$0xff]
      %v5892 = vld [vmem:[#allocation3 + $0xa8] sm:$0xff]
      %v5893 = vld [vmem:[#allocation3 + $0xb0] sm:$0xff]
      %v5894 = vld [vmem:[#allocation3 + $0xb8] sm:$0xff]
      %v5895 = vld [vmem:[#allocation3 + $0xc0] sm:$0xff]
      %v5896 = vld [vmem:[#allocation3 + $0xc8] sm:$0xff]
      %v5897 = vld [vmem:[#allocation3 + $0xd0] sm:$0xff]
      %v5898 = vld [vmem:[#allocation3 + $0xd8] sm:$0xff]
      %v5899 = vld [vmem:[#allocation3 + $0xe0] sm:$0xff]
      %v5900 = vld [vmem:[#allocation3 + $0xe8] sm:$0xff]
      %v5901 = vld [vmem:[#allocation3 + $0xf0] sm:$0xff]
      %v5902 = vld [vmem:[#allocation3 + $0xf8] sm:$0xff]
      %v5903 = vld [vmem:[#allocation3 + $0x100] sm:$0xff]
      %v5904 = vld [vmem:[#allocation3 + $0x108] sm:$0xff]
      %v5905 = vld [vmem:[#allocation3 + $0x110] sm:$0xff]
      %v5906 = vld [vmem:[#allocation3 + $0x118] sm:$0xff]
      %v5907 = vld [vmem:[#allocation3 + $0x120] sm:$0xff]
      %v5908 = vld [vmem:[#allocation3 + $0x128] sm:$0xff]
      %v5909 = vld [vmem:[#allocation3 + $0x130] sm:$0xff]
      %v5910 = vld [vmem:[#allocation3 + $0x138] sm:$0xff]
      %v5911 = vld [vmem:[#allocation3 + $0x140] sm:$0xff]
      %v5912 = vld [vmem:[#allocation3 + $0x148] sm:$0xff]
      %v5913 = vld [vmem:[#allocation3 + $0x150] sm:$0xff]
      %v5914 = vld [vmem:[#allocation3 + $0x158] sm:$0xff]
      %v5915 = vld [vmem:[#allocation3 + $0x160] sm:$0xff]
      %v5916 = vld [vmem:[#allocation3 + $0x168] sm:$0xff]
      %v5917 = vld [vmem:[#allocation3 + $0x170] sm:$0xff]
      %v5918 = vld [vmem:[#allocation3 + $0x178] sm:$0xff]
      %v5919 = vld [vmem:[#allocation3 + $0x180] sm:$0xff]
      %v5920 = vld [vmem:[#allocation3 + $0x188] sm:$0xff]
      %v5921 = vld [vmem:[#allocation3 + $0x190] sm:$0xff]
      %v5922 = vld [vmem:[#allocation3 + $0x198] sm:$0xff]
      %v5923 = vld [vmem:[#allocation3 + $0x1a0] sm:$0xff]
      %v5924 = vld [vmem:[#allocation3 + $0x1a8] sm:$0xff]
      %v5925 = vld [vmem:[#allocation3 + $0x1b0] sm:$0xff]
      %v5926 = vld [vmem:[#allocation3 + $0x1b8] sm:$0xff]
      %v5927 = vld [vmem:[#allocation3 + $0x1c0] sm:$0xff]
      %v5928 = vld [vmem:[#allocation3 + $0x1c8] sm:$0xff]
      %v5929 = vld [vmem:[#allocation3 + $0x1d0] sm:$0xff]
      %v5930 = vld [vmem:[#allocation3 + $0x1d8] sm:$0xff]
      %v5931 = vld [vmem:[#allocation3 + $0x1e0] sm:$0xff]
      %v5932 = vld [vmem:[#allocation3 + $0x1e8] sm:$0xff]
      %v5933 = vld [vmem:[#allocation3 + $0x1f0] sm:$0xff]
      %v5934 = vld [vmem:[#allocation3 + $0x1f8] sm:$0xff]
      %v5936 = vrot.slane %v1311, 5
      %v5937 = vrot.slane %v5936, 4
      %v5938 = vrot.slane %v1312, 5
      %v5939 = vsel %vm4812, %v5937, %v5938
      %v5940 = vrot.slane %v5938, 4
      %v5941 = vrot.slane %v1313, 5
      %v5942 = vsel %vm4812, %v5940, %v5941
      %s5943 = scalar_lea.vmem %s3, 1024
      %v5944 = vld [vmem:[%s5943] sm:$0xff]
      %v5945 = vld [vmem:[%s5943 + $0x8] sm:$0xff]
      %v5946 = vld [vmem:[%s5943 + $0x10] sm:$0xff]
      %v5947 = vld [vmem:[%s5943 + $0x18] sm:$0xff]
      %v5948 = vld [vmem:[%s5943 + $0x20] sm:$0xff]
      %v5949 = vld [vmem:[%s5943 + $0x28] sm:$0xff]
      %v5950 = vld [vmem:[%s5943 + $0x30] sm:$0xff]
      %v5951 = vld [vmem:[%s5943 + $0x38] sm:$0xff]
      %v5952 = vld [vmem:[%s5943 + $0x40] sm:$0xff]
      %v5953 = vld [vmem:[%s5943 + $0x48] sm:$0xff]
      %v5954 = vld [vmem:[%s5943 + $0x50] sm:$0xff]
      %v5955 = vld [vmem:[%s5943 + $0x58] sm:$0xff]
      %v5956 = vld [vmem:[%s5943 + $0x60] sm:$0xff]
      %v5957 = vld [vmem:[%s5943 + $0x68] sm:$0xff]
      %v5958 = vld [vmem:[%s5943 + $0x70] sm:$0xff]
      %v5959 = vld [vmem:[%s5943 + $0x78] sm:$0xff]
      %v5960 = vunpack.c.l.b16 %v5939
      %v5961 = vunpack.c.l.b16 %v5942
      %v5962 = vpack.c.b16 %v5961, %v5960
      %v5980 = vunpack.c.l.b16 %v5944
      %v5981 = vunpack.c.h.b16 %v5944
      %v5982 = vunpack.c.l.b16 %v5945
      %v5983 = vunpack.c.h.b16 %v5945
      %v5984 = vunpack.c.l.b16 %v5946
      %v5985 = vunpack.c.h.b16 %v5946
      %v5986 = vunpack.c.l.b16 %v5947
      %v5987 = vunpack.c.h.b16 %v5947
      %v5988 = vunpack.c.l.b16 %v5948
      %v5989 = vunpack.c.h.b16 %v5948
      %v5990 = vunpack.c.l.b16 %v5949
      %v5991 = vunpack.c.h.b16 %v5949
      %v5992 = vunpack.c.l.b16 %v5950
      %v5993 = vunpack.c.h.b16 %v5950
      %v5994 = vunpack.c.l.b16 %v5951
      %v5995 = vunpack.c.h.b16 %v5951
      %v5996 = vunpack.c.l.b16 %v5952
      %v5997 = vunpack.c.h.b16 %v5952
      %v5998 = vunpack.c.l.b16 %v5953
      %v5999 = vunpack.c.h.b16 %v5953
      %v6000 = vunpack.c.l.b16 %v5954
      %v6001 = vunpack.c.h.b16 %v5954
      %v6002 = vunpack.c.l.b16 %v5955
      %v6003 = vunpack.c.h.b16 %v5955
      %v6004 = vunpack.c.l.b16 %v5956
      %v6005 = vunpack.c.h.b16 %v5956
      %v6006 = vunpack.c.l.b16 %v5957
      %v6007 = vunpack.c.h.b16 %v5957
      %v6008 = vunpack.c.l.b16 %v5958
      %v6009 = vunpack.c.h.b16 %v5958
      %v6010 = vunpack.c.l.b16 %v5959
      %v6011 = vunpack.c.h.b16 %v5959
      %v6012 = vpack.c.b16 %v5982, %v5980
      %v6013 = vpack.c.b16 %v5983, %v5981
      %v6014 = vpack.c.b16 %v5986, %v5984
      %v6015 = vpack.c.b16 %v5987, %v5985
      %v6016 = vpack.c.b16 %v5990, %v5988
      %v6017 = vpack.c.b16 %v5991, %v5989
      %v6018 = vpack.c.b16 %v5994, %v5992
      %v6019 = vpack.c.b16 %v5995, %v5993
      %v6020 = vpack.c.b16 %v5998, %v5996
      %v6021 = vpack.c.b16 %v5999, %v5997
      %v6022 = vpack.c.b16 %v6002, %v6000
      %v6023 = vpack.c.b16 %v6003, %v6001
      %v6024 = vpack.c.b16 %v6006, %v6004
      %v6025 = vpack.c.b16 %v6007, %v6005
      %v6026 = vpack.c.b16 %v6010, %v6008
      %v6027 = vpack.c.b16 %v6011, %v6009
      %6044 = vmatpush.bf16.msra.mxu0 %v6026
      %6045 = vmatpush.bf16.msra.mxu0 %v6024
      %6046 = vmatpush.bf16.msra.mxu0 %v6022
      %6047 = vmatpush.bf16.msra.mxu0 %v6020
      %6048 = vmatpush.bf16.msra.mxu0 %v6018
      %6049 = vmatpush.bf16.msra.mxu0 %v6016
      %6050 = vmatpush.bf16.msra.mxu0 %v6014
      %6051 = vmatpush.bf16.msra.mxu0 %v6012
      %6052 = vmatmul.bf16.gmra.mxu0 %v4976
      %v6053 = vpop.f32.mrf.mxu0
      %v6054 = vadd.f32 0.0, %v6053
      %v6055 = vpop.f32.mrf.mxu0
      %v6056 = vadd.f32 0.0, %v6055
      %6057 = vmatmul.bf16.gmra.mxu0 %v4977
      %v6058 = vpop.f32.mrf.mxu0
      %v6059 = vadd.f32 0.0, %v6058
      %v6060 = vpop.f32.mrf.mxu0
      %v6061 = vadd.f32 0.0, %v6060
      %6062 = vmatmul.bf16.gmra.mxu0 %v4978
      %v6063 = vpop.f32.mrf.mxu0
      %v6064 = vadd.f32 0.0, %v6063
      %v6065 = vpop.f32.mrf.mxu0
      %v6066 = vadd.f32 0.0, %v6065
      %6067 = vmatmul.bf16.gmra.mxu0 %v4979
      %v6068 = vpop.f32.mrf.mxu0
      %v6069 = vadd.f32 0.0, %v6068
      %v6070 = vpop.f32.mrf.mxu0
      %v6071 = vadd.f32 0.0, %v6070
      %6072 = vmatmul.bf16.gmra.mxu0 %v4980
      %v6073 = vpop.f32.mrf.mxu0
      %v6074 = vadd.f32 0.0, %v6073
      %v6075 = vpop.f32.mrf.mxu0
      %v6076 = vadd.f32 0.0, %v6075
      %6077 = vmatmul.bf16.gmra.mxu0 %v4981
      %v6078 = vpop.f32.mrf.mxu0
      %v6079 = vadd.f32 0.0, %v6078
      %v6080 = vpop.f32.mrf.mxu0
      %v6081 = vadd.f32 0.0, %v6080
      %6082 = vmatmul.bf16.gmra.mxu0 %v4982
      %v6083 = vpop.f32.mrf.mxu0
      %v6084 = vadd.f32 0.0, %v6083
      %v6085 = vpop.f32.mrf.mxu0
      %v6086 = vadd.f32 0.0, %v6085
      %6087 = vmatmul.bf16.gmra.mxu0 %v4983
      %v6088 = vpop.f32.mrf.mxu0
      %v6089 = vadd.f32 0.0, %v6088
      %v6090 = vpop.f32.mrf.mxu0
      %v6091 = vadd.f32 0.0, %v6090
      %6092 = vmatmul.bf16.gmra.mxu0 %v4984
      %v6093 = vpop.f32.mrf.mxu0
      %v6094 = vadd.f32 0.0, %v6093
      %v6095 = vpop.f32.mrf.mxu0
      %v6096 = vadd.f32 0.0, %v6095
      %6097 = vmatmul.bf16.gmra.mxu0 %v4985
      %v6098 = vpop.f32.mrf.mxu0
      %v6099 = vadd.f32 0.0, %v6098
      %v6100 = vpop.f32.mrf.mxu0
      %v6101 = vadd.f32 0.0, %v6100
      %6102 = vmatmul.bf16.gmra.mxu0 %v4986
      %v6103 = vpop.f32.mrf.mxu0
      %v6104 = vadd.f32 0.0, %v6103
      %v6105 = vpop.f32.mrf.mxu0
      %v6106 = vadd.f32 0.0, %v6105
      %6107 = vmatmul.bf16.gmra.mxu0 %v4987
      %v6108 = vpop.f32.mrf.mxu0
      %v6109 = vadd.f32 0.0, %v6108
      %v6110 = vpop.f32.mrf.mxu0
      %v6111 = vadd.f32 0.0, %v6110
      %6112 = vmatmul.bf16.gmra.mxu0 %v4988
      %v6113 = vpop.f32.mrf.mxu0
      %v6114 = vadd.f32 0.0, %v6113
      %v6115 = vpop.f32.mrf.mxu0
      %v6116 = vadd.f32 0.0, %v6115
      %6117 = vmatmul.bf16.gmra.mxu0 %v4989
      %v6118 = vpop.f32.mrf.mxu0
      %v6119 = vadd.f32 0.0, %v6118
      %v6120 = vpop.f32.mrf.mxu0
      %v6121 = vadd.f32 0.0, %v6120
      %6122 = vmatmul.bf16.gmra.mxu0 %v5483
      %v6123 = vpop.f32.mrf.mxu0
      %v6124 = vadd.f32 0.0, %v6123
      %v6125 = vpop.f32.mrf.mxu0
      %v6126 = vadd.f32 0.0, %v6125
      %6127 = vmatmul.bf16.gmra.mxu0 %v5962
      %v6128 = vpop.f32.mrf.mxu0
      %v6129 = vadd.f32 0.0, %v6128
      %v6130 = vpop.f32.mrf.mxu0
      %v6131 = vadd.f32 0.0, %v6130
      %6132 = vdwg.mxu0
      %6133 = vmatpush.bf16.msra.mxu0 %v6027
      %6134 = vmatpush.bf16.msra.mxu0 %v6025
      %6135 = vmatpush.bf16.msra.mxu0 %v6023
      %6136 = vmatpush.bf16.msra.mxu0 %v6021
      %6137 = vmatpush.bf16.msra.mxu0 %v6019
      %6138 = vmatpush.bf16.msra.mxu0 %v6017
      %6139 = vmatpush.bf16.msra.mxu0 %v6015
      %6140 = vmatpush.bf16.msra.mxu0 %v6013
      %6141 = vmatmul.bf16.gmra.mxu0 %v4976
      %v6142 = vpop.f32.mrf.mxu0
      %v6143 = vadd.f32 0.0, %v6142
      %v6144 = vpop.f32.mrf.mxu0
      %v6145 = vadd.f32 0.0, %v6144
      %6146 = vmatmul.bf16.gmra.mxu0 %v4977
      %v6147 = vpop.f32.mrf.mxu0
      %v6148 = vadd.f32 0.0, %v6147
      %v6149 = vpop.f32.mrf.mxu0
      %v6150 = vadd.f32 0.0, %v6149
      %6151 = vmatmul.bf16.gmra.mxu0 %v4978
      %v6152 = vpop.f32.mrf.mxu0
      %v6153 = vadd.f32 0.0, %v6152
      %v6154 = vpop.f32.mrf.mxu0
      %v6155 = vadd.f32 0.0, %v6154
      %6156 = vmatmul.bf16.gmra.mxu0 %v4979
      %v6157 = vpop.f32.mrf.mxu0
      %v6158 = vadd.f32 0.0, %v6157
      %v6159 = vpop.f32.mrf.mxu0
      %v6160 = vadd.f32 0.0, %v6159
      %6161 = vmatmul.bf16.gmra.mxu0 %v4980
      %v6162 = vpop.f32.mrf.mxu0
      %v6163 = vadd.f32 0.0, %v6162
      %v6164 = vpop.f32.mrf.mxu0
      %v6165 = vadd.f32 0.0, %v6164
      %6166 = vmatmul.bf16.gmra.mxu0 %v4981
      %v6167 = vpop.f32.mrf.mxu0
      %v6168 = vadd.f32 0.0, %v6167
      %v6169 = vpop.f32.mrf.mxu0
      %v6170 = vadd.f32 0.0, %v6169
      %6171 = vmatmul.bf16.gmra.mxu0 %v4982
      %v6172 = vpop.f32.mrf.mxu0
      %v6173 = vadd.f32 0.0, %v6172
      %v6174 = vpop.f32.mrf.mxu0
      %v6175 = vadd.f32 0.0, %v6174
      %6176 = vmatmul.bf16.gmra.mxu0 %v4983
      %v6177 = vpop.f32.mrf.mxu0
      %v6178 = vadd.f32 0.0, %v6177
      %v6179 = vpop.f32.mrf.mxu0
      %v6180 = vadd.f32 0.0, %v6179
      %6181 = vmatmul.bf16.gmra.mxu0 %v4984
      %v6182 = vpop.f32.mrf.mxu0
      %v6183 = vadd.f32 0.0, %v6182
      %v6184 = vpop.f32.mrf.mxu0
      %v6185 = vadd.f32 0.0, %v6184
      %6186 = vmatmul.bf16.gmra.mxu0 %v4985
      %v6187 = vpop.f32.mrf.mxu0
      %v6188 = vadd.f32 0.0, %v6187
      %v6189 = vpop.f32.mrf.mxu0
      %v6190 = vadd.f32 0.0, %v6189
      %6191 = vmatmul.bf16.gmra.mxu0 %v4986
      %v6192 = vpop.f32.mrf.mxu0
      %v6193 = vadd.f32 0.0, %v6192
      %v6194 = vpop.f32.mrf.mxu0
      %v6195 = vadd.f32 0.0, %v6194
      %6196 = vmatmul.bf16.gmra.mxu0 %v4987
      %v6197 = vpop.f32.mrf.mxu0
      %v6198 = vadd.f32 0.0, %v6197
      %v6199 = vpop.f32.mrf.mxu0
      %v6200 = vadd.f32 0.0, %v6199
      %6201 = vmatmul.bf16.gmra.mxu0 %v4988
      %v6202 = vpop.f32.mrf.mxu0
      %v6203 = vadd.f32 0.0, %v6202
      %v6204 = vpop.f32.mrf.mxu0
      %v6205 = vadd.f32 0.0, %v6204
      %6206 = vmatmul.bf16.gmra.mxu0 %v4989
      %v6207 = vpop.f32.mrf.mxu0
      %v6208 = vadd.f32 0.0, %v6207
      %v6209 = vpop.f32.mrf.mxu0
      %v6210 = vadd.f32 0.0, %v6209
      %6211 = vmatmul.bf16.gmra.mxu0 %v5483
      %v6212 = vpop.f32.mrf.mxu0
      %v6213 = vadd.f32 0.0, %v6212
      %v6214 = vpop.f32.mrf.mxu0
      %v6215 = vadd.f32 0.0, %v6214
      %6216 = vmatmul.bf16.gmra.mxu0 %v5962
      %v6217 = vpop.f32.mrf.mxu0
      %v6218 = vadd.f32 0.0, %v6217
      %v6219 = vpop.f32.mrf.mxu0
      %v6220 = vadd.f32 0.0, %v6219
      %6221 = vdwg.mxu0
      %v6222 = vadd.f32 %v5871, %v6054
      %v6223 = vadd.f32 %v5872, %v6143
      %v6224 = vadd.f32 %v5873, %v6056
      %v6225 = vadd.f32 %v5874, %v6145
      %v6226 = vadd.f32 %v5875, %v6059
      %v6227 = vadd.f32 %v5876, %v6148
      %v6228 = vadd.f32 %v5877, %v6061
      %v6229 = vadd.f32 %v5878, %v6150
      %v6230 = vadd.f32 %v5879, %v6064
      %v6231 = vadd.f32 %v5880, %v6153
      %v6232 = vadd.f32 %v5881, %v6066
      %v6233 = vadd.f32 %v5882, %v6155
      %v6234 = vadd.f32 %v5883, %v6069
      %v6235 = vadd.f32 %v5884, %v6158
      %v6236 = vadd.f32 %v5885, %v6071
      %v6237 = vadd.f32 %v5886, %v6160
      %v6238 = vadd.f32 %v5887, %v6074
      %v6239 = vadd.f32 %v5888, %v6163
      %v6240 = vadd.f32 %v5889, %v6076
      %v6241 = vadd.f32 %v5890, %v6165
      %v6242 = vadd.f32 %v5891, %v6079
      %v6243 = vadd.f32 %v5892, %v6168
      %v6244 = vadd.f32 %v5893, %v6081
      %v6245 = vadd.f32 %v5894, %v6170
      %v6246 = vadd.f32 %v5895, %v6084
      %v6247 = vadd.f32 %v5896, %v6173
      %v6248 = vadd.f32 %v5897, %v6086
      %v6249 = vadd.f32 %v5898, %v6175
      %v6250 = vadd.f32 %v5899, %v6089
      %v6251 = vadd.f32 %v5900, %v6178
      %v6252 = vadd.f32 %v5901, %v6091
      %v6253 = vadd.f32 %v5902, %v6180
      %v6254 = vadd.f32 %v5903, %v6094
      %v6255 = vadd.f32 %v5904, %v6183
      %v6256 = vadd.f32 %v5905, %v6096
      %v6257 = vadd.f32 %v5906, %v6185
      %v6258 = vadd.f32 %v5907, %v6099
      %v6259 = vadd.f32 %v5908, %v6188
      %v6260 = vadd.f32 %v5909, %v6101
      %v6261 = vadd.f32 %v5910, %v6190
      %v6262 = vadd.f32 %v5911, %v6104
      %v6263 = vadd.f32 %v5912, %v6193
      %v6264 = vadd.f32 %v5913, %v6106
      %v6265 = vadd.f32 %v5914, %v6195
      %v6266 = vadd.f32 %v5915, %v6109
      %v6267 = vadd.f32 %v5916, %v6198
      %v6268 = vadd.f32 %v5917, %v6111
      %v6269 = vadd.f32 %v5918, %v6200
      %v6270 = vadd.f32 %v5919, %v6114
      %v6271 = vadd.f32 %v5920, %v6203
      %v6272 = vadd.f32 %v5921, %v6116
      %v6273 = vadd.f32 %v5922, %v6205
      %v6274 = vadd.f32 %v5923, %v6119
      %v6275 = vadd.f32 %v5924, %v6208
      %v6276 = vadd.f32 %v5925, %v6121
      %v6277 = vadd.f32 %v5926, %v6210
      %v6278 = vadd.f32 %v5927, %v6124
      %v6279 = vadd.f32 %v5928, %v6213
      %v6280 = vadd.f32 %v5929, %v6126
      %v6281 = vadd.f32 %v5930, %v6215
      %v6282 = vadd.f32 %v5931, %v6129
      %v6283 = vadd.f32 %v5932, %v6218
      %v6284 = vadd.f32 %v5933, %v6131
      %v6285 = vadd.f32 %v5934, %v6220
      %6286 = vst [vmem:[#allocation3] sm:$0xff] %v6222
      %6287 = vst [vmem:[#allocation3 + $0x8] sm:$0xff] %v6223
      %6288 = vst [vmem:[#allocation3 + $0x10] sm:$0xff] %v6224
      %6289 = vst [vmem:[#allocation3 + $0x18] sm:$0xff] %v6225
      %6290 = vst [vmem:[#allocation3 + $0x20] sm:$0xff] %v6226
      %6291 = vst [vmem:[#allocation3 + $0x28] sm:$0xff] %v6227
      %6292 = vst [vmem:[#allocation3 + $0x30] sm:$0xff] %v6228
      %6293 = vst [vmem:[#allocation3 + $0x38] sm:$0xff] %v6229
      %6294 = vst [vmem:[#allocation3 + $0x40] sm:$0xff] %v6230
      %6295 = vst [vmem:[#allocation3 + $0x48] sm:$0xff] %v6231
      %6296 = vst [vmem:[#allocation3 + $0x50] sm:$0xff] %v6232
      %6297 = vst [vmem:[#allocation3 + $0x58] sm:$0xff] %v6233
      %6298 = vst [vmem:[#allocation3 + $0x60] sm:$0xff] %v6234
      %6299 = vst [vmem:[#allocation3 + $0x68] sm:$0xff] %v6235
      %6300 = vst [vmem:[#allocation3 + $0x70] sm:$0xff] %v6236
      %6301 = vst [vmem:[#allocation3 + $0x78] sm:$0xff] %v6237
      %6302 = vst [vmem:[#allocation3 + $0x80] sm:$0xff] %v6238
      %6303 = vst [vmem:[#allocation3 + $0x88] sm:$0xff] %v6239
      %6304 = vst [vmem:[#allocation3 + $0x90] sm:$0xff] %v6240
      %6305 = vst [vmem:[#allocation3 + $0x98] sm:$0xff] %v6241
      %6306 = vst [vmem:[#allocation3 + $0xa0] sm:$0xff] %v6242
      %6307 = vst [vmem:[#allocation3 + $0xa8] sm:$0xff] %v6243
      %6308 = vst [vmem:[#allocation3 + $0xb0] sm:$0xff] %v6244
      %6309 = vst [vmem:[#allocation3 + $0xb8] sm:$0xff] %v6245
      %6310 = vst [vmem:[#allocation3 + $0xc0] sm:$0xff] %v6246
      %6311 = vst [vmem:[#allocation3 + $0xc8] sm:$0xff] %v6247
      %6312 = vst [vmem:[#allocation3 + $0xd0] sm:$0xff] %v6248
      %6313 = vst [vmem:[#allocation3 + $0xd8] sm:$0xff] %v6249
      %6314 = vst [vmem:[#allocation3 + $0xe0] sm:$0xff] %v6250
      %6315 = vst [vmem:[#allocation3 + $0xe8] sm:$0xff] %v6251
      %6316 = vst [vmem:[#allocation3 + $0xf0] sm:$0xff] %v6252
      %6317 = vst [vmem:[#allocation3 + $0xf8] sm:$0xff] %v6253
      %6318 = vst [vmem:[#allocation3 + $0x100] sm:$0xff] %v6254
      %6319 = vst [vmem:[#allocation3 + $0x108] sm:$0xff] %v6255
      %6320 = vst [vmem:[#allocation3 + $0x110] sm:$0xff] %v6256
      %6321 = vst [vmem:[#allocation3 + $0x118] sm:$0xff] %v6257
      %6322 = vst [vmem:[#allocation3 + $0x120] sm:$0xff] %v6258
      %6323 = vst [vmem:[#allocation3 + $0x128] sm:$0xff] %v6259
      %6324 = vst [vmem:[#allocation3 + $0x130] sm:$0xff] %v6260
      %6325 = vst [vmem:[#allocation3 + $0x138] sm:$0xff] %v6261
      %6326 = vst [vmem:[#allocation3 + $0x140] sm:$0xff] %v6262
      %6327 = vst [vmem:[#allocation3 + $0x148] sm:$0xff] %v6263
      %6328 = vst [vmem:[#allocation3 + $0x150] sm:$0xff] %v6264
      %6329 = vst [vmem:[#allocation3 + $0x158] sm:$0xff] %v6265
      %6330 = vst [vmem:[#allocation3 + $0x160] sm:$0xff] %v6266
      %6331 = vst [vmem:[#allocation3 + $0x168] sm:$0xff] %v6267
      %6332 = vst [vmem:[#allocation3 + $0x170] sm:$0xff] %v6268
      %6333 = vst [vmem:[#allocation3 + $0x178] sm:$0xff] %v6269
      %6334 = vst [vmem:[#allocation3 + $0x180] sm:$0xff] %v6270
      %6335 = vst [vmem:[#allocation3 + $0x188] sm:$0xff] %v6271
      %6336 = vst [vmem:[#allocation3 + $0x190] sm:$0xff] %v6272
      %6337 = vst [vmem:[#allocation3 + $0x198] sm:$0xff] %v6273
      %6338 = vst [vmem:[#allocation3 + $0x1a0] sm:$0xff] %v6274
      %6339 = vst [vmem:[#allocation3 + $0x1a8] sm:$0xff] %v6275
      %6340 = vst [vmem:[#allocation3 + $0x1b0] sm:$0xff] %v6276
      %6341 = vst [vmem:[#allocation3 + $0x1b8] sm:$0xff] %v6277
      %6342 = vst [vmem:[#allocation3 + $0x1c0] sm:$0xff] %v6278
      %6343 = vst [vmem:[#allocation3 + $0x1c8] sm:$0xff] %v6279
      %6344 = vst [vmem:[#allocation3 + $0x1d0] sm:$0xff] %v6280
      %6345 = vst [vmem:[#allocation3 + $0x1d8] sm:$0xff] %v6281
      %6346 = vst [vmem:[#allocation3 + $0x1e0] sm:$0xff] %v6282
      %6347 = vst [vmem:[#allocation3 + $0x1e8] sm:$0xff] %v6283
      %6348 = vst [vmem:[#allocation3 + $0x1f0] sm:$0xff] %v6284
      %6349 = vst [vmem:[#allocation3 + $0x1f8] sm:$0xff] %v6285
      %v6350 = vld [vmem:[#allocation3] sm:$0xff]
      %v6351 = vld [vmem:[#allocation3 + $0x8] sm:$0xff]
      %v6352 = vld [vmem:[#allocation3 + $0x10] sm:$0xff]
      %v6353 = vld [vmem:[#allocation3 + $0x18] sm:$0xff]
      %v6354 = vld [vmem:[#allocation3 + $0x20] sm:$0xff]
      %v6355 = vld [vmem:[#allocation3 + $0x28] sm:$0xff]
      %v6356 = vld [vmem:[#allocation3 + $0x30] sm:$0xff]
      %v6357 = vld [vmem:[#allocation3 + $0x38] sm:$0xff]
      %v6358 = vld [vmem:[#allocation3 + $0x40] sm:$0xff]
      %v6359 = vld [vmem:[#allocation3 + $0x48] sm:$0xff]
      %v6360 = vld [vmem:[#allocation3 + $0x50] sm:$0xff]
      %v6361 = vld [vmem:[#allocation3 + $0x58] sm:$0xff]
      %v6362 = vld [vmem:[#allocation3 + $0x60] sm:$0xff]
      %v6363 = vld [vmem:[#allocation3 + $0x68] sm:$0xff]
      %v6364 = vld [vmem:[#allocation3 + $0x70] sm:$0xff]
      %v6365 = vld [vmem:[#allocation3 + $0x78] sm:$0xff]
      %v6366 = vld [vmem:[#allocation3 + $0x80] sm:$0xff]
      %v6367 = vld [vmem:[#allocation3 + $0x88] sm:$0xff]
      %v6368 = vld [vmem:[#allocation3 + $0x90] sm:$0xff]
      %v6369 = vld [vmem:[#allocation3 + $0x98] sm:$0xff]
      %v6370 = vld [vmem:[#allocation3 + $0xa0] sm:$0xff]
      %v6371 = vld [vmem:[#allocation3 + $0xa8] sm:$0xff]
      %v6372 = vld [vmem:[#allocation3 + $0xb0] sm:$0xff]
      %v6373 = vld [vmem:[#allocation3 + $0xb8] sm:$0xff]
      %v6374 = vld [vmem:[#allocation3 + $0xc0] sm:$0xff]
      %v6375 = vld [vmem:[#allocation3 + $0xc8] sm:$0xff]
      %v6376 = vld [vmem:[#allocation3 + $0xd0] sm:$0xff]
      %v6377 = vld [vmem:[#allocation3 + $0xd8] sm:$0xff]
      %v6378 = vld [vmem:[#allocation3 + $0xe0] sm:$0xff]
      %v6379 = vld [vmem:[#allocation3 + $0xe8] sm:$0xff]
      %v6380 = vld [vmem:[#allocation3 + $0xf0] sm:$0xff]
      %v6381 = vld [vmem:[#allocation3 + $0xf8] sm:$0xff]
      %v6382 = vld [vmem:[#allocation3 + $0x100] sm:$0xff]
      %v6383 = vld [vmem:[#allocation3 + $0x108] sm:$0xff]
      %v6384 = vld [vmem:[#allocation3 + $0x110] sm:$0xff]
      %v6385 = vld [vmem:[#allocation3 + $0x118] sm:$0xff]
      %v6386 = vld [vmem:[#allocation3 + $0x120] sm:$0xff]
      %v6387 = vld [vmem:[#allocation3 + $0x128] sm:$0xff]
      %v6388 = vld [vmem:[#allocation3 + $0x130] sm:$0xff]
      %v6389 = vld [vmem:[#allocation3 + $0x138] sm:$0xff]
      %v6390 = vld [vmem:[#allocation3 + $0x140] sm:$0xff]
      %v6391 = vld [vmem:[#allocation3 + $0x148] sm:$0xff]
      %v6392 = vld [vmem:[#allocation3 + $0x150] sm:$0xff]
      %v6393 = vld [vmem:[#allocation3 + $0x158] sm:$0xff]
      %v6394 = vld [vmem:[#allocation3 + $0x160] sm:$0xff]
      %v6395 = vld [vmem:[#allocation3 + $0x168] sm:$0xff]
      %v6396 = vld [vmem:[#allocation3 + $0x170] sm:$0xff]
      %v6397 = vld [vmem:[#allocation3 + $0x178] sm:$0xff]
      %v6398 = vld [vmem:[#allocation3 + $0x180] sm:$0xff]
      %v6399 = vld [vmem:[#allocation3 + $0x188] sm:$0xff]
      %v6400 = vld [vmem:[#allocation3 + $0x190] sm:$0xff]
      %v6401 = vld [vmem:[#allocation3 + $0x198] sm:$0xff]
      %v6402 = vld [vmem:[#allocation3 + $0x1a0] sm:$0xff]
      %v6403 = vld [vmem:[#allocation3 + $0x1a8] sm:$0xff]
      %v6404 = vld [vmem:[#allocation3 + $0x1b0] sm:$0xff]
      %v6405 = vld [vmem:[#allocation3 + $0x1b8] sm:$0xff]
      %v6406 = vld [vmem:[#allocation3 + $0x1c0] sm:$0xff]
      %v6407 = vld [vmem:[#allocation3 + $0x1c8] sm:$0xff]
      %v6408 = vld [vmem:[#allocation3 + $0x1d0] sm:$0xff]
      %v6409 = vld [vmem:[#allocation3 + $0x1d8] sm:$0xff]
      %v6410 = vld [vmem:[#allocation3 + $0x1e0] sm:$0xff]
      %v6411 = vld [vmem:[#allocation3 + $0x1e8] sm:$0xff]
      %v6412 = vld [vmem:[#allocation3 + $0x1f0] sm:$0xff]
      %v6413 = vld [vmem:[#allocation3 + $0x1f8] sm:$0xff]
      %v6414 = vmax.f32 %v6350, %v6351
      %v6415 = vmax.f32 %v6352, %v6353
      %v6416 = vmax.f32 %v6354, %v6355
      %v6417 = vmax.f32 %v6356, %v6357
      %v6418 = vmax.f32 %v6358, %v6359
      %v6419 = vmax.f32 %v6360, %v6361
      %v6420 = vmax.f32 %v6362, %v6363
      %v6421 = vmax.f32 %v6364, %v6365
      %v6422 = vmax.f32 %v6366, %v6367
      %v6423 = vmax.f32 %v6368, %v6369
      %v6424 = vmax.f32 %v6370, %v6371
      %v6425 = vmax.f32 %v6372, %v6373
      %v6426 = vmax.f32 %v6374, %v6375
      %v6427 = vmax.f32 %v6376, %v6377
      %v6428 = vmax.f32 %v6378, %v6379
      %v6429 = vmax.f32 %v6380, %v6381
      %v6430 = vmax.f32 %v6382, %v6383
      %v6431 = vmax.f32 %v6384, %v6385
      %v6432 = vmax.f32 %v6386, %v6387
      %v6433 = vmax.f32 %v6388, %v6389
      %v6434 = vmax.f32 %v6390, %v6391
      %v6435 = vmax.f32 %v6392, %v6393
      %v6436 = vmax.f32 %v6394, %v6395
      %v6437 = vmax.f32 %v6396, %v6397
      %v6438 = vmax.f32 %v6398, %v6399
      %v6439 = vmax.f32 %v6400, %v6401
      %v6440 = vmax.f32 %v6402, %v6403
      %v6441 = vmax.f32 %v6404, %v6405
      %v6442 = vmax.f32 %v6406, %v6407
      %v6443 = vmax.f32 %v6408, %v6409
      %v6444 = vmax.f32 %v6410, %v6411
      %v6445 = vmax.f32 %v6412, %v6413
      %v6446 = vpack.c.bf16 %v6414, %v6414
      %v6447 = vpack.c.bf16 %v6415, %v6415
      %v6448 = vpack.c.bf16 %v6416, %v6416
      %v6449 = vpack.c.bf16 %v6417, %v6417
      %v6450 = vpack.c.bf16 %v6418, %v6418
      %v6451 = vpack.c.bf16 %v6419, %v6419
      %v6452 = vpack.c.bf16 %v6420, %v6420
      %v6453 = vpack.c.bf16 %v6421, %v6421
      %v6454 = vpack.c.bf16 %v6422, %v6422
      %v6455 = vpack.c.bf16 %v6423, %v6423
      %v6456 = vpack.c.bf16 %v6424, %v6424
      %v6457 = vpack.c.bf16 %v6425, %v6425
      %v6458 = vpack.c.bf16 %v6426, %v6426
      %v6459 = vpack.c.bf16 %v6427, %v6427
      %v6460 = vpack.c.bf16 %v6428, %v6428
      %v6461 = vpack.c.bf16 %v6429, %v6429
      %v6462 = vpack.c.bf16 %v6430, %v6430
      %v6463 = vpack.c.bf16 %v6431, %v6431
      %v6464 = vpack.c.bf16 %v6432, %v6432
      %v6465 = vpack.c.bf16 %v6433, %v6433
      %v6466 = vpack.c.bf16 %v6434, %v6434
      %v6467 = vpack.c.bf16 %v6435, %v6435
      %v6468 = vpack.c.bf16 %v6436, %v6436
      %v6469 = vpack.c.bf16 %v6437, %v6437
      %v6470 = vpack.c.bf16 %v6438, %v6438
      %v6471 = vpack.c.bf16 %v6439, %v6439
      %v6472 = vpack.c.bf16 %v6440, %v6440
      %v6473 = vpack.c.bf16 %v6441, %v6441
      %v6474 = vpack.c.bf16 %v6442, %v6442
      %v6475 = vpack.c.bf16 %v6443, %v6443
      %v6476 = vpack.c.bf16 %v6444, %v6444
      %v6477 = vpack.c.bf16 %v6445, %v6445
      %6478 = vst [vmem:[%s224] sm:$0xf] %v6446
      %6479 = vst [vmem:[%s224 + $0x4] sm:$0xf] %v6447
      %6480 = vst [vmem:[%s224 + $0x8] sm:$0xf] %v6448
      %6481 = vst [vmem:[%s224 + $0xc] sm:$0xf] %v6449
      %6482 = vst [vmem:[%s224 + $0x10] sm:$0xf] %v6450
      %6483 = vst [vmem:[%s224 + $0x14] sm:$0xf] %v6451
      %6484 = vst [vmem:[%s224 + $0x18] sm:$0xf] %v6452
      %6485 = vst [vmem:[%s224 + $0x1c] sm:$0xf] %v6453
      %6486 = vst [vmem:[%s224 + $0x20] sm:$0xf] %v6454
      %6487 = vst [vmem:[%s224 + $0x24] sm:$0xf] %v6455
      %6488 = vst [vmem:[%s224 + $0x28] sm:$0xf] %v6456
      %6489 = vst [vmem:[%s224 + $0x2c] sm:$0xf] %v6457
      %6490 = vst [vmem:[%s224 + $0x30] sm:$0xf] %v6458
      %6491 = vst [vmem:[%s224 + $0x34] sm:$0xf] %v6459
      %6492 = vst [vmem:[%s224 + $0x38] sm:$0xf] %v6460
      %6493 = vst [vmem:[%s224 + $0x3c] sm:$0xf] %v6461
      %6494 = vst [vmem:[%s224 + $0x40] sm:$0xf] %v6462
      %6495 = vst [vmem:[%s224 + $0x44] sm:$0xf] %v6463
      %6496 = vst [vmem:[%s224 + $0x48] sm:$0xf] %v6464
      %6497 = vst [vmem:[%s224 + $0x4c] sm:$0xf] %v6465
      %6498 = vst [vmem:[%s224 + $0x50] sm:$0xf] %v6466
      %6499 = vst [vmem:[%s224 + $0x54] sm:$0xf] %v6467
      %6500 = vst [vmem:[%s224 + $0x58] sm:$0xf] %v6468
      %6501 = vst [vmem:[%s224 + $0x5c] sm:$0xf] %v6469
      %6502 = vst [vmem:[%s224 + $0x60] sm:$0xf] %v6470
      %6503 = vst [vmem:[%s224 + $0x64] sm:$0xf] %v6471
      %6504 = vst [vmem:[%s224 + $0x68] sm:$0xf] %v6472
      %6505 = vst [vmem:[%s224 + $0x6c] sm:$0xf] %v6473
      %6506 = vst [vmem:[%s224 + $0x70] sm:$0xf] %v6474
      %6507 = vst [vmem:[%s224 + $0x74] sm:$0xf] %v6475
      %6508 = vst [vmem:[%s224 + $0x78] sm:$0xf] %v6476
      %6509 = vst [vmem:[%s224 + $0x7c] sm:$0xf] %v6477
      %p6510 = scmp.lt.s32.totalorder %s16, 1
      %s6511 = scalar_select %p6510, %s16, 1
      %s6512 = smul.addr %s6511, 32
      %s6513 = smul.addr %s6512, 4
      %s6514 = scalar_lea.vmem %s5, %s6513
      // Predicated region
      $region41: #{_group_forward_jit.1} parent=39 // pred_check
        %p6515 = pneg %p144
      $region42: #{_group_forward_jit.1} parent=39 // pred_check_branch
        %6517 = sbr.rel (%p6515) target = $region44
      $region43: #{_group_forward_jit.1} parent=39 // pred_region
        _
      $region44: #{_group_forward_jit.1} parent=39 // pred_fallthru
        _
    $region40: #{_group_forward_jit.1} parent=5 // pred_fallthru
      _
    %p6518 = scmp.le.s32.totalorder 2, %s11
    // Predicated region
    $region45: #{_group_forward_jit.1} parent=5 // pred_check
      %p6519 = pneg %p6518
    $region46: #{_group_forward_jit.1} parent=5 // pred_check_branch
      %6521 = sbr.rel (%p6519) target = $region48
    $region47: #{_group_forward_jit.1} parent=5 // pred_region
      %s6522 = ssub.s32 %s11, 2
      // Predicated region
      $region49: #{_group_forward_jit.1} parent=47 // pred_check
        %p6523 = pneg %p150
      $region50: #{_group_forward_jit.1} parent=47 // pred_check_branch
        %6525 = sbr.rel (%p6523) target = $region52
      $region51: #{_group_forward_jit.1} parent=47 // pred_region
        %p6526 = scmp.lt.s32.totalorder %s17, 1
        %s6527 = scalar_select %p6526, %s17, 1
        %s6528 = smul.addr %s6527, 32
        %s6529 = smul.addr %s6528, 4
        %s6530 = scalar_lea.vmem %s5, %s6529
      $region52: #{_group_forward_jit.1} parent=47 // pred_fallthru
        _
    $region48: #{_group_forward_jit.1} parent=5 // pred_fallthru
      _
  $region6: #{_group_forward_jit.1} parent=0 // loop_footer
    %s15 = sadd.s32 1, %s11
  $region7: #{_group_forward_jit.1} parent=0 // loop_footer_branch
    %10 = sbr.rel target = $region3
  $region8: #{_group_forward_jit.1} parent=0 // loop_exit
    _

</llo_original>
